<compile_context>
chip_gen: v7x
topology: tpu7x:2x2x1
jax: 0.10.0
libtpu: 0.0.40
codegen_flags: <defaults>
</compile_context>

<pallas_src>
import functools
import math

import jax
import jax.numpy as jnp
from jax.experimental import pallas as pl
from jax.experimental.pallas import tpu as pltpu

# ------------------------- small synthetic configuration -------------------------
B = 2            # batch
S = 8            # sequence length
V = 64           # vocab size (synthetic)
E = 32           # BERT hidden size (stand-in for 768)
BERT_LAYERS = 2  # stand-in for 12 pretrained layers
BERT_HEADS = 2
FFN = 64
MAX_POS = 16
H = 24           # hiddenDim (stand-in for 300; divisible by 2 and by 3 heads)
HD = H // 2      # per-direction LSTM hidden
LSTM_LAYERS = 2  # stand-in for 100
MHA_HEADS = 3
L = 19           # numLabels (kept from the reference module)


# ================================ Pallas kernels =================================

def _ln_kernel(x_ref, g_ref, b_ref, o_ref, *, eps):
    x = x_ref[...]
    mu = jnp.mean(x, axis=-1, keepdims=True)
    var = jnp.mean(jnp.square(x - mu), axis=-1, keepdims=True)
    o_ref[...] = (x - mu) * jax.lax.rsqrt(var + eps) * g_ref[...] + b_ref[...]


def layernorm(x, g, b, eps=1e-12):
    """Plain LayerNorm over the last dim. x: (M, N)."""
    M, N = x.shape
    return pl.pallas_call(
        functools.partial(_ln_kernel, eps=eps),
        out_shape=jax.ShapeDtypeStruct((M, N), jnp.float32),
        grid=(1,),
        in_specs=[pl.BlockSpec((M, N), lambda i: (0, 0)),
                  pl.BlockSpec((1, N), lambda i: (0, 0)),
                  pl.BlockSpec((1, N), lambda i: (0, 0))],
        out_specs=pl.BlockSpec((M, N), lambda i: (0, 0)),
    )(x, g.reshape(1, N), b.reshape(1, N))


def _bert_layer_kernel(x_ref, bias_ref, wqkv_ref, bqkv_ref, wo_ref, bo_ref,
                       ln1g_ref, ln1b_ref, wff1_ref, bff1_ref, wff2_ref, bff2_ref,
                       ln2g_ref, ln2b_ref, o_ref, *, nh, eps):
    """Entire BERT encoder layer fused into one kernel."""
    B_, S_, E_ = x_ref.shape
    hd = E_ // nh
    scale = 1.0 / math.sqrt(hd)

    xf = x_ref[...].reshape(B_ * S_, E_)                       # (B*S, E)

    # fused QKV projection (single matmul with concatenated weight)
    qkv = jnp.dot(xf, wqkv_ref[...], preferred_element_type=jnp.float32) + bqkv_ref[...]
    q = (qkv[:, :E_] * scale).reshape(B_, S_, E_)              # scale folded into q
    k = qkv[:, E_:2 * E_].reshape(B_, S_, E_)
    v = qkv[:, 2 * E_:].reshape(B_, S_, E_)
    bias = bias_ref[...]                                       # (B, 1, S) additive mask

    # per-head attention; out-projection accumulated per head (avoids head-merge concat)
    acc = jnp.zeros((B_ * S_, E_), jnp.float32)
    for h in range(nh):
        sl = slice(h * hd, (h + 1) * hd)
        s = jnp.einsum("bqd,bkd->bqk", q[:, :, sl], k[:, :, sl],
                       preferred_element_type=jnp.float32) + bias
        s = s - jnp.max(s, axis=-1, keepdims=True)
        p = jnp.exp(s)
        p = p * pl.reciprocal(jnp.sum(p, axis=-1, keepdims=True), approx=True)
        ctx = jnp.einsum("bqk,bkd->bqd", p, v[:, :, sl],
                         preferred_element_type=jnp.float32)
        acc = acc + jnp.dot(ctx.reshape(B_ * S_, hd), wo_ref[sl, :],
                            preferred_element_type=jnp.float32)
    proj = acc + bo_ref[...]

    # residual + LayerNorm 1
    y = proj + xf
    mu = jnp.mean(y, axis=-1, keepdims=True)
    var = jnp.mean(jnp.square(y - mu), axis=-1, keepdims=True)
    x1 = (y - mu) * jax.lax.rsqrt(var + eps) * ln1g_ref[...] + ln1b_ref[...]

    # FFN
    hdn = jnp.dot(x1, wff1_ref[...], preferred_element_type=jnp.float32) + bff1_ref[...]
    # TODO(synk): HuggingFace BERT uses exact erf GELU; tanh approximation kept here.
    hdn = jax.nn.gelu(hdn, approximate=True)
    f2 = jnp.dot(hdn, wff2_ref[...], preferred_element_type=jnp.float32) + bff2_ref[...]

    # residual + LayerNorm 2
    y2 = f2 + x1
    mu2 = jnp.mean(y2, axis=-1, keepdims=True)
    var2 = jnp.mean(jnp.square(y2 - mu2), axis=-1, keepdims=True)
    out = (y2 - mu2) * jax.lax.rsqrt(var2 + eps) * ln2g_ref[...] + ln2b_ref[...]

    o_ref[...] = out.reshape(B_, S_, E_)


def bert_layer(x, bias, wqkv, bqkv, wo, bo, ln1g, ln1b, wff1, bff1, wff2, bff2,
               ln2g, ln2b):
    B_, S_, E_ = x.shape
    F_ = wff1.shape[1]

    def spec(shape):
        return pl.BlockSpec(shape, lambda i, _n=len(shape): (0,) * _n)

    return pl.pallas_call(
        functools.partial(_bert_layer_kernel, nh=BERT_HEADS, eps=1e-12),
        out_shape=jax.ShapeDtypeStruct((B_, S_, E_), jnp.float32),
        grid=(1,),
        in_specs=[spec((B_, S_, E_)), spec((B_, 1, S_)),
                  spec((E_, 3 * E_)), spec((1, 3 * E_)),
                  spec((E_, E_)), spec((1, E_)),
                  spec((1, E_)), spec((1, E_)),
                  spec((E_, F_)), spec((1, F_)),
                  spec((F_, E_)), spec((1, E_)),
                  spec((1, E_)), spec((1, E_))],
        out_specs=spec((B_, S_, E_)),
    )(x, bias, wqkv, bqkv.reshape(1, -1), wo, bo.reshape(1, -1),
      ln1g.reshape(1, -1), ln1b.reshape(1, -1), wff1, bff1.reshape(1, -1),
      wff2, bff2.reshape(1, -1), ln2g.reshape(1, -1), ln2b.reshape(1, -1))


def _bilstm_layer_kernel(x_ref, wih_ref, whh_ref, b_ref, h_out_ref, xg_scr,
                         *, seq_len, batch):
    """One BiLSTM layer, one direction per grid step (grid axis = direction).

    x_ref:   (S*B, Din)   time-major, already reversed for the backward direction
    wih_ref: (4, Din, hd) per-gate input weights (i, f, g, o)
    whh_ref: (4, hd, hd)  per-gate recurrent weights
    b_ref:   (4, 1, hd)   per-gate bias (b_ih + b_hh)
    h_out:   (S*B, hd)
    """
    SB = seq_len * batch
    hd = h_out_ref.shape[-1]
    x2 = x_ref[...]

    # input-gate projections for all time steps, one matmul per gate; gate index kept
    # on a leading axis so each gate slice stays lane-aligned (no 12-lane offsets).
    for g in range(4):
        xg_scr[pl.ds(g * SB, SB)] = (
            jnp.dot(x2, wih_ref[g], preferred_element_type=jnp.float32) + b_ref[g])

    w_i = whh_ref[0]
    w_f = whh_ref[1]
    w_g = whh_ref[2]
    w_o = whh_ref[3]

    h = jnp.zeros((batch, hd), jnp.float32)
    c = jnp.zeros((batch, hd), jnp.float32)
    # TODO(synk): at real sequence lengths switch this static unroll to
    # lax.fori_loop(..., unroll=k) to bound code size; S=8 here so a full unroll is fine.
    for t in range(seq_len):
        base = t * batch
        gi = jax.nn.sigmoid(xg_scr[pl.ds(0 * SB + base, batch)] +
                            jnp.dot(h, w_i, preferred_element_type=jnp.float32))
        gf = jax.nn.sigmoid(xg_scr[pl.ds(1 * SB + base, batch)] +
                            jnp.dot(h, w_f, preferred_element_type=jnp.float32))
        gg = jnp.tanh(xg_scr[pl.ds(2 * SB + base, batch)] +
                      jnp.dot(h, w_g, preferred_element_type=jnp.float32))
        go = jax.nn.sigmoid(xg_scr[pl.ds(3 * SB + base, batch)] +
                            jnp.dot(h, w_o, preferred_element_type=jnp.float32))
        c = gf * c + gi * gg
        h = go * jnp.tanh(c)
        h_out_ref[pl.ds(base, batch)] = h


def bilstm_layer(x_tm, w_ih_f, w_hh_f, b_f, w_ih_b, w_hh_b, b_b):
    """x_tm: (S, B, Din) time-major -> (S, B, 2*hd). Both directions in ONE kernel."""
    S_, B_, Din = x_tm.shape
    hd = w_hh_f.shape[1]
    SB = S_ * B_

    # direction 0: forward time order; direction 1: reversed time order
    x_stack = jnp.stack([x_tm, x_tm[::-1]], axis=0).reshape(2, SB, Din)

    def pack_ih(w):  # (4*hd, Din) -> (4, Din, hd), PyTorch gate order i,f,g,o
        return jnp.transpose(w.reshape(4, hd, Din), (0, 2, 1))

    def pack_hh(w):  # (4*hd, hd) -> (4, hd, hd)
        return jnp.transpose(w.reshape(4, hd, hd), (0, 2, 1))

    wih = jnp.stack([pack_ih(w_ih_f), pack_ih(w_ih_b)], axis=0)         # (2,4,Din,hd)
    whh = jnp.stack([pack_hh(w_hh_f), pack_hh(w_hh_b)], axis=0)         # (2,4,hd,hd)
    bb = jnp.stack([b_f.reshape(4, 1, hd), b_b.reshape(4, 1, hd)], 0)   # (2,4,1,hd)

    out = pl.pallas_call(
        functools.partial(_bilstm_layer_kernel, seq_len=S_, batch=B_),
        out_shape=jax.ShapeDtypeStruct((2, SB, hd), jnp.float32),
        grid=(2,),
        in_specs=[pl.BlockSpec((None, SB, Din), lambda d: (d, 0, 0)),
                  pl.BlockSpec((None, 4, Din, hd), lambda d: (d, 0, 0, 0)),
                  pl.BlockSpec((None, 4, hd, hd), lambda d: (d, 0, 0, 0)),
                  pl.BlockSpec((None, 4, 1, hd), lambda d: (d, 0, 0, 0))],
        out_specs=pl.BlockSpec((None, SB, hd), lambda d: (d, 0, 0)),
        scratch_shapes=[pltpu.VMEM((4 * SB, hd), jnp.float32)],
        # the two directions are independent -> on v7x they run on the two TensorCores
        compiler_params=pltpu.CompilerParams(dimension_semantics=("parallel",)),
    )(x_stack, wih, whh, bb)

    out = out.reshape(2, S_, B_, hd)
    h_f = out[0]
    h_b = out[1][::-1]                       # un-reverse the backward direction
    return jnp.concatenate([h_f, h_b], axis=-1)


def _mha_fc_kernel(x_ref, win_ref, bin_ref, wout_ref, bout_ref, wfc_ref, bfc_ref,
                   o_ref, *, nh):
    """torch.nn.MultiheadAttention (batch_first, eval) + fc1 emissions, fused."""
    B_, S_, H_ = x_ref.shape
    L_ = o_ref.shape[2]
    hd = H_ // nh
    scale = 1.0 / math.sqrt(hd)

    xf = x_ref[...].reshape(B_ * S_, H_)
    qkv = jnp.dot(xf, win_ref[...], preferred_element_type=jnp.float32) + bin_ref[...]
    q = (qkv[:, :H_] * scale).reshape(B_, S_, H_)
    k = qkv[:, H_:2 * H_].reshape(B_, S_, H_)
    v = qkv[:, 2 * H_:].reshape(B_, S_, H_)

    acc = jnp.zeros((B_ * S_, H_), jnp.float32)
    for h in range(nh):
        sl = slice(h * hd, (h + 1) * hd)
        s = jnp.einsum("bqd,bkd->bqk", q[:, :, sl], k[:, :, sl],
                       preferred_element_type=jnp.float32)
        s = s - jnp.max(s, axis=-1, keepdims=True)
        p = jnp.exp(s)
        p = p * pl.reciprocal(jnp.sum(p, axis=-1, keepdims=True), approx=True)
        ctx = jnp.einsum("bqk,bkd->bqd", p, v[:, :, sl],
                         preferred_element_type=jnp.float32)
        acc = acc + jnp.dot(ctx.reshape(B_ * S_, hd), wout_ref[sl, :],
                            preferred_element_type=jnp.float32)
    attn = acc + bout_ref[...]

    em = jnp.dot(attn, wfc_ref[...], preferred_element_type=jnp.float32) + bfc_ref[...]
    o_ref[...] = em.reshape(B_, S_, L_)


def mha_fc_forward(p, x):
    B_, S_, H_ = x.shape

    def spec(shape):
        return pl.BlockSpec(shape, lambda i, _n=len(shape): (0,) * _n)

    return pl.pallas_call(
        functools.partial(_mha_fc_kernel, nh=MHA_HEADS),
        out_shape=jax.ShapeDtypeStruct((B_, S_, L), jnp.float32),
        grid=(1,),
        in_specs=[spec((B_, S_, H_)),
                  spec((H_, 3 * H_)), spec((1, 3 * H_)),
                  spec((H_, H_)), spec((1, H_)),
                  spec((H_, L)), spec((1, L))],
        out_specs=spec((B_, S_, L)),
    )(x, p["mha_in_w"].T, p["mha_in_b"].reshape(1, -1),
      p["mha_out_w"].T, p["mha_out_b"].reshape(1, -1),
      p["fc1_w"], p["fc1_b"].reshape(1, -1))


# ================================ model composition ==============================

def bert_forward(p, ids, attn_mask):
    B_, S_ = ids.shape
    x = p["word_emb"][ids] + p["pos_emb"][None, :S_, :] + p["type_emb"][0][None, None, :]
    x = layernorm(x.reshape(B_ * S_, E), p["emb_ln_g"], p["emb_ln_b"]).reshape(B_, S_, E)

    bias = ((1.0 - attn_mask) * -1e9)[:, None, :]              # (B, 1, S) additive bias

    for l in range(BERT_LAYERS):
        x = bert_layer(x, bias,
                       p[f"qkv_w_{l}"], p[f"qkv_b_{l}"],
                       p[f"ao_w_{l}"], p[f"ao_b_{l}"],
                       p[f"ln1_g_{l}"], p[f"ln1_b_{l}"],
                       p[f"ff1_w_{l}"], p[f"ff1_b_{l}"],
                       p[f"ff2_w_{l}"], p[f"ff2_b_{l}"],
                       p[f"ln2_g_{l}"], p[f"ln2_b_{l}"])
    return x


def bilstm_forward(p, x):
    """x: (B, S, E) -> (B, S, H) via stacked bidirectional LSTM (eval-mode dropout)."""
    inp = jnp.transpose(x, (1, 0, 2))  # time-major (S, B, E)
    for l in range(LSTM_LAYERS):
        inp = bilstm_layer(
            inp,
            p[f"lstm_w_ih_l{l}"], p[f"lstm_w_hh_l{l}"],
            p[f"lstm_b_ih_l{l}"] + p[f"lstm_b_hh_l{l}"],
            p[f"lstm_w_ih_l{l}_rev"], p[f"lstm_w_hh_l{l}_rev"],
            p[f"lstm_b_ih_l{l}_rev"] + p[f"lstm_b_hh_l{l}_rev"])
        # inter-layer dropout is train-time only -> identity here
    return jnp.transpose(inp, (1, 0, 2))  # (B, S, H)


def crf_decode(emissions, mask, start_t, end_t, trans):
    """torchcrf-style Viterbi decode.  emissions: (B, S, L), mask: (B, S) bool.
    Returns a (B, S) int32 tag array (valid up to each sequence length)."""
    # TODO(synk): sequential Viterbi DP + data-dependent backtracking stays in plain
    # JAX (lax.scan); all matmul/attention/LSTM hot paths above are Pallas kernels.
    em = jnp.transpose(emissions, (1, 0, 2))   # (S, B, L)
    m = jnp.transpose(mask, (1, 0))            # (S, B)
    score0 = start_t[None, :] + em[0]          # (B, L)

    def fwd(score, inp):
        e_t, m_t = inp
        next_score = score[:, :, None] + trans[None, :, :] + e_t[:, None, :]
        best = jnp.max(next_score, axis=1)
        idx = jnp.argmax(next_score, axis=1).astype(jnp.int32)   # (B, L)
        new_score = jnp.where(m_t[:, None], best, score)
        return new_score, idx

    final_score, history = jax.lax.scan(fwd, score0, (em[1:], m[1:]))
    final_score = final_score + end_t[None, :]
    last_tag = jnp.argmax(final_score, axis=-1).astype(jnp.int32)  # (B,)

    def bwd(tag, inp):
        hist_t, m_t1 = inp
        prev = jnp.take_along_axis(hist_t, tag[:, None], axis=1)[:, 0]
        new_tag = jnp.where(m_t1, prev, tag)
        return new_tag, new_tag

    _, tags_rev = jax.lax.scan(bwd, last_tag, (history[::-1], m[1:][::-1]))
    tags = jnp.concatenate([tags_rev[::-1], last_tag[None, :]], axis=0)  # (S, B)
    return jnp.transpose(tags, (1, 0))


def forward(params, input_tensor, attention_mask):
    """Mirrors InvoiceBBMC.forward with labels=None -> returns (-1, prediction)."""
    x = bert_forward(params, input_tensor, attention_mask)      # (B, S, E)
    x = bilstm_forward(params, x)                               # (B, S, H)
    # self.dropout is undefined in the reference __init__; eval-mode dropout = identity
    emissions = mha_fc_forward(params, x)                       # (B, S, L)
    pred = crf_decode(emissions, attention_mask > 0.5,
                      params["crf_start"], params["crf_end"], params["crf_trans"])
    return -1, pred


# ================================= parameters ===================================

def init_params(key):
    keys = iter(jax.random.split(key, 256))

    def nrm(shape, scale=0.02):
        return scale * jax.random.normal(next(keys), shape, dtype=jnp.float32)

    p = {}
    p["word_emb"] = nrm((V, E))
    p["pos_emb"] = nrm((MAX_POS, E))
    p["type_emb"] = nrm((2, E))
    p["emb_ln_g"] = jnp.ones((E,), jnp.float32)
    p["emb_ln_b"] = jnp.zeros((E,), jnp.float32)
    for l in range(BERT_LAYERS):
        # q/k/v stored pre-concatenated -> single matmul per layer
        p[f"qkv_w_{l}"] = nrm((E, 3 * E))
        p[f"qkv_b_{l}"] = jnp.zeros((3 * E,), jnp.float32)
        p[f"ao_w_{l}"] = nrm((E, E)); p[f"ao_b_{l}"] = jnp.zeros((E,), jnp.float32)
        p[f"ff1_w_{l}"] = nrm((E, FFN)); p[f"ff1_b_{l}"] = jnp.zeros((FFN,), jnp.float32)
        p[f"ff2_w_{l}"] = nrm((FFN, E)); p[f"ff2_b_{l}"] = jnp.zeros((E,), jnp.float32)
        p[f"ln1_g_{l}"] = jnp.ones((E,), jnp.float32)
        p[f"ln1_b_{l}"] = jnp.zeros((E,), jnp.float32)
        p[f"ln2_g_{l}"] = jnp.ones((E,), jnp.float32)
        p[f"ln2_b_{l}"] = jnp.zeros((E,), jnp.float32)
    for l in range(LSTM_LAYERS):
        din = E if l == 0 else 2 * HD
        for sfx in ("", "_rev"):
            p[f"lstm_w_ih_l{l}{sfx}"] = nrm((4 * HD, din), 0.1)
            p[f"lstm_w_hh_l{l}{sfx}"] = nrm((4 * HD, HD), 0.1)
            p[f"lstm_b_ih_l{l}{sfx}"] = jnp.zeros((4 * HD,), jnp.float32)
            p[f"lstm_b_hh_l{l}{sfx}"] = jnp.zeros((4 * HD,), jnp.float32)
    p["mha_in_w"] = nrm((3 * H, H), 0.1)
    p["mha_in_b"] = jnp.zeros((3 * H,), jnp.float32)
    p["mha_out_w"] = nrm((H, H), 0.1)
    p["mha_out_b"] = jnp.zeros((H,), jnp.float32)
    p["fc1_w"] = nrm((H, L), 0.1)
    p["fc1_b"] = jnp.zeros((L,), jnp.float32)
    p["crf_start"] = nrm((L,), 0.1)
    p["crf_end"] = nrm((L,), 0.1)
    p["crf_trans"] = nrm((L, L), 0.1)
    return p


# ==================================== main =======================================

if __name__ == "__main__":
    key = jax.random.PRNGKey(0)
    pkey, ikey = jax.random.split(key)
    params = init_params(pkey)

    input_ids = jax.random.randint(ikey, (B, S), 0, V, dtype=jnp.int32)
    attention_mask = jnp.ones((B, S), dtype=jnp.float32)   # as built in trainModel()

    fwd = jax.jit(forward)
    loss, prediction = fwd(params, input_ids, attention_mask)
    jax.block_until_ready(prediction)
    assert prediction.shape == (B, S)
    print("KERNEL_OK")
</pallas_src>

<mosaic_0001>
module attributes {stable_mosaic.version = 11 : i64} {
  func.func @_ln_kernel(%arg0: i32, %arg1: memref<16x32xf32, #tpu.memory_space<vmem>>, %arg2: memref<1x32xf32, #tpu.memory_space<vmem>>, %arg3: memref<1x32xf32, #tpu.memory_space<vmem>>, %arg4: memref<16x32xf32, #tpu.memory_space<vmem>>) attributes {dimension_semantics = [#tpu.dimension_semantics<arbitrary>], iteration_bounds = array<i64: 1>, scalar_prefetch = 0 : i64, scratch_operands = 0 : i64, tpu.core_type = #tpu.core_type<tc>, window_params = [{pipeline_mode = #tpu.pipeline_mode<synchronous>, transform_indices = @transform_0, window_bounds = array<i64: 16, 32>}, {pipeline_mode = #tpu.pipeline_mode<synchronous>, transform_indices = @transform_1, window_bounds = array<i64: 1, 32>}, {pipeline_mode = #tpu.pipeline_mode<synchronous>, transform_indices = @transform_2, window_bounds = array<i64: 1, 32>}, {pipeline_mode = #tpu.pipeline_mode<synchronous>, transform_indices = @transform_3, window_bounds = array<i64: 16, 32>}]} {
    %c0 = arith.constant 0 : index
    %c0_0 = arith.constant 0 : index
    %0 = vector.load %arg1[%c0, %c0_0] : memref<16x32xf32, #tpu.memory_space<vmem>>, vector<16x32xf32>
    %cst = arith.constant dense<0.000000e+00> : vector<16xf32>
    %1 = vector.multi_reduction <add>, %0, %cst [1] : vector<16x32xf32> to vector<16xf32>
    %2 = vector.shape_cast %1 : vector<16xf32> to vector<16x1xf32>
    %cst_1 = arith.constant 3.200000e+01 : f32
    %3 = vector.broadcast %cst_1 : f32 to vector<16x1xf32>
    %4 = arith.divf %2, %3 : vector<16x1xf32>
    %5 = vector.broadcast %4 : vector<16x1xf32> to vector<16x32xf32>
    %6 = arith.subf %0, %5 : vector<16x32xf32>
    %7 = arith.mulf %6, %6 : vector<16x32xf32>
    %cst_2 = arith.constant dense<0.000000e+00> : vector<16xf32>
    %8 = vector.multi_reduction <add>, %7, %cst_2 [1] : vector<16x32xf32> to vector<16xf32>
    %9 = vector.shape_cast %8 : vector<16xf32> to vector<16x1xf32>
    %cst_3 = arith.constant 3.200000e+01 : f32
    %10 = vector.broadcast %cst_3 : f32 to vector<16x1xf32>
    %11 = arith.divf %9, %10 : vector<16x1xf32>
    %12 = vector.broadcast %4 : vector<16x1xf32> to vector<16x32xf32>
    %13 = arith.subf %0, %12 : vector<16x32xf32>
    %cst_4 = arith.constant 9.99999996E-13 : f32
    %14 = vector.broadcast %cst_4 : f32 to vector<16x1xf32>
    %15 = arith.addf %11, %14 : vector<16x1xf32>
    %16 = math.rsqrt %15 : vector<16x1xf32>
    %17 = vector.broadcast %16 : vector<16x1xf32> to vector<16x32xf32>
    %18 = arith.mulf %13, %17 : vector<16x32xf32>
    %c0_5 = arith.constant 0 : index
    %c0_6 = arith.constant 0 : index
    %19 = vector.load %arg2[%c0_5, %c0_6] : memref<1x32xf32, #tpu.memory_space<vmem>>, vector<1x32xf32>
    %20 = vector.broadcast %19 : vector<1x32xf32> to vector<16x32xf32>
    %21 = arith.mulf %18, %20 : vector<16x32xf32>
    %c0_7 = arith.constant 0 : index
    %c0_8 = arith.constant 0 : index
    %22 = vector.load %arg3[%c0_7, %c0_8] : memref<1x32xf32, #tpu.memory_space<vmem>>, vector<1x32xf32>
    %23 = vector.broadcast %22 : vector<1x32xf32> to vector<16x32xf32>
    %24 = arith.addf %21, %23 : vector<16x32xf32>
    %c0_9 = arith.constant 0 : index
    %c0_10 = arith.constant 0 : index
    %25 = vector.load %arg4[%c0_9, %c0_10] : memref<16x32xf32, #tpu.memory_space<vmem>>, vector<16x32xf32>
    tpu.vector_store %arg4[%c0_9, %c0_10], %24 {strides = array<i32>} : memref<16x32xf32, #tpu.memory_space<vmem>>, vector<16x32xf32>,
    return
  }
  func.func @transform_0(%arg0: i32) -> (i32, i32) {
    %c0_i32 = arith.constant 0 : i32
    %c0_i32_0 = arith.constant 0 : i32
    %c0_i32_1 = arith.constant 0 : i32
    return %c0_i32, %c0_i32_0 : i32, i32
  }
  func.func @transform_1(%arg0: i32) -> (i32, i32) {
    %c0_i32 = arith.constant 0 : i32
    %c0_i32_0 = arith.constant 0 : i32
    %c0_i32_1 = arith.constant 0 : i32
    return %c0_i32, %c0_i32_0 : i32, i32
  }
  func.func @transform_2(%arg0: i32) -> (i32, i32) {
    %c0_i32 = arith.constant 0 : i32
    %c0_i32_0 = arith.constant 0 : i32
    %c0_i32_1 = arith.constant 0 : i32
    return %c0_i32, %c0_i32_0 : i32, i32
  }
  func.func @transform_3(%arg0: i32) -> (i32, i32) {
    %c0_i32 = arith.constant 0 : i32
    %c0_i32_0 = arith.constant 0 : i32
    %c0_i32_1 = arith.constant 0 : i32
    return %c0_i32, %c0_i32_0 : i32, i32
  }
}

module attributes {stable_mosaic.version = 11 : i64} {
  func.func @_bert_layer_kernel(%arg0: i32, %arg1: memref<2x8x32xf32, #tpu.memory_space<vmem>>, %arg2: memref<2x1x8xf32, #tpu.memory_space<vmem>>, %arg3: memref<32x96xf32, #tpu.memory_space<vmem>>, %arg4: memref<1x96xf32, #tpu.memory_space<vmem>>, %arg5: memref<32x32xf32, #tpu.memory_space<vmem>>, %arg6: memref<1x32xf32, #tpu.memory_space<vmem>>, %arg7: memref<1x32xf32, #tpu.memory_space<vmem>>, %arg8: memref<1x32xf32, #tpu.memory_space<vmem>>, %arg9: memref<32x64xf32, #tpu.memory_space<vmem>>, %arg10: memref<1x64xf32, #tpu.memory_space<vmem>>, %arg11: memref<64x32xf32, #tpu.memory_space<vmem>>, %arg12: memref<1x32xf32, #tpu.memory_space<vmem>>, %arg13: memref<1x32xf32, #tpu.memory_space<vmem>>, %arg14: memref<1x32xf32, #tpu.memory_space<vmem>>, %arg15: memref<2x8x32xf32, #tpu.memory_space<vmem>>) attributes {dimension_semantics = [#tpu.dimension_semantics<arbitrary>], iteration_bounds = array<i64: 1>, scalar_prefetch = 0 : i64, scratch_operands = 0 : i64, tpu.core_type = #tpu.core_type<tc>, window_params = [{pipeline_mode = #tpu.pipeline_mode<synchronous>, transform_indices = @transform_0, window_bounds = array<i64: 2, 8, 32>}, {pipeline_mode = #tpu.pipeline_mode<synchronous>, transform_indices = @transform_1, window_bounds = array<i64: 2, 1, 8>}, {pipeline_mode = #tpu.pipeline_mode<synchronous>, transform_indices = @transform_2, window_bounds = array<i64: 32, 96>}, {pipeline_mode = #tpu.pipeline_mode<synchronous>, transform_indices = @transform_3, window_bounds = array<i64: 1, 96>}, {pipeline_mode = #tpu.pipeline_mode<synchronous>, transform_indices = @transform_4, window_bounds = array<i64: 32, 32>}, {pipeline_mode = #tpu.pipeline_mode<synchronous>, transform_indices = @transform_5, window_bounds = array<i64: 1, 32>}, {pipeline_mode = #tpu.pipeline_mode<synchronous>, transform_indices = @transform_6, window_bounds = array<i64: 1, 32>}, {pipeline_mode = #tpu.pipeline_mode<synchronous>, transform_indices = @transform_7, window_bounds = array<i64: 1, 32>}, {pipeline_mode = #tpu.pipeline_mode<synchronous>, transform_indices = @transform_8, window_bounds = array<i64: 32, 64>}, {pipeline_mode = #tpu.pipeline_mode<synchronous>, transform_indices = @transform_9, window_bounds = array<i64: 1, 64>}, {pipeline_mode = #tpu.pipeline_mode<synchronous>, transform_indices = @transform_10, window_bounds = array<i64: 64, 32>}, {pipeline_mode = #tpu.pipeline_mode<synchronous>, transform_indices = @transform_11, window_bounds = array<i64: 1, 32>}, {pipeline_mode = #tpu.pipeline_mode<synchronous>, transform_indices = @transform_12, window_bounds = array<i64: 1, 32>}, {pipeline_mode = #tpu.pipeline_mode<synchronous>, transform_indices = @transform_13, window_bounds = array<i64: 1, 32>}, {pipeline_mode = #tpu.pipeline_mode<synchronous>, transform_indices = @transform_14, window_bounds = array<i64: 2, 8, 32>}]} {
    %c0 = arith.constant 0 : index
    %c0_0 = arith.constant 0 : index
    %c0_1 = arith.constant 0 : index
    %0 = vector.load %arg1[%c0, %c0_0, %c0_1] : memref<2x8x32xf32, #tpu.memory_space<vmem>>, vector<2x8x32xf32>
    %1 = vector.shape_cast %0 : vector<2x8x32xf32> to vector<16x32xf32>
    %c0_2 = arith.constant 0 : index
    %c0_3 = arith.constant 0 : index
    %2 = vector.load %arg3[%c0_2, %c0_3] : memref<32x96xf32, #tpu.memory_space<vmem>>, vector<32x96xf32>
    %cst = arith.constant dense<0.000000e+00> : vector<16x96xf32>
    %3 = tpu.matmul %1, %2, %cst {dimension_numbers = #tpu.dot_dimension_numbers<[1], [0], [0], [1], [0, 0, 1, 1], [], []>} : vector<16x32xf32>, vector<32x96xf32>, vector<16x96xf32> -> vector<16x96xf32>
    %c0_4 = arith.constant 0 : index
    %c0_5 = arith.constant 0 : index
    %4 = vector.load %arg4[%c0_4, %c0_5] : memref<1x96xf32, #tpu.memory_space<vmem>>, vector<1x96xf32>
    %5 = vector.broadcast %4 : vector<1x96xf32> to vector<16x96xf32>
    %6 = arith.addf %3, %5 : vector<16x96xf32>
    %7 = vector.extract_strided_slice %6 {offsets = [0, 0], sizes = [16, 32], strides = [1, 1]} : vector<16x96xf32> to vector<16x32xf32>
    %cst_6 = arith.constant 2.500000e-01 : f32
    %8 = vector.broadcast %cst_6 : f32 to vector<16x32xf32>
    %9 = arith.mulf %7, %8 : vector<16x32xf32>
    %10 = vector.shape_cast %9 : vector<16x32xf32> to vector<2x8x32xf32>
    %11 = vector.extract_strided_slice %6 {offsets = [0, 32], sizes = [16, 32], strides = [1, 1]} : vector<16x96xf32> to vector<16x32xf32>
    %12 = vector.shape_cast %11 : vector<16x32xf32> to vector<2x8x32xf32>
    %13 = vector.extract_strided_slice %6 {offsets = [0, 64], sizes = [16, 32], strides = [1, 1]} : vector<16x96xf32> to vector<16x32xf32>
    %14 = vector.shape_cast %13 : vector<16x32xf32> to vector<2x8x32xf32>
    %c0_7 = arith.constant 0 : index
    %c0_8 = arith.constant 0 : index
    %c0_9 = arith.constant 0 : index
    %15 = vector.load %arg2[%c0_7, %c0_8, %c0_9] : memref<2x1x8xf32, #tpu.memory_space<vmem>>, vector<2x1x8xf32>
    %cst_10 = arith.constant 0.000000e+00 : f32
    %16 = vector.broadcast %cst_10 : f32 to vector<16x32xf32>
    %17 = vector.extract_strided_slice %10 {offsets = [0, 0, 0], sizes = [2, 8, 16], strides = [1, 1, 1]} : vector<2x8x32xf32> to vector<2x8x16xf32>
    %18 = vector.extract_strided_slice %12 {offsets = [0, 0, 0], sizes = [2, 8, 16], strides = [1, 1, 1]} : vector<2x8x32xf32> to vector<2x8x16xf32>
    "tpu.trace_start"() <{level = 10 : i32, message = "bqd,bkd->bqk"}> : () -> ()
    %cst_11 = arith.constant dense<0.000000e+00> : vector<2x8x8xf32>
    %19 = tpu.matmul %17, %18, %cst_11 {dimension_numbers = #tpu.dot_dimension_numbers<[2], [2], [1], [1], [0, 0, 0, 1, 1, 1], [0], [0]>} : vector<2x8x16xf32>, vector<2x8x16xf32>, vector<2x8x8xf32> -> vector<2x8x8xf32>
    "tpu.trace_stop"() : () -> ()
    %20 = vector.broadcast %15 : vector<2x1x8xf32> to vector<2x8x8xf32>
    %21 = arith.addf %19, %20 : vector<2x8x8xf32>
    %cst_12 = arith.constant dense<0xFF800000> : vector<2x8xf32>
    %22 = vector.multi_reduction <maximumf>, %21, %cst_12 [2] : vector<2x8x8xf32> to vector<2x8xf32>
    %23 = vector.shape_cast %22 : vector<2x8xf32> to vector<2x8x1xf32>
    %24 = vector.broadcast %23 : vector<2x8x1xf32> to vector<2x8x8xf32>
    %25 = arith.subf %21, %24 : vector<2x8x8xf32>
    %26 = math.exp %25 : vector<2x8x8xf32>
    %cst_13 = arith.constant dense<0.000000e+00> : vector<2x8xf32>
    %27 = vector.multi_reduction <add>, %26, %cst_13 [2] : vector<2x8x8xf32> to vector<2x8xf32>
    %28 = vector.shape_cast %27 : vector<2x8xf32> to vector<2x8x1xf32>
    %29 = tpu.reciprocal %28 {approx = true} : vector<2x8x1xf32> -> vector<2x8x1xf32>
    %30 = vector.broadcast %29 : vector<2x8x1xf32> to vector<2x8x8xf32>
    %31 = arith.mulf %26, %30 : vector<2x8x8xf32>
    %32 = vector.extract_strided_slice %14 {offsets = [0, 0, 0], sizes = [2, 8, 16], strides = [1, 1, 1]} : vector<2x8x32xf32> to vector<2x8x16xf32>
    "tpu.trace_start"() <{level = 10 : i32, message = "bqk,bkd->bqd"}> : () -> ()
    %cst_14 = arith.constant dense<0.000000e+00> : vector<2x8x16xf32>
    %33 = tpu.matmul %31, %32, %cst_14 {dimension_numbers = #tpu.dot_dimension_numbers<[2], [1], [1], [2], [0, 0, 0, 1, 1, 2], [0], [0]>} : vector<2x8x8xf32>, vector<2x8x16xf32>, vector<2x8x16xf32> -> vector<2x8x16xf32>
    "tpu.trace_stop"() : () -> ()
    %34 = vector.shape_cast %33 : vector<2x8x16xf32> to vector<16x16xf32>
    %c0_15 = arith.constant 0 : index
    %c0_16 = arith.constant 0 : index
    %35 = vector.load %arg5[%c0_15, %c0_16] : memref<32x32xf32, #tpu.memory_space<vmem>>, vector<16x32xf32>
    %cst_17 = arith.constant dense<0.000000e+00> : vector<16x32xf32>
    %36 = tpu.matmul %34, %35, %cst_17 {dimension_numbers = #tpu.dot_dimension_numbers<[1], [0], [0], [1], [0, 0, 1, 1], [], []>} : vector<16x16xf32>, vector<16x32xf32>, vector<16x32xf32> -> vector<16x32xf32>
    %37 = arith.addf %16, %36 : vector<16x32xf32>
    %38 = vector.extract_strided_slice %10 {offsets = [0, 0, 16], sizes = [2, 8, 16], strides = [1, 1, 1]} : vector<2x8x32xf32> to vector<2x8x16xf32>
    %39 = vector.extract_strided_slice %12 {offsets = [0, 0, 16], sizes = [2, 8, 16], strides = [1, 1, 1]} : vector<2x8x32xf32> to vector<2x8x16xf32>
    "tpu.trace_start"() <{level = 10 : i32, message = "bqd,bkd->bqk"}> : () -> ()
    %cst_18 = arith.constant dense<0.000000e+00> : vector<2x8x8xf32>
    %40 = tpu.matmul %38, %39, %cst_18 {dimension_numbers = #tpu.dot_dimension_numbers<[2], [2], [1], [1], [0, 0, 0, 1, 1, 1], [0], [0]>} : vector<2x8x16xf32>, vector<2x8x16xf32>, vector<2x8x8xf32> -> vector<2x8x8xf32>
    "tpu.trace_stop"() : () -> ()
    %41 = vector.broadcast %15 : vector<2x1x8xf32> to vector<2x8x8xf32>
    %42 = arith.addf %40, %41 : vector<2x8x8xf32>
    %cst_19 = arith.constant dense<0xFF800000> : vector<2x8xf32>
    %43 = vector.multi_reduction <maximumf>, %42, %cst_19 [2] : vector<2x8x8xf32> to vector<2x8xf32>
    %44 = vector.shape_cast %43 : vector<2x8xf32> to vector<2x8x1xf32>
    %45 = vector.broadcast %44 : vector<2x8x1xf32> to vector<2x8x8xf32>
    %46 = arith.subf %42, %45 : vector<2x8x8xf32>
    %47 = math.exp %46 : vector<2x8x8xf32>
    %cst_20 = arith.constant dense<0.000000e+00> : vector<2x8xf32>
    %48 = vector.multi_reduction <add>, %47, %cst_20 [2] : vector<2x8x8xf32> to vector<2x8xf32>
    %49 = vector.shape_cast %48 : vector<2x8xf32> to vector<2x8x1xf32>
    %50 = tpu.reciprocal %49 {approx = true} : vector<2x8x1xf32> -> vector<2x8x1xf32>
    %51 = vector.broadcast %50 : vector<2x8x1xf32> to vector<2x8x8xf32>
    %52 = arith.mulf %47, %51 : vector<2x8x8xf32>
    %53 = vector.extract_strided_slice %14 {offsets = [0, 0, 16], sizes = [2, 8, 16], strides = [1, 1, 1]} : vector<2x8x32xf32> to vector<2x8x16xf32>
    "tpu.trace_start"() <{level = 10 : i32, message = "bqk,bkd->bqd"}> : () -> ()
    %cst_21 = arith.constant dense<0.000000e+00> : vector<2x8x16xf32>
    %54 = tpu.matmul %52, %53, %cst_21 {dimension_numbers = #tpu.dot_dimension_numbers<[2], [1], [1], [2], [0, 0, 0, 1, 1, 2], [0], [0]>} : vector<2x8x8xf32>, vector<2x8x16xf32>, vector<2x8x16xf32> -> vector<2x8x16xf32>
    "tpu.trace_stop"() : () -> ()
    %55 = vector.shape_cast %54 : vector<2x8x16xf32> to vector<16x16xf32>
    %c16 = arith.constant 16 : index
    %c0_22 = arith.constant 0 : index
    %56 = vector.load %arg5[%c16, %c0_22] : memref<32x32xf32, #tpu.memory_space<vmem>>, vector<16x32xf32>
    %cst_23 = arith.constant dense<0.000000e+00> : vector<16x32xf32>
    %57 = tpu.matmul %55, %56, %cst_23 {dimension_numbers = #tpu.dot_dimension_numbers<[1], [0], [0], [1], [0, 0, 1, 1], [], []>} : vector<16x16xf32>, vector<16x32xf32>, vector<16x32xf32> -> vector<16x32xf32>
    %58 = arith.addf %37, %57 : vector<16x32xf32>
    %c0_24 = arith.constant 0 : index
    %c0_25 = arith.constant 0 : index
    %59 = vector.load %arg6[%c0_24, %c0_25] : memref<1x32xf32, #tpu.memory_space<vmem>>, vector<1x32xf32>
    %60 = vector.broadcast %59 : vector<1x32xf32> to vector<16x32xf32>
    %61 = arith.addf %58, %60 : vector<16x32xf32>
    %62 = arith.addf %61, %1 : vector<16x32xf32>
    %cst_26 = arith.constant dense<0.000000e+00> : vector<16xf32>
    %63 = vector.multi_reduction <add>, %62, %cst_26 [1] : vector<16x32xf32> to vector<16xf32>
    %64 = vector.shape_cast %63 : vector<16xf32> to vector<16x1xf32>
    %cst_27 = arith.constant 3.200000e+01 : f32
    %65 = vector.broadcast %cst_27 : f32 to vector<16x1xf32>
    %66 = arith.divf %64, %65 : vector<16x1xf32>
    %67 = vector.broadcast %66 : vector<16x1xf32> to vector<16x32xf32>
    %68 = arith.subf %62, %67 : vector<16x32xf32>
    %69 = arith.mulf %68, %68 : vector<16x32xf32>
    %cst_28 = arith.constant dense<0.000000e+00> : vector<16xf32>
    %70 = vector.multi_reduction <add>, %69, %cst_28 [1] : vector<16x32xf32> to vector<16xf32>
    %71 = vector.shape_cast %70 : vector<16xf32> to vector<16x1xf32>
    %cst_29 = arith.constant 3.200000e+01 : f32
    %72 = vector.broadcast %cst_29 : f32 to vector<16x1xf32>
    %73 = arith.divf %71, %72 : vector<16x1xf32>
    %74 = vector.broadcast %66 : vector<16x1xf32> to vector<16x32xf32>
    %75 = arith.subf %62, %74 : vector<16x32xf32>
    %cst_30 = arith.constant 9.99999996E-13 : f32
    %76 = vector.broadcast %cst_30 : f32 to vector<16x1xf32>
    %77 = arith.addf %73, %76 : vector<16x1xf32>
    %78 = math.rsqrt %77 : vector<16x1xf32>
    %79 = vector.broadcast %78 : vector<16x1xf32> to vector<16x32xf32>
    %80 = arith.mulf %75, %79 : vector<16x32xf32>
    %c0_31 = arith.constant 0 : index
    %c0_32 = arith.constant 0 : index
    %81 = vector.load %arg7[%c0_31, %c0_32] : memref<1x32xf32, #tpu.memory_space<vmem>>, vector<1x32xf32>
    %82 = vector.broadcast %81 : vector<1x32xf32> to vector<16x32xf32>
    %83 = arith.mulf %80, %82 : vector<16x32xf32>
    %c0_33 = arith.constant 0 : index
    %c0_34 = arith.constant 0 : index
    %84 = vector.load %arg8[%c0_33, %c0_34] : memref<1x32xf32, #tpu.memory_space<vmem>>, vector<1x32xf32>
    %85 = vector.broadcast %84 : vector<1x32xf32> to vector<16x32xf32>
    %86 = arith.addf %83, %85 : vector<16x32xf32>
    %c0_35 = arith.constant 0 : index
    %c0_36 = arith.constant 0 : index
    %87 = vector.load %arg9[%c0_35, %c0_36] : memref<32x64xf32, #tpu.memory_space<vmem>>, vector<32x64xf32>
    %cst_37 = arith.constant dense<0.000000e+00> : vector<16x64xf32>
    %88 = tpu.matmul %86, %87, %cst_37 {dimension_numbers = #tpu.dot_dimension_numbers<[1], [0], [0], [1], [0, 0, 1, 1], [], []>} : vector<16x32xf32>, vector<32x64xf32>, vector<16x64xf32> -> vector<16x64xf32>
    %c0_38 = arith.constant 0 : index
    %c0_39 = arith.constant 0 : index
    %89 = vector.load %arg10[%c0_38, %c0_39] : memref<1x64xf32, #tpu.memory_space<vmem>>, vector<1x64xf32>
    %90 = vector.broadcast %89 : vector<1x64xf32> to vector<16x64xf32>
    %91 = arith.addf %88, %90 : vector<16x64xf32>
    %92 = arith.mulf %91, %91 : vector<16x64xf32>
    %93 = arith.mulf %91, %92 : vector<16x64xf32>
    %cst_40 = arith.constant 4.471500e-02 : f32
    %94 = vector.broadcast %cst_40 : f32 to vector<16x64xf32>
    %95 = arith.mulf %94, %93 : vector<16x64xf32>
    %96 = arith.addf %91, %95 : vector<16x64xf32>
    %cst_41 = arith.constant 0.797884583 : f32
    %97 = vector.broadcast %cst_41 : f32 to vector<16x64xf32>
    %98 = arith.mulf %97, %96 : vector<16x64xf32>
    %99 = math.tanh %98 : vector<16x64xf32>
    %cst_42 = arith.constant 1.000000e+00 : f32
    %100 = vector.broadcast %cst_42 : f32 to vector<16x64xf32>
    %101 = arith.addf %100, %99 : vector<16x64xf32>
    %cst_43 = arith.constant 5.000000e-01 : f32
    %102 = vector.broadcast %cst_43 : f32 to vector<16x64xf32>
    %103 = arith.mulf %102, %101 : vector<16x64xf32>
    %104 = arith.mulf %91, %103 : vector<16x64xf32>
    %c0_44 = arith.constant 0 : index
    %c0_45 = arith.constant 0 : index
    %105 = vector.load %arg11[%c0_44, %c0_45] : memref<64x32xf32, #tpu.memory_space<vmem>>, vector<64x32xf32>
    %cst_46 = arith.constant dense<0.000000e+00> : vector<16x32xf32>
    %106 = tpu.matmul %104, %105, %cst_46 {dimension_numbers = #tpu.dot_dimension_numbers<[1], [0], [0], [1], [0, 0, 1, 1], [], []>} : vector<16x64xf32>, vector<64x32xf32>, vector<16x32xf32> -> vector<16x32xf32>
    %c0_47 = arith.constant 0 : index
    %c0_48 = arith.constant 0 : index
    %107 = vector.load %arg12[%c0_47, %c0_48] : memref<1x32xf32, #tpu.memory_space<vmem>>, vector<1x32xf32>
    %108 = vector.broadcast %107 : vector<1x32xf32> to vector<16x32xf32>
    %109 = arith.addf %106, %108 : vector<16x32xf32>
    %110 = arith.addf %109, %86 : vector<16x32xf32>
    %cst_49 = arith.constant dense<0.000000e+00> : vector<16xf32>
    %111 = vector.multi_reduction <add>, %110, %cst_49 [1] : vector<16x32xf32> to vector<16xf32>
    %112 = vector.shape_cast %111 : vector<16xf32> to vector<16x1xf32>
    %cst_50 = arith.constant 3.200000e+01 : f32
    %113 = vector.broadcast %cst_50 : f32 to vector<16x1xf32>
    %114 = arith.divf %112, %113 : vector<16x1xf32>
    %115 = vector.broadcast %114 : vector<16x1xf32> to vector<16x32xf32>
    %116 = arith.subf %110, %115 : vector<16x32xf32>
    %117 = arith.mulf %116, %116 : vector<16x32xf32>
    %cst_51 = arith.constant dense<0.000000e+00> : vector<16xf32>
    %118 = vector.multi_reduction <add>, %117, %cst_51 [1] : vector<16x32xf32> to vector<16xf32>
    %119 = vector.shape_cast %118 : vector<16xf32> to vector<16x1xf32>
    %cst_52 = arith.constant 3.200000e+01 : f32
    %120 = vector.broadcast %cst_52 : f32 to vector<16x1xf32>
    %121 = arith.divf %119, %120 : vector<16x1xf32>
    %122 = vector.broadcast %114 : vector<16x1xf32> to vector<16x32xf32>
    %123 = arith.subf %110, %122 : vector<16x32xf32>
    %cst_53 = arith.constant 9.99999996E-13 : f32
    %124 = vector.broadcast %cst_53 : f32 to vector<16x1xf32>
    %125 = arith.addf %121, %124 : vector<16x1xf32>
    %126 = math.rsqrt %125 : vector<16x1xf32>
    %127 = vector.broadcast %126 : vector<16x1xf32> to vector<16x32xf32>
    %128 = arith.mulf %123, %127 : vector<16x32xf32>
    %c0_54 = arith.constant 0 : index
    %c0_55 = arith.constant 0 : index
    %129 = vector.load %arg13[%c0_54, %c0_55] : memref<1x32xf32, #tpu.memory_space<vmem>>, vector<1x32xf32>
    %130 = vector.broadcast %129 : vector<1x32xf32> to vector<16x32xf32>
    %131 = arith.mulf %128, %130 : vector<16x32xf32>
    %c0_56 = arith.constant 0 : index
    %c0_57 = arith.constant 0 : index
    %132 = vector.load %arg14[%c0_56, %c0_57] : memref<1x32xf32, #tpu.memory_space<vmem>>, vector<1x32xf32>
    %133 = vector.broadcast %132 : vector<1x32xf32> to vector<16x32xf32>
    %134 = arith.addf %131, %133 : vector<16x32xf32>
    %135 = vector.shape_cast %134 : vector<16x32xf32> to vector<2x8x32xf32>
    %c0_58 = arith.constant 0 : index
    %c0_59 = arith.constant 0 : index
    %c0_60 = arith.constant 0 : index
    %136 = vector.load %arg15[%c0_58, %c0_59, %c0_60] : memref<2x8x32xf32, #tpu.memory_space<vmem>>, vector<2x8x32xf32>
    tpu.vector_store %arg15[%c0_58, %c0_59, %c0_60], %135 {strides = array<i32>} : memref<2x8x32xf32, #tpu.memory_space<vmem>>, vector<2x8x32xf32>,
    return
  }
  func.func @transform_0(%arg0: i32) -> (i32, i32, i32) {
    %c0_i32 = arith.constant 0 : i32
    %c0_i32_0 = arith.constant 0 : i32
    %c0_i32_1 = arith.constant 0 : i32
    %c0_i32_2 = arith.constant 0 : i32
    return %c0_i32, %c0_i32_0, %c0_i32_1 : i32, i32, i32
  }
  func.func @transform_1(%arg0: i32) -> (i32, i32, i32) {
    %c0_i32 = arith.constant 0 : i32
    %c0_i32_0 = arith.constant 0 : i32
    %c0_i32_1 = arith.constant 0 : i32
    %c0_i32_2 = arith.constant 0 : i32
    return %c0_i32, %c0_i32_0, %c0_i32_1 : i32, i32, i32
  }
  func.func @transform_2(%arg0: i32) -> (i32, i32) {
    %c0_i32 = arith.constant 0 : i32
    %c0_i32_0 = arith.constant 0 : i32
    %c0_i32_1 = arith.constant 0 : i32
    return %c0_i32, %c0_i32_0 : i32, i32
  }
  func.func @transform_3(%arg0: i32) -> (i32, i32) {
    %c0_i32 = arith.constant 0 : i32
    %c0_i32_0 = arith.constant 0 : i32
    %c0_i32_1 = arith.constant 0 : i32
    return %c0_i32, %c0_i32_0 : i32, i32
  }
  func.func @transform_4(%arg0: i32) -> (i32, i32) {
    %c0_i32 = arith.constant 0 : i32
    %c0_i32_0 = arith.constant 0 : i32
    %c0_i32_1 = arith.constant 0 : i32
    return %c0_i32, %c0_i32_0 : i32, i32
  }
  func.func @transform_5(%arg0: i32) -> (i32, i32) {
    %c0_i32 = arith.constant 0 : i32
    %c0_i32_0 = arith.constant 0 : i32
    %c0_i32_1 = arith.constant 0 : i32
    return %c0_i32, %c0_i32_0 : i32, i32
  }
  func.func @transform_6(%arg0: i32) -> (i32, i32) {
    %c0_i32 = arith.constant 0 : i32
    %c0_i32_0 = arith.constant 0 : i32
    %c0_i32_1 = arith.constant 0 : i32
    return %c0_i32, %c0_i32_0 : i32, i32
  }
  func.func @transform_7(%arg0: i32) -> (i32, i32) {
    %c0_i32 = arith.constant 0 : i32
    %c0_i32_0 = arith.constant 0 : i32
    %c0_i32_1 = arith.constant 0 : i32
    return %c0_i32, %c0_i32_0 : i32, i32
  }
  func.func @transform_8(%arg0: i32) -> (i32, i32) {
    %c0_i32 = arith.constant 0 : i32
    %c0_i32_0 = arith.constant 0 : i32
    %c0_i32_1 = arith.constant 0 : i32
    return %c0_i32, %c0_i32_0 : i32, i32
  }
  func.func @transform_9(%arg0: i32) -> (i32, i32) {
    %c0_i32 = arith.constant 0 : i32
    %c0_i32_0 = arith.constant 0 : i32
    %c0_i32_1 = arith.constant 0 : i32
    return %c0_i32, %c0_i32_0 : i32, i32
  }
  func.func @transform_10(%arg0: i32) -> (i32, i32) {
    %c0_i32 = arith.constant 0 : i32
    %c0_i32_0 = arith.constant 0 : i32
    %c0_i32_1 = arith.constant 0 : i32
    return %c0_i32, %c0_i32_0 : i32, i32
  }
  func.func @transform_11(%arg0: i32) -> (i32, i32) {
    %c0_i32 = arith.constant 0 : i32
    %c0_i32_0 = arith.constant 0 : i32
    %c0_i32_1 = arith.constant 0 : i32
    return %c0_i32, %c0_i32_0 : i32, i32
  }
  func.func @transform_12(%arg0: i32) -> (i32, i32) {
    %c0_i32 = arith.constant 0 : i32
    %c0_i32_0 = arith.constant 0 : i32
    %c0_i32_1 = arith.constant 0 : i32
    return %c0_i32, %c0_i32_0 : i32, i32
  }
  func.func @transform_13(%arg0: i32) -> (i32, i32) {
    %c0_i32 = arith.constant 0 : i32
    %c0_i32_0 = arith.constant 0 : i32
    %c0_i32_1 = arith.constant 0 : i32
    return %c0_i32, %c0_i32_0 : i32, i32
  }
  func.func @transform_14(%arg0: i32) -> (i32, i32, i32) {
    %c0_i32 = arith.constant 0 : i32
    %c0_i32_0 = arith.constant 0 : i32
    %c0_i32_1 = arith.constant 0 : i32
    %c0_i32_2 = arith.constant 0 : i32
    return %c0_i32, %c0_i32_0, %c0_i32_1 : i32, i32, i32
  }
}

module attributes {stable_mosaic.version = 11 : i64} {
  func.func @_bilstm_layer_kernel(%arg0: i32, %arg1: memref<1x16x32xf32, #tpu.memory_space<vmem>>, %arg2: memref<1x4x32x12xf32, #tpu.memory_space<vmem>>, %arg3: memref<1x4x12x12xf32, #tpu.memory_space<vmem>>, %arg4: memref<1x4x1x12xf32, #tpu.memory_space<vmem>>, %arg5: memref<1x16x12xf32, #tpu.memory_space<vmem>>, %arg6: memref<64x12xf32, #tpu.memory_space<vmem>>) attributes {dimension_semantics = [#tpu.dimension_semantics<parallel>], iteration_bounds = array<i64: 2>, scalar_prefetch = 0 : i64, scratch_operands = 1 : i64, tpu.core_type = #tpu.core_type<tc>, window_params = [{transform_indices = @transform_0, window_bounds = array<i64: 1, 16, 32>}, {transform_indices = @transform_1, window_bounds = array<i64: 1, 4, 32, 12>}, {transform_indices = @transform_2, window_bounds = array<i64: 1, 4, 12, 12>}, {transform_indices = @transform_3, window_bounds = array<i64: 1, 4, 1, 12>}, {transform_indices = @transform_4, window_bounds = array<i64: 1, 16, 12>}]} {
    %c0 = arith.constant 0 : index
    %c0_0 = arith.constant 0 : index
    %c0_1 = arith.constant 0 : index
    %0 = vector.load %arg1[%c0, %c0_0, %c0_1] : memref<1x16x32xf32, #tpu.memory_space<vmem>>, vector<1x16x32xf32>
    %1 = vector.shape_cast %0 : vector<1x16x32xf32> to vector<16x32xf32>
    %c0_2 = arith.constant 0 : index
    %c0_3 = arith.constant 0 : index
    %c0_4 = arith.constant 0 : index
    %c0_5 = arith.constant 0 : index
    %2 = vector.load %arg2[%c0_2, %c0_3, %c0_4, %c0_5] : memref<1x4x32x12xf32, #tpu.memory_space<vmem>>, vector<1x1x32x12xf32>
    %3 = vector.shape_cast %2 : vector<1x1x32x12xf32> to vector<32x12xf32>
    %cst = arith.constant dense<0.000000e+00> : vector<16x12xf32>
    %4 = tpu.matmul %1, %3, %cst {dimension_numbers = #tpu.dot_dimension_numbers<[1], [0], [0], [1], [0, 0, 1, 1], [], []>} : vector<16x32xf32>, vector<32x12xf32>, vector<16x12xf32> -> vector<16x12xf32>
    %c0_6 = arith.constant 0 : index
    %c0_7 = arith.constant 0 : index
    %c0_8 = arith.constant 0 : index
    %c0_9 = arith.constant 0 : index
    %5 = vector.load %arg4[%c0_6, %c0_7, %c0_8, %c0_9] : memref<1x4x1x12xf32, #tpu.memory_space<vmem>>, vector<1x1x1x12xf32>
    %6 = vector.shape_cast %5 : vector<1x1x1x12xf32> to vector<1x12xf32>
    %7 = vector.broadcast %6 : vector<1x12xf32> to vector<16x12xf32>
    %8 = arith.addf %4, %7 : vector<16x12xf32>
    %c0_10 = arith.constant 0 : index
    %c0_11 = arith.constant 0 : index
    %9 = vector.load %arg6[%c0_10, %c0_11] : memref<64x12xf32, #tpu.memory_space<vmem>>, vector<16x12xf32>
    tpu.vector_store %arg6[%c0_10, %c0_11], %8 {strides = array<i32>} : memref<64x12xf32, #tpu.memory_space<vmem>>, vector<16x12xf32>,
    %c0_12 = arith.constant 0 : index
    %c1 = arith.constant 1 : index
    %c0_13 = arith.constant 0 : index
    %c0_14 = arith.constant 0 : index
    %10 = vector.load %arg2[%c0_12, %c1, %c0_13, %c0_14] : memref<1x4x32x12xf32, #tpu.memory_space<vmem>>, vector<1x1x32x12xf32>
    %11 = vector.shape_cast %10 : vector<1x1x32x12xf32> to vector<32x12xf32>
    %cst_15 = arith.constant dense<0.000000e+00> : vector<16x12xf32>
    %12 = tpu.matmul %1, %11, %cst_15 {dimension_numbers = #tpu.dot_dimension_numbers<[1], [0], [0], [1], [0, 0, 1, 1], [], []>} : vector<16x32xf32>, vector<32x12xf32>, vector<16x12xf32> -> vector<16x12xf32>
    %c0_16 = arith.constant 0 : index
    %c1_17 = arith.constant 1 : index
    %c0_18 = arith.constant 0 : index
    %c0_19 = arith.constant 0 : index
    %13 = vector.load %arg4[%c0_16, %c1_17, %c0_18, %c0_19] : memref<1x4x1x12xf32, #tpu.memory_space<vmem>>, vector<1x1x1x12xf32>
    %14 = vector.shape_cast %13 : vector<1x1x1x12xf32> to vector<1x12xf32>
    %15 = vector.broadcast %14 : vector<1x12xf32> to vector<16x12xf32>
    %16 = arith.addf %12, %15 : vector<16x12xf32>
    %c16 = arith.constant 16 : index
    %c0_20 = arith.constant 0 : index
    %17 = vector.load %arg6[%c16, %c0_20] : memref<64x12xf32, #tpu.memory_space<vmem>>, vector<16x12xf32>
    tpu.vector_store %arg6[%c16, %c0_20], %16 {strides = array<i32>} : memref<64x12xf32, #tpu.memory_space<vmem>>, vector<16x12xf32>,
    %c0_21 = arith.constant 0 : index
    %c2 = arith.constant 2 : index
    %c0_22 = arith.constant 0 : index
    %c0_23 = arith.constant 0 : index
    %18 = vector.load %arg2[%c0_21, %c2, %c0_22, %c0_23] : memref<1x4x32x12xf32, #tpu.memory_space<vmem>>, vector<1x1x32x12xf32>
    %19 = vector.shape_cast %18 : vector<1x1x32x12xf32> to vector<32x12xf32>
    %cst_24 = arith.constant dense<0.000000e+00> : vector<16x12xf32>
    %20 = tpu.matmul %1, %19, %cst_24 {dimension_numbers = #tpu.dot_dimension_numbers<[1], [0], [0], [1], [0, 0, 1, 1], [], []>} : vector<16x32xf32>, vector<32x12xf32>, vector<16x12xf32> -> vector<16x12xf32>
    %c0_25 = arith.constant 0 : index
    %c2_26 = arith.constant 2 : index
    %c0_27 = arith.constant 0 : index
    %c0_28 = arith.constant 0 : index
    %21 = vector.load %arg4[%c0_25, %c2_26, %c0_27, %c0_28] : memref<1x4x1x12xf32, #tpu.memory_space<vmem>>, vector<1x1x1x12xf32>
    %22 = vector.shape_cast %21 : vector<1x1x1x12xf32> to vector<1x12xf32>
    %23 = vector.broadcast %22 : vector<1x12xf32> to vector<16x12xf32>
    %24 = arith.addf %20, %23 : vector<16x12xf32>
    %c32 = arith.constant 32 : index
    %c0_29 = arith.constant 0 : index
    %25 = vector.load %arg6[%c32, %c0_29] : memref<64x12xf32, #tpu.memory_space<vmem>>, vector<16x12xf32>
    tpu.vector_store %arg6[%c32, %c0_29], %24 {strides = array<i32>} : memref<64x12xf32, #tpu.memory_space<vmem>>, vector<16x12xf32>,
    %c0_30 = arith.constant 0 : index
    %c3 = arith.constant 3 : index
    %c0_31 = arith.constant 0 : index
    %c0_32 = arith.constant 0 : index
    %26 = vector.load %arg2[%c0_30, %c3, %c0_31, %c0_32] : memref<1x4x32x12xf32, #tpu.memory_space<vmem>>, vector<1x1x32x12xf32>
    %27 = vector.shape_cast %26 : vector<1x1x32x12xf32> to vector<32x12xf32>
    %cst_33 = arith.constant dense<0.000000e+00> : vector<16x12xf32>
    %28 = tpu.matmul %1, %27, %cst_33 {dimension_numbers = #tpu.dot_dimension_numbers<[1], [0], [0], [1], [0, 0, 1, 1], [], []>} : vector<16x32xf32>, vector<32x12xf32>, vector<16x12xf32> -> vector<16x12xf32>
    %c0_34 = arith.constant 0 : index
    %c3_35 = arith.constant 3 : index
    %c0_36 = arith.constant 0 : index
    %c0_37 = arith.constant 0 : index
    %29 = vector.load %arg4[%c0_34, %c3_35, %c0_36, %c0_37] : memref<1x4x1x12xf32, #tpu.memory_space<vmem>>, vector<1x1x1x12xf32>
    %30 = vector.shape_cast %29 : vector<1x1x1x12xf32> to vector<1x12xf32>
    %31 = vector.broadcast %30 : vector<1x12xf32> to vector<16x12xf32>
    %32 = arith.addf %28, %31 : vector<16x12xf32>
    %c48 = arith.constant 48 : index
    %c0_38 = arith.constant 0 : index
    %33 = vector.load %arg6[%c48, %c0_38] : memref<64x12xf32, #tpu.memory_space<vmem>>, vector<16x12xf32>
    tpu.vector_store %arg6[%c48, %c0_38], %32 {strides = array<i32>} : memref<64x12xf32, #tpu.memory_space<vmem>>, vector<16x12xf32>,
    %c0_39 = arith.constant 0 : index
    %c0_40 = arith.constant 0 : index
    %c0_41 = arith.constant 0 : index
    %c0_42 = arith.constant 0 : index
    %34 = vector.load %arg3[%c0_39, %c0_40, %c0_41, %c0_42] : memref<1x4x12x12xf32, #tpu.memory_space<vmem>>, vector<1x1x12x12xf32>
    %35 = vector.shape_cast %34 : vector<1x1x12x12xf32> to vector<12x12xf32>
    %c0_43 = arith.constant 0 : index
    %c1_44 = arith.constant 1 : index
    %c0_45 = arith.constant 0 : index
    %c0_46 = arith.constant 0 : index
    %36 = vector.load %arg3[%c0_43, %c1_44, %c0_45, %c0_46] : memref<1x4x12x12xf32, #tpu.memory_space<vmem>>, vector<1x1x12x12xf32>
    %37 = vector.shape_cast %36 : vector<1x1x12x12xf32> to vector<12x12xf32>
    %c0_47 = arith.constant 0 : index
    %c2_48 = arith.constant 2 : index
    %c0_49 = arith.constant 0 : index
    %c0_50 = arith.constant 0 : index
    %38 = vector.load %arg3[%c0_47, %c2_48, %c0_49, %c0_50] : memref<1x4x12x12xf32, #tpu.memory_space<vmem>>, vector<1x1x12x12xf32>
    %39 = vector.shape_cast %38 : vector<1x1x12x12xf32> to vector<12x12xf32>
    %c0_51 = arith.constant 0 : index
    %c3_52 = arith.constant 3 : index
    %c0_53 = arith.constant 0 : index
    %c0_54 = arith.constant 0 : index
    %40 = vector.load %arg3[%c0_51, %c3_52, %c0_53, %c0_54] : memref<1x4x12x12xf32, #tpu.memory_space<vmem>>, vector<1x1x12x12xf32>
    %41 = vector.shape_cast %40 : vector<1x1x12x12xf32> to vector<12x12xf32>
    %cst_55 = arith.constant 0.000000e+00 : f32
    %42 = vector.broadcast %cst_55 : f32 to vector<2x12xf32>
    %cst_56 = arith.constant 0.000000e+00 : f32
    %43 = vector.broadcast %cst_56 : f32 to vector<2x12xf32>
    %c0_57 = arith.constant 0 : index
    %c0_58 = arith.constant 0 : index
    %44 = vector.load %arg6[%c0_57, %c0_58] : memref<64x12xf32, #tpu.memory_space<vmem>>, vector<2x12xf32>
    %cst_59 = arith.constant dense<0.000000e+00> : vector<2x12xf32>
    %45 = tpu.matmul %42, %35, %cst_59 {dimension_numbers = #tpu.dot_dimension_numbers<[1], [0], [0], [1], [0, 0, 1, 1], [], []>} : vector<2x12xf32>, vector<12x12xf32>, vector<2x12xf32> -> vector<2x12xf32>
    %46 = arith.addf %44, %45 : vector<2x12xf32>
    %47 = arith.negf %46 : vector<2x12xf32>
    %48 = math.exp %47 : vector<2x12xf32>
    %cst_60 = arith.constant 1.000000e+00 : f32
    %49 = vector.broadcast %cst_60 : f32 to vector<2x12xf32>
    %50 = arith.addf %49, %48 : vector<2x12xf32>
    %51 = arith.divf %49, %50 : vector<2x12xf32>
    %c16_61 = arith.constant 16 : index
    %c0_62 = arith.constant 0 : index
    %52 = vector.load %arg6[%c16_61, %c0_62] : memref<64x12xf32, #tpu.memory_space<vmem>>, vector<2x12xf32>
    %cst_63 = arith.constant dense<0.000000e+00> : vector<2x12xf32>
    %53 = tpu.matmul %42, %37, %cst_63 {dimension_numbers = #tpu.dot_dimension_numbers<[1], [0], [0], [1], [0, 0, 1, 1], [], []>} : vector<2x12xf32>, vector<12x12xf32>, vector<2x12xf32> -> vector<2x12xf32>
    %54 = arith.addf %52, %53 : vector<2x12xf32>
    %55 = arith.negf %54 : vector<2x12xf32>
    %56 = math.exp %55 : vector<2x12xf32>
    %cst_64 = arith.constant 1.000000e+00 : f32
    %57 = vector.broadcast %cst_64 : f32 to vector<2x12xf32>
    %58 = arith.addf %57, %56 : vector<2x12xf32>
    %59 = arith.divf %57, %58 : vector<2x12xf32>
    %c32_65 = arith.constant 32 : index
    %c0_66 = arith.constant 0 : index
    %60 = vector.load %arg6[%c32_65, %c0_66] : memref<64x12xf32, #tpu.memory_space<vmem>>, vector<2x12xf32>
    %cst_67 = arith.constant dense<0.000000e+00> : vector<2x12xf32>
    %61 = tpu.matmul %42, %39, %cst_67 {dimension_numbers = #tpu.dot_dimension_numbers<[1], [0], [0], [1], [0, 0, 1, 1], [], []>} : vector<2x12xf32>, vector<12x12xf32>, vector<2x12xf32> -> vector<2x12xf32>
    %62 = arith.addf %60, %61 : vector<2x12xf32>
    %63 = math.tanh %62 : vector<2x12xf32>
    %c48_68 = arith.constant 48 : index
    %c0_69 = arith.constant 0 : index
    %64 = vector.load %arg6[%c48_68, %c0_69] : memref<64x12xf32, #tpu.memory_space<vmem>>, vector<2x12xf32>
    %cst_70 = arith.constant dense<0.000000e+00> : vector<2x12xf32>
    %65 = tpu.matmul %42, %41, %cst_70 {dimension_numbers = #tpu.dot_dimension_numbers<[1], [0], [0], [1], [0, 0, 1, 1], [], []>} : vector<2x12xf32>, vector<12x12xf32>, vector<2x12xf32> -> vector<2x12xf32>
    %66 = arith.addf %64, %65 : vector<2x12xf32>
    %67 = arith.negf %66 : vector<2x12xf32>
    %68 = math.exp %67 : vector<2x12xf32>
    %cst_71 = arith.constant 1.000000e+00 : f32
    %69 = vector.broadcast %cst_71 : f32 to vector<2x12xf32>
    %70 = arith.addf %69, %68 : vector<2x12xf32>
    %71 = arith.divf %69, %70 : vector<2x12xf32>
    %72 = arith.mulf %59, %43 : vector<2x12xf32>
    %73 = arith.mulf %51, %63 : vector<2x12xf32>
    %74 = arith.addf %72, %73 : vector<2x12xf32>
    %75 = math.tanh %74 : vector<2x12xf32>
    %76 = arith.mulf %71, %75 : vector<2x12xf32>
    %c0_72 = arith.constant 0 : index
    %c0_73 = arith.constant 0 : index
    %c0_74 = arith.constant 0 : index
    %77 = vector.load %arg5[%c0_72, %c0_73, %c0_74] : memref<1x16x12xf32, #tpu.memory_space<vmem>>, vector<1x2x12xf32>
    %78 = vector.shape_cast %77 : vector<1x2x12xf32> to vector<2x12xf32>
    %79 = vector.shape_cast %76 : vector<2x12xf32> to vector<1x2x12xf32>
    tpu.vector_store %arg5[%c0_72, %c0_73, %c0_74], %79 {strides = array<i32>} : memref<1x16x12xf32, #tpu.memory_space<vmem>>, vector<1x2x12xf32>,
    %c2_75 = arith.constant 2 : index
    %c0_76 = arith.constant 0 : index
    %80 = vector.load %arg6[%c2_75, %c0_76] : memref<64x12xf32, #tpu.memory_space<vmem>>, vector<2x12xf32>
    %cst_77 = arith.constant dense<0.000000e+00> : vector<2x12xf32>
    %81 = tpu.matmul %76, %35, %cst_77 {dimension_numbers = #tpu.dot_dimension_numbers<[1], [0], [0], [1], [0, 0, 1, 1], [], []>} : vector<2x12xf32>, vector<12x12xf32>, vector<2x12xf32> -> vector<2x12xf32>
    %82 = arith.addf %80, %81 : vector<2x12xf32>
    %83 = arith.negf %82 : vector<2x12xf32>
    %84 = math.exp %83 : vector<2x12xf32>
    %cst_78 = arith.constant 1.000000e+00 : f32
    %85 = vector.broadcast %cst_78 : f32 to vector<2x12xf32>
    %86 = arith.addf %85, %84 : vector<2x12xf32>
    %87 = arith.divf %85, %86 : vector<2x12xf32>
    %c18 = arith.constant 18 : index
    %c0_79 = arith.constant 0 : index
    %88 = vector.load %arg6[%c18, %c0_79] : memref<64x12xf32, #tpu.memory_space<vmem>>, vector<2x12xf32>
    %cst_80 = arith.constant dense<0.000000e+00> : vector<2x12xf32>
    %89 = tpu.matmul %76, %37, %cst_80 {dimension_numbers = #tpu.dot_dimension_numbers<[1], [0], [0], [1], [0, 0, 1, 1], [], []>} : vector<2x12xf32>, vector<12x12xf32>, vector<2x12xf32> -> vector<2x12xf32>
    %90 = arith.addf %88, %89 : vector<2x12xf32>
    %91 = arith.negf %90 : vector<2x12xf32>
    %92 = math.exp %91 : vector<2x12xf32>
    %cst_81 = arith.constant 1.000000e+00 : f32
    %93 = vector.broadcast %cst_81 : f32 to vector<2x12xf32>
    %94 = arith.addf %93, %92 : vector<2x12xf32>
    %95 = arith.divf %93, %94 : vector<2x12xf32>
    %c34 = arith.constant 34 : index
    %c0_82 = arith.constant 0 : index
    %96 = vector.load %arg6[%c34, %c0_82] : memref<64x12xf32, #tpu.memory_space<vmem>>, vector<2x12xf32>
    %cst_83 = arith.constant dense<0.000000e+00> : vector<2x12xf32>
    %97 = tpu.matmul %76, %39, %cst_83 {dimension_numbers = #tpu.dot_dimension_numbers<[1], [0], [0], [1], [0, 0, 1, 1], [], []>} : vector<2x12xf32>, vector<12x12xf32>, vector<2x12xf32> -> vector<2x12xf32>
    %98 = arith.addf %96, %97 : vector<2x12xf32>
    %99 = math.tanh %98 : vector<2x12xf32>
    %c50 = arith.constant 50 : index
    %c0_84 = arith.constant 0 : index
    %100 = vector.load %arg6[%c50, %c0_84] : memref<64x12xf32, #tpu.memory_space<vmem>>, vector<2x12xf32>
    %cst_85 = arith.constant dense<0.000000e+00> : vector<2x12xf32>
    %101 = tpu.matmul %76, %41, %cst_85 {dimension_numbers = #tpu.dot_dimension_numbers<[1], [0], [0], [1], [0, 0, 1, 1], [], []>} : vector<2x12xf32>, vector<12x12xf32>, vector<2x12xf32> -> vector<2x12xf32>
    %102 = arith.addf %100, %101 : vector<2x12xf32>
    %103 = arith.negf %102 : vector<2x12xf32>
    %104 = math.exp %103 : vector<2x12xf32>
    %cst_86 = arith.constant 1.000000e+00 : f32
    %105 = vector.broadcast %cst_86 : f32 to vector<2x12xf32>
    %106 = arith.addf %105, %104 : vector<2x12xf32>
    %107 = arith.divf %105, %106 : vector<2x12xf32>
    %108 = arith.mulf %95, %74 : vector<2x12xf32>
    %109 = arith.mulf %87, %99 : vector<2x12xf32>
    %110 = arith.addf %108, %109 : vector<2x12xf32>
    %111 = math.tanh %110 : vector<2x12xf32>
    %112 = arith.mulf %107, %111 : vector<2x12xf32>
    %c0_87 = arith.constant 0 : index
    %c2_88 = arith.constant 2 : index
    %c0_89 = arith.constant 0 : index
    %113 = vector.load %arg5[%c0_87, %c2_88, %c0_89] : memref<1x16x12xf32, #tpu.memory_space<vmem>>, vector<1x2x12xf32>
    %114 = vector.shape_cast %113 : vector<1x2x12xf32> to vector<2x12xf32>
    %115 = vector.shape_cast %112 : vector<2x12xf32> to vector<1x2x12xf32>
    tpu.vector_store %arg5[%c0_87, %c2_88, %c0_89], %115 {strides = array<i32>} : memref<1x16x12xf32, #tpu.memory_space<vmem>>, vector<1x2x12xf32>,
    %c4 = arith.constant 4 : index
    %c0_90 = arith.constant 0 : index
    %116 = vector.load %arg6[%c4, %c0_90] : memref<64x12xf32, #tpu.memory_space<vmem>>, vector<2x12xf32>
    %cst_91 = arith.constant dense<0.000000e+00> : vector<2x12xf32>
    %117 = tpu.matmul %112, %35, %cst_91 {dimension_numbers = #tpu.dot_dimension_numbers<[1], [0], [0], [1], [0, 0, 1, 1], [], []>} : vector<2x12xf32>, vector<12x12xf32>, vector<2x12xf32> -> vector<2x12xf32>
    %118 = arith.addf %116, %117 : vector<2x12xf32>
    %119 = arith.negf %118 : vector<2x12xf32>
    %120 = math.exp %119 : vector<2x12xf32>
    %cst_92 = arith.constant 1.000000e+00 : f32
    %121 = vector.broadcast %cst_92 : f32 to vector<2x12xf32>
    %122 = arith.addf %121, %120 : vector<2x12xf32>
    %123 = arith.divf %121, %122 : vector<2x12xf32>
    %c20 = arith.constant 20 : index
    %c0_93 = arith.constant 0 : index
    %124 = vector.load %arg6[%c20, %c0_93] : memref<64x12xf32, #tpu.memory_space<vmem>>, vector<2x12xf32>
    %cst_94 = arith.constant dense<0.000000e+00> : vector<2x12xf32>
    %125 = tpu.matmul %112, %37, %cst_94 {dimension_numbers = #tpu.dot_dimension_numbers<[1], [0], [0], [1], [0, 0, 1, 1], [], []>} : vector<2x12xf32>, vector<12x12xf32>, vector<2x12xf32> -> vector<2x12xf32>
    %126 = arith.addf %124, %125 : vector<2x12xf32>
    %127 = arith.negf %126 : vector<2x12xf32>
    %128 = math.exp %127 : vector<2x12xf32>
    %cst_95 = arith.constant 1.000000e+00 : f32
    %129 = vector.broadcast %cst_95 : f32 to vector<2x12xf32>
    %130 = arith.addf %129, %128 : vector<2x12xf32>
    %131 = arith.divf %129, %130 : vector<2x12xf32>
    %c36 = arith.constant 36 : index
    %c0_96 = arith.constant 0 : index
    %132 = vector.load %arg6[%c36, %c0_96] : memref<64x12xf32, #tpu.memory_space<vmem>>, vector<2x12xf32>
    %cst_97 = arith.constant dense<0.000000e+00> : vector<2x12xf32>
    %133 = tpu.matmul %112, %39, %cst_97 {dimension_numbers = #tpu.dot_dimension_numbers<[1], [0], [0], [1], [0, 0, 1, 1], [], []>} : vector<2x12xf32>, vector<12x12xf32>, vector<2x12xf32> -> vector<2x12xf32>
    %134 = arith.addf %132, %133 : vector<2x12xf32>
    %135 = math.tanh %134 : vector<2x12xf32>
    %c52 = arith.constant 52 : index
    %c0_98 = arith.constant 0 : index
    %136 = vector.load %arg6[%c52, %c0_98] : memref<64x12xf32, #tpu.memory_space<vmem>>, vector<2x12xf32>
    %cst_99 = arith.constant dense<0.000000e+00> : vector<2x12xf32>
    %137 = tpu.matmul %112, %41, %cst_99 {dimension_numbers = #tpu.dot_dimension_numbers<[1], [0], [0], [1], [0, 0, 1, 1], [], []>} : vector<2x12xf32>, vector<12x12xf32>, vector<2x12xf32> -> vector<2x12xf32>
    %138 = arith.addf %136, %137 : vector<2x12xf32>
    %139 = arith.negf %138 : vector<2x12xf32>
    %140 = math.exp %139 : vector<2x12xf32>
    %cst_100 = arith.constant 1.000000e+00 : f32
    %141 = vector.broadcast %cst_100 : f32 to vector<2x12xf32>
    %142 = arith.addf %141, %140 : vector<2x12xf32>
    %143 = arith.divf %141, %142 : vector<2x12xf32>
    %144 = arith.mulf %131, %110 : vector<2x12xf32>
    %145 = arith.mulf %123, %135 : vector<2x12xf32>
    %146 = arith.addf %144, %145 : vector<2x12xf32>
    %147 = math.tanh %146 : vector<2x12xf32>
    %148 = arith.mulf %143, %147 : vector<2x12xf32>
    %c0_101 = arith.constant 0 : index
    %c4_102 = arith.constant 4 : index
    %c0_103 = arith.constant 0 : index
    %149 = vector.load %arg5[%c0_101, %c4_102, %c0_103] : memref<1x16x12xf32, #tpu.memory_space<vmem>>, vector<1x2x12xf32>
    %150 = vector.shape_cast %149 : vector<1x2x12xf32> to vector<2x12xf32>
    %151 = vector.shape_cast %148 : vector<2x12xf32> to vector<1x2x12xf32>
    tpu.vector_store %arg5[%c0_101, %c4_102, %c0_103], %151 {strides = array<i32>} : memref<1x16x12xf32, #tpu.memory_space<vmem>>, vector<1x2x12xf32>,
    %c6 = arith.constant 6 : index
    %c0_104 = arith.constant 0 : index
    %152 = vector.load %arg6[%c6, %c0_104] : memref<64x12xf32, #tpu.memory_space<vmem>>, vector<2x12xf32>
    %cst_105 = arith.constant dense<0.000000e+00> : vector<2x12xf32>
    %153 = tpu.matmul %148, %35, %cst_105 {dimension_numbers = #tpu.dot_dimension_numbers<[1], [0], [0], [1], [0, 0, 1, 1], [], []>} : vector<2x12xf32>, vector<12x12xf32>, vector<2x12xf32> -> vector<2x12xf32>
    %154 = arith.addf %152, %153 : vector<2x12xf32>
    %155 = arith.negf %154 : vector<2x12xf32>
    %156 = math.exp %155 : vector<2x12xf32>
    %cst_106 = arith.constant 1.000000e+00 : f32
    %157 = vector.broadcast %cst_106 : f32 to vector<2x12xf32>
    %158 = arith.addf %157, %156 : vector<2x12xf32>
    %159 = arith.divf %157, %158 : vector<2x12xf32>
    %c22 = arith.constant 22 : index
    %c0_107 = arith.constant 0 : index
    %160 = vector.load %arg6[%c22, %c0_107] : memref<64x12xf32, #tpu.memory_space<vmem>>, vector<2x12xf32>
    %cst_108 = arith.constant dense<0.000000e+00> : vector<2x12xf32>
    %161 = tpu.matmul %148, %37, %cst_108 {dimension_numbers = #tpu.dot_dimension_numbers<[1], [0], [0], [1], [0, 0, 1, 1], [], []>} : vector<2x12xf32>, vector<12x12xf32>, vector<2x12xf32> -> vector<2x12xf32>
    %162 = arith.addf %160, %161 : vector<2x12xf32>
    %163 = arith.negf %162 : vector<2x12xf32>
    %164 = math.exp %163 : vector<2x12xf32>
    %cst_109 = arith.constant 1.000000e+00 : f32
    %165 = vector.broadcast %cst_109 : f32 to vector<2x12xf32>
    %166 = arith.addf %165, %164 : vector<2x12xf32>
    %167 = arith.divf %165, %166 : vector<2x12xf32>
    %c38 = arith.constant 38 : index
    %c0_110 = arith.constant 0 : index
    %168 = vector.load %arg6[%c38, %c0_110] : memref<64x12xf32, #tpu.memory_space<vmem>>, vector<2x12xf32>
    %cst_111 = arith.constant dense<0.000000e+00> : vector<2x12xf32>
    %169 = tpu.matmul %148, %39, %cst_111 {dimension_numbers = #tpu.dot_dimension_numbers<[1], [0], [0], [1], [0, 0, 1, 1], [], []>} : vector<2x12xf32>, vector<12x12xf32>, vector<2x12xf32> -> vector<2x12xf32>
    %170 = arith.addf %168, %169 : vector<2x12xf32>
    %171 = math.tanh %170 : vector<2x12xf32>
    %c54 = arith.constant 54 : index
    %c0_112 = arith.constant 0 : index
    %172 = vector.load %arg6[%c54, %c0_112] : memref<64x12xf32, #tpu.memory_space<vmem>>, vector<2x12xf32>
    %cst_113 = arith.constant dense<0.000000e+00> : vector<2x12xf32>
    %173 = tpu.matmul %148, %41, %cst_113 {dimension_numbers = #tpu.dot_dimension_numbers<[1], [0], [0], [1], [0, 0, 1, 1], [], []>} : vector<2x12xf32>, vector<12x12xf32>, vector<2x12xf32> -> vector<2x12xf32>
    %174 = arith.addf %172, %173 : vector<2x12xf32>
    %175 = arith.negf %174 : vector<2x12xf32>
    %176 = math.exp %175 : vector<2x12xf32>
    %cst_114 = arith.constant 1.000000e+00 : f32
    %177 = vector.broadcast %cst_114 : f32 to vector<2x12xf32>
    %178 = arith.addf %177, %176 : vector<2x12xf32>
    %179 = arith.divf %177, %178 : vector<2x12xf32>
    %180 = arith.mulf %167, %146 : vector<2x12xf32>
    %181 = arith.mulf %159, %171 : vector<2x12xf32>
    %182 = arith.addf %180, %181 : vector<2x12xf32>
    %183 = math.tanh %182 : vector<2x12xf32>
    %184 = arith.mulf %179, %183 : vector<2x12xf32>
    %c0_115 = arith.constant 0 : index
    %c6_116 = arith.constant 6 : index
    %c0_117 = arith.constant 0 : index
    %185 = vector.load %arg5[%c0_115, %c6_116, %c0_117] : memref<1x16x12xf32, #tpu.memory_space<vmem>>, vector<1x2x12xf32>
    %186 = vector.shape_cast %185 : vector<1x2x12xf32> to vector<2x12xf32>
    %187 = vector.shape_cast %184 : vector<2x12xf32> to vector<1x2x12xf32>
    tpu.vector_store %arg5[%c0_115, %c6_116, %c0_117], %187 {strides = array<i32>} : memref<1x16x12xf32, #tpu.memory_space<vmem>>, vector<1x2x12xf32>,
    %c8 = arith.constant 8 : index
    %c0_118 = arith.constant 0 : index
    %188 = vector.load %arg6[%c8, %c0_118] : memref<64x12xf32, #tpu.memory_space<vmem>>, vector<2x12xf32>
    %cst_119 = arith.constant dense<0.000000e+00> : vector<2x12xf32>
    %189 = tpu.matmul %184, %35, %cst_119 {dimension_numbers = #tpu.dot_dimension_numbers<[1], [0], [0], [1], [0, 0, 1, 1], [], []>} : vector<2x12xf32>, vector<12x12xf32>, vector<2x12xf32> -> vector<2x12xf32>
    %190 = arith.addf %188, %189 : vector<2x12xf32>
    %191 = arith.negf %190 : vector<2x12xf32>
    %192 = math.exp %191 : vector<2x12xf32>
    %cst_120 = arith.constant 1.000000e+00 : f32
    %193 = vector.broadcast %cst_120 : f32 to vector<2x12xf32>
    %194 = arith.addf %193, %192 : vector<2x12xf32>
    %195 = arith.divf %193, %194 : vector<2x12xf32>
    %c24 = arith.constant 24 : index
    %c0_121 = arith.constant 0 : index
    %196 = vector.load %arg6[%c24, %c0_121] : memref<64x12xf32, #tpu.memory_space<vmem>>, vector<2x12xf32>
    %cst_122 = arith.constant dense<0.000000e+00> : vector<2x12xf32>
    %197 = tpu.matmul %184, %37, %cst_122 {dimension_numbers = #tpu.dot_dimension_numbers<[1], [0], [0], [1], [0, 0, 1, 1], [], []>} : vector<2x12xf32>, vector<12x12xf32>, vector<2x12xf32> -> vector<2x12xf32>
    %198 = arith.addf %196, %197 : vector<2x12xf32>
    %199 = arith.negf %198 : vector<2x12xf32>
    %200 = math.exp %199 : vector<2x12xf32>
    %cst_123 = arith.constant 1.000000e+00 : f32
    %201 = vector.broadcast %cst_123 : f32 to vector<2x12xf32>
    %202 = arith.addf %201, %200 : vector<2x12xf32>
    %203 = arith.divf %201, %202 : vector<2x12xf32>
    %c40 = arith.constant 40 : index
    %c0_124 = arith.constant 0 : index
    %204 = vector.load %arg6[%c40, %c0_124] : memref<64x12xf32, #tpu.memory_space<vmem>>, vector<2x12xf32>
    %cst_125 = arith.constant dense<0.000000e+00> : vector<2x12xf32>
    %205 = tpu.matmul %184, %39, %cst_125 {dimension_numbers = #tpu.dot_dimension_numbers<[1], [0], [0], [1], [0, 0, 1, 1], [], []>} : vector<2x12xf32>, vector<12x12xf32>, vector<2x12xf32> -> vector<2x12xf32>
    %206 = arith.addf %204, %205 : vector<2x12xf32>
    %207 = math.tanh %206 : vector<2x12xf32>
    %c56 = arith.constant 56 : index
    %c0_126 = arith.constant 0 : index
    %208 = vector.load %arg6[%c56, %c0_126] : memref<64x12xf32, #tpu.memory_space<vmem>>, vector<2x12xf32>
    %cst_127 = arith.constant dense<0.000000e+00> : vector<2x12xf32>
    %209 = tpu.matmul %184, %41, %cst_127 {dimension_numbers = #tpu.dot_dimension_numbers<[1], [0], [0], [1], [0, 0, 1, 1], [], []>} : vector<2x12xf32>, vector<12x12xf32>, vector<2x12xf32> -> vector<2x12xf32>
    %210 = arith.addf %208, %209 : vector<2x12xf32>
    %211 = arith.negf %210 : vector<2x12xf32>
    %212 = math.exp %211 : vector<2x12xf32>
    %cst_128 = arith.constant 1.000000e+00 : f32
    %213 = vector.broadcast %cst_128 : f32 to vector<2x12xf32>
    %214 = arith.addf %213, %212 : vector<2x12xf32>
    %215 = arith.divf %213, %214 : vector<2x12xf32>
    %216 = arith.mulf %203, %182 : vector<2x12xf32>
    %217 = arith.mulf %195, %207 : vector<2x12xf32>
    %218 = arith.addf %216, %217 : vector<2x12xf32>
    %219 = math.tanh %218 : vector<2x12xf32>
    %220 = arith.mulf %215, %219 : vector<2x12xf32>
    %c0_129 = arith.constant 0 : index
    %c8_130 = arith.constant 8 : index
    %c0_131 = arith.constant 0 : index
    %221 = vector.load %arg5[%c0_129, %c8_130, %c0_131] : memref<1x16x12xf32, #tpu.memory_space<vmem>>, vector<1x2x12xf32>
    %222 = vector.shape_cast %221 : vector<1x2x12xf32> to vector<2x12xf32>
    %223 = vector.shape_cast %220 : vector<2x12xf32> to vector<1x2x12xf32>
    tpu.vector_store %arg5[%c0_129, %c8_130, %c0_131], %223 {strides = array<i32>} : memref<1x16x12xf32, #tpu.memory_space<vmem>>, vector<1x2x12xf32>,
    %c10 = arith.constant 10 : index
    %c0_132 = arith.constant 0 : index
    %224 = vector.load %arg6[%c10, %c0_132] : memref<64x12xf32, #tpu.memory_space<vmem>>, vector<2x12xf32>
    %cst_133 = arith.constant dense<0.000000e+00> : vector<2x12xf32>
    %225 = tpu.matmul %220, %35, %cst_133 {dimension_numbers = #tpu.dot_dimension_numbers<[1], [0], [0], [1], [0, 0, 1, 1], [], []>} : vector<2x12xf32>, vector<12x12xf32>, vector<2x12xf32> -> vector<2x12xf32>
    %226 = arith.addf %224, %225 : vector<2x12xf32>
    %227 = arith.negf %226 : vector<2x12xf32>
    %228 = math.exp %227 : vector<2x12xf32>
    %cst_134 = arith.constant 1.000000e+00 : f32
    %229 = vector.broadcast %cst_134 : f32 to vector<2x12xf32>
    %230 = arith.addf %229, %228 : vector<2x12xf32>
    %231 = arith.divf %229, %230 : vector<2x12xf32>
    %c26 = arith.constant 26 : index
    %c0_135 = arith.constant 0 : index
    %232 = vector.load %arg6[%c26, %c0_135] : memref<64x12xf32, #tpu.memory_space<vmem>>, vector<2x12xf32>
    %cst_136 = arith.constant dense<0.000000e+00> : vector<2x12xf32>
    %233 = tpu.matmul %220, %37, %cst_136 {dimension_numbers = #tpu.dot_dimension_numbers<[1], [0], [0], [1], [0, 0, 1, 1], [], []>} : vector<2x12xf32>, vector<12x12xf32>, vector<2x12xf32> -> vector<2x12xf32>
    %234 = arith.addf %232, %233 : vector<2x12xf32>
    %235 = arith.negf %234 : vector<2x12xf32>
    %236 = math.exp %235 : vector<2x12xf32>
    %cst_137 = arith.constant 1.000000e+00 : f32
    %237 = vector.broadcast %cst_137 : f32 to vector<2x12xf32>
    %238 = arith.addf %237, %236 : vector<2x12xf32>
    %239 = arith.divf %237, %238 : vector<2x12xf32>
    %c42 = arith.constant 42 : index
    %c0_138 = arith.constant 0 : index
    %240 = vector.load %arg6[%c42, %c0_138] : memref<64x12xf32, #tpu.memory_space<vmem>>, vector<2x12xf32>
    %cst_139 = arith.constant dense<0.000000e+00> : vector<2x12xf32>
    %241 = tpu.matmul %220, %39, %cst_139 {dimension_numbers = #tpu.dot_dimension_numbers<[1], [0], [0], [1], [0, 0, 1, 1], [], []>} : vector<2x12xf32>, vector<12x12xf32>, vector<2x12xf32> -> vector<2x12xf32>
    %242 = arith.addf %240, %241 : vector<2x12xf32>
    %243 = math.tanh %242 : vector<2x12xf32>
    %c58 = arith.constant 58 : index
    %c0_140 = arith.constant 0 : index
    %244 = vector.load %arg6[%c58, %c0_140] : memref<64x12xf32, #tpu.memory_space<vmem>>, vector<2x12xf32>
    %cst_141 = arith.constant dense<0.000000e+00> : vector<2x12xf32>
    %245 = tpu.matmul %220, %41, %cst_141 {dimension_numbers = #tpu.dot_dimension_numbers<[1], [0], [0], [1], [0, 0, 1, 1], [], []>} : vector<2x12xf32>, vector<12x12xf32>, vector<2x12xf32> -> vector<2x12xf32>
    %246 = arith.addf %244, %245 : vector<2x12xf32>
    %247 = arith.negf %246 : vector<2x12xf32>
    %248 = math.exp %247 : vector<2x12xf32>
    %cst_142 = arith.constant 1.000000e+00 : f32
    %249 = vector.broadcast %cst_142 : f32 to vector<2x12xf32>
    %250 = arith.addf %249, %248 : vector<2x12xf32>
    %251 = arith.divf %249, %250 : vector<2x12xf32>
    %252 = arith.mulf %239, %218 : vector<2x12xf32>
    %253 = arith.mulf %231, %243 : vector<2x12xf32>
    %254 = arith.addf %252, %253 : vector<2x12xf32>
    %255 = math.tanh %254 : vector<2x12xf32>
    %256 = arith.mulf %251, %255 : vector<2x12xf32>
    %c0_143 = arith.constant 0 : index
    %c10_144 = arith.constant 10 : index
    %c0_145 = arith.constant 0 : index
    %257 = vector.load %arg5[%c0_143, %c10_144, %c0_145] : memref<1x16x12xf32, #tpu.memory_space<vmem>>, vector<1x2x12xf32>
    %258 = vector.shape_cast %257 : vector<1x2x12xf32> to vector<2x12xf32>
    %259 = vector.shape_cast %256 : vector<2x12xf32> to vector<1x2x12xf32>
    tpu.vector_store %arg5[%c0_143, %c10_144, %c0_145], %259 {strides = array<i32>} : memref<1x16x12xf32, #tpu.memory_space<vmem>>, vector<1x2x12xf32>,
    %c12 = arith.constant 12 : index
    %c0_146 = arith.constant 0 : index
    %260 = vector.load %arg6[%c12, %c0_146] : memref<64x12xf32, #tpu.memory_space<vmem>>, vector<2x12xf32>
    %cst_147 = arith.constant dense<0.000000e+00> : vector<2x12xf32>
    %261 = tpu.matmul %256, %35, %cst_147 {dimension_numbers = #tpu.dot_dimension_numbers<[1], [0], [0], [1], [0, 0, 1, 1], [], []>} : vector<2x12xf32>, vector<12x12xf32>, vector<2x12xf32> -> vector<2x12xf32>
    %262 = arith.addf %260, %261 : vector<2x12xf32>
    %263 = arith.negf %262 : vector<2x12xf32>
    %264 = math.exp %263 : vector<2x12xf32>
    %cst_148 = arith.constant 1.000000e+00 : f32
    %265 = vector.broadcast %cst_148 : f32 to vector<2x12xf32>
    %266 = arith.addf %265, %264 : vector<2x12xf32>
    %267 = arith.divf %265, %266 : vector<2x12xf32>
    %c28 = arith.constant 28 : index
    %c0_149 = arith.constant 0 : index
    %268 = vector.load %arg6[%c28, %c0_149] : memref<64x12xf32, #tpu.memory_space<vmem>>, vector<2x12xf32>
    %cst_150 = arith.constant dense<0.000000e+00> : vector<2x12xf32>
    %269 = tpu.matmul %256, %37, %cst_150 {dimension_numbers = #tpu.dot_dimension_numbers<[1], [0], [0], [1], [0, 0, 1, 1], [], []>} : vector<2x12xf32>, vector<12x12xf32>, vector<2x12xf32> -> vector<2x12xf32>
    %270 = arith.addf %268, %269 : vector<2x12xf32>
    %271 = arith.negf %270 : vector<2x12xf32>
    %272 = math.exp %271 : vector<2x12xf32>
    %cst_151 = arith.constant 1.000000e+00 : f32
    %273 = vector.broadcast %cst_151 : f32 to vector<2x12xf32>
    %274 = arith.addf %273, %272 : vector<2x12xf32>
    %275 = arith.divf %273, %274 : vector<2x12xf32>
    %c44 = arith.constant 44 : index
    %c0_152 = arith.constant 0 : index
    %276 = vector.load %arg6[%c44, %c0_152] : memref<64x12xf32, #tpu.memory_space<vmem>>, vector<2x12xf32>
    %cst_153 = arith.constant dense<0.000000e+00> : vector<2x12xf32>
    %277 = tpu.matmul %256, %39, %cst_153 {dimension_numbers = #tpu.dot_dimension_numbers<[1], [0], [0], [1], [0, 0, 1, 1], [], []>} : vector<2x12xf32>, vector<12x12xf32>, vector<2x12xf32> -> vector<2x12xf32>
    %278 = arith.addf %276, %277 : vector<2x12xf32>
    %279 = math.tanh %278 : vector<2x12xf32>
    %c60 = arith.constant 60 : index
    %c0_154 = arith.constant 0 : index
    %280 = vector.load %arg6[%c60, %c0_154] : memref<64x12xf32, #tpu.memory_space<vmem>>, vector<2x12xf32>
    %cst_155 = arith.constant dense<0.000000e+00> : vector<2x12xf32>
    %281 = tpu.matmul %256, %41, %cst_155 {dimension_numbers = #tpu.dot_dimension_numbers<[1], [0], [0], [1], [0, 0, 1, 1], [], []>} : vector<2x12xf32>, vector<12x12xf32>, vector<2x12xf32> -> vector<2x12xf32>
    %282 = arith.addf %280, %281 : vector<2x12xf32>
    %283 = arith.negf %282 : vector<2x12xf32>
    %284 = math.exp %283 : vector<2x12xf32>
    %cst_156 = arith.constant 1.000000e+00 : f32
    %285 = vector.broadcast %cst_156 : f32 to vector<2x12xf32>
    %286 = arith.addf %285, %284 : vector<2x12xf32>
    %287 = arith.divf %285, %286 : vector<2x12xf32>
    %288 = arith.mulf %275, %254 : vector<2x12xf32>
    %289 = arith.mulf %267, %279 : vector<2x12xf32>
    %290 = arith.addf %288, %289 : vector<2x12xf32>
    %291 = math.tanh %290 : vector<2x12xf32>
    %292 = arith.mulf %287, %291 : vector<2x12xf32>
    %c0_157 = arith.constant 0 : index
    %c12_158 = arith.constant 12 : index
    %c0_159 = arith.constant 0 : index
    %293 = vector.load %arg5[%c0_157, %c12_158, %c0_159] : memref<1x16x12xf32, #tpu.memory_space<vmem>>, vector<1x2x12xf32>
    %294 = vector.shape_cast %293 : vector<1x2x12xf32> to vector<2x12xf32>
    %295 = vector.shape_cast %292 : vector<2x12xf32> to vector<1x2x12xf32>
    tpu.vector_store %arg5[%c0_157, %c12_158, %c0_159], %295 {strides = array<i32>} : memref<1x16x12xf32, #tpu.memory_space<vmem>>, vector<1x2x12xf32>,
    %c14 = arith.constant 14 : index
    %c0_160 = arith.constant 0 : index
    %296 = vector.load %arg6[%c14, %c0_160] : memref<64x12xf32, #tpu.memory_space<vmem>>, vector<2x12xf32>
    %cst_161 = arith.constant dense<0.000000e+00> : vector<2x12xf32>
    %297 = tpu.matmul %292, %35, %cst_161 {dimension_numbers = #tpu.dot_dimension_numbers<[1], [0], [0], [1], [0, 0, 1, 1], [], []>} : vector<2x12xf32>, vector<12x12xf32>, vector<2x12xf32> -> vector<2x12xf32>
    %298 = arith.addf %296, %297 : vector<2x12xf32>
    %299 = arith.negf %298 : vector<2x12xf32>
    %300 = math.exp %299 : vector<2x12xf32>
    %cst_162 = arith.constant 1.000000e+00 : f32
    %301 = vector.broadcast %cst_162 : f32 to vector<2x12xf32>
    %302 = arith.addf %301, %300 : vector<2x12xf32>
    %303 = arith.divf %301, %302 : vector<2x12xf32>
    %c30 = arith.constant 30 : index
    %c0_163 = arith.constant 0 : index
    %304 = vector.load %arg6[%c30, %c0_163] : memref<64x12xf32, #tpu.memory_space<vmem>>, vector<2x12xf32>
    %cst_164 = arith.constant dense<0.000000e+00> : vector<2x12xf32>
    %305 = tpu.matmul %292, %37, %cst_164 {dimension_numbers = #tpu.dot_dimension_numbers<[1], [0], [0], [1], [0, 0, 1, 1], [], []>} : vector<2x12xf32>, vector<12x12xf32>, vector<2x12xf32> -> vector<2x12xf32>
    %306 = arith.addf %304, %305 : vector<2x12xf32>
    %307 = arith.negf %306 : vector<2x12xf32>
    %308 = math.exp %307 : vector<2x12xf32>
    %cst_165 = arith.constant 1.000000e+00 : f32
    %309 = vector.broadcast %cst_165 : f32 to vector<2x12xf32>
    %310 = arith.addf %309, %308 : vector<2x12xf32>
    %311 = arith.divf %309, %310 : vector<2x12xf32>
    %c46 = arith.constant 46 : index
    %c0_166 = arith.constant 0 : index
    %312 = vector.load %arg6[%c46, %c0_166] : memref<64x12xf32, #tpu.memory_space<vmem>>, vector<2x12xf32>
    %cst_167 = arith.constant dense<0.000000e+00> : vector<2x12xf32>
    %313 = tpu.matmul %292, %39, %cst_167 {dimension_numbers = #tpu.dot_dimension_numbers<[1], [0], [0], [1], [0, 0, 1, 1], [], []>} : vector<2x12xf32>, vector<12x12xf32>, vector<2x12xf32> -> vector<2x12xf32>
    %314 = arith.addf %312, %313 : vector<2x12xf32>
    %315 = math.tanh %314 : vector<2x12xf32>
    %c62 = arith.constant 62 : index
    %c0_168 = arith.constant 0 : index
    %316 = vector.load %arg6[%c62, %c0_168] : memref<64x12xf32, #tpu.memory_space<vmem>>, vector<2x12xf32>
    %cst_169 = arith.constant dense<0.000000e+00> : vector<2x12xf32>
    %317 = tpu.matmul %292, %41, %cst_169 {dimension_numbers = #tpu.dot_dimension_numbers<[1], [0], [0], [1], [0, 0, 1, 1], [], []>} : vector<2x12xf32>, vector<12x12xf32>, vector<2x12xf32> -> vector<2x12xf32>
    %318 = arith.addf %316, %317 : vector<2x12xf32>
    %319 = arith.negf %318 : vector<2x12xf32>
    %320 = math.exp %319 : vector<2x12xf32>
    %cst_170 = arith.constant 1.000000e+00 : f32
    %321 = vector.broadcast %cst_170 : f32 to vector<2x12xf32>
    %322 = arith.addf %321, %320 : vector<2x12xf32>
    %323 = arith.divf %321, %322 : vector<2x12xf32>
    %324 = arith.mulf %311, %290 : vector<2x12xf32>
    %325 = arith.mulf %303, %315 : vector<2x12xf32>
    %326 = arith.addf %324, %325 : vector<2x12xf32>
    %327 = math.tanh %326 : vector<2x12xf32>
    %328 = arith.mulf %323, %327 : vector<2x12xf32>
    %c0_171 = arith.constant 0 : index
    %c14_172 = arith.constant 14 : index
    %c0_173 = arith.constant 0 : index
    %329 = vector.load %arg5[%c0_171, %c14_172, %c0_173] : memref<1x16x12xf32, #tpu.memory_space<vmem>>, vector<1x2x12xf32>
    %330 = vector.shape_cast %329 : vector<1x2x12xf32> to vector<2x12xf32>
    %331 = vector.shape_cast %328 : vector<2x12xf32> to vector<1x2x12xf32>
    tpu.vector_store %arg5[%c0_171, %c14_172, %c0_173], %331 {strides = array<i32>} : memref<1x16x12xf32, #tpu.memory_space<vmem>>, vector<1x2x12xf32>,
    return
  }
  func.func @transform_0(%arg0: i32) -> (i32, i32, i32) {
    %c0_i32 = arith.constant 0 : i32
    %c0_i32_0 = arith.constant 0 : i32
    %c0_i32_1 = arith.constant 0 : i32
    return %arg0, %c0_i32, %c0_i32_0 : i32, i32, i32
  }
  func.func @transform_1(%arg0: i32) -> (i32, i32, i32, i32) {
    %c0_i32 = arith.constant 0 : i32
    %c0_i32_0 = arith.constant 0 : i32
    %c0_i32_1 = arith.constant 0 : i32
    %c0_i32_2 = arith.constant 0 : i32
    return %arg0, %c0_i32, %c0_i32_0, %c0_i32_1 : i32, i32, i32, i32
  }
  func.func @transform_2(%arg0: i32) -> (i32, i32, i32, i32) {
    %c0_i32 = arith.constant 0 : i32
    %c0_i32_0 = arith.constant 0 : i32
    %c0_i32_1 = arith.constant 0 : i32
    %c0_i32_2 = arith.constant 0 : i32
    return %arg0, %c0_i32, %c0_i32_0, %c0_i32_1 : i32, i32, i32, i32
  }
  func.func @transform_3(%arg0: i32) -> (i32, i32, i32, i32) {
    %c0_i32 = arith.constant 0 : i32
    %c0_i32_0 = arith.constant 0 : i32
    %c0_i32_1 = arith.constant 0 : i32
    %c0_i32_2 = arith.constant 0 : i32
    return %arg0, %c0_i32, %c0_i32_0, %c0_i32_1 : i32, i32, i32, i32
  }
  func.func @transform_4(%arg0: i32) -> (i32, i32, i32) {
    %c0_i32 = arith.constant 0 : i32
    %c0_i32_0 = arith.constant 0 : i32
    %c0_i32_1 = arith.constant 0 : i32
    return %arg0, %c0_i32, %c0_i32_0 : i32, i32, i32
  }
}

module attributes {stable_mosaic.version = 11 : i64} {
  func.func @_bilstm_layer_kernel(%arg0: i32, %arg1: memref<1x16x24xf32, #tpu.memory_space<vmem>>, %arg2: memref<1x4x24x12xf32, #tpu.memory_space<vmem>>, %arg3: memref<1x4x12x12xf32, #tpu.memory_space<vmem>>, %arg4: memref<1x4x1x12xf32, #tpu.memory_space<vmem>>, %arg5: memref<1x16x12xf32, #tpu.memory_space<vmem>>, %arg6: memref<64x12xf32, #tpu.memory_space<vmem>>) attributes {dimension_semantics = [#tpu.dimension_semantics<parallel>], iteration_bounds = array<i64: 2>, scalar_prefetch = 0 : i64, scratch_operands = 1 : i64, tpu.core_type = #tpu.core_type<tc>, window_params = [{transform_indices = @transform_0, window_bounds = array<i64: 1, 16, 24>}, {transform_indices = @transform_1, window_bounds = array<i64: 1, 4, 24, 12>}, {transform_indices = @transform_2, window_bounds = array<i64: 1, 4, 12, 12>}, {transform_indices = @transform_3, window_bounds = array<i64: 1, 4, 1, 12>}, {transform_indices = @transform_4, window_bounds = array<i64: 1, 16, 12>}]} {
    %c0 = arith.constant 0 : index
    %c0_0 = arith.constant 0 : index
    %c0_1 = arith.constant 0 : index
    %0 = vector.load %arg1[%c0, %c0_0, %c0_1] : memref<1x16x24xf32, #tpu.memory_space<vmem>>, vector<1x16x24xf32>
    %1 = vector.shape_cast %0 : vector<1x16x24xf32> to vector<16x24xf32>
    %c0_2 = arith.constant 0 : index
    %c0_3 = arith.constant 0 : index
    %c0_4 = arith.constant 0 : index
    %c0_5 = arith.constant 0 : index
    %2 = vector.load %arg2[%c0_2, %c0_3, %c0_4, %c0_5] : memref<1x4x24x12xf32, #tpu.memory_space<vmem>>, vector<1x1x24x12xf32>
    %3 = vector.shape_cast %2 : vector<1x1x24x12xf32> to vector<24x12xf32>
    %cst = arith.constant dense<0.000000e+00> : vector<16x12xf32>
    %4 = tpu.matmul %1, %3, %cst {dimension_numbers = #tpu.dot_dimension_numbers<[1], [0], [0], [1], [0, 0, 1, 1], [], []>} : vector<16x24xf32>, vector<24x12xf32>, vector<16x12xf32> -> vector<16x12xf32>
    %c0_6 = arith.constant 0 : index
    %c0_7 = arith.constant 0 : index
    %c0_8 = arith.constant 0 : index
    %c0_9 = arith.constant 0 : index
    %5 = vector.load %arg4[%c0_6, %c0_7, %c0_8, %c0_9] : memref<1x4x1x12xf32, #tpu.memory_space<vmem>>, vector<1x1x1x12xf32>
    %6 = vector.shape_cast %5 : vector<1x1x1x12xf32> to vector<1x12xf32>
    %7 = vector.broadcast %6 : vector<1x12xf32> to vector<16x12xf32>
    %8 = arith.addf %4, %7 : vector<16x12xf32>
    %c0_10 = arith.constant 0 : index
    %c0_11 = arith.constant 0 : index
    %9 = vector.load %arg6[%c0_10, %c0_11] : memref<64x12xf32, #tpu.memory_space<vmem>>, vector<16x12xf32>
    tpu.vector_store %arg6[%c0_10, %c0_11], %8 {strides = array<i32>} : memref<64x12xf32, #tpu.memory_space<vmem>>, vector<16x12xf32>,
    %c0_12 = arith.constant 0 : index
    %c1 = arith.constant 1 : index
    %c0_13 = arith.constant 0 : index
    %c0_14 = arith.constant 0 : index
    %10 = vector.load %arg2[%c0_12, %c1, %c0_13, %c0_14] : memref<1x4x24x12xf32, #tpu.memory_space<vmem>>, vector<1x1x24x12xf32>
    %11 = vector.shape_cast %10 : vector<1x1x24x12xf32> to vector<24x12xf32>
    %cst_15 = arith.constant dense<0.000000e+00> : vector<16x12xf32>
    %12 = tpu.matmul %1, %11, %cst_15 {dimension_numbers = #tpu.dot_dimension_numbers<[1], [0], [0], [1], [0, 0, 1, 1], [], []>} : vector<16x24xf32>, vector<24x12xf32>, vector<16x12xf32> -> vector<16x12xf32>
    %c0_16 = arith.constant 0 : index
    %c1_17 = arith.constant 1 : index
    %c0_18 = arith.constant 0 : index
    %c0_19 = arith.constant 0 : index
    %13 = vector.load %arg4[%c0_16, %c1_17, %c0_18, %c0_19] : memref<1x4x1x12xf32, #tpu.memory_space<vmem>>, vector<1x1x1x12xf32>
    %14 = vector.shape_cast %13 : vector<1x1x1x12xf32> to vector<1x12xf32>
    %15 = vector.broadcast %14 : vector<1x12xf32> to vector<16x12xf32>
    %16 = arith.addf %12, %15 : vector<16x12xf32>
    %c16 = arith.constant 16 : index
    %c0_20 = arith.constant 0 : index
    %17 = vector.load %arg6[%c16, %c0_20] : memref<64x12xf32, #tpu.memory_space<vmem>>, vector<16x12xf32>
    tpu.vector_store %arg6[%c16, %c0_20], %16 {strides = array<i32>} : memref<64x12xf32, #tpu.memory_space<vmem>>, vector<16x12xf32>,
    %c0_21 = arith.constant 0 : index
    %c2 = arith.constant 2 : index
    %c0_22 = arith.constant 0 : index
    %c0_23 = arith.constant 0 : index
    %18 = vector.load %arg2[%c0_21, %c2, %c0_22, %c0_23] : memref<1x4x24x12xf32, #tpu.memory_space<vmem>>, vector<1x1x24x12xf32>
    %19 = vector.shape_cast %18 : vector<1x1x24x12xf32> to vector<24x12xf32>
    %cst_24 = arith.constant dense<0.000000e+00> : vector<16x12xf32>
    %20 = tpu.matmul %1, %19, %cst_24 {dimension_numbers = #tpu.dot_dimension_numbers<[1], [0], [0], [1], [0, 0, 1, 1], [], []>} : vector<16x24xf32>, vector<24x12xf32>, vector<16x12xf32> -> vector<16x12xf32>
    %c0_25 = arith.constant 0 : index
    %c2_26 = arith.constant 2 : index
    %c0_27 = arith.constant 0 : index
    %c0_28 = arith.constant 0 : index
    %21 = vector.load %arg4[%c0_25, %c2_26, %c0_27, %c0_28] : memref<1x4x1x12xf32, #tpu.memory_space<vmem>>, vector<1x1x1x12xf32>
    %22 = vector.shape_cast %21 : vector<1x1x1x12xf32> to vector<1x12xf32>
    %23 = vector.broadcast %22 : vector<1x12xf32> to vector<16x12xf32>
    %24 = arith.addf %20, %23 : vector<16x12xf32>
    %c32 = arith.constant 32 : index
    %c0_29 = arith.constant 0 : index
    %25 = vector.load %arg6[%c32, %c0_29] : memref<64x12xf32, #tpu.memory_space<vmem>>, vector<16x12xf32>
    tpu.vector_store %arg6[%c32, %c0_29], %24 {strides = array<i32>} : memref<64x12xf32, #tpu.memory_space<vmem>>, vector<16x12xf32>,
    %c0_30 = arith.constant 0 : index
    %c3 = arith.constant 3 : index
    %c0_31 = arith.constant 0 : index
    %c0_32 = arith.constant 0 : index
    %26 = vector.load %arg2[%c0_30, %c3, %c0_31, %c0_32] : memref<1x4x24x12xf32, #tpu.memory_space<vmem>>, vector<1x1x24x12xf32>
    %27 = vector.shape_cast %26 : vector<1x1x24x12xf32> to vector<24x12xf32>
    %cst_33 = arith.constant dense<0.000000e+00> : vector<16x12xf32>
    %28 = tpu.matmul %1, %27, %cst_33 {dimension_numbers = #tpu.dot_dimension_numbers<[1], [0], [0], [1], [0, 0, 1, 1], [], []>} : vector<16x24xf32>, vector<24x12xf32>, vector<16x12xf32> -> vector<16x12xf32>
    %c0_34 = arith.constant 0 : index
    %c3_35 = arith.constant 3 : index
    %c0_36 = arith.constant 0 : index
    %c0_37 = arith.constant 0 : index
    %29 = vector.load %arg4[%c0_34, %c3_35, %c0_36, %c0_37] : memref<1x4x1x12xf32, #tpu.memory_space<vmem>>, vector<1x1x1x12xf32>
    %30 = vector.shape_cast %29 : vector<1x1x1x12xf32> to vector<1x12xf32>
    %31 = vector.broadcast %30 : vector<1x12xf32> to vector<16x12xf32>
    %32 = arith.addf %28, %31 : vector<16x12xf32>
    %c48 = arith.constant 48 : index
    %c0_38 = arith.constant 0 : index
    %33 = vector.load %arg6[%c48, %c0_38] : memref<64x12xf32, #tpu.memory_space<vmem>>, vector<16x12xf32>
    tpu.vector_store %arg6[%c48, %c0_38], %32 {strides = array<i32>} : memref<64x12xf32, #tpu.memory_space<vmem>>, vector<16x12xf32>,
    %c0_39 = arith.constant 0 : index
    %c0_40 = arith.constant 0 : index
    %c0_41 = arith.constant 0 : index
    %c0_42 = arith.constant 0 : index
    %34 = vector.load %arg3[%c0_39, %c0_40, %c0_41, %c0_42] : memref<1x4x12x12xf32, #tpu.memory_space<vmem>>, vector<1x1x12x12xf32>
    %35 = vector.shape_cast %34 : vector<1x1x12x12xf32> to vector<12x12xf32>
    %c0_43 = arith.constant 0 : index
    %c1_44 = arith.constant 1 : index
    %c0_45 = arith.constant 0 : index
    %c0_46 = arith.constant 0 : index
    %36 = vector.load %arg3[%c0_43, %c1_44, %c0_45, %c0_46] : memref<1x4x12x12xf32, #tpu.memory_space<vmem>>, vector<1x1x12x12xf32>
    %37 = vector.shape_cast %36 : vector<1x1x12x12xf32> to vector<12x12xf32>
    %c0_47 = arith.constant 0 : index
    %c2_48 = arith.constant 2 : index
    %c0_49 = arith.constant 0 : index
    %c0_50 = arith.constant 0 : index
    %38 = vector.load %arg3[%c0_47, %c2_48, %c0_49, %c0_50] : memref<1x4x12x12xf32, #tpu.memory_space<vmem>>, vector<1x1x12x12xf32>
    %39 = vector.shape_cast %38 : vector<1x1x12x12xf32> to vector<12x12xf32>
    %c0_51 = arith.constant 0 : index
    %c3_52 = arith.constant 3 : index
    %c0_53 = arith.constant 0 : index
    %c0_54 = arith.constant 0 : index
    %40 = vector.load %arg3[%c0_51, %c3_52, %c0_53, %c0_54] : memref<1x4x12x12xf32, #tpu.memory_space<vmem>>, vector<1x1x12x12xf32>
    %41 = vector.shape_cast %40 : vector<1x1x12x12xf32> to vector<12x12xf32>
    %cst_55 = arith.constant 0.000000e+00 : f32
    %42 = vector.broadcast %cst_55 : f32 to vector<2x12xf32>
    %cst_56 = arith.constant 0.000000e+00 : f32
    %43 = vector.broadcast %cst_56 : f32 to vector<2x12xf32>
    %c0_57 = arith.constant 0 : index
    %c0_58 = arith.constant 0 : index
    %44 = vector.load %arg6[%c0_57, %c0_58] : memref<64x12xf32, #tpu.memory_space<vmem>>, vector<2x12xf32>
    %cst_59 = arith.constant dense<0.000000e+00> : vector<2x12xf32>
    %45 = tpu.matmul %42, %35, %cst_59 {dimension_numbers = #tpu.dot_dimension_numbers<[1], [0], [0], [1], [0, 0, 1, 1], [], []>} : vector<2x12xf32>, vector<12x12xf32>, vector<2x12xf32> -> vector<2x12xf32>
    %46 = arith.addf %44, %45 : vector<2x12xf32>
    %47 = arith.negf %46 : vector<2x12xf32>
    %48 = math.exp %47 : vector<2x12xf32>
    %cst_60 = arith.constant 1.000000e+00 : f32
    %49 = vector.broadcast %cst_60 : f32 to vector<2x12xf32>
    %50 = arith.addf %49, %48 : vector<2x12xf32>
    %51 = arith.divf %49, %50 : vector<2x12xf32>
    %c16_61 = arith.constant 16 : index
    %c0_62 = arith.constant 0 : index
    %52 = vector.load %arg6[%c16_61, %c0_62] : memref<64x12xf32, #tpu.memory_space<vmem>>, vector<2x12xf32>
    %cst_63 = arith.constant dense<0.000000e+00> : vector<2x12xf32>
    %53 = tpu.matmul %42, %37, %cst_63 {dimension_numbers = #tpu.dot_dimension_numbers<[1], [0], [0], [1], [0, 0, 1, 1], [], []>} : vector<2x12xf32>, vector<12x12xf32>, vector<2x12xf32> -> vector<2x12xf32>
    %54 = arith.addf %52, %53 : vector<2x12xf32>
    %55 = arith.negf %54 : vector<2x12xf32>
    %56 = math.exp %55 : vector<2x12xf32>
    %cst_64 = arith.constant 1.000000e+00 : f32
    %57 = vector.broadcast %cst_64 : f32 to vector<2x12xf32>
    %58 = arith.addf %57, %56 : vector<2x12xf32>
    %59 = arith.divf %57, %58 : vector<2x12xf32>
    %c32_65 = arith.constant 32 : index
    %c0_66 = arith.constant 0 : index
    %60 = vector.load %arg6[%c32_65, %c0_66] : memref<64x12xf32, #tpu.memory_space<vmem>>, vector<2x12xf32>
    %cst_67 = arith.constant dense<0.000000e+00> : vector<2x12xf32>
    %61 = tpu.matmul %42, %39, %cst_67 {dimension_numbers = #tpu.dot_dimension_numbers<[1], [0], [0], [1], [0, 0, 1, 1], [], []>} : vector<2x12xf32>, vector<12x12xf32>, vector<2x12xf32> -> vector<2x12xf32>
    %62 = arith.addf %60, %61 : vector<2x12xf32>
    %63 = math.tanh %62 : vector<2x12xf32>
    %c48_68 = arith.constant 48 : index
    %c0_69 = arith.constant 0 : index
    %64 = vector.load %arg6[%c48_68, %c0_69] : memref<64x12xf32, #tpu.memory_space<vmem>>, vector<2x12xf32>
    %cst_70 = arith.constant dense<0.000000e+00> : vector<2x12xf32>
    %65 = tpu.matmul %42, %41, %cst_70 {dimension_numbers = #tpu.dot_dimension_numbers<[1], [0], [0], [1], [0, 0, 1, 1], [], []>} : vector<2x12xf32>, vector<12x12xf32>, vector<2x12xf32> -> vector<2x12xf32>
    %66 = arith.addf %64, %65 : vector<2x12xf32>
    %67 = arith.negf %66 : vector<2x12xf32>
    %68 = math.exp %67 : vector<2x12xf32>
    %cst_71 = arith.constant 1.000000e+00 : f32
    %69 = vector.broadcast %cst_71 : f32 to vector<2x12xf32>
    %70 = arith.addf %69, %68 : vector<2x12xf32>
    %71 = arith.divf %69, %70 : vector<2x12xf32>
    %72 = arith.mulf %59, %43 : vector<2x12xf32>
    %73 = arith.mulf %51, %63 : vector<2x12xf32>
    %74 = arith.addf %72, %73 : vector<2x12xf32>
    %75 = math.tanh %74 : vector<2x12xf32>
    %76 = arith.mulf %71, %75 : vector<2x12xf32>
    %c0_72 = arith.constant 0 : index
    %c0_73 = arith.constant 0 : index
    %c0_74 = arith.constant 0 : index
    %77 = vector.load %arg5[%c0_72, %c0_73, %c0_74] : memref<1x16x12xf32, #tpu.memory_space<vmem>>, vector<1x2x12xf32>
    %78 = vector.shape_cast %77 : vector<1x2x12xf32> to vector<2x12xf32>
    %79 = vector.shape_cast %76 : vector<2x12xf32> to vector<1x2x12xf32>
    tpu.vector_store %arg5[%c0_72, %c0_73, %c0_74], %79 {strides = array<i32>} : memref<1x16x12xf32, #tpu.memory_space<vmem>>, vector<1x2x12xf32>,
    %c2_75 = arith.constant 2 : index
    %c0_76 = arith.constant 0 : index
    %80 = vector.load %arg6[%c2_75, %c0_76] : memref<64x12xf32, #tpu.memory_space<vmem>>, vector<2x12xf32>
    %cst_77 = arith.constant dense<0.000000e+00> : vector<2x12xf32>
    %81 = tpu.matmul %76, %35, %cst_77 {dimension_numbers = #tpu.dot_dimension_numbers<[1], [0], [0], [1], [0, 0, 1, 1], [], []>} : vector<2x12xf32>, vector<12x12xf32>, vector<2x12xf32> -> vector<2x12xf32>
    %82 = arith.addf %80, %81 : vector<2x12xf32>
    %83 = arith.negf %82 : vector<2x12xf32>
    %84 = math.exp %83 : vector<2x12xf32>
    %cst_78 = arith.constant 1.000000e+00 : f32
    %85 = vector.broadcast %cst_78 : f32 to vector<2x12xf32>
    %86 = arith.addf %85, %84 : vector<2x12xf32>
    %87 = arith.divf %85, %86 : vector<2x12xf32>
    %c18 = arith.constant 18 : index
    %c0_79 = arith.constant 0 : index
    %88 = vector.load %arg6[%c18, %c0_79] : memref<64x12xf32, #tpu.memory_space<vmem>>, vector<2x12xf32>
    %cst_80 = arith.constant dense<0.000000e+00> : vector<2x12xf32>
    %89 = tpu.matmul %76, %37, %cst_80 {dimension_numbers = #tpu.dot_dimension_numbers<[1], [0], [0], [1], [0, 0, 1, 1], [], []>} : vector<2x12xf32>, vector<12x12xf32>, vector<2x12xf32> -> vector<2x12xf32>
    %90 = arith.addf %88, %89 : vector<2x12xf32>
    %91 = arith.negf %90 : vector<2x12xf32>
    %92 = math.exp %91 : vector<2x12xf32>
    %cst_81 = arith.constant 1.000000e+00 : f32
    %93 = vector.broadcast %cst_81 : f32 to vector<2x12xf32>
    %94 = arith.addf %93, %92 : vector<2x12xf32>
    %95 = arith.divf %93, %94 : vector<2x12xf32>
    %c34 = arith.constant 34 : index
    %c0_82 = arith.constant 0 : index
    %96 = vector.load %arg6[%c34, %c0_82] : memref<64x12xf32, #tpu.memory_space<vmem>>, vector<2x12xf32>
    %cst_83 = arith.constant dense<0.000000e+00> : vector<2x12xf32>
    %97 = tpu.matmul %76, %39, %cst_83 {dimension_numbers = #tpu.dot_dimension_numbers<[1], [0], [0], [1], [0, 0, 1, 1], [], []>} : vector<2x12xf32>, vector<12x12xf32>, vector<2x12xf32> -> vector<2x12xf32>
    %98 = arith.addf %96, %97 : vector<2x12xf32>
    %99 = math.tanh %98 : vector<2x12xf32>
    %c50 = arith.constant 50 : index
    %c0_84 = arith.constant 0 : index
    %100 = vector.load %arg6[%c50, %c0_84] : memref<64x12xf32, #tpu.memory_space<vmem>>, vector<2x12xf32>
    %cst_85 = arith.constant dense<0.000000e+00> : vector<2x12xf32>
    %101 = tpu.matmul %76, %41, %cst_85 {dimension_numbers = #tpu.dot_dimension_numbers<[1], [0], [0], [1], [0, 0, 1, 1], [], []>} : vector<2x12xf32>, vector<12x12xf32>, vector<2x12xf32> -> vector<2x12xf32>
    %102 = arith.addf %100, %101 : vector<2x12xf32>
    %103 = arith.negf %102 : vector<2x12xf32>
    %104 = math.exp %103 : vector<2x12xf32>
    %cst_86 = arith.constant 1.000000e+00 : f32
    %105 = vector.broadcast %cst_86 : f32 to vector<2x12xf32>
    %106 = arith.addf %105, %104 : vector<2x12xf32>
    %107 = arith.divf %105, %106 : vector<2x12xf32>
    %108 = arith.mulf %95, %74 : vector<2x12xf32>
    %109 = arith.mulf %87, %99 : vector<2x12xf32>
    %110 = arith.addf %108, %109 : vector<2x12xf32>
    %111 = math.tanh %110 : vector<2x12xf32>
    %112 = arith.mulf %107, %111 : vector<2x12xf32>
    %c0_87 = arith.constant 0 : index
    %c2_88 = arith.constant 2 : index
    %c0_89 = arith.constant 0 : index
    %113 = vector.load %arg5[%c0_87, %c2_88, %c0_89] : memref<1x16x12xf32, #tpu.memory_space<vmem>>, vector<1x2x12xf32>
    %114 = vector.shape_cast %113 : vector<1x2x12xf32> to vector<2x12xf32>
    %115 = vector.shape_cast %112 : vector<2x12xf32> to vector<1x2x12xf32>
    tpu.vector_store %arg5[%c0_87, %c2_88, %c0_89], %115 {strides = array<i32>} : memref<1x16x12xf32, #tpu.memory_space<vmem>>, vector<1x2x12xf32>,
    %c4 = arith.constant 4 : index
    %c0_90 = arith.constant 0 : index
    %116 = vector.load %arg6[%c4, %c0_90] : memref<64x12xf32, #tpu.memory_space<vmem>>, vector<2x12xf32>
    %cst_91 = arith.constant dense<0.000000e+00> : vector<2x12xf32>
    %117 = tpu.matmul %112, %35, %cst_91 {dimension_numbers = #tpu.dot_dimension_numbers<[1], [0], [0], [1], [0, 0, 1, 1], [], []>} : vector<2x12xf32>, vector<12x12xf32>, vector<2x12xf32> -> vector<2x12xf32>
    %118 = arith.addf %116, %117 : vector<2x12xf32>
    %119 = arith.negf %118 : vector<2x12xf32>
    %120 = math.exp %119 : vector<2x12xf32>
    %cst_92 = arith.constant 1.000000e+00 : f32
    %121 = vector.broadcast %cst_92 : f32 to vector<2x12xf32>
    %122 = arith.addf %121, %120 : vector<2x12xf32>
    %123 = arith.divf %121, %122 : vector<2x12xf32>
    %c20 = arith.constant 20 : index
    %c0_93 = arith.constant 0 : index
    %124 = vector.load %arg6[%c20, %c0_93] : memref<64x12xf32, #tpu.memory_space<vmem>>, vector<2x12xf32>
    %cst_94 = arith.constant dense<0.000000e+00> : vector<2x12xf32>
    %125 = tpu.matmul %112, %37, %cst_94 {dimension_numbers = #tpu.dot_dimension_numbers<[1], [0], [0], [1], [0, 0, 1, 1], [], []>} : vector<2x12xf32>, vector<12x12xf32>, vector<2x12xf32> -> vector<2x12xf32>
    %126 = arith.addf %124, %125 : vector<2x12xf32>
    %127 = arith.negf %126 : vector<2x12xf32>
    %128 = math.exp %127 : vector<2x12xf32>
    %cst_95 = arith.constant 1.000000e+00 : f32
    %129 = vector.broadcast %cst_95 : f32 to vector<2x12xf32>
    %130 = arith.addf %129, %128 : vector<2x12xf32>
    %131 = arith.divf %129, %130 : vector<2x12xf32>
    %c36 = arith.constant 36 : index
    %c0_96 = arith.constant 0 : index
    %132 = vector.load %arg6[%c36, %c0_96] : memref<64x12xf32, #tpu.memory_space<vmem>>, vector<2x12xf32>
    %cst_97 = arith.constant dense<0.000000e+00> : vector<2x12xf32>
    %133 = tpu.matmul %112, %39, %cst_97 {dimension_numbers = #tpu.dot_dimension_numbers<[1], [0], [0], [1], [0, 0, 1, 1], [], []>} : vector<2x12xf32>, vector<12x12xf32>, vector<2x12xf32> -> vector<2x12xf32>
    %134 = arith.addf %132, %133 : vector<2x12xf32>
    %135 = math.tanh %134 : vector<2x12xf32>
    %c52 = arith.constant 52 : index
    %c0_98 = arith.constant 0 : index
    %136 = vector.load %arg6[%c52, %c0_98] : memref<64x12xf32, #tpu.memory_space<vmem>>, vector<2x12xf32>
    %cst_99 = arith.constant dense<0.000000e+00> : vector<2x12xf32>
    %137 = tpu.matmul %112, %41, %cst_99 {dimension_numbers = #tpu.dot_dimension_numbers<[1], [0], [0], [1], [0, 0, 1, 1], [], []>} : vector<2x12xf32>, vector<12x12xf32>, vector<2x12xf32> -> vector<2x12xf32>
    %138 = arith.addf %136, %137 : vector<2x12xf32>
    %139 = arith.negf %138 : vector<2x12xf32>
    %140 = math.exp %139 : vector<2x12xf32>
    %cst_100 = arith.constant 1.000000e+00 : f32
    %141 = vector.broadcast %cst_100 : f32 to vector<2x12xf32>
    %142 = arith.addf %141, %140 : vector<2x12xf32>
    %143 = arith.divf %141, %142 : vector<2x12xf32>
    %144 = arith.mulf %131, %110 : vector<2x12xf32>
    %145 = arith.mulf %123, %135 : vector<2x12xf32>
    %146 = arith.addf %144, %145 : vector<2x12xf32>
    %147 = math.tanh %146 : vector<2x12xf32>
    %148 = arith.mulf %143, %147 : vector<2x12xf32>
    %c0_101 = arith.constant 0 : index
    %c4_102 = arith.constant 4 : index
    %c0_103 = arith.constant 0 : index
    %149 = vector.load %arg5[%c0_101, %c4_102, %c0_103] : memref<1x16x12xf32, #tpu.memory_space<vmem>>, vector<1x2x12xf32>
    %150 = vector.shape_cast %149 : vector<1x2x12xf32> to vector<2x12xf32>
    %151 = vector.shape_cast %148 : vector<2x12xf32> to vector<1x2x12xf32>
    tpu.vector_store %arg5[%c0_101, %c4_102, %c0_103], %151 {strides = array<i32>} : memref<1x16x12xf32, #tpu.memory_space<vmem>>, vector<1x2x12xf32>,
    %c6 = arith.constant 6 : index
    %c0_104 = arith.constant 0 : index
    %152 = vector.load %arg6[%c6, %c0_104] : memref<64x12xf32, #tpu.memory_space<vmem>>, vector<2x12xf32>
    %cst_105 = arith.constant dense<0.000000e+00> : vector<2x12xf32>
    %153 = tpu.matmul %148, %35, %cst_105 {dimension_numbers = #tpu.dot_dimension_numbers<[1], [0], [0], [1], [0, 0, 1, 1], [], []>} : vector<2x12xf32>, vector<12x12xf32>, vector<2x12xf32> -> vector<2x12xf32>
    %154 = arith.addf %152, %153 : vector<2x12xf32>
    %155 = arith.negf %154 : vector<2x12xf32>
    %156 = math.exp %155 : vector<2x12xf32>
    %cst_106 = arith.constant 1.000000e+00 : f32
    %157 = vector.broadcast %cst_106 : f32 to vector<2x12xf32>
    %158 = arith.addf %157, %156 : vector<2x12xf32>
    %159 = arith.divf %157, %158 : vector<2x12xf32>
    %c22 = arith.constant 22 : index
    %c0_107 = arith.constant 0 : index
    %160 = vector.load %arg6[%c22, %c0_107] : memref<64x12xf32, #tpu.memory_space<vmem>>, vector<2x12xf32>
    %cst_108 = arith.constant dense<0.000000e+00> : vector<2x12xf32>
    %161 = tpu.matmul %148, %37, %cst_108 {dimension_numbers = #tpu.dot_dimension_numbers<[1], [0], [0], [1], [0, 0, 1, 1], [], []>} : vector<2x12xf32>, vector<12x12xf32>, vector<2x12xf32> -> vector<2x12xf32>
    %162 = arith.addf %160, %161 : vector<2x12xf32>
    %163 = arith.negf %162 : vector<2x12xf32>
    %164 = math.exp %163 : vector<2x12xf32>
    %cst_109 = arith.constant 1.000000e+00 : f32
    %165 = vector.broadcast %cst_109 : f32 to vector<2x12xf32>
    %166 = arith.addf %165, %164 : vector<2x12xf32>
    %167 = arith.divf %165, %166 : vector<2x12xf32>
    %c38 = arith.constant 38 : index
    %c0_110 = arith.constant 0 : index
    %168 = vector.load %arg6[%c38, %c0_110] : memref<64x12xf32, #tpu.memory_space<vmem>>, vector<2x12xf32>
    %cst_111 = arith.constant dense<0.000000e+00> : vector<2x12xf32>
    %169 = tpu.matmul %148, %39, %cst_111 {dimension_numbers = #tpu.dot_dimension_numbers<[1], [0], [0], [1], [0, 0, 1, 1], [], []>} : vector<2x12xf32>, vector<12x12xf32>, vector<2x12xf32> -> vector<2x12xf32>
    %170 = arith.addf %168, %169 : vector<2x12xf32>
    %171 = math.tanh %170 : vector<2x12xf32>
    %c54 = arith.constant 54 : index
    %c0_112 = arith.constant 0 : index
    %172 = vector.load %arg6[%c54, %c0_112] : memref<64x12xf32, #tpu.memory_space<vmem>>, vector<2x12xf32>
    %cst_113 = arith.constant dense<0.000000e+00> : vector<2x12xf32>
    %173 = tpu.matmul %148, %41, %cst_113 {dimension_numbers = #tpu.dot_dimension_numbers<[1], [0], [0], [1], [0, 0, 1, 1], [], []>} : vector<2x12xf32>, vector<12x12xf32>, vector<2x12xf32> -> vector<2x12xf32>
    %174 = arith.addf %172, %173 : vector<2x12xf32>
    %175 = arith.negf %174 : vector<2x12xf32>
    %176 = math.exp %175 : vector<2x12xf32>
    %cst_114 = arith.constant 1.000000e+00 : f32
    %177 = vector.broadcast %cst_114 : f32 to vector<2x12xf32>
    %178 = arith.addf %177, %176 : vector<2x12xf32>
    %179 = arith.divf %177, %178 : vector<2x12xf32>
    %180 = arith.mulf %167, %146 : vector<2x12xf32>
    %181 = arith.mulf %159, %171 : vector<2x12xf32>
    %182 = arith.addf %180, %181 : vector<2x12xf32>
    %183 = math.tanh %182 : vector<2x12xf32>
    %184 = arith.mulf %179, %183 : vector<2x12xf32>
    %c0_115 = arith.constant 0 : index
    %c6_116 = arith.constant 6 : index
    %c0_117 = arith.constant 0 : index
    %185 = vector.load %arg5[%c0_115, %c6_116, %c0_117] : memref<1x16x12xf32, #tpu.memory_space<vmem>>, vector<1x2x12xf32>
    %186 = vector.shape_cast %185 : vector<1x2x12xf32> to vector<2x12xf32>
    %187 = vector.shape_cast %184 : vector<2x12xf32> to vector<1x2x12xf32>
    tpu.vector_store %arg5[%c0_115, %c6_116, %c0_117], %187 {strides = array<i32>} : memref<1x16x12xf32, #tpu.memory_space<vmem>>, vector<1x2x12xf32>,
    %c8 = arith.constant 8 : index
    %c0_118 = arith.constant 0 : index
    %188 = vector.load %arg6[%c8, %c0_118] : memref<64x12xf32, #tpu.memory_space<vmem>>, vector<2x12xf32>
    %cst_119 = arith.constant dense<0.000000e+00> : vector<2x12xf32>
    %189 = tpu.matmul %184, %35, %cst_119 {dimension_numbers = #tpu.dot_dimension_numbers<[1], [0], [0], [1], [0, 0, 1, 1], [], []>} : vector<2x12xf32>, vector<12x12xf32>, vector<2x12xf32> -> vector<2x12xf32>
    %190 = arith.addf %188, %189 : vector<2x12xf32>
    %191 = arith.negf %190 : vector<2x12xf32>
    %192 = math.exp %191 : vector<2x12xf32>
    %cst_120 = arith.constant 1.000000e+00 : f32
    %193 = vector.broadcast %cst_120 : f32 to vector<2x12xf32>
    %194 = arith.addf %193, %192 : vector<2x12xf32>
    %195 = arith.divf %193, %194 : vector<2x12xf32>
    %c24 = arith.constant 24 : index
    %c0_121 = arith.constant 0 : index
    %196 = vector.load %arg6[%c24, %c0_121] : memref<64x12xf32, #tpu.memory_space<vmem>>, vector<2x12xf32>
    %cst_122 = arith.constant dense<0.000000e+00> : vector<2x12xf32>
    %197 = tpu.matmul %184, %37, %cst_122 {dimension_numbers = #tpu.dot_dimension_numbers<[1], [0], [0], [1], [0, 0, 1, 1], [], []>} : vector<2x12xf32>, vector<12x12xf32>, vector<2x12xf32> -> vector<2x12xf32>
    %198 = arith.addf %196, %197 : vector<2x12xf32>
    %199 = arith.negf %198 : vector<2x12xf32>
    %200 = math.exp %199 : vector<2x12xf32>
    %cst_123 = arith.constant 1.000000e+00 : f32
    %201 = vector.broadcast %cst_123 : f32 to vector<2x12xf32>
    %202 = arith.addf %201, %200 : vector<2x12xf32>
    %203 = arith.divf %201, %202 : vector<2x12xf32>
    %c40 = arith.constant 40 : index
    %c0_124 = arith.constant 0 : index
    %204 = vector.load %arg6[%c40, %c0_124] : memref<64x12xf32, #tpu.memory_space<vmem>>, vector<2x12xf32>
    %cst_125 = arith.constant dense<0.000000e+00> : vector<2x12xf32>
    %205 = tpu.matmul %184, %39, %cst_125 {dimension_numbers = #tpu.dot_dimension_numbers<[1], [0], [0], [1], [0, 0, 1, 1], [], []>} : vector<2x12xf32>, vector<12x12xf32>, vector<2x12xf32> -> vector<2x12xf32>
    %206 = arith.addf %204, %205 : vector<2x12xf32>
    %207 = math.tanh %206 : vector<2x12xf32>
    %c56 = arith.constant 56 : index
    %c0_126 = arith.constant 0 : index
    %208 = vector.load %arg6[%c56, %c0_126] : memref<64x12xf32, #tpu.memory_space<vmem>>, vector<2x12xf32>
    %cst_127 = arith.constant dense<0.000000e+00> : vector<2x12xf32>
    %209 = tpu.matmul %184, %41, %cst_127 {dimension_numbers = #tpu.dot_dimension_numbers<[1], [0], [0], [1], [0, 0, 1, 1], [], []>} : vector<2x12xf32>, vector<12x12xf32>, vector<2x12xf32> -> vector<2x12xf32>
    %210 = arith.addf %208, %209 : vector<2x12xf32>
    %211 = arith.negf %210 : vector<2x12xf32>
    %212 = math.exp %211 : vector<2x12xf32>
    %cst_128 = arith.constant 1.000000e+00 : f32
    %213 = vector.broadcast %cst_128 : f32 to vector<2x12xf32>
    %214 = arith.addf %213, %212 : vector<2x12xf32>
    %215 = arith.divf %213, %214 : vector<2x12xf32>
    %216 = arith.mulf %203, %182 : vector<2x12xf32>
    %217 = arith.mulf %195, %207 : vector<2x12xf32>
    %218 = arith.addf %216, %217 : vector<2x12xf32>
    %219 = math.tanh %218 : vector<2x12xf32>
    %220 = arith.mulf %215, %219 : vector<2x12xf32>
    %c0_129 = arith.constant 0 : index
    %c8_130 = arith.constant 8 : index
    %c0_131 = arith.constant 0 : index
    %221 = vector.load %arg5[%c0_129, %c8_130, %c0_131] : memref<1x16x12xf32, #tpu.memory_space<vmem>>, vector<1x2x12xf32>
    %222 = vector.shape_cast %221 : vector<1x2x12xf32> to vector<2x12xf32>
    %223 = vector.shape_cast %220 : vector<2x12xf32> to vector<1x2x12xf32>
    tpu.vector_store %arg5[%c0_129, %c8_130, %c0_131], %223 {strides = array<i32>} : memref<1x16x12xf32, #tpu.memory_space<vmem>>, vector<1x2x12xf32>,
    %c10 = arith.constant 10 : index
    %c0_132 = arith.constant 0 : index
    %224 = vector.load %arg6[%c10, %c0_132] : memref<64x12xf32, #tpu.memory_space<vmem>>, vector<2x12xf32>
    %cst_133 = arith.constant dense<0.000000e+00> : vector<2x12xf32>
    %225 = tpu.matmul %220, %35, %cst_133 {dimension_numbers = #tpu.dot_dimension_numbers<[1], [0], [0], [1], [0, 0, 1, 1], [], []>} : vector<2x12xf32>, vector<12x12xf32>, vector<2x12xf32> -> vector<2x12xf32>
    %226 = arith.addf %224, %225 : vector<2x12xf32>
    %227 = arith.negf %226 : vector<2x12xf32>
    %228 = math.exp %227 : vector<2x12xf32>
    %cst_134 = arith.constant 1.000000e+00 : f32
    %229 = vector.broadcast %cst_134 : f32 to vector<2x12xf32>
    %230 = arith.addf %229, %228 : vector<2x12xf32>
    %231 = arith.divf %229, %230 : vector<2x12xf32>
    %c26 = arith.constant 26 : index
    %c0_135 = arith.constant 0 : index
    %232 = vector.load %arg6[%c26, %c0_135] : memref<64x12xf32, #tpu.memory_space<vmem>>, vector<2x12xf32>
    %cst_136 = arith.constant dense<0.000000e+00> : vector<2x12xf32>
    %233 = tpu.matmul %220, %37, %cst_136 {dimension_numbers = #tpu.dot_dimension_numbers<[1], [0], [0], [1], [0, 0, 1, 1], [], []>} : vector<2x12xf32>, vector<12x12xf32>, vector<2x12xf32> -> vector<2x12xf32>
    %234 = arith.addf %232, %233 : vector<2x12xf32>
    %235 = arith.negf %234 : vector<2x12xf32>
    %236 = math.exp %235 : vector<2x12xf32>
    %cst_137 = arith.constant 1.000000e+00 : f32
    %237 = vector.broadcast %cst_137 : f32 to vector<2x12xf32>
    %238 = arith.addf %237, %236 : vector<2x12xf32>
    %239 = arith.divf %237, %238 : vector<2x12xf32>
    %c42 = arith.constant 42 : index
    %c0_138 = arith.constant 0 : index
    %240 = vector.load %arg6[%c42, %c0_138] : memref<64x12xf32, #tpu.memory_space<vmem>>, vector<2x12xf32>
    %cst_139 = arith.constant dense<0.000000e+00> : vector<2x12xf32>
    %241 = tpu.matmul %220, %39, %cst_139 {dimension_numbers = #tpu.dot_dimension_numbers<[1], [0], [0], [1], [0, 0, 1, 1], [], []>} : vector<2x12xf32>, vector<12x12xf32>, vector<2x12xf32> -> vector<2x12xf32>
    %242 = arith.addf %240, %241 : vector<2x12xf32>
    %243 = math.tanh %242 : vector<2x12xf32>
    %c58 = arith.constant 58 : index
    %c0_140 = arith.constant 0 : index
    %244 = vector.load %arg6[%c58, %c0_140] : memref<64x12xf32, #tpu.memory_space<vmem>>, vector<2x12xf32>
    %cst_141 = arith.constant dense<0.000000e+00> : vector<2x12xf32>
    %245 = tpu.matmul %220, %41, %cst_141 {dimension_numbers = #tpu.dot_dimension_numbers<[1], [0], [0], [1], [0, 0, 1, 1], [], []>} : vector<2x12xf32>, vector<12x12xf32>, vector<2x12xf32> -> vector<2x12xf32>
    %246 = arith.addf %244, %245 : vector<2x12xf32>
    %247 = arith.negf %246 : vector<2x12xf32>
    %248 = math.exp %247 : vector<2x12xf32>
    %cst_142 = arith.constant 1.000000e+00 : f32
    %249 = vector.broadcast %cst_142 : f32 to vector<2x12xf32>
    %250 = arith.addf %249, %248 : vector<2x12xf32>
    %251 = arith.divf %249, %250 : vector<2x12xf32>
    %252 = arith.mulf %239, %218 : vector<2x12xf32>
    %253 = arith.mulf %231, %243 : vector<2x12xf32>
    %254 = arith.addf %252, %253 : vector<2x12xf32>
    %255 = math.tanh %254 : vector<2x12xf32>
    %256 = arith.mulf %251, %255 : vector<2x12xf32>
    %c0_143 = arith.constant 0 : index
    %c10_144 = arith.constant 10 : index
    %c0_145 = arith.constant 0 : index
    %257 = vector.load %arg5[%c0_143, %c10_144, %c0_145] : memref<1x16x12xf32, #tpu.memory_space<vmem>>, vector<1x2x12xf32>
    %258 = vector.shape_cast %257 : vector<1x2x12xf32> to vector<2x12xf32>
    %259 = vector.shape_cast %256 : vector<2x12xf32> to vector<1x2x12xf32>
    tpu.vector_store %arg5[%c0_143, %c10_144, %c0_145], %259 {strides = array<i32>} : memref<1x16x12xf32, #tpu.memory_space<vmem>>, vector<1x2x12xf32>,
    %c12 = arith.constant 12 : index
    %c0_146 = arith.constant 0 : index
    %260 = vector.load %arg6[%c12, %c0_146] : memref<64x12xf32, #tpu.memory_space<vmem>>, vector<2x12xf32>
    %cst_147 = arith.constant dense<0.000000e+00> : vector<2x12xf32>
    %261 = tpu.matmul %256, %35, %cst_147 {dimension_numbers = #tpu.dot_dimension_numbers<[1], [0], [0], [1], [0, 0, 1, 1], [], []>} : vector<2x12xf32>, vector<12x12xf32>, vector<2x12xf32> -> vector<2x12xf32>
    %262 = arith.addf %260, %261 : vector<2x12xf32>
    %263 = arith.negf %262 : vector<2x12xf32>
    %264 = math.exp %263 : vector<2x12xf32>
    %cst_148 = arith.constant 1.000000e+00 : f32
    %265 = vector.broadcast %cst_148 : f32 to vector<2x12xf32>
    %266 = arith.addf %265, %264 : vector<2x12xf32>
    %267 = arith.divf %265, %266 : vector<2x12xf32>
    %c28 = arith.constant 28 : index
    %c0_149 = arith.constant 0 : index
    %268 = vector.load %arg6[%c28, %c0_149] : memref<64x12xf32, #tpu.memory_space<vmem>>, vector<2x12xf32>
    %cst_150 = arith.constant dense<0.000000e+00> : vector<2x12xf32>
    %269 = tpu.matmul %256, %37, %cst_150 {dimension_numbers = #tpu.dot_dimension_numbers<[1], [0], [0], [1], [0, 0, 1, 1], [], []>} : vector<2x12xf32>, vector<12x12xf32>, vector<2x12xf32> -> vector<2x12xf32>
    %270 = arith.addf %268, %269 : vector<2x12xf32>
    %271 = arith.negf %270 : vector<2x12xf32>
    %272 = math.exp %271 : vector<2x12xf32>
    %cst_151 = arith.constant 1.000000e+00 : f32
    %273 = vector.broadcast %cst_151 : f32 to vector<2x12xf32>
    %274 = arith.addf %273, %272 : vector<2x12xf32>
    %275 = arith.divf %273, %274 : vector<2x12xf32>
    %c44 = arith.constant 44 : index
    %c0_152 = arith.constant 0 : index
    %276 = vector.load %arg6[%c44, %c0_152] : memref<64x12xf32, #tpu.memory_space<vmem>>, vector<2x12xf32>
    %cst_153 = arith.constant dense<0.000000e+00> : vector<2x12xf32>
    %277 = tpu.matmul %256, %39, %cst_153 {dimension_numbers = #tpu.dot_dimension_numbers<[1], [0], [0], [1], [0, 0, 1, 1], [], []>} : vector<2x12xf32>, vector<12x12xf32>, vector<2x12xf32> -> vector<2x12xf32>
    %278 = arith.addf %276, %277 : vector<2x12xf32>
    %279 = math.tanh %278 : vector<2x12xf32>
    %c60 = arith.constant 60 : index
    %c0_154 = arith.constant 0 : index
    %280 = vector.load %arg6[%c60, %c0_154] : memref<64x12xf32, #tpu.memory_space<vmem>>, vector<2x12xf32>
    %cst_155 = arith.constant dense<0.000000e+00> : vector<2x12xf32>
    %281 = tpu.matmul %256, %41, %cst_155 {dimension_numbers = #tpu.dot_dimension_numbers<[1], [0], [0], [1], [0, 0, 1, 1], [], []>} : vector<2x12xf32>, vector<12x12xf32>, vector<2x12xf32> -> vector<2x12xf32>
    %282 = arith.addf %280, %281 : vector<2x12xf32>
    %283 = arith.negf %282 : vector<2x12xf32>
    %284 = math.exp %283 : vector<2x12xf32>
    %cst_156 = arith.constant 1.000000e+00 : f32
    %285 = vector.broadcast %cst_156 : f32 to vector<2x12xf32>
    %286 = arith.addf %285, %284 : vector<2x12xf32>
    %287 = arith.divf %285, %286 : vector<2x12xf32>
    %288 = arith.mulf %275, %254 : vector<2x12xf32>
    %289 = arith.mulf %267, %279 : vector<2x12xf32>
    %290 = arith.addf %288, %289 : vector<2x12xf32>
    %291 = math.tanh %290 : vector<2x12xf32>
    %292 = arith.mulf %287, %291 : vector<2x12xf32>
    %c0_157 = arith.constant 0 : index
    %c12_158 = arith.constant 12 : index
    %c0_159 = arith.constant 0 : index
    %293 = vector.load %arg5[%c0_157, %c12_158, %c0_159] : memref<1x16x12xf32, #tpu.memory_space<vmem>>, vector<1x2x12xf32>
    %294 = vector.shape_cast %293 : vector<1x2x12xf32> to vector<2x12xf32>
    %295 = vector.shape_cast %292 : vector<2x12xf32> to vector<1x2x12xf32>
    tpu.vector_store %arg5[%c0_157, %c12_158, %c0_159], %295 {strides = array<i32>} : memref<1x16x12xf32, #tpu.memory_space<vmem>>, vector<1x2x12xf32>,
    %c14 = arith.constant 14 : index
    %c0_160 = arith.constant 0 : index
    %296 = vector.load %arg6[%c14, %c0_160] : memref<64x12xf32, #tpu.memory_space<vmem>>, vector<2x12xf32>
    %cst_161 = arith.constant dense<0.000000e+00> : vector<2x12xf32>
    %297 = tpu.matmul %292, %35, %cst_161 {dimension_numbers = #tpu.dot_dimension_numbers<[1], [0], [0], [1], [0, 0, 1, 1], [], []>} : vector<2x12xf32>, vector<12x12xf32>, vector<2x12xf32> -> vector<2x12xf32>
    %298 = arith.addf %296, %297 : vector<2x12xf32>
    %299 = arith.negf %298 : vector<2x12xf32>
    %300 = math.exp %299 : vector<2x12xf32>
    %cst_162 = arith.constant 1.000000e+00 : f32
    %301 = vector.broadcast %cst_162 : f32 to vector<2x12xf32>
    %302 = arith.addf %301, %300 : vector<2x12xf32>
    %303 = arith.divf %301, %302 : vector<2x12xf32>
    %c30 = arith.constant 30 : index
    %c0_163 = arith.constant 0 : index
    %304 = vector.load %arg6[%c30, %c0_163] : memref<64x12xf32, #tpu.memory_space<vmem>>, vector<2x12xf32>
    %cst_164 = arith.constant dense<0.000000e+00> : vector<2x12xf32>
    %305 = tpu.matmul %292, %37, %cst_164 {dimension_numbers = #tpu.dot_dimension_numbers<[1], [0], [0], [1], [0, 0, 1, 1], [], []>} : vector<2x12xf32>, vector<12x12xf32>, vector<2x12xf32> -> vector<2x12xf32>
    %306 = arith.addf %304, %305 : vector<2x12xf32>
    %307 = arith.negf %306 : vector<2x12xf32>
    %308 = math.exp %307 : vector<2x12xf32>
    %cst_165 = arith.constant 1.000000e+00 : f32
    %309 = vector.broadcast %cst_165 : f32 to vector<2x12xf32>
    %310 = arith.addf %309, %308 : vector<2x12xf32>
    %311 = arith.divf %309, %310 : vector<2x12xf32>
    %c46 = arith.constant 46 : index
    %c0_166 = arith.constant 0 : index
    %312 = vector.load %arg6[%c46, %c0_166] : memref<64x12xf32, #tpu.memory_space<vmem>>, vector<2x12xf32>
    %cst_167 = arith.constant dense<0.000000e+00> : vector<2x12xf32>
    %313 = tpu.matmul %292, %39, %cst_167 {dimension_numbers = #tpu.dot_dimension_numbers<[1], [0], [0], [1], [0, 0, 1, 1], [], []>} : vector<2x12xf32>, vector<12x12xf32>, vector<2x12xf32> -> vector<2x12xf32>
    %314 = arith.addf %312, %313 : vector<2x12xf32>
    %315 = math.tanh %314 : vector<2x12xf32>
    %c62 = arith.constant 62 : index
    %c0_168 = arith.constant 0 : index
    %316 = vector.load %arg6[%c62, %c0_168] : memref<64x12xf32, #tpu.memory_space<vmem>>, vector<2x12xf32>
    %cst_169 = arith.constant dense<0.000000e+00> : vector<2x12xf32>
    %317 = tpu.matmul %292, %41, %cst_169 {dimension_numbers = #tpu.dot_dimension_numbers<[1], [0], [0], [1], [0, 0, 1, 1], [], []>} : vector<2x12xf32>, vector<12x12xf32>, vector<2x12xf32> -> vector<2x12xf32>
    %318 = arith.addf %316, %317 : vector<2x12xf32>
    %319 = arith.negf %318 : vector<2x12xf32>
    %320 = math.exp %319 : vector<2x12xf32>
    %cst_170 = arith.constant 1.000000e+00 : f32
    %321 = vector.broadcast %cst_170 : f32 to vector<2x12xf32>
    %322 = arith.addf %321, %320 : vector<2x12xf32>
    %323 = arith.divf %321, %322 : vector<2x12xf32>
    %324 = arith.mulf %311, %290 : vector<2x12xf32>
    %325 = arith.mulf %303, %315 : vector<2x12xf32>
    %326 = arith.addf %324, %325 : vector<2x12xf32>
    %327 = math.tanh %326 : vector<2x12xf32>
    %328 = arith.mulf %323, %327 : vector<2x12xf32>
    %c0_171 = arith.constant 0 : index
    %c14_172 = arith.constant 14 : index
    %c0_173 = arith.constant 0 : index
    %329 = vector.load %arg5[%c0_171, %c14_172, %c0_173] : memref<1x16x12xf32, #tpu.memory_space<vmem>>, vector<1x2x12xf32>
    %330 = vector.shape_cast %329 : vector<1x2x12xf32> to vector<2x12xf32>
    %331 = vector.shape_cast %328 : vector<2x12xf32> to vector<1x2x12xf32>
    tpu.vector_store %arg5[%c0_171, %c14_172, %c0_173], %331 {strides = array<i32>} : memref<1x16x12xf32, #tpu.memory_space<vmem>>, vector<1x2x12xf32>,
    return
  }
  func.func @transform_0(%arg0: i32) -> (i32, i32, i32) {
    %c0_i32 = arith.constant 0 : i32
    %c0_i32_0 = arith.constant 0 : i32
    %c0_i32_1 = arith.constant 0 : i32
    return %arg0, %c0_i32, %c0_i32_0 : i32, i32, i32
  }
  func.func @transform_1(%arg0: i32) -> (i32, i32, i32, i32) {
    %c0_i32 = arith.constant 0 : i32
    %c0_i32_0 = arith.constant 0 : i32
    %c0_i32_1 = arith.constant 0 : i32
    %c0_i32_2 = arith.constant 0 : i32
    return %arg0, %c0_i32, %c0_i32_0, %c0_i32_1 : i32, i32, i32, i32
  }
  func.func @transform_2(%arg0: i32) -> (i32, i32, i32, i32) {
    %c0_i32 = arith.constant 0 : i32
    %c0_i32_0 = arith.constant 0 : i32
    %c0_i32_1 = arith.constant 0 : i32
    %c0_i32_2 = arith.constant 0 : i32
    return %arg0, %c0_i32, %c0_i32_0, %c0_i32_1 : i32, i32, i32, i32
  }
  func.func @transform_3(%arg0: i32) -> (i32, i32, i32, i32) {
    %c0_i32 = arith.constant 0 : i32
    %c0_i32_0 = arith.constant 0 : i32
    %c0_i32_1 = arith.constant 0 : i32
    %c0_i32_2 = arith.constant 0 : i32
    return %arg0, %c0_i32, %c0_i32_0, %c0_i32_1 : i32, i32, i32, i32
  }
  func.func @transform_4(%arg0: i32) -> (i32, i32, i32) {
    %c0_i32 = arith.constant 0 : i32
    %c0_i32_0 = arith.constant 0 : i32
    %c0_i32_1 = arith.constant 0 : i32
    return %arg0, %c0_i32, %c0_i32_0 : i32, i32, i32
  }
}

module attributes {stable_mosaic.version = 11 : i64} {
  func.func @_mha_fc_kernel(%arg0: i32, %arg1: memref<2x8x24xf32, #tpu.memory_space<vmem>>, %arg2: memref<24x72xf32, #tpu.memory_space<vmem>>, %arg3: memref<1x72xf32, #tpu.memory_space<vmem>>, %arg4: memref<24x24xf32, #tpu.memory_space<vmem>>, %arg5: memref<1x24xf32, #tpu.memory_space<vmem>>, %arg6: memref<24x19xf32, #tpu.memory_space<vmem>>, %arg7: memref<1x19xf32, #tpu.memory_space<vmem>>, %arg8: memref<2x8x19xf32, #tpu.memory_space<vmem>>) attributes {dimension_semantics = [#tpu.dimension_semantics<arbitrary>], iteration_bounds = array<i64: 1>, scalar_prefetch = 0 : i64, scratch_operands = 0 : i64, tpu.core_type = #tpu.core_type<tc>, window_params = [{pipeline_mode = #tpu.pipeline_mode<synchronous>, transform_indices = @transform_0, window_bounds = array<i64: 2, 8, 24>}, {pipeline_mode = #tpu.pipeline_mode<synchronous>, transform_indices = @transform_1, window_bounds = array<i64: 24, 72>}, {pipeline_mode = #tpu.pipeline_mode<synchronous>, transform_indices = @transform_2, window_bounds = array<i64: 1, 72>}, {pipeline_mode = #tpu.pipeline_mode<synchronous>, transform_indices = @transform_3, window_bounds = array<i64: 24, 24>}, {pipeline_mode = #tpu.pipeline_mode<synchronous>, transform_indices = @transform_4, window_bounds = array<i64: 1, 24>}, {pipeline_mode = #tpu.pipeline_mode<synchronous>, transform_indices = @transform_5, window_bounds = array<i64: 24, 19>}, {pipeline_mode = #tpu.pipeline_mode<synchronous>, transform_indices = @transform_6, window_bounds = array<i64: 1, 19>}, {pipeline_mode = #tpu.pipeline_mode<synchronous>, transform_indices = @transform_7, window_bounds = array<i64: 2, 8, 19>}]} {
    %c0 = arith.constant 0 : index
    %c0_0 = arith.constant 0 : index
    %c0_1 = arith.constant 0 : index
    %0 = vector.load %arg1[%c0, %c0_0, %c0_1] : memref<2x8x24xf32, #tpu.memory_space<vmem>>, vector<2x8x24xf32>
    %1 = vector.shape_cast %0 : vector<2x8x24xf32> to vector<16x24xf32>
    %c0_2 = arith.constant 0 : index
    %c0_3 = arith.constant 0 : index
    %2 = vector.load %arg2[%c0_2, %c0_3] : memref<24x72xf32, #tpu.memory_space<vmem>>, vector<24x72xf32>
    %cst = arith.constant dense<0.000000e+00> : vector<16x72xf32>
    %3 = tpu.matmul %1, %2, %cst {dimension_numbers = #tpu.dot_dimension_numbers<[1], [0], [0], [1], [0, 0, 1, 1], [], []>} : vector<16x24xf32>, vector<24x72xf32>, vector<16x72xf32> -> vector<16x72xf32>
    %c0_4 = arith.constant 0 : index
    %c0_5 = arith.constant 0 : index
    %4 = vector.load %arg3[%c0_4, %c0_5] : memref<1x72xf32, #tpu.memory_space<vmem>>, vector<1x72xf32>
    %5 = vector.broadcast %4 : vector<1x72xf32> to vector<16x72xf32>
    %6 = arith.addf %3, %5 : vector<16x72xf32>
    %7 = vector.extract_strided_slice %6 {offsets = [0, 0], sizes = [16, 24], strides = [1, 1]} : vector<16x72xf32> to vector<16x24xf32>
    %cst_6 = arith.constant 0.353553385 : f32
    %8 = vector.broadcast %cst_6 : f32 to vector<16x24xf32>
    %9 = arith.mulf %7, %8 : vector<16x24xf32>
    %10 = vector.shape_cast %9 : vector<16x24xf32> to vector<2x8x24xf32>
    %11 = vector.extract_strided_slice %6 {offsets = [0, 24], sizes = [16, 24], strides = [1, 1]} : vector<16x72xf32> to vector<16x24xf32>
    %12 = vector.shape_cast %11 : vector<16x24xf32> to vector<2x8x24xf32>
    %13 = vector.extract_strided_slice %6 {offsets = [0, 48], sizes = [16, 24], strides = [1, 1]} : vector<16x72xf32> to vector<16x24xf32>
    %14 = vector.shape_cast %13 : vector<16x24xf32> to vector<2x8x24xf32>
    %cst_7 = arith.constant 0.000000e+00 : f32
    %15 = vector.broadcast %cst_7 : f32 to vector<16x24xf32>
    %16 = vector.extract_strided_slice %10 {offsets = [0, 0, 0], sizes = [2, 8, 8], strides = [1, 1, 1]} : vector<2x8x24xf32> to vector<2x8x8xf32>
    %17 = vector.extract_strided_slice %12 {offsets = [0, 0, 0], sizes = [2, 8, 8], strides = [1, 1, 1]} : vector<2x8x24xf32> to vector<2x8x8xf32>
    "tpu.trace_start"() <{level = 10 : i32, message = "bqd,bkd->bqk"}> : () -> ()
    %cst_8 = arith.constant dense<0.000000e+00> : vector<2x8x8xf32>
    %18 = tpu.matmul %16, %17, %cst_8 {dimension_numbers = #tpu.dot_dimension_numbers<[2], [2], [1], [1], [0, 0, 0, 1, 1, 1], [0], [0]>} : vector<2x8x8xf32>, vector<2x8x8xf32>, vector<2x8x8xf32> -> vector<2x8x8xf32>
    "tpu.trace_stop"() : () -> ()
    %cst_9 = arith.constant dense<0xFF800000> : vector<2x8xf32>
    %19 = vector.multi_reduction <maximumf>, %18, %cst_9 [2] : vector<2x8x8xf32> to vector<2x8xf32>
    %20 = vector.shape_cast %19 : vector<2x8xf32> to vector<2x8x1xf32>
    %21 = vector.broadcast %20 : vector<2x8x1xf32> to vector<2x8x8xf32>
    %22 = arith.subf %18, %21 : vector<2x8x8xf32>
    %23 = math.exp %22 : vector<2x8x8xf32>
    %cst_10 = arith.constant dense<0.000000e+00> : vector<2x8xf32>
    %24 = vector.multi_reduction <add>, %23, %cst_10 [2] : vector<2x8x8xf32> to vector<2x8xf32>
    %25 = vector.shape_cast %24 : vector<2x8xf32> to vector<2x8x1xf32>
    %26 = tpu.reciprocal %25 {approx = true} : vector<2x8x1xf32> -> vector<2x8x1xf32>
    %27 = vector.broadcast %26 : vector<2x8x1xf32> to vector<2x8x8xf32>
    %28 = arith.mulf %23, %27 : vector<2x8x8xf32>
    %29 = vector.extract_strided_slice %14 {offsets = [0, 0, 0], sizes = [2, 8, 8], strides = [1, 1, 1]} : vector<2x8x24xf32> to vector<2x8x8xf32>
    "tpu.trace_start"() <{level = 10 : i32, message = "bqk,bkd->bqd"}> : () -> ()
    %cst_11 = arith.constant dense<0.000000e+00> : vector<2x8x8xf32>
    %30 = tpu.matmul %28, %29, %cst_11 {dimension_numbers = #tpu.dot_dimension_numbers<[2], [1], [1], [2], [0, 0, 0, 1, 1, 2], [0], [0]>} : vector<2x8x8xf32>, vector<2x8x8xf32>, vector<2x8x8xf32> -> vector<2x8x8xf32>
    "tpu.trace_stop"() : () -> ()
    %31 = vector.shape_cast %30 : vector<2x8x8xf32> to vector<16x8xf32>
    %c0_12 = arith.constant 0 : index
    %c0_13 = arith.constant 0 : index
    %32 = vector.load %arg4[%c0_12, %c0_13] : memref<24x24xf32, #tpu.memory_space<vmem>>, vector<8x24xf32>
    %cst_14 = arith.constant dense<0.000000e+00> : vector<16x24xf32>
    %33 = tpu.matmul %31, %32, %cst_14 {dimension_numbers = #tpu.dot_dimension_numbers<[1], [0], [0], [1], [0, 0, 1, 1], [], []>} : vector<16x8xf32>, vector<8x24xf32>, vector<16x24xf32> -> vector<16x24xf32>
    %34 = arith.addf %15, %33 : vector<16x24xf32>
    %35 = vector.extract_strided_slice %10 {offsets = [0, 0, 8], sizes = [2, 8, 8], strides = [1, 1, 1]} : vector<2x8x24xf32> to vector<2x8x8xf32>
    %36 = vector.extract_strided_slice %12 {offsets = [0, 0, 8], sizes = [2, 8, 8], strides = [1, 1, 1]} : vector<2x8x24xf32> to vector<2x8x8xf32>
    "tpu.trace_start"() <{level = 10 : i32, message = "bqd,bkd->bqk"}> : () -> ()
    %cst_15 = arith.constant dense<0.000000e+00> : vector<2x8x8xf32>
    %37 = tpu.matmul %35, %36, %cst_15 {dimension_numbers = #tpu.dot_dimension_numbers<[2], [2], [1], [1], [0, 0, 0, 1, 1, 1], [0], [0]>} : vector<2x8x8xf32>, vector<2x8x8xf32>, vector<2x8x8xf32> -> vector<2x8x8xf32>
    "tpu.trace_stop"() : () -> ()
    %cst_16 = arith.constant dense<0xFF800000> : vector<2x8xf32>
    %38 = vector.multi_reduction <maximumf>, %37, %cst_16 [2] : vector<2x8x8xf32> to vector<2x8xf32>
    %39 = vector.shape_cast %38 : vector<2x8xf32> to vector<2x8x1xf32>
    %40 = vector.broadcast %39 : vector<2x8x1xf32> to vector<2x8x8xf32>
    %41 = arith.subf %37, %40 : vector<2x8x8xf32>
    %42 = math.exp %41 : vector<2x8x8xf32>
    %cst_17 = arith.constant dense<0.000000e+00> : vector<2x8xf32>
    %43 = vector.multi_reduction <add>, %42, %cst_17 [2] : vector<2x8x8xf32> to vector<2x8xf32>
    %44 = vector.shape_cast %43 : vector<2x8xf32> to vector<2x8x1xf32>
    %45 = tpu.reciprocal %44 {approx = true} : vector<2x8x1xf32> -> vector<2x8x1xf32>
    %46 = vector.broadcast %45 : vector<2x8x1xf32> to vector<2x8x8xf32>
    %47 = arith.mulf %42, %46 : vector<2x8x8xf32>
    %48 = vector.extract_strided_slice %14 {offsets = [0, 0, 8], sizes = [2, 8, 8], strides = [1, 1, 1]} : vector<2x8x24xf32> to vector<2x8x8xf32>
    "tpu.trace_start"() <{level = 10 : i32, message = "bqk,bkd->bqd"}> : () -> ()
    %cst_18 = arith.constant dense<0.000000e+00> : vector<2x8x8xf32>
    %49 = tpu.matmul %47, %48, %cst_18 {dimension_numbers = #tpu.dot_dimension_numbers<[2], [1], [1], [2], [0, 0, 0, 1, 1, 2], [0], [0]>} : vector<2x8x8xf32>, vector<2x8x8xf32>, vector<2x8x8xf32> -> vector<2x8x8xf32>
    "tpu.trace_stop"() : () -> ()
    %50 = vector.shape_cast %49 : vector<2x8x8xf32> to vector<16x8xf32>
    %c8 = arith.constant 8 : index
    %c0_19 = arith.constant 0 : index
    %51 = vector.load %arg4[%c8, %c0_19] : memref<24x24xf32, #tpu.memory_space<vmem>>, vector<8x24xf32>
    %cst_20 = arith.constant dense<0.000000e+00> : vector<16x24xf32>
    %52 = tpu.matmul %50, %51, %cst_20 {dimension_numbers = #tpu.dot_dimension_numbers<[1], [0], [0], [1], [0, 0, 1, 1], [], []>} : vector<16x8xf32>, vector<8x24xf32>, vector<16x24xf32> -> vector<16x24xf32>
    %53 = arith.addf %34, %52 : vector<16x24xf32>
    %54 = vector.extract_strided_slice %10 {offsets = [0, 0, 16], sizes = [2, 8, 8], strides = [1, 1, 1]} : vector<2x8x24xf32> to vector<2x8x8xf32>
    %55 = vector.extract_strided_slice %12 {offsets = [0, 0, 16], sizes = [2, 8, 8], strides = [1, 1, 1]} : vector<2x8x24xf32> to vector<2x8x8xf32>
    "tpu.trace_start"() <{level = 10 : i32, message = "bqd,bkd->bqk"}> : () -> ()
    %cst_21 = arith.constant dense<0.000000e+00> : vector<2x8x8xf32>
    %56 = tpu.matmul %54, %55, %cst_21 {dimension_numbers = #tpu.dot_dimension_numbers<[2], [2], [1], [1], [0, 0, 0, 1, 1, 1], [0], [0]>} : vector<2x8x8xf32>, vector<2x8x8xf32>, vector<2x8x8xf32> -> vector<2x8x8xf32>
    "tpu.trace_stop"() : () -> ()
    %cst_22 = arith.constant dense<0xFF800000> : vector<2x8xf32>
    %57 = vector.multi_reduction <maximumf>, %56, %cst_22 [2] : vector<2x8x8xf32> to vector<2x8xf32>
    %58 = vector.shape_cast %57 : vector<2x8xf32> to vector<2x8x1xf32>
    %59 = vector.broadcast %58 : vector<2x8x1xf32> to vector<2x8x8xf32>
    %60 = arith.subf %56, %59 : vector<2x8x8xf32>
    %61 = math.exp %60 : vector<2x8x8xf32>
    %cst_23 = arith.constant dense<0.000000e+00> : vector<2x8xf32>
    %62 = vector.multi_reduction <add>, %61, %cst_23 [2] : vector<2x8x8xf32> to vector<2x8xf32>
    %63 = vector.shape_cast %62 : vector<2x8xf32> to vector<2x8x1xf32>
    %64 = tpu.reciprocal %63 {approx = true} : vector<2x8x1xf32> -> vector<2x8x1xf32>
    %65 = vector.broadcast %64 : vector<2x8x1xf32> to vector<2x8x8xf32>
    %66 = arith.mulf %61, %65 : vector<2x8x8xf32>
    %67 = vector.extract_strided_slice %14 {offsets = [0, 0, 16], sizes = [2, 8, 8], strides = [1, 1, 1]} : vector<2x8x24xf32> to vector<2x8x8xf32>
    "tpu.trace_start"() <{level = 10 : i32, message = "bqk,bkd->bqd"}> : () -> ()
    %cst_24 = arith.constant dense<0.000000e+00> : vector<2x8x8xf32>
    %68 = tpu.matmul %66, %67, %cst_24 {dimension_numbers = #tpu.dot_dimension_numbers<[2], [1], [1], [2], [0, 0, 0, 1, 1, 2], [0], [0]>} : vector<2x8x8xf32>, vector<2x8x8xf32>, vector<2x8x8xf32> -> vector<2x8x8xf32>
    "tpu.trace_stop"() : () -> ()
    %69 = vector.shape_cast %68 : vector<2x8x8xf32> to vector<16x8xf32>
    %c16 = arith.constant 16 : index
    %c0_25 = arith.constant 0 : index
    %70 = vector.load %arg4[%c16, %c0_25] : memref<24x24xf32, #tpu.memory_space<vmem>>, vector<8x24xf32>
    %cst_26 = arith.constant dense<0.000000e+00> : vector<16x24xf32>
    %71 = tpu.matmul %69, %70, %cst_26 {dimension_numbers = #tpu.dot_dimension_numbers<[1], [0], [0], [1], [0, 0, 1, 1], [], []>} : vector<16x8xf32>, vector<8x24xf32>, vector<16x24xf32> -> vector<16x24xf32>
    %72 = arith.addf %53, %71 : vector<16x24xf32>
    %c0_27 = arith.constant 0 : index
    %c0_28 = arith.constant 0 : index
    %73 = vector.load %arg5[%c0_27, %c0_28] : memref<1x24xf32, #tpu.memory_space<vmem>>, vector<1x24xf32>
    %74 = vector.broadcast %73 : vector<1x24xf32> to vector<16x24xf32>
    %75 = arith.addf %72, %74 : vector<16x24xf32>
    %c0_29 = arith.constant 0 : index
    %c0_30 = arith.constant 0 : index
    %76 = vector.load %arg6[%c0_29, %c0_30] : memref<24x19xf32, #tpu.memory_space<vmem>>, vector<24x19xf32>
    %cst_31 = arith.constant dense<0.000000e+00> : vector<16x19xf32>
    %77 = tpu.matmul %75, %76, %cst_31 {dimension_numbers = #tpu.dot_dimension_numbers<[1], [0], [0], [1], [0, 0, 1, 1], [], []>} : vector<16x24xf32>, vector<24x19xf32>, vector<16x19xf32> -> vector<16x19xf32>
    %c0_32 = arith.constant 0 : index
    %c0_33 = arith.constant 0 : index
    %78 = vector.load %arg7[%c0_32, %c0_33] : memref<1x19xf32, #tpu.memory_space<vmem>>, vector<1x19xf32>
    %79 = vector.broadcast %78 : vector<1x19xf32> to vector<16x19xf32>
    %80 = arith.addf %77, %79 : vector<16x19xf32>
    %81 = vector.shape_cast %80 : vector<16x19xf32> to vector<2x8x19xf32>
    %c0_34 = arith.constant 0 : index
    %c0_35 = arith.constant 0 : index
    %c0_36 = arith.constant 0 : index
    %82 = vector.load %arg8[%c0_34, %c0_35, %c0_36] : memref<2x8x19xf32, #tpu.memory_space<vmem>>, vector<2x8x19xf32>
    tpu.vector_store %arg8[%c0_34, %c0_35, %c0_36], %81 {strides = array<i32>} : memref<2x8x19xf32, #tpu.memory_space<vmem>>, vector<2x8x19xf32>,
    return
  }
  func.func @transform_0(%arg0: i32) -> (i32, i32, i32) {
    %c0_i32 = arith.constant 0 : i32
    %c0_i32_0 = arith.constant 0 : i32
    %c0_i32_1 = arith.constant 0 : i32
    %c0_i32_2 = arith.constant 0 : i32
    return %c0_i32, %c0_i32_0, %c0_i32_1 : i32, i32, i32
  }
  func.func @transform_1(%arg0: i32) -> (i32, i32) {
    %c0_i32 = arith.constant 0 : i32
    %c0_i32_0 = arith.constant 0 : i32
    %c0_i32_1 = arith.constant 0 : i32
    return %c0_i32, %c0_i32_0 : i32, i32
  }
  func.func @transform_2(%arg0: i32) -> (i32, i32) {
    %c0_i32 = arith.constant 0 : i32
    %c0_i32_0 = arith.constant 0 : i32
    %c0_i32_1 = arith.constant 0 : i32
    return %c0_i32, %c0_i32_0 : i32, i32
  }
  func.func @transform_3(%arg0: i32) -> (i32, i32) {
    %c0_i32 = arith.constant 0 : i32
    %c0_i32_0 = arith.constant 0 : i32
    %c0_i32_1 = arith.constant 0 : i32
    return %c0_i32, %c0_i32_0 : i32, i32
  }
  func.func @transform_4(%arg0: i32) -> (i32, i32) {
    %c0_i32 = arith.constant 0 : i32
    %c0_i32_0 = arith.constant 0 : i32
    %c0_i32_1 = arith.constant 0 : i32
    return %c0_i32, %c0_i32_0 : i32, i32
  }
  func.func @transform_5(%arg0: i32) -> (i32, i32) {
    %c0_i32 = arith.constant 0 : i32
    %c0_i32_0 = arith.constant 0 : i32
    %c0_i32_1 = arith.constant 0 : i32
    return %c0_i32, %c0_i32_0 : i32, i32
  }
  func.func @transform_6(%arg0: i32) -> (i32, i32) {
    %c0_i32 = arith.constant 0 : i32
    %c0_i32_0 = arith.constant 0 : i32
    %c0_i32_1 = arith.constant 0 : i32
    return %c0_i32, %c0_i32_0 : i32, i32
  }
  func.func @transform_7(%arg0: i32) -> (i32, i32, i32) {
    %c0_i32 = arith.constant 0 : i32
    %c0_i32_0 = arith.constant 0 : i32
    %c0_i32_1 = arith.constant 0 : i32
    %c0_i32_2 = arith.constant 0 : i32
    return %c0_i32, %c0_i32_0, %c0_i32_1 : i32, i32, i32
  }
}

</mosaic_0001>

<llo_original>
// kernel: forward.6
$region0: #{forward.6}
  #allocation0 [shape = 'u32[]', space=smem, size = 0x4, offset = 0x4, fixed_abs, tag = 'smem constant byte address 0x4 - core index']
  #allocation1 [shape = 'u32[144,128]{1,0:T(1,128)}', space=vmem, size = 0x12000, scoped, tag = 'internal scratch']
  %s0 = inlined_call_operand.vmem [shape: f32[16,32], index: 0, kind: input, shape index: {}]
  %s1 = inlined_call_operand.vmem [shape: f32[1,32], index: 1, kind: input, shape index: {}]
  %s2 = inlined_call_operand.vmem [shape: f32[1,32], index: 2, kind: input, shape index: {}]
  %s3 = inlined_call_operand.vmem [shape: f32[16,32], index: 3, kind: output, shape index: {}]
  %s4 = sld [smem:[#allocation0]]
  $region22: #{forward.6} parent=0
    _
  %s6 = ssub.s32 1, %s4
  %s7 = scalar_select 0, %s6, %s4
  // Predicated region
  $region2: #{forward.6} parent=0 // pred_check
    _
  $region3: #{forward.6} parent=0 // pred_check_branch
    %9 = sbr.rel (0) target = $region5
  $region4: #{forward.6} parent=0 // pred_region
    _
  $region5: #{forward.6} parent=0 // pred_fallthru
    _
  // Predicated region
  $region6: #{forward.6} parent=0 // pred_check
    _
  $region7: #{forward.6} parent=0 // pred_check_branch
    %11 = sbr.rel (0) target = $region9
  $region8: #{forward.6} parent=0 // pred_region
    _
  $region9: #{forward.6} parent=0 // pred_fallthru
    _
  // Predicated region
  $region10: #{forward.6} parent=0 // pred_check
    _
  $region11: #{forward.6} parent=0 // pred_check_branch
    %13 = sbr.rel (0) target = $region13
  $region12: #{forward.6} parent=0 // pred_region
    _
  $region13: #{forward.6} parent=0 // pred_fallthru
    _
  %v14 = vld [vmem:[%s0] sm:$0xff]
  %v15 = vld [vmem:[%s0 + $0x8] sm:$0xff]
  %vm16 = vcmask 261120
  %v17 = vsel %vm16, %v14, 0.0
  %18 = vadd.xlane.f32.xlu0 %v17
  %v19 = vpop.xlane.xlu0 %18
  %v20 = vsel %vm16, %v15, 0.0
  %21 = vadd.xlane.f32.xlu0 %v20
  %v22 = vpop.xlane.xlu0 %21
  %v23 = vrcp.pop 32.0
  %v24 = vmul.f32 %v19, %v23
  %v25 = vmul.f32 %v22, %v23
  %v26 = vsub.f32 %v14, %v24
  %v27 = vsub.f32 %v15, %v25
  %v28 = vmul.f32 %v26, %v26
  %v29 = vmul.f32 %v27, %v27
  %v30 = vsel %vm16, %v28, 0.0
  %31 = vadd.xlane.f32.xlu0 %v30
  %v32 = vpop.xlane.xlu0 %31
  %v33 = vsel %vm16, %v29, 0.0
  %34 = vadd.xlane.f32.xlu0 %v33
  %v35 = vpop.xlane.xlu0 %34
  %v36 = vmul.f32 %v32, %v23
  %v37 = vmul.f32 %v35, %v23
  %v38 = vadd.f32 %v36, 1e-12
  %v39 = vadd.f32 %v37, 1e-12
  %v40 = vrsqrt.pop %v38
  %v41 = vrsqrt.pop %v39
  %v42 = vmul.f32 %v26, %v40
  %v43 = vmul.f32 %v27, %v41
  %v44 = vld [vmem:[%s1] sm:$0x1]
  %v46 = vlaneseq
  %v47 = vshrl.u32 %v46, 7
  %v48 = vsub.s32 0, %v47
  %v49 = vrot.slane %v44, %v48
  %v51 = vmul.f32 %v42, %v49
  %v52 = vmul.f32 %v43, %v49
  %v53 = vld [vmem:[%s2] sm:$0x1]
  %v55 = vlaneseq
  %v56 = vshrl.u32 %v55, 7
  %v57 = vsub.s32 0, %v56
  %v58 = vrot.slane %v53, %v57
  %v60 = vadd.f32 %v51, %v58
  %v61 = vadd.f32 %v52, %v58
  %62 = vst.msk [vmem:[%s3] sm:$0xff] %vm16, %v60
  %63 = vst.msk [vmem:[%s3 + $0x8] sm:$0xff] %vm16, %v61
  // Predicated region
  $region14: #{forward.6} parent=0 // pred_check
    _
  $region15: #{forward.6} parent=0 // pred_check_branch
    %65 = sbr.rel (0) target = $region17
  $region16: #{forward.6} parent=0 // pred_region
    _
  $region17: #{forward.6} parent=0 // pred_fallthru
    _
  // Predicated region
  $region18: #{forward.6} parent=0 // pred_check
    _
  $region19: #{forward.6} parent=0 // pred_check_branch
    %67 = sbr.rel (0) target = $region21
  $region20: #{forward.6} parent=0 // pred_region
    _
  $region21: #{forward.6} parent=0 // pred_fallthru
    _

// kernel: forward.7
$region0: #{forward.7}
  #allocation0 [shape = 'u32[]', space=smem, size = 0x4, offset = 0x4, fixed_abs, tag = 'smem constant byte address 0x4 - core index']
  #allocation1 [shape = 'u32[144,128]{1,0:T(1,128)}', space=vmem, size = 0x12000, scoped, tag = 'internal scratch']
  %s0 = inlined_call_operand.vmem [shape: f32[2,8,32], index: 0, kind: input, shape index: {}]
  %s1 = inlined_call_operand.vmem [shape: f32[2,1,8], index: 1, kind: input, shape index: {}]
  %s2 = inlined_call_operand.vmem [shape: f32[32,96], index: 2, kind: input, shape index: {}]
  %s3 = inlined_call_operand.vmem [shape: f32[1,96], index: 3, kind: input, shape index: {}]
  %s4 = inlined_call_operand.vmem [shape: f32[32,32], index: 4, kind: input, shape index: {}]
  %s5 = inlined_call_operand.vmem [shape: f32[1,32], index: 5, kind: input, shape index: {}]
  %s6 = inlined_call_operand.vmem [shape: f32[1,32], index: 6, kind: input, shape index: {}]
  %s7 = inlined_call_operand.vmem [shape: f32[1,32], index: 7, kind: input, shape index: {}]
  %s8 = inlined_call_operand.vmem [shape: f32[32,64], index: 8, kind: input, shape index: {}]
  %s9 = inlined_call_operand.vmem [shape: f32[1,64], index: 9, kind: input, shape index: {}]
  %s10 = inlined_call_operand.vmem [shape: f32[64,32], index: 10, kind: input, shape index: {}]
  %s11 = inlined_call_operand.vmem [shape: f32[1,32], index: 11, kind: input, shape index: {}]
  %s12 = inlined_call_operand.vmem [shape: f32[1,32], index: 12, kind: input, shape index: {}]
  %s13 = inlined_call_operand.vmem [shape: f32[1,32], index: 13, kind: input, shape index: {}]
  %s14 = inlined_call_operand.vmem [shape: f32[2,8,32], index: 14, kind: output, shape index: {}]
  %s15 = sld [smem:[#allocation0]]
  $region66: #{forward.7} parent=0
    _
  %s17 = ssub.s32 1, %s15
  %s18 = scalar_select 0, %s17, %s15
  // Predicated region
  $region2: #{forward.7} parent=0 // pred_check
    _
  $region3: #{forward.7} parent=0 // pred_check_branch
    %20 = sbr.rel (0) target = $region5
  $region4: #{forward.7} parent=0 // pred_region
    _
  $region5: #{forward.7} parent=0 // pred_fallthru
    _
  // Predicated region
  $region6: #{forward.7} parent=0 // pred_check
    _
  $region7: #{forward.7} parent=0 // pred_check_branch
    %22 = sbr.rel (0) target = $region9
  $region8: #{forward.7} parent=0 // pred_region
    _
  $region9: #{forward.7} parent=0 // pred_fallthru
    _
  // Predicated region
  $region10: #{forward.7} parent=0 // pred_check
    _
  $region11: #{forward.7} parent=0 // pred_check_branch
    %24 = sbr.rel (0) target = $region13
  $region12: #{forward.7} parent=0 // pred_region
    _
  $region13: #{forward.7} parent=0 // pred_fallthru
    _
  // Predicated region
  $region14: #{forward.7} parent=0 // pred_check
    _
  $region15: #{forward.7} parent=0 // pred_check_branch
    %26 = sbr.rel (0) target = $region17
  $region16: #{forward.7} parent=0 // pred_region
    _
  $region17: #{forward.7} parent=0 // pred_fallthru
    _
  // Predicated region
  $region18: #{forward.7} parent=0 // pred_check
    _
  $region19: #{forward.7} parent=0 // pred_check_branch
    %28 = sbr.rel (0) target = $region21
  $region20: #{forward.7} parent=0 // pred_region
    _
  $region21: #{forward.7} parent=0 // pred_fallthru
    _
  // Predicated region
  $region22: #{forward.7} parent=0 // pred_check
    _
  $region23: #{forward.7} parent=0 // pred_check_branch
    %30 = sbr.rel (0) target = $region25
  $region24: #{forward.7} parent=0 // pred_region
    _
  $region25: #{forward.7} parent=0 // pred_fallthru
    _
  // Predicated region
  $region26: #{forward.7} parent=0 // pred_check
    _
  $region27: #{forward.7} parent=0 // pred_check_branch
    %32 = sbr.rel (0) target = $region29
  $region28: #{forward.7} parent=0 // pred_region
    _
  $region29: #{forward.7} parent=0 // pred_fallthru
    _
  // Predicated region
  $region30: #{forward.7} parent=0 // pred_check
    _
  $region31: #{forward.7} parent=0 // pred_check_branch
    %34 = sbr.rel (0) target = $region33
  $region32: #{forward.7} parent=0 // pred_region
    _
  $region33: #{forward.7} parent=0 // pred_fallthru
    _
  // Predicated region
  $region34: #{forward.7} parent=0 // pred_check
    _
  $region35: #{forward.7} parent=0 // pred_check_branch
    %36 = sbr.rel (0) target = $region37
  $region36: #{forward.7} parent=0 // pred_region
    _
  $region37: #{forward.7} parent=0 // pred_fallthru
    _
  // Predicated region
  $region38: #{forward.7} parent=0 // pred_check
    _
  $region39: #{forward.7} parent=0 // pred_check_branch
    %38 = sbr.rel (0) target = $region41
  $region40: #{forward.7} parent=0 // pred_region
    _
  $region41: #{forward.7} parent=0 // pred_fallthru
    _
  // Predicated region
  $region42: #{forward.7} parent=0 // pred_check
    _
  $region43: #{forward.7} parent=0 // pred_check_branch
    %40 = sbr.rel (0) target = $region45
  $region44: #{forward.7} parent=0 // pred_region
    _
  $region45: #{forward.7} parent=0 // pred_fallthru
    _
  // Predicated region
  $region46: #{forward.7} parent=0 // pred_check
    _
  $region47: #{forward.7} parent=0 // pred_check_branch
    %42 = sbr.rel (0) target = $region49
  $region48: #{forward.7} parent=0 // pred_region
    _
  $region49: #{forward.7} parent=0 // pred_fallthru
    _
  // Predicated region
  $region50: #{forward.7} parent=0 // pred_check
    _
  $region51: #{forward.7} parent=0 // pred_check_branch
    %44 = sbr.rel (0) target = $region53
  $region52: #{forward.7} parent=0 // pred_region
    _
  $region53: #{forward.7} parent=0 // pred_fallthru
    _
  // Predicated region
  $region54: #{forward.7} parent=0 // pred_check
    _
  $region55: #{forward.7} parent=0 // pred_check_branch
    %46 = sbr.rel (0) target = $region57
  $region56: #{forward.7} parent=0 // pred_region
    _
  $region57: #{forward.7} parent=0 // pred_fallthru
    _
  %v47 = vld [vmem:[%s0] sm:$0xff]
  %v48 = vld [vmem:[%s0 + $0x8] sm:$0xff]
  %v49 = vld [vmem:[%s2] sm:$0xff]
  %v50 = vld [vmem:[%s2 + $0x8] sm:$0xff]
  %v51 = vld [vmem:[%s2 + $0x10] sm:$0xff]
  %v52 = vld [vmem:[%s2 + $0x18] sm:$0xff]
  %v53 = vld [vmem:[%s3] sm:$0x1]
  %v55 = vlaneseq
  %v56 = vshrl.u32 %v55, 7
  %v57 = vsub.s32 0, %v56
  %v58 = vrot.slane %v53, %v57
  %vm60 = vcmask 261120
  %v62 = vsel %vm60, %v47, 0
  %v65 = vsel %vm60, %v48, 0
  %67 = vmatprep.subr.mxu0 0.0
  %68 = vmatpush1.msra.mxu0 %v49
  %69 = vmatprep.subr.mxu0 0.0
  %70 = vmatpush1.msra.mxu0 %v50
  %71 = vmatprep.subr.mxu0 0.0
  %72 = vmatpush1.msra.mxu0 %v51
  %73 = vmatprep.subr.mxu0 0.0
  %74 = vmatpush1.msra.mxu0 %v52
  %75 = vmatprep.subr.mxu0 0.0
  %76 = vmatpush1.msra.mxu0 0.0
  %77 = vmatprep.subr.mxu0 0.0
  %78 = vmatpush1.msra.mxu0 0.0
  %79 = vmatprep.subr.mxu0 0.0
  %80 = vmatpush1.msra.mxu0 0.0
  %81 = vmatprep.subr.mxu0 0.0
  %82 = vmatpush1.msra.mxu0 0.0
  %83 = vmatprep.subr.mxu0 0.0
  %84 = vmatpush1.msra.mxu0 0.0
  %85 = vmatprep.subr.mxu0 0.0
  %86 = vmatpush1.msra.mxu0 0.0
  %87 = vmatprep.subr.mxu0 0.0
  %88 = vmatpush1.msra.mxu0 0.0
  %89 = vmatprep.subr.mxu0 0.0
  %90 = vmatpush1.msra.mxu0 0.0
  %91 = vmatprep.subr.mxu0 0.0
  %92 = vmatpush1.msra.mxu0 0.0
  %93 = vmatprep.subr.mxu0 0.0
  %94 = vmatpush1.msra.mxu0 0.0
  %95 = vmatprep.subr.mxu0 0.0
  %96 = vmatpush1.msra.mxu0 0.0
  %97 = vmatprep.subr.mxu0 0.0
  %98 = vmatpush1.msra.mxu0 0.0
  %99 = vmatprep.subr.mxu0 0.0
  %100 = vmatpush1.msra.mxu0 0.0
  %101 = vmatprep.subr.mxu0 0.0
  %102 = vmatpush1.msra.mxu0 0.0
  %103 = vmatprep.subr.mxu0 0.0
  %104 = vmatpush1.msra.mxu0 0.0
  %105 = vmatprep.subr.mxu0 0.0
  %106 = vmatpush1.msra.mxu0 0.0
  %107 = vmatprep.subr.mxu0 0.0
  %108 = vmatpush1.msra.mxu0 0.0
  %109 = vmatprep.subr.mxu0 0.0
  %110 = vmatpush1.msra.mxu0 0.0
  %111 = vmatprep.subr.mxu0 0.0
  %112 = vmatpush1.msra.mxu0 0.0
  %113 = vmatprep.subr.mxu0 0.0
  %114 = vmatpush1.msra.mxu0 0.0
  %115 = vmatprep.subr.mxu0 0.0
  %116 = vmatpush1.msra.mxu0 0.0
  %117 = vmatprep.subr.mxu0 0.0
  %118 = vmatpush1.msra.mxu0 0.0
  %119 = vmatprep.subr.mxu0 0.0
  %120 = vmatpush1.msra.mxu0 0.0
  %121 = vmatprep.subr.mxu0 0.0
  %122 = vmatpush1.msra.mxu0 0.0
  %123 = vmatprep.subr.mxu0 0.0
  %124 = vmatpush1.msra.mxu0 0.0
  %125 = vmatprep.subr.mxu0 0.0
  %126 = vmatpush1.msra.mxu0 0.0
  %127 = vmatprep.subr.mxu0 0.0
  %128 = vmatpush1.msra.mxu0 0.0
  %129 = vmatprep.subr.mxu0 0.0
  %130 = vmatpush1.msra.mxu0 0.0
  %131 = vmatprep.mubr.f32.mxu0 0.0
  %132 = vmatmul.mubr.f32.gmra.mrb[0].mxu0 %v62
  %v133 = vpop.f32.mrb[0].mxu0
  %v134 = vadd.f32 %v58, %v133
  %v135 = vpop.f32.mrb[0].mxu0
  %136 = vmatprep.mubr.f32.mxu0 0.0
  %137 = vmatmul.mubr.f32.gmra.mrb[0].mxu0 %v65
  %v138 = vpop.f32.mrb[0].mxu0
  %v139 = vadd.f32 %v58, %v138
  %v140 = vpop.f32.mrb[0].mxu0
  %141 = vdwg.mxu0
  %v142 = vmul.f32 %v134, 0.25
  %v143 = vmul.f32 %v139, 0.25
  %v144 = vld [vmem:[%s1] sm:$0x1]
  %v145 = vld [vmem:[%s1 + $0x1] sm:$0x1]
  %v148 = vlaneseq
  %v149 = vshrl.u32 %v148, 7
  %v150 = vsub.s32 0, %v149
  %v151 = vrot.slane %v144, %v150
  %v152 = vlaneseq
  %v153 = vshrl.u32 %v152, 7
  %v154 = vsub.s32 0, %v153
  %v155 = vrot.slane %v145, %v154
  %159 = vrot.lane.b32.xlu0 %v134, 96
  %v160 = vpop.permute.xlu0 %159
  %vm161 = vcmask 130048
  %v163 = vsel %vm161, %v142, 0
  %v165 = vsel %vm161, %v160, 0
  %167 = vmatprep.subr.mxu0 0.0
  %168 = vmatpush1.xpose.msra.mxu0 %v165
  %169 = vmatprep.subr.mxu0 0.0
  %170 = vmatpush1.xpose.msra.mxu0 0.0
  %171 = vmatprep.subr.mxu0 0.0
  %172 = vmatpush1.xpose.msra.mxu0 0.0
  %173 = vmatprep.subr.mxu0 0.0
  %174 = vmatpush1.xpose.msra.mxu0 0.0
  %175 = vmatprep.subr.mxu0 0.0
  %176 = vmatpush1.xpose.msra.mxu0 0.0
  %177 = vmatprep.subr.mxu0 0.0
  %178 = vmatpush1.xpose.msra.mxu0 0.0
  %179 = vmatprep.subr.mxu0 0.0
  %180 = vmatpush1.xpose.msra.mxu0 0.0
  %181 = vmatprep.subr.mxu0 0.0
  %182 = vmatpush1.xpose.msra.mxu0 0.0
  %183 = vmatprep.subr.mxu0 0.0
  %184 = vmatpush1.xpose.msra.mxu0 0.0
  %185 = vmatprep.subr.mxu0 0.0
  %186 = vmatpush1.xpose.msra.mxu0 0.0
  %187 = vmatprep.subr.mxu0 0.0
  %188 = vmatpush1.xpose.msra.mxu0 0.0
  %189 = vmatprep.subr.mxu0 0.0
  %190 = vmatpush1.xpose.msra.mxu0 0.0
  %191 = vmatprep.subr.mxu0 0.0
  %192 = vmatpush1.xpose.msra.mxu0 0.0
  %193 = vmatprep.subr.mxu0 0.0
  %194 = vmatpush1.xpose.msra.mxu0 0.0
  %195 = vmatprep.subr.mxu0 0.0
  %196 = vmatpush1.xpose.msra.mxu0 0.0
  %197 = vmatprep.subr.mxu0 0.0
  %198 = vmatpush1.xpose.msra.mxu0 0.0
  %199 = vmatprep.subr.mxu0 0.0
  %200 = vmatpush1.xpose.msra.mxu0 0.0
  %201 = vmatprep.subr.mxu0 0.0
  %202 = vmatpush1.xpose.msra.mxu0 0.0
  %203 = vmatprep.subr.mxu0 0.0
  %204 = vmatpush1.xpose.msra.mxu0 0.0
  %205 = vmatprep.subr.mxu0 0.0
  %206 = vmatpush1.xpose.msra.mxu0 0.0
  %207 = vmatprep.subr.mxu0 0.0
  %208 = vmatpush1.xpose.msra.mxu0 0.0
  %209 = vmatprep.subr.mxu0 0.0
  %210 = vmatpush1.xpose.msra.mxu0 0.0
  %211 = vmatprep.subr.mxu0 0.0
  %212 = vmatpush1.xpose.msra.mxu0 0.0
  %213 = vmatprep.subr.mxu0 0.0
  %214 = vmatpush1.xpose.msra.mxu0 0.0
  %215 = vmatprep.subr.mxu0 0.0
  %216 = vmatpush1.xpose.msra.mxu0 0.0
  %217 = vmatprep.subr.mxu0 0.0
  %218 = vmatpush1.xpose.msra.mxu0 0.0
  %219 = vmatprep.subr.mxu0 0.0
  %220 = vmatpush1.xpose.msra.mxu0 0.0
  %221 = vmatprep.subr.mxu0 0.0
  %222 = vmatpush1.xpose.msra.mxu0 0.0
  %223 = vmatprep.subr.mxu0 0.0
  %224 = vmatpush1.xpose.msra.mxu0 0.0
  %225 = vmatprep.subr.mxu0 0.0
  %226 = vmatpush1.xpose.msra.mxu0 0.0
  %227 = vmatprep.subr.mxu0 0.0
  %228 = vmatpush1.xpose.msra.mxu0 0.0
  %229 = vmatprep.subr.mxu0 0.0
  %230 = vmatpush1.xpose.msra.mxu0 0.0
  %231 = vmatprep.mubr.f32.mxu0 0.0
  %232 = vmatmul.mubr.f32.gmra.mrb[0].mxu0 %v163
  %v233 = vpop.f32.mrb[0].mxu0
  %v234 = vadd.f32 %v151, %v233
  %v235 = vpop.f32.mrb[0].mxu0
  %236 = vdwg.mxu0
  %238 = vrot.lane.b32.xlu0 %v139, 96
  %v239 = vpop.permute.xlu0 %238
  %v241 = vsel %vm161, %v143, 0
  %v243 = vsel %vm161, %v239, 0
  %245 = vmatprep.subr.mxu0 0.0
  %246 = vmatpush1.xpose.msra.mxu0 %v243
  %247 = vmatprep.subr.mxu0 0.0
  %248 = vmatpush1.xpose.msra.mxu0 0.0
  %249 = vmatprep.subr.mxu0 0.0
  %250 = vmatpush1.xpose.msra.mxu0 0.0
  %251 = vmatprep.subr.mxu0 0.0
  %252 = vmatpush1.xpose.msra.mxu0 0.0
  %253 = vmatprep.subr.mxu0 0.0
  %254 = vmatpush1.xpose.msra.mxu0 0.0
  %255 = vmatprep.subr.mxu0 0.0
  %256 = vmatpush1.xpose.msra.mxu0 0.0
  %257 = vmatprep.subr.mxu0 0.0
  %258 = vmatpush1.xpose.msra.mxu0 0.0
  %259 = vmatprep.subr.mxu0 0.0
  %260 = vmatpush1.xpose.msra.mxu0 0.0
  %261 = vmatprep.subr.mxu0 0.0
  %262 = vmatpush1.xpose.msra.mxu0 0.0
  %263 = vmatprep.subr.mxu0 0.0
  %264 = vmatpush1.xpose.msra.mxu0 0.0
  %265 = vmatprep.subr.mxu0 0.0
  %266 = vmatpush1.xpose.msra.mxu0 0.0
  %267 = vmatprep.subr.mxu0 0.0
  %268 = vmatpush1.xpose.msra.mxu0 0.0
  %269 = vmatprep.subr.mxu0 0.0
  %270 = vmatpush1.xpose.msra.mxu0 0.0
  %271 = vmatprep.subr.mxu0 0.0
  %272 = vmatpush1.xpose.msra.mxu0 0.0
  %273 = vmatprep.subr.mxu0 0.0
  %274 = vmatpush1.xpose.msra.mxu0 0.0
  %275 = vmatprep.subr.mxu0 0.0
  %276 = vmatpush1.xpose.msra.mxu0 0.0
  %277 = vmatprep.subr.mxu0 0.0
  %278 = vmatpush1.xpose.msra.mxu0 0.0
  %279 = vmatprep.subr.mxu0 0.0
  %280 = vmatpush1.xpose.msra.mxu0 0.0
  %281 = vmatprep.subr.mxu0 0.0
  %282 = vmatpush1.xpose.msra.mxu0 0.0
  %283 = vmatprep.subr.mxu0 0.0
  %284 = vmatpush1.xpose.msra.mxu0 0.0
  %285 = vmatprep.subr.mxu0 0.0
  %286 = vmatpush1.xpose.msra.mxu0 0.0
  %287 = vmatprep.subr.mxu0 0.0
  %288 = vmatpush1.xpose.msra.mxu0 0.0
  %289 = vmatprep.subr.mxu0 0.0
  %290 = vmatpush1.xpose.msra.mxu0 0.0
  %291 = vmatprep.subr.mxu0 0.0
  %292 = vmatpush1.xpose.msra.mxu0 0.0
  %293 = vmatprep.subr.mxu0 0.0
  %294 = vmatpush1.xpose.msra.mxu0 0.0
  %295 = vmatprep.subr.mxu0 0.0
  %296 = vmatpush1.xpose.msra.mxu0 0.0
  %297 = vmatprep.subr.mxu0 0.0
  %298 = vmatpush1.xpose.msra.mxu0 0.0
  %299 = vmatprep.subr.mxu0 0.0
  %300 = vmatpush1.xpose.msra.mxu0 0.0
  %301 = vmatprep.subr.mxu0 0.0
  %302 = vmatpush1.xpose.msra.mxu0 0.0
  %303 = vmatprep.subr.mxu0 0.0
  %304 = vmatpush1.xpose.msra.mxu0 0.0
  %305 = vmatprep.subr.mxu0 0.0
  %306 = vmatpush1.xpose.msra.mxu0 0.0
  %307 = vmatprep.subr.mxu0 0.0
  %308 = vmatpush1.xpose.msra.mxu0 0.0
  %309 = vmatprep.mubr.f32.mxu0 0.0
  %310 = vmatmul.mubr.f32.gmra.mrb[0].mxu0 %v241
  %v311 = vpop.f32.mrb[0].mxu0
  %v312 = vadd.f32 %v155, %v311
  %v313 = vpop.f32.mrb[0].mxu0
  %314 = vdwg.mxu0
  %vm315 = vcmask 64512
  %v316 = vsel %vm315, %v234, -inf
  %317 = vmax.xlane.f32.xlu0 %v316
  %v318 = vpop.xlane.xlu0 %317
  %v319 = vsel %vm315, %v312, -inf
  %320 = vmax.xlane.f32.xlu0 %v319
  %v321 = vpop.xlane.xlu0 %320
  %v322 = vsub.f32 %v234, %v318
  %v323 = vsub.f32 %v312, %v321
  %v324 = vmul.f32 %v322, 1.442695
  %v325 = vpow.pop %v324
  %v326 = vmul.f32 %v323, 1.442695
  %v327 = vpow.pop %v326
  %v328 = vsel %vm315, %v325, 0.0
  %329 = vadd.xlane.f32.xlu0 %v328
  %v330 = vpop.xlane.xlu0 %329
  %v331 = vsel %vm315, %v327, 0.0
  %332 = vadd.xlane.f32.xlu0 %v331
  %v333 = vpop.xlane.xlu0 %332
  %v334 = vrcp.pop %v330
  %v335 = vrcp.pop %v333
  %v336 = vmul.f32 %v325, %v334
  %v337 = vmul.f32 %v327, %v335
  %338 = vrot.lane.b32.xlu0 %v134, 64
  %v339 = vpop.permute.xlu0 %338
  %v342 = vsel %vm315, %v336, 0
  %344 = vmatprep.subr.mxu0 0.0
  %345 = vmatpush1.msra.mxu0 %v339
  %346 = vmatprep.subr.mxu0 0.0
  %347 = vmatpush1.msra.mxu0 0.0
  %348 = vmatprep.subr.mxu0 0.0
  %349 = vmatpush1.msra.mxu0 0.0
  %350 = vmatprep.subr.mxu0 0.0
  %351 = vmatpush1.msra.mxu0 0.0
  %352 = vmatprep.subr.mxu0 0.0
  %353 = vmatpush1.msra.mxu0 0.0
  %354 = vmatprep.subr.mxu0 0.0
  %355 = vmatpush1.msra.mxu0 0.0
  %356 = vmatprep.subr.mxu0 0.0
  %357 = vmatpush1.msra.mxu0 0.0
  %358 = vmatprep.subr.mxu0 0.0
  %359 = vmatpush1.msra.mxu0 0.0
  %360 = vmatprep.subr.mxu0 0.0
  %361 = vmatpush1.msra.mxu0 0.0
  %362 = vmatprep.subr.mxu0 0.0
  %363 = vmatpush1.msra.mxu0 0.0
  %364 = vmatprep.subr.mxu0 0.0
  %365 = vmatpush1.msra.mxu0 0.0
  %366 = vmatprep.subr.mxu0 0.0
  %367 = vmatpush1.msra.mxu0 0.0
  %368 = vmatprep.subr.mxu0 0.0
  %369 = vmatpush1.msra.mxu0 0.0
  %370 = vmatprep.subr.mxu0 0.0
  %371 = vmatpush1.msra.mxu0 0.0
  %372 = vmatprep.subr.mxu0 0.0
  %373 = vmatpush1.msra.mxu0 0.0
  %374 = vmatprep.subr.mxu0 0.0
  %375 = vmatpush1.msra.mxu0 0.0
  %376 = vmatprep.subr.mxu0 0.0
  %377 = vmatpush1.msra.mxu0 0.0
  %378 = vmatprep.subr.mxu0 0.0
  %379 = vmatpush1.msra.mxu0 0.0
  %380 = vmatprep.subr.mxu0 0.0
  %381 = vmatpush1.msra.mxu0 0.0
  %382 = vmatprep.subr.mxu0 0.0
  %383 = vmatpush1.msra.mxu0 0.0
  %384 = vmatprep.subr.mxu0 0.0
  %385 = vmatpush1.msra.mxu0 0.0
  %386 = vmatprep.subr.mxu0 0.0
  %387 = vmatpush1.msra.mxu0 0.0
  %388 = vmatprep.subr.mxu0 0.0
  %389 = vmatpush1.msra.mxu0 0.0
  %390 = vmatprep.subr.mxu0 0.0
  %391 = vmatpush1.msra.mxu0 0.0
  %392 = vmatprep.subr.mxu0 0.0
  %393 = vmatpush1.msra.mxu0 0.0
  %394 = vmatprep.subr.mxu0 0.0
  %395 = vmatpush1.msra.mxu0 0.0
  %396 = vmatprep.subr.mxu0 0.0
  %397 = vmatpush1.msra.mxu0 0.0
  %398 = vmatprep.subr.mxu0 0.0
  %399 = vmatpush1.msra.mxu0 0.0
  %400 = vmatprep.subr.mxu0 0.0
  %401 = vmatpush1.msra.mxu0 0.0
  %402 = vmatprep.subr.mxu0 0.0
  %403 = vmatpush1.msra.mxu0 0.0
  %404 = vmatprep.subr.mxu0 0.0
  %405 = vmatpush1.msra.mxu0 0.0
  %406 = vmatprep.subr.mxu0 0.0
  %407 = vmatpush1.msra.mxu0 0.0
  %408 = vmatprep.mubr.f32.mxu0 0.0
  %409 = vmatmul.mubr.f32.gmra.mrb[0].mxu0 %v342
  %v410 = vpop.f32.mrb[0].mxu0
  %v411 = vadd.f32 0.0, %v410
  %v412 = vpop.f32.mrb[0].mxu0
  %413 = vdwg.mxu0
  %414 = vrot.lane.b32.xlu0 %v139, 64
  %v415 = vpop.permute.xlu0 %414
  %v418 = vsel %vm315, %v337, 0
  %420 = vmatprep.subr.mxu0 0.0
  %421 = vmatpush1.msra.mxu0 %v415
  %422 = vmatprep.subr.mxu0 0.0
  %423 = vmatpush1.msra.mxu0 0.0
  %424 = vmatprep.subr.mxu0 0.0
  %425 = vmatpush1.msra.mxu0 0.0
  %426 = vmatprep.subr.mxu0 0.0
  %427 = vmatpush1.msra.mxu0 0.0
  %428 = vmatprep.subr.mxu0 0.0
  %429 = vmatpush1.msra.mxu0 0.0
  %430 = vmatprep.subr.mxu0 0.0
  %431 = vmatpush1.msra.mxu0 0.0
  %432 = vmatprep.subr.mxu0 0.0
  %433 = vmatpush1.msra.mxu0 0.0
  %434 = vmatprep.subr.mxu0 0.0
  %435 = vmatpush1.msra.mxu0 0.0
  %436 = vmatprep.subr.mxu0 0.0
  %437 = vmatpush1.msra.mxu0 0.0
  %438 = vmatprep.subr.mxu0 0.0
  %439 = vmatpush1.msra.mxu0 0.0
  %440 = vmatprep.subr.mxu0 0.0
  %441 = vmatpush1.msra.mxu0 0.0
  %442 = vmatprep.subr.mxu0 0.0
  %443 = vmatpush1.msra.mxu0 0.0
  %444 = vmatprep.subr.mxu0 0.0
  %445 = vmatpush1.msra.mxu0 0.0
  %446 = vmatprep.subr.mxu0 0.0
  %447 = vmatpush1.msra.mxu0 0.0
  %448 = vmatprep.subr.mxu0 0.0
  %449 = vmatpush1.msra.mxu0 0.0
  %450 = vmatprep.subr.mxu0 0.0
  %451 = vmatpush1.msra.mxu0 0.0
  %452 = vmatprep.subr.mxu0 0.0
  %453 = vmatpush1.msra.mxu0 0.0
  %454 = vmatprep.subr.mxu0 0.0
  %455 = vmatpush1.msra.mxu0 0.0
  %456 = vmatprep.subr.mxu0 0.0
  %457 = vmatpush1.msra.mxu0 0.0
  %458 = vmatprep.subr.mxu0 0.0
  %459 = vmatpush1.msra.mxu0 0.0
  %460 = vmatprep.subr.mxu0 0.0
  %461 = vmatpush1.msra.mxu0 0.0
  %462 = vmatprep.subr.mxu0 0.0
  %463 = vmatpush1.msra.mxu0 0.0
  %464 = vmatprep.subr.mxu0 0.0
  %465 = vmatpush1.msra.mxu0 0.0
  %466 = vmatprep.subr.mxu0 0.0
  %467 = vmatpush1.msra.mxu0 0.0
  %468 = vmatprep.subr.mxu0 0.0
  %469 = vmatpush1.msra.mxu0 0.0
  %470 = vmatprep.subr.mxu0 0.0
  %471 = vmatpush1.msra.mxu0 0.0
  %472 = vmatprep.subr.mxu0 0.0
  %473 = vmatpush1.msra.mxu0 0.0
  %474 = vmatprep.subr.mxu0 0.0
  %475 = vmatpush1.msra.mxu0 0.0
  %476 = vmatprep.subr.mxu0 0.0
  %477 = vmatpush1.msra.mxu0 0.0
  %478 = vmatprep.subr.mxu0 0.0
  %479 = vmatpush1.msra.mxu0 0.0
  %480 = vmatprep.subr.mxu0 0.0
  %481 = vmatpush1.msra.mxu0 0.0
  %482 = vmatprep.subr.mxu0 0.0
  %483 = vmatpush1.msra.mxu0 0.0
  %484 = vmatprep.mubr.f32.mxu0 0.0
  %485 = vmatmul.mubr.f32.gmra.mrb[0].mxu0 %v418
  %v486 = vpop.f32.mrb[0].mxu0
  %v487 = vadd.f32 0.0, %v486
  %v488 = vpop.f32.mrb[0].mxu0
  %489 = vdwg.mxu0
  %v490 = vld [vmem:[%s4] sm:$0xff]
  %v491 = vld [vmem:[%s4 + $0x8] sm:$0xff]
  %492 = vrot.lane.b32.xlu0 %v142, 112
  %v493 = vpop.permute.xlu0 %492
  %494 = vrot.lane.b32.xlu0 %v134, 80
  %v495 = vpop.permute.xlu0 %494
  %v496 = vsel %vm161, %v493, 0
  %v498 = vsel %vm161, %v495, 0
  %500 = vmatprep.subr.mxu0 0.0
  %501 = vmatpush1.xpose.msra.mxu0 %v498
  %502 = vmatprep.subr.mxu0 0.0
  %503 = vmatpush1.xpose.msra.mxu0 0.0
  %504 = vmatprep.subr.mxu0 0.0
  %505 = vmatpush1.xpose.msra.mxu0 0.0
  %506 = vmatprep.subr.mxu0 0.0
  %507 = vmatpush1.xpose.msra.mxu0 0.0
  %508 = vmatprep.subr.mxu0 0.0
  %509 = vmatpush1.xpose.msra.mxu0 0.0
  %510 = vmatprep.subr.mxu0 0.0
  %511 = vmatpush1.xpose.msra.mxu0 0.0
  %512 = vmatprep.subr.mxu0 0.0
  %513 = vmatpush1.xpose.msra.mxu0 0.0
  %514 = vmatprep.subr.mxu0 0.0
  %515 = vmatpush1.xpose.msra.mxu0 0.0
  %516 = vmatprep.subr.mxu0 0.0
  %517 = vmatpush1.xpose.msra.mxu0 0.0
  %518 = vmatprep.subr.mxu0 0.0
  %519 = vmatpush1.xpose.msra.mxu0 0.0
  %520 = vmatprep.subr.mxu0 0.0
  %521 = vmatpush1.xpose.msra.mxu0 0.0
  %522 = vmatprep.subr.mxu0 0.0
  %523 = vmatpush1.xpose.msra.mxu0 0.0
  %524 = vmatprep.subr.mxu0 0.0
  %525 = vmatpush1.xpose.msra.mxu0 0.0
  %526 = vmatprep.subr.mxu0 0.0
  %527 = vmatpush1.xpose.msra.mxu0 0.0
  %528 = vmatprep.subr.mxu0 0.0
  %529 = vmatpush1.xpose.msra.mxu0 0.0
  %530 = vmatprep.subr.mxu0 0.0
  %531 = vmatpush1.xpose.msra.mxu0 0.0
  %532 = vmatprep.subr.mxu0 0.0
  %533 = vmatpush1.xpose.msra.mxu0 0.0
  %534 = vmatprep.subr.mxu0 0.0
  %535 = vmatpush1.xpose.msra.mxu0 0.0
  %536 = vmatprep.subr.mxu0 0.0
  %537 = vmatpush1.xpose.msra.mxu0 0.0
  %538 = vmatprep.subr.mxu0 0.0
  %539 = vmatpush1.xpose.msra.mxu0 0.0
  %540 = vmatprep.subr.mxu0 0.0
  %541 = vmatpush1.xpose.msra.mxu0 0.0
  %542 = vmatprep.subr.mxu0 0.0
  %543 = vmatpush1.xpose.msra.mxu0 0.0
  %544 = vmatprep.subr.mxu0 0.0
  %545 = vmatpush1.xpose.msra.mxu0 0.0
  %546 = vmatprep.subr.mxu0 0.0
  %547 = vmatpush1.xpose.msra.mxu0 0.0
  %548 = vmatprep.subr.mxu0 0.0
  %549 = vmatpush1.xpose.msra.mxu0 0.0
  %550 = vmatprep.subr.mxu0 0.0
  %551 = vmatpush1.xpose.msra.mxu0 0.0
  %552 = vmatprep.subr.mxu0 0.0
  %553 = vmatpush1.xpose.msra.mxu0 0.0
  %554 = vmatprep.subr.mxu0 0.0
  %555 = vmatpush1.xpose.msra.mxu0 0.0
  %556 = vmatprep.subr.mxu0 0.0
  %557 = vmatpush1.xpose.msra.mxu0 0.0
  %558 = vmatprep.subr.mxu0 0.0
  %559 = vmatpush1.xpose.msra.mxu0 0.0
  %560 = vmatprep.subr.mxu0 0.0
  %561 = vmatpush1.xpose.msra.mxu0 0.0
  %562 = vmatprep.subr.mxu0 0.0
  %563 = vmatpush1.xpose.msra.mxu0 0.0
  %564 = vmatprep.mubr.f32.mxu0 0.0
  %565 = vmatmul.mubr.f32.gmra.mrb[0].mxu0 %v496
  %v566 = vpop.f32.mrb[0].mxu0
  %v567 = vadd.f32 %v151, %v566
  %v568 = vpop.f32.mrb[0].mxu0
  %569 = vdwg.mxu0
  %570 = vrot.lane.b32.xlu0 %v143, 112
  %v571 = vpop.permute.xlu0 %570
  %572 = vrot.lane.b32.xlu0 %v139, 80
  %v573 = vpop.permute.xlu0 %572
  %v574 = vsel %vm161, %v571, 0
  %v576 = vsel %vm161, %v573, 0
  %578 = vmatprep.subr.mxu0 0.0
  %579 = vmatpush1.xpose.msra.mxu0 %v576
  %580 = vmatprep.subr.mxu0 0.0
  %581 = vmatpush1.xpose.msra.mxu0 0.0
  %582 = vmatprep.subr.mxu0 0.0
  %583 = vmatpush1.xpose.msra.mxu0 0.0
  %584 = vmatprep.subr.mxu0 0.0
  %585 = vmatpush1.xpose.msra.mxu0 0.0
  %586 = vmatprep.subr.mxu0 0.0
  %587 = vmatpush1.xpose.msra.mxu0 0.0
  %588 = vmatprep.subr.mxu0 0.0
  %589 = vmatpush1.xpose.msra.mxu0 0.0
  %590 = vmatprep.subr.mxu0 0.0
  %591 = vmatpush1.xpose.msra.mxu0 0.0
  %592 = vmatprep.subr.mxu0 0.0
  %593 = vmatpush1.xpose.msra.mxu0 0.0
  %594 = vmatprep.subr.mxu0 0.0
  %595 = vmatpush1.xpose.msra.mxu0 0.0
  %596 = vmatprep.subr.mxu0 0.0
  %597 = vmatpush1.xpose.msra.mxu0 0.0
  %598 = vmatprep.subr.mxu0 0.0
  %599 = vmatpush1.xpose.msra.mxu0 0.0
  %600 = vmatprep.subr.mxu0 0.0
  %601 = vmatpush1.xpose.msra.mxu0 0.0
  %602 = vmatprep.subr.mxu0 0.0
  %603 = vmatpush1.xpose.msra.mxu0 0.0
  %604 = vmatprep.subr.mxu0 0.0
  %605 = vmatpush1.xpose.msra.mxu0 0.0
  %606 = vmatprep.subr.mxu0 0.0
  %607 = vmatpush1.xpose.msra.mxu0 0.0
  %608 = vmatprep.subr.mxu0 0.0
  %609 = vmatpush1.xpose.msra.mxu0 0.0
  %610 = vmatprep.subr.mxu0 0.0
  %611 = vmatpush1.xpose.msra.mxu0 0.0
  %612 = vmatprep.subr.mxu0 0.0
  %613 = vmatpush1.xpose.msra.mxu0 0.0
  %614 = vmatprep.subr.mxu0 0.0
  %615 = vmatpush1.xpose.msra.mxu0 0.0
  %616 = vmatprep.subr.mxu0 0.0
  %617 = vmatpush1.xpose.msra.mxu0 0.0
  %618 = vmatprep.subr.mxu0 0.0
  %619 = vmatpush1.xpose.msra.mxu0 0.0
  %620 = vmatprep.subr.mxu0 0.0
  %621 = vmatpush1.xpose.msra.mxu0 0.0
  %622 = vmatprep.subr.mxu0 0.0
  %623 = vmatpush1.xpose.msra.mxu0 0.0
  %624 = vmatprep.subr.mxu0 0.0
  %625 = vmatpush1.xpose.msra.mxu0 0.0
  %626 = vmatprep.subr.mxu0 0.0
  %627 = vmatpush1.xpose.msra.mxu0 0.0
  %628 = vmatprep.subr.mxu0 0.0
  %629 = vmatpush1.xpose.msra.mxu0 0.0
  %630 = vmatprep.subr.mxu0 0.0
  %631 = vmatpush1.xpose.msra.mxu0 0.0
  %632 = vmatprep.subr.mxu0 0.0
  %633 = vmatpush1.xpose.msra.mxu0 0.0
  %634 = vmatprep.subr.mxu0 0.0
  %635 = vmatpush1.xpose.msra.mxu0 0.0
  %636 = vmatprep.subr.mxu0 0.0
  %637 = vmatpush1.xpose.msra.mxu0 0.0
  %638 = vmatprep.subr.mxu0 0.0
  %639 = vmatpush1.xpose.msra.mxu0 0.0
  %640 = vmatprep.subr.mxu0 0.0
  %641 = vmatpush1.xpose.msra.mxu0 0.0
  %642 = vmatprep.mubr.f32.mxu0 0.0
  %643 = vmatmul.mubr.f32.gmra.mrb[0].mxu0 %v574
  %v644 = vpop.f32.mrb[0].mxu0
  %v645 = vadd.f32 %v155, %v644
  %v646 = vpop.f32.mrb[0].mxu0
  %647 = vdwg.mxu0
  %v648 = vsel %vm315, %v567, -inf
  %649 = vmax.xlane.f32.xlu0 %v648
  %v650 = vpop.xlane.xlu0 %649
  %v651 = vsel %vm315, %v645, -inf
  %652 = vmax.xlane.f32.xlu0 %v651
  %v653 = vpop.xlane.xlu0 %652
  %v654 = vsub.f32 %v567, %v650
  %v655 = vsub.f32 %v645, %v653
  %v656 = vmul.f32 %v654, 1.442695
  %v657 = vpow.pop %v656
  %v658 = vmul.f32 %v655, 1.442695
  %v659 = vpow.pop %v658
  %v660 = vsel %vm315, %v657, 0.0
  %661 = vadd.xlane.f32.xlu0 %v660
  %v662 = vpop.xlane.xlu0 %661
  %v663 = vsel %vm315, %v659, 0.0
  %664 = vadd.xlane.f32.xlu0 %v663
  %v665 = vpop.xlane.xlu0 %664
  %v666 = vrcp.pop %v662
  %v667 = vrcp.pop %v665
  %v668 = vmul.f32 %v657, %v666
  %v669 = vmul.f32 %v659, %v667
  %670 = vrot.lane.b32.xlu0 %v134, 48
  %v671 = vpop.permute.xlu0 %670
  %v674 = vsel %vm315, %v668, 0
  %676 = vmatprep.subr.mxu0 0.0
  %677 = vmatpush1.msra.mxu0 %v671
  %678 = vmatprep.subr.mxu0 0.0
  %679 = vmatpush1.msra.mxu0 0.0
  %680 = vmatprep.subr.mxu0 0.0
  %681 = vmatpush1.msra.mxu0 0.0
  %682 = vmatprep.subr.mxu0 0.0
  %683 = vmatpush1.msra.mxu0 0.0
  %684 = vmatprep.subr.mxu0 0.0
  %685 = vmatpush1.msra.mxu0 0.0
  %686 = vmatprep.subr.mxu0 0.0
  %687 = vmatpush1.msra.mxu0 0.0
  %688 = vmatprep.subr.mxu0 0.0
  %689 = vmatpush1.msra.mxu0 0.0
  %690 = vmatprep.subr.mxu0 0.0
  %691 = vmatpush1.msra.mxu0 0.0
  %692 = vmatprep.subr.mxu0 0.0
  %693 = vmatpush1.msra.mxu0 0.0
  %694 = vmatprep.subr.mxu0 0.0
  %695 = vmatpush1.msra.mxu0 0.0
  %696 = vmatprep.subr.mxu0 0.0
  %697 = vmatpush1.msra.mxu0 0.0
  %698 = vmatprep.subr.mxu0 0.0
  %699 = vmatpush1.msra.mxu0 0.0
  %700 = vmatprep.subr.mxu0 0.0
  %701 = vmatpush1.msra.mxu0 0.0
  %702 = vmatprep.subr.mxu0 0.0
  %703 = vmatpush1.msra.mxu0 0.0
  %704 = vmatprep.subr.mxu0 0.0
  %705 = vmatpush1.msra.mxu0 0.0
  %706 = vmatprep.subr.mxu0 0.0
  %707 = vmatpush1.msra.mxu0 0.0
  %708 = vmatprep.subr.mxu0 0.0
  %709 = vmatpush1.msra.mxu0 0.0
  %710 = vmatprep.subr.mxu0 0.0
  %711 = vmatpush1.msra.mxu0 0.0
  %712 = vmatprep.subr.mxu0 0.0
  %713 = vmatpush1.msra.mxu0 0.0
  %714 = vmatprep.subr.mxu0 0.0
  %715 = vmatpush1.msra.mxu0 0.0
  %716 = vmatprep.subr.mxu0 0.0
  %717 = vmatpush1.msra.mxu0 0.0
  %718 = vmatprep.subr.mxu0 0.0
  %719 = vmatpush1.msra.mxu0 0.0
  %720 = vmatprep.subr.mxu0 0.0
  %721 = vmatpush1.msra.mxu0 0.0
  %722 = vmatprep.subr.mxu0 0.0
  %723 = vmatpush1.msra.mxu0 0.0
  %724 = vmatprep.subr.mxu0 0.0
  %725 = vmatpush1.msra.mxu0 0.0
  %726 = vmatprep.subr.mxu0 0.0
  %727 = vmatpush1.msra.mxu0 0.0
  %728 = vmatprep.subr.mxu0 0.0
  %729 = vmatpush1.msra.mxu0 0.0
  %730 = vmatprep.subr.mxu0 0.0
  %731 = vmatpush1.msra.mxu0 0.0
  %732 = vmatprep.subr.mxu0 0.0
  %733 = vmatpush1.msra.mxu0 0.0
  %734 = vmatprep.subr.mxu0 0.0
  %735 = vmatpush1.msra.mxu0 0.0
  %736 = vmatprep.subr.mxu0 0.0
  %737 = vmatpush1.msra.mxu0 0.0
  %738 = vmatprep.subr.mxu0 0.0
  %739 = vmatpush1.msra.mxu0 0.0
  %740 = vmatprep.mubr.f32.mxu0 0.0
  %741 = vmatmul.mubr.f32.gmra.mrb[0].mxu0 %v674
  %v742 = vpop.f32.mrb[0].mxu0
  %v743 = vadd.f32 0.0, %v742
  %v744 = vpop.f32.mrb[0].mxu0
  %745 = vdwg.mxu0
  %746 = vrot.lane.b32.xlu0 %v139, 48
  %v747 = vpop.permute.xlu0 %746
  %v750 = vsel %vm315, %v669, 0
  %752 = vmatprep.subr.mxu0 0.0
  %753 = vmatpush1.msra.mxu0 %v747
  %754 = vmatprep.subr.mxu0 0.0
  %755 = vmatpush1.msra.mxu0 0.0
  %756 = vmatprep.subr.mxu0 0.0
  %757 = vmatpush1.msra.mxu0 0.0
  %758 = vmatprep.subr.mxu0 0.0
  %759 = vmatpush1.msra.mxu0 0.0
  %760 = vmatprep.subr.mxu0 0.0
  %761 = vmatpush1.msra.mxu0 0.0
  %762 = vmatprep.subr.mxu0 0.0
  %763 = vmatpush1.msra.mxu0 0.0
  %764 = vmatprep.subr.mxu0 0.0
  %765 = vmatpush1.msra.mxu0 0.0
  %766 = vmatprep.subr.mxu0 0.0
  %767 = vmatpush1.msra.mxu0 0.0
  %768 = vmatprep.subr.mxu0 0.0
  %769 = vmatpush1.msra.mxu0 0.0
  %770 = vmatprep.subr.mxu0 0.0
  %771 = vmatpush1.msra.mxu0 0.0
  %772 = vmatprep.subr.mxu0 0.0
  %773 = vmatpush1.msra.mxu0 0.0
  %774 = vmatprep.subr.mxu0 0.0
  %775 = vmatpush1.msra.mxu0 0.0
  %776 = vmatprep.subr.mxu0 0.0
  %777 = vmatpush1.msra.mxu0 0.0
  %778 = vmatprep.subr.mxu0 0.0
  %779 = vmatpush1.msra.mxu0 0.0
  %780 = vmatprep.subr.mxu0 0.0
  %781 = vmatpush1.msra.mxu0 0.0
  %782 = vmatprep.subr.mxu0 0.0
  %783 = vmatpush1.msra.mxu0 0.0
  %784 = vmatprep.subr.mxu0 0.0
  %785 = vmatpush1.msra.mxu0 0.0
  %786 = vmatprep.subr.mxu0 0.0
  %787 = vmatpush1.msra.mxu0 0.0
  %788 = vmatprep.subr.mxu0 0.0
  %789 = vmatpush1.msra.mxu0 0.0
  %790 = vmatprep.subr.mxu0 0.0
  %791 = vmatpush1.msra.mxu0 0.0
  %792 = vmatprep.subr.mxu0 0.0
  %793 = vmatpush1.msra.mxu0 0.0
  %794 = vmatprep.subr.mxu0 0.0
  %795 = vmatpush1.msra.mxu0 0.0
  %796 = vmatprep.subr.mxu0 0.0
  %797 = vmatpush1.msra.mxu0 0.0
  %798 = vmatprep.subr.mxu0 0.0
  %799 = vmatpush1.msra.mxu0 0.0
  %800 = vmatprep.subr.mxu0 0.0
  %801 = vmatpush1.msra.mxu0 0.0
  %802 = vmatprep.subr.mxu0 0.0
  %803 = vmatpush1.msra.mxu0 0.0
  %804 = vmatprep.subr.mxu0 0.0
  %805 = vmatpush1.msra.mxu0 0.0
  %806 = vmatprep.subr.mxu0 0.0
  %807 = vmatpush1.msra.mxu0 0.0
  %808 = vmatprep.subr.mxu0 0.0
  %809 = vmatpush1.msra.mxu0 0.0
  %810 = vmatprep.subr.mxu0 0.0
  %811 = vmatpush1.msra.mxu0 0.0
  %812 = vmatprep.subr.mxu0 0.0
  %813 = vmatpush1.msra.mxu0 0.0
  %814 = vmatprep.subr.mxu0 0.0
  %815 = vmatpush1.msra.mxu0 0.0
  %816 = vmatprep.mubr.f32.mxu0 0.0
  %817 = vmatmul.mubr.f32.gmra.mrb[0].mxu0 %v750
  %v818 = vpop.f32.mrb[0].mxu0
  %v819 = vadd.f32 0.0, %v818
  %v820 = vpop.f32.mrb[0].mxu0
  %821 = vdwg.mxu0
  %v822 = vld [vmem:[%s4 + $0x10] sm:$0xff]
  %v823 = vld [vmem:[%s4 + $0x18] sm:$0xff]
  %v825 = vsel %vm161, %v743, 0
  %v828 = vsel %vm161, %v819, 0
  %830 = vmatprep.subr.mxu0 0.0
  %831 = vmatpush1.msra.mxu0 %v822
  %832 = vmatprep.subr.mxu0 0.0
  %833 = vmatpush1.msra.mxu0 %v823
  %834 = vmatprep.subr.mxu0 0.0
  %835 = vmatpush1.msra.mxu0 0.0
  %836 = vmatprep.subr.mxu0 0.0
  %837 = vmatpush1.msra.mxu0 0.0
  %838 = vmatprep.subr.mxu0 0.0
  %839 = vmatpush1.msra.mxu0 0.0
  %840 = vmatprep.subr.mxu0 0.0
  %841 = vmatpush1.msra.mxu0 0.0
  %842 = vmatprep.subr.mxu0 0.0
  %843 = vmatpush1.msra.mxu0 0.0
  %844 = vmatprep.subr.mxu0 0.0
  %845 = vmatpush1.msra.mxu0 0.0
  %846 = vmatprep.subr.mxu0 0.0
  %847 = vmatpush1.msra.mxu0 0.0
  %848 = vmatprep.subr.mxu0 0.0
  %849 = vmatpush1.msra.mxu0 0.0
  %850 = vmatprep.subr.mxu0 0.0
  %851 = vmatpush1.msra.mxu0 0.0
  %852 = vmatprep.subr.mxu0 0.0
  %853 = vmatpush1.msra.mxu0 0.0
  %854 = vmatprep.subr.mxu0 0.0
  %855 = vmatpush1.msra.mxu0 0.0
  %856 = vmatprep.subr.mxu0 0.0
  %857 = vmatpush1.msra.mxu0 0.0
  %858 = vmatprep.subr.mxu0 0.0
  %859 = vmatpush1.msra.mxu0 0.0
  %860 = vmatprep.subr.mxu0 0.0
  %861 = vmatpush1.msra.mxu0 0.0
  %862 = vmatprep.subr.mxu0 0.0
  %863 = vmatpush1.msra.mxu0 0.0
  %864 = vmatprep.subr.mxu0 0.0
  %865 = vmatpush1.msra.mxu0 0.0
  %866 = vmatprep.subr.mxu0 0.0
  %867 = vmatpush1.msra.mxu0 0.0
  %868 = vmatprep.subr.mxu0 0.0
  %869 = vmatpush1.msra.mxu0 0.0
  %870 = vmatprep.subr.mxu0 0.0
  %871 = vmatpush1.msra.mxu0 0.0
  %872 = vmatprep.subr.mxu0 0.0
  %873 = vmatpush1.msra.mxu0 0.0
  %874 = vmatprep.subr.mxu0 0.0
  %875 = vmatpush1.msra.mxu0 0.0
  %876 = vmatprep.subr.mxu0 0.0
  %877 = vmatpush1.msra.mxu0 0.0
  %878 = vmatprep.subr.mxu0 0.0
  %879 = vmatpush1.msra.mxu0 0.0
  %880 = vmatprep.subr.mxu0 0.0
  %881 = vmatpush1.msra.mxu0 0.0
  %882 = vmatprep.subr.mxu0 0.0
  %883 = vmatpush1.msra.mxu0 0.0
  %884 = vmatprep.subr.mxu0 0.0
  %885 = vmatpush1.msra.mxu0 0.0
  %886 = vmatprep.subr.mxu0 0.0
  %887 = vmatpush1.msra.mxu0 0.0
  %888 = vmatprep.subr.mxu0 0.0
  %889 = vmatpush1.msra.mxu0 0.0
  %890 = vmatprep.subr.mxu0 0.0
  %891 = vmatpush1.msra.mxu0 0.0
  %892 = vmatprep.subr.mxu0 0.0
  %893 = vmatpush1.msra.mxu0 0.0
  %894 = vmatprep.mubr.f32.mxu0 0.0
  %895 = vmatmul.mubr.f32.gmra.mrb[0].mxu0 %v825
  %v896 = vpop.f32.mrb[0].mxu0
  %v897 = vadd.f32 0.0, %v896
  %v898 = vpop.f32.mrb[0].mxu0
  %899 = vmatprep.mubr.f32.mxu0 0.0
  %900 = vmatmul.mubr.f32.gmra.mrb[0].mxu0 %v828
  %v901 = vpop.f32.mrb[0].mxu0
  %v902 = vadd.f32 0.0, %v901
  %v903 = vpop.f32.mrb[0].mxu0
  %904 = vdwg.mxu0
  %v906 = vsel %vm161, %v411, 0
  %v909 = vsel %vm161, %v487, 0
  %911 = vmatprep.subr.mxu0 0.0
  %912 = vmatpush1.msra.mxu0 %v490
  %913 = vmatprep.subr.mxu0 0.0
  %914 = vmatpush1.msra.mxu0 %v491
  %915 = vmatprep.subr.mxu0 0.0
  %916 = vmatpush1.msra.mxu0 0.0
  %917 = vmatprep.subr.mxu0 0.0
  %918 = vmatpush1.msra.mxu0 0.0
  %919 = vmatprep.subr.mxu0 0.0
  %920 = vmatpush1.msra.mxu0 0.0
  %921 = vmatprep.subr.mxu0 0.0
  %922 = vmatpush1.msra.mxu0 0.0
  %923 = vmatprep.subr.mxu0 0.0
  %924 = vmatpush1.msra.mxu0 0.0
  %925 = vmatprep.subr.mxu0 0.0
  %926 = vmatpush1.msra.mxu0 0.0
  %927 = vmatprep.subr.mxu0 0.0
  %928 = vmatpush1.msra.mxu0 0.0
  %929 = vmatprep.subr.mxu0 0.0
  %930 = vmatpush1.msra.mxu0 0.0
  %931 = vmatprep.subr.mxu0 0.0
  %932 = vmatpush1.msra.mxu0 0.0
  %933 = vmatprep.subr.mxu0 0.0
  %934 = vmatpush1.msra.mxu0 0.0
  %935 = vmatprep.subr.mxu0 0.0
  %936 = vmatpush1.msra.mxu0 0.0
  %937 = vmatprep.subr.mxu0 0.0
  %938 = vmatpush1.msra.mxu0 0.0
  %939 = vmatprep.subr.mxu0 0.0
  %940 = vmatpush1.msra.mxu0 0.0
  %941 = vmatprep.subr.mxu0 0.0
  %942 = vmatpush1.msra.mxu0 0.0
  %943 = vmatprep.subr.mxu0 0.0
  %944 = vmatpush1.msra.mxu0 0.0
  %945 = vmatprep.subr.mxu0 0.0
  %946 = vmatpush1.msra.mxu0 0.0
  %947 = vmatprep.subr.mxu0 0.0
  %948 = vmatpush1.msra.mxu0 0.0
  %949 = vmatprep.subr.mxu0 0.0
  %950 = vmatpush1.msra.mxu0 0.0
  %951 = vmatprep.subr.mxu0 0.0
  %952 = vmatpush1.msra.mxu0 0.0
  %953 = vmatprep.subr.mxu0 0.0
  %954 = vmatpush1.msra.mxu0 0.0
  %955 = vmatprep.subr.mxu0 0.0
  %956 = vmatpush1.msra.mxu0 0.0
  %957 = vmatprep.subr.mxu0 0.0
  %958 = vmatpush1.msra.mxu0 0.0
  %959 = vmatprep.subr.mxu0 0.0
  %960 = vmatpush1.msra.mxu0 0.0
  %961 = vmatprep.subr.mxu0 0.0
  %962 = vmatpush1.msra.mxu0 0.0
  %963 = vmatprep.subr.mxu0 0.0
  %964 = vmatpush1.msra.mxu0 0.0
  %965 = vmatprep.subr.mxu0 0.0
  %966 = vmatpush1.msra.mxu0 0.0
  %967 = vmatprep.subr.mxu0 0.0
  %968 = vmatpush1.msra.mxu0 0.0
  %969 = vmatprep.subr.mxu0 0.0
  %970 = vmatpush1.msra.mxu0 0.0
  %971 = vmatprep.subr.mxu0 0.0
  %972 = vmatpush1.msra.mxu0 0.0
  %973 = vmatprep.subr.mxu0 0.0
  %974 = vmatpush1.msra.mxu0 0.0
  %975 = vmatprep.mubr.f32.mxu0 0.0
  %976 = vmatmul.mubr.f32.gmra.mrb[0].mxu0 %v906
  %v977 = vpop.f32.mrb[0].mxu0
  %v978 = vadd.f32 %v897, %v977
  %v979 = vpop.f32.mrb[0].mxu0
  %980 = vmatprep.mubr.f32.mxu0 0.0
  %981 = vmatmul.mubr.f32.gmra.mrb[0].mxu0 %v909
  %v982 = vpop.f32.mrb[0].mxu0
  %v983 = vadd.f32 %v902, %v982
  %v984 = vpop.f32.mrb[0].mxu0
  %985 = vdwg.mxu0
  %v986 = vld [vmem:[%s5] sm:$0x1]
  %v988 = vlaneseq
  %v989 = vshrl.u32 %v988, 7
  %v990 = vsub.s32 0, %v989
  %v991 = vrot.slane %v986, %v990
  %v993 = vadd.f32 %v978, %v991
  %v994 = vadd.f32 %v983, %v991
  %v995 = vadd.f32 %v993, %v47
  %v996 = vadd.f32 %v994, %v48
  %v997 = vsel %vm60, %v995, 0.0
  %998 = vadd.xlane.f32.xlu0 %v997
  %v999 = vpop.xlane.xlu0 %998
  %v1000 = vsel %vm60, %v996, 0.0
  %1001 = vadd.xlane.f32.xlu0 %v1000
  %v1002 = vpop.xlane.xlu0 %1001
  %v1003 = vrcp.pop 32.0
  %v1004 = vmul.f32 %v999, %v1003
  %v1005 = vmul.f32 %v1002, %v1003
  %v1006 = vsub.f32 %v995, %v1004
  %v1007 = vsub.f32 %v996, %v1005
  %v1008 = vmul.f32 %v1006, %v1006
  %v1009 = vmul.f32 %v1007, %v1007
  %v1010 = vsel %vm60, %v1008, 0.0
  %1011 = vadd.xlane.f32.xlu0 %v1010
  %v1012 = vpop.xlane.xlu0 %1011
  %v1013 = vsel %vm60, %v1009, 0.0
  %1014 = vadd.xlane.f32.xlu0 %v1013
  %v1015 = vpop.xlane.xlu0 %1014
  %v1016 = vmul.f32 %v1012, %v1003
  %v1017 = vmul.f32 %v1015, %v1003
  %v1018 = vadd.f32 %v1016, 1e-12
  %v1019 = vadd.f32 %v1017, 1e-12
  %v1020 = vrsqrt.pop %v1018
  %v1021 = vrsqrt.pop %v1019
  %v1022 = vmul.f32 %v1006, %v1020
  %v1023 = vmul.f32 %v1007, %v1021
  %v1024 = vld [vmem:[%s6] sm:$0x1]
  %v1026 = vlaneseq
  %v1027 = vshrl.u32 %v1026, 7
  %v1028 = vsub.s32 0, %v1027
  %v1029 = vrot.slane %v1024, %v1028
  %v1031 = vmul.f32 %v1022, %v1029
  %v1032 = vmul.f32 %v1023, %v1029
  %v1033 = vld [vmem:[%s7] sm:$0x1]
  %v1035 = vlaneseq
  %v1036 = vshrl.u32 %v1035, 7
  %v1037 = vsub.s32 0, %v1036
  %v1038 = vrot.slane %v1033, %v1037
  %v1040 = vadd.f32 %v1031, %v1038
  %v1041 = vadd.f32 %v1032, %v1038
  %v1042 = vld [vmem:[%s8] sm:$0xff]
  %v1043 = vld [vmem:[%s8 + $0x8] sm:$0xff]
  %v1044 = vld [vmem:[%s8 + $0x10] sm:$0xff]
  %v1045 = vld [vmem:[%s8 + $0x18] sm:$0xff]
  %v1046 = vld [vmem:[%s9] sm:$0x1]
  %v1048 = vlaneseq
  %v1049 = vshrl.u32 %v1048, 7
  %v1050 = vsub.s32 0, %v1049
  %v1051 = vrot.slane %v1046, %v1050
  %v1054 = vsel %vm60, %v1040, 0
  %v1057 = vsel %vm60, %v1041, 0
  %1059 = vmatprep.subr.mxu0 0.0
  %1060 = vmatpush1.msra.mxu0 %v1042
  %1061 = vmatprep.subr.mxu0 0.0
  %1062 = vmatpush1.msra.mxu0 %v1043
  %1063 = vmatprep.subr.mxu0 0.0
  %1064 = vmatpush1.msra.mxu0 %v1044
  %1065 = vmatprep.subr.mxu0 0.0
  %1066 = vmatpush1.msra.mxu0 %v1045
  %1067 = vmatprep.subr.mxu0 0.0
  %1068 = vmatpush1.msra.mxu0 0.0
  %1069 = vmatprep.subr.mxu0 0.0
  %1070 = vmatpush1.msra.mxu0 0.0
  %1071 = vmatprep.subr.mxu0 0.0
  %1072 = vmatpush1.msra.mxu0 0.0
  %1073 = vmatprep.subr.mxu0 0.0
  %1074 = vmatpush1.msra.mxu0 0.0
  %1075 = vmatprep.subr.mxu0 0.0
  %1076 = vmatpush1.msra.mxu0 0.0
  %1077 = vmatprep.subr.mxu0 0.0
  %1078 = vmatpush1.msra.mxu0 0.0
  %1079 = vmatprep.subr.mxu0 0.0
  %1080 = vmatpush1.msra.mxu0 0.0
  %1081 = vmatprep.subr.mxu0 0.0
  %1082 = vmatpush1.msra.mxu0 0.0
  %1083 = vmatprep.subr.mxu0 0.0
  %1084 = vmatpush1.msra.mxu0 0.0
  %1085 = vmatprep.subr.mxu0 0.0
  %1086 = vmatpush1.msra.mxu0 0.0
  %1087 = vmatprep.subr.mxu0 0.0
  %1088 = vmatpush1.msra.mxu0 0.0
  %1089 = vmatprep.subr.mxu0 0.0
  %1090 = vmatpush1.msra.mxu0 0.0
  %1091 = vmatprep.subr.mxu0 0.0
  %1092 = vmatpush1.msra.mxu0 0.0
  %1093 = vmatprep.subr.mxu0 0.0
  %1094 = vmatpush1.msra.mxu0 0.0
  %1095 = vmatprep.subr.mxu0 0.0
  %1096 = vmatpush1.msra.mxu0 0.0
  %1097 = vmatprep.subr.mxu0 0.0
  %1098 = vmatpush1.msra.mxu0 0.0
  %1099 = vmatprep.subr.mxu0 0.0
  %1100 = vmatpush1.msra.mxu0 0.0
  %1101 = vmatprep.subr.mxu0 0.0
  %1102 = vmatpush1.msra.mxu0 0.0
  %1103 = vmatprep.subr.mxu0 0.0
  %1104 = vmatpush1.msra.mxu0 0.0
  %1105 = vmatprep.subr.mxu0 0.0
  %1106 = vmatpush1.msra.mxu0 0.0
  %1107 = vmatprep.subr.mxu0 0.0
  %1108 = vmatpush1.msra.mxu0 0.0
  %1109 = vmatprep.subr.mxu0 0.0
  %1110 = vmatpush1.msra.mxu0 0.0
  %1111 = vmatprep.subr.mxu0 0.0
  %1112 = vmatpush1.msra.mxu0 0.0
  %1113 = vmatprep.subr.mxu0 0.0
  %1114 = vmatpush1.msra.mxu0 0.0
  %1115 = vmatprep.subr.mxu0 0.0
  %1116 = vmatpush1.msra.mxu0 0.0
  %1117 = vmatprep.subr.mxu0 0.0
  %1118 = vmatpush1.msra.mxu0 0.0
  %1119 = vmatprep.subr.mxu0 0.0
  %1120 = vmatpush1.msra.mxu0 0.0
  %1121 = vmatprep.subr.mxu0 0.0
  %1122 = vmatpush1.msra.mxu0 0.0
  %1123 = vmatprep.mubr.f32.mxu0 0.0
  %1124 = vmatmul.mubr.f32.gmra.mrb[0].mxu0 %v1054
  %v1125 = vpop.f32.mrb[0].mxu0
  %v1126 = vadd.f32 %v1051, %v1125
  %v1127 = vpop.f32.mrb[0].mxu0
  %1128 = vmatprep.mubr.f32.mxu0 0.0
  %1129 = vmatmul.mubr.f32.gmra.mrb[0].mxu0 %v1057
  %v1130 = vpop.f32.mrb[0].mxu0
  %v1131 = vadd.f32 %v1051, %v1130
  %v1132 = vpop.f32.mrb[0].mxu0
  %1133 = vdwg.mxu0
  %v1134 = vmul.f32 %v1126, %v1126
  %v1135 = vmul.f32 %v1131, %v1131
  %v1136 = vmul.f32 %v1126, %v1134
  %v1137 = vmul.f32 %v1131, %v1135
  %v1138 = vmul.f32 %v1136, 0.044715
  %v1139 = vmul.f32 %v1137, 0.044715
  %v1140 = vadd.f32 %v1126, %v1138
  %v1141 = vadd.f32 %v1131, %v1139
  %v1142 = vmul.f32 %v1140, 0.7978846
  %v1143 = vmul.f32 %v1141, 0.7978846
  %v1144 = vtanh.pop %v1142
  %v1145 = vtanh.pop %v1143
  %v1146 = vadd.f32 %v1144, 1.0
  %v1147 = vadd.f32 %v1145, 1.0
  %v1148 = vmul.f32 %v1146, 0.5
  %v1149 = vmul.f32 %v1147, 0.5
  %v1150 = vmul.f32 %v1126, %v1148
  %v1151 = vmul.f32 %v1131, %v1149
  %v1152 = vld [vmem:[%s10] sm:$0xff]
  %v1153 = vld [vmem:[%s10 + $0x8] sm:$0xff]
  %v1154 = vld [vmem:[%s10 + $0x10] sm:$0xff]
  %v1155 = vld [vmem:[%s10 + $0x18] sm:$0xff]
  %v1156 = vld [vmem:[%s10 + $0x20] sm:$0xff]
  %v1157 = vld [vmem:[%s10 + $0x28] sm:$0xff]
  %v1158 = vld [vmem:[%s10 + $0x30] sm:$0xff]
  %v1159 = vld [vmem:[%s10 + $0x38] sm:$0xff]
  %v1160 = vld [vmem:[%s11] sm:$0x1]
  %v1162 = vlaneseq
  %v1163 = vshrl.u32 %v1162, 7
  %v1164 = vsub.s32 0, %v1163
  %v1165 = vrot.slane %v1160, %v1164
  %vm1167 = vcmask 523264
  %v1169 = vsel %vm1167, %v1150, 0
  %v1172 = vsel %vm1167, %v1151, 0
  %1174 = vmatprep.subr.mxu0 0.0
  %1175 = vmatpush1.msra.mxu0 %v1152
  %1176 = vmatprep.subr.mxu0 0.0
  %1177 = vmatpush1.msra.mxu0 %v1153
  %1178 = vmatprep.subr.mxu0 0.0
  %1179 = vmatpush1.msra.mxu0 %v1154
  %1180 = vmatprep.subr.mxu0 0.0
  %1181 = vmatpush1.msra.mxu0 %v1155
  %1182 = vmatprep.subr.mxu0 0.0
  %1183 = vmatpush1.msra.mxu0 %v1156
  %1184 = vmatprep.subr.mxu0 0.0
  %1185 = vmatpush1.msra.mxu0 %v1157
  %1186 = vmatprep.subr.mxu0 0.0
  %1187 = vmatpush1.msra.mxu0 %v1158
  %1188 = vmatprep.subr.mxu0 0.0
  %1189 = vmatpush1.msra.mxu0 %v1159
  %1190 = vmatprep.subr.mxu0 0.0
  %1191 = vmatpush1.msra.mxu0 0.0
  %1192 = vmatprep.subr.mxu0 0.0
  %1193 = vmatpush1.msra.mxu0 0.0
  %1194 = vmatprep.subr.mxu0 0.0
  %1195 = vmatpush1.msra.mxu0 0.0
  %1196 = vmatprep.subr.mxu0 0.0
  %1197 = vmatpush1.msra.mxu0 0.0
  %1198 = vmatprep.subr.mxu0 0.0
  %1199 = vmatpush1.msra.mxu0 0.0
  %1200 = vmatprep.subr.mxu0 0.0
  %1201 = vmatpush1.msra.mxu0 0.0
  %1202 = vmatprep.subr.mxu0 0.0
  %1203 = vmatpush1.msra.mxu0 0.0
  %1204 = vmatprep.subr.mxu0 0.0
  %1205 = vmatpush1.msra.mxu0 0.0
  %1206 = vmatprep.subr.mxu0 0.0
  %1207 = vmatpush1.msra.mxu0 0.0
  %1208 = vmatprep.subr.mxu0 0.0
  %1209 = vmatpush1.msra.mxu0 0.0
  %1210 = vmatprep.subr.mxu0 0.0
  %1211 = vmatpush1.msra.mxu0 0.0
  %1212 = vmatprep.subr.mxu0 0.0
  %1213 = vmatpush1.msra.mxu0 0.0
  %1214 = vmatprep.subr.mxu0 0.0
  %1215 = vmatpush1.msra.mxu0 0.0
  %1216 = vmatprep.subr.mxu0 0.0
  %1217 = vmatpush1.msra.mxu0 0.0
  %1218 = vmatprep.subr.mxu0 0.0
  %1219 = vmatpush1.msra.mxu0 0.0
  %1220 = vmatprep.subr.mxu0 0.0
  %1221 = vmatpush1.msra.mxu0 0.0
  %1222 = vmatprep.subr.mxu0 0.0
  %1223 = vmatpush1.msra.mxu0 0.0
  %1224 = vmatprep.subr.mxu0 0.0
  %1225 = vmatpush1.msra.mxu0 0.0
  %1226 = vmatprep.subr.mxu0 0.0
  %1227 = vmatpush1.msra.mxu0 0.0
  %1228 = vmatprep.subr.mxu0 0.0
  %1229 = vmatpush1.msra.mxu0 0.0
  %1230 = vmatprep.subr.mxu0 0.0
  %1231 = vmatpush1.msra.mxu0 0.0
  %1232 = vmatprep.subr.mxu0 0.0
  %1233 = vmatpush1.msra.mxu0 0.0
  %1234 = vmatprep.subr.mxu0 0.0
  %1235 = vmatpush1.msra.mxu0 0.0
  %1236 = vmatprep.subr.mxu0 0.0
  %1237 = vmatpush1.msra.mxu0 0.0
  %1238 = vmatprep.mubr.f32.mxu0 0.0
  %1239 = vmatmul.mubr.f32.gmra.mrb[0].mxu0 %v1169
  %v1240 = vpop.f32.mrb[0].mxu0
  %v1241 = vadd.f32 %v1165, %v1240
  %v1242 = vpop.f32.mrb[0].mxu0
  %1243 = vmatprep.mubr.f32.mxu0 0.0
  %1244 = vmatmul.mubr.f32.gmra.mrb[0].mxu0 %v1172
  %v1245 = vpop.f32.mrb[0].mxu0
  %v1246 = vadd.f32 %v1165, %v1245
  %v1247 = vpop.f32.mrb[0].mxu0
  %1248 = vdwg.mxu0
  %v1249 = vadd.f32 %v1241, %v1040
  %v1250 = vadd.f32 %v1246, %v1041
  %v1251 = vsel %vm60, %v1249, 0.0
  %1252 = vadd.xlane.f32.xlu0 %v1251
  %v1253 = vpop.xlane.xlu0 %1252
  %v1254 = vsel %vm60, %v1250, 0.0
  %1255 = vadd.xlane.f32.xlu0 %v1254
  %v1256 = vpop.xlane.xlu0 %1255
  %v1257 = vmul.f32 %v1253, %v1003
  %v1258 = vmul.f32 %v1256, %v1003
  %v1259 = vsub.f32 %v1249, %v1257
  %v1260 = vsub.f32 %v1250, %v1258
  %v1261 = vmul.f32 %v1259, %v1259
  %v1262 = vmul.f32 %v1260, %v1260
  %v1263 = vsel %vm60, %v1261, 0.0
  %1264 = vadd.xlane.f32.xlu0 %v1263
  %v1265 = vpop.xlane.xlu0 %1264
  %v1266 = vsel %vm60, %v1262, 0.0
  %1267 = vadd.xlane.f32.xlu0 %v1266
  %v1268 = vpop.xlane.xlu0 %1267
  %v1269 = vmul.f32 %v1265, %v1003
  %v1270 = vmul.f32 %v1268, %v1003
  %v1271 = vadd.f32 %v1269, 1e-12
  %v1272 = vadd.f32 %v1270, 1e-12
  %v1273 = vrsqrt.pop %v1271
  %v1274 = vrsqrt.pop %v1272
  %v1275 = vmul.f32 %v1259, %v1273
  %v1276 = vmul.f32 %v1260, %v1274
  %v1277 = vld [vmem:[%s12] sm:$0x1]
  %v1279 = vlaneseq
  %v1280 = vshrl.u32 %v1279, 7
  %v1281 = vsub.s32 0, %v1280
  %v1282 = vrot.slane %v1277, %v1281
  %v1284 = vmul.f32 %v1275, %v1282
  %v1285 = vmul.f32 %v1276, %v1282
  %v1286 = vld [vmem:[%s13] sm:$0x1]
  %v1288 = vlaneseq
  %v1289 = vshrl.u32 %v1288, 7
  %v1290 = vsub.s32 0, %v1289
  %v1291 = vrot.slane %v1286, %v1290
  %v1293 = vadd.f32 %v1284, %v1291
  %v1294 = vadd.f32 %v1285, %v1291
  %1295 = vst.msk [vmem:[%s14] sm:$0xff] %vm60, %v1293
  %1296 = vst.msk [vmem:[%s14 + $0x8] sm:$0xff] %vm60, %v1294
  // Predicated region
  $region58: #{forward.7} parent=0 // pred_check
    _
  $region59: #{forward.7} parent=0 // pred_check_branch
    %1298 = sbr.rel (0) target = $region61
  $region60: #{forward.7} parent=0 // pred_region
    _
  $region61: #{forward.7} parent=0 // pred_fallthru
    _
  // Predicated region
  $region62: #{forward.7} parent=0 // pred_check
    _
  $region63: #{forward.7} parent=0 // pred_check_branch
    %1300 = sbr.rel (0) target = $region65
  $region64: #{forward.7} parent=0 // pred_region
    _
  $region65: #{forward.7} parent=0 // pred_fallthru
    _

// kernel: custom-call.4
$region0: #{custom-call.4}
  %s0 = inlined_call_operand.vmem [shape: s32[7,2,19], index: 0, kind: output, shape index: {}]

// kernel: forward.10
$region0: #{forward.10}
  #allocation0 [shape = 'u32[]', space=smem, size = 0x4, offset = 0x4, fixed_abs, tag = 'smem constant byte address 0x4 - core index']
  #allocation1 [shape = 'u32[144,128]{1,0:T(1,128)}', space=vmem, size = 0x12000, scoped, tag = 'internal scratch']
  #allocation2 [shape = 'f32[64,12]{1,0:T(8,128)}', space=vmem, size = 0x8000, scoped, tag = 'scratch operand']
  %s0 = inlined_call_operand.vmem [shape: f32[2,16,24], index: 0, kind: input, shape index: {}]
  %s1 = inlined_call_operand.vmem [shape: f32[2,4,24,12], index: 1, kind: input, shape index: {}]
  %s2 = inlined_call_operand.vmem [shape: f32[2,4,12,12], index: 2, kind: input, shape index: {}]
  %s3 = inlined_call_operand.vmem [shape: f32[2,4,1,12], index: 3, kind: input, shape index: {}]
  %s4 = inlined_call_operand.vmem [shape: f32[2,16,12], index: 4, kind: output, shape index: {}]
  %s5 = sld [smem:[#allocation0]]
  $region49: #{forward.10} parent=0
    _
  %s7 = ssub.s32 1, %s5
  %s8 = scalar_select 0, %s7, %s5
  loop: start=0, step=1, limit=4
  $region2: #{forward.10} parent=0 // loop_pre_header
    _
  $region3: #{forward.10} parent=0 // loop_header
    %s10 = sphi 0, %s14
    %p11 = scmp.ge.s32.totalorder %s10, 4
    %s20 = sphi 0, %s22
    %s23 = sphi 0, %s20
    %s24 = sphi 0, %s23
    %s40 = sphi 0, %s24
    %s46 = sphi 0, %s48
    %s49 = sphi 0, %s46
    %s50 = sphi 0, %s49
    %s66 = sphi 0, %s50
    %s72 = sphi 0, %s74
    %s75 = sphi 0, %s72
    %s76 = sphi 0, %s75
    %s92 = sphi 0, %s76
    %s98 = sphi 0, %s100
    %s101 = sphi 0, %s98
    %s102 = sphi 0, %s101
    %s118 = sphi 0, %s102
    %s124 = sphi 0, %s126
    %s127 = sphi 0, %s124
    %s128 = sphi 0, %s127
    %s144 = sphi 0, %s128
  $region4: #{forward.10} parent=0 // loop_header_branch
    %13 = sbr.rel (%p11) target = $region8
  $region5: #{forward.10} parent=0 // loop_body
    %s15 = ssub.s32 %s10, 1
    %s16 = ssub.s32 %s10, 2
    %s17 = sadd.s32 %s10, 1
    %s18 = ssub.s32 %s10, %s17
    %p19 = scmp.eq.s32.totalorder %s18, 0
    %s21 = sadd.s32 %s20, 1
    %s22 = scalar_select %p19, %s20, %s21
    %p25 = pneg %p19
    %p26 = scmp.eq.s32.totalorder %s10, 1
    %p27 = por %p25, %p26
    %p28 = scmp.ne.s32.totalorder %s20, %s23
    %p29 = scmp.eq.s32.totalorder %s10, 0
    %p30 = por %p28, %p29
    %p31 = scmp.ne.s32.totalorder %s20, %s23
    %p32 = scmp.eq.s32.totalorder %s15, 1
    %p33 = por %p31, %p32
    %p34 = scmp.ne.s32.totalorder %s23, %s24
    %p35 = scmp.eq.s32.totalorder %s15, 0
    %p36 = por %p34, %p35
    %p37 = scmp.ne.s32.totalorder %s23, %s24
    %p38 = scmp.eq.s32.totalorder %s16, 1
    %p39 = por %p37, %p38
    %p41 = scmp.ne.s32.totalorder %s24, %s40
    %p42 = scmp.eq.s32.totalorder %s16, 0
    %p43 = por %p41, %p42
    %s44 = ssub.s32 %s10, %s17
    %p45 = scmp.eq.s32.totalorder %s44, 0
    %s47 = sadd.s32 %s46, 1
    %s48 = scalar_select %p45, %s46, %s47
    %p51 = pneg %p45
    %p52 = scmp.eq.s32.totalorder %s10, 1
    %p53 = por %p51, %p52
    %p54 = scmp.ne.s32.totalorder %s46, %s49
    %p55 = scmp.eq.s32.totalorder %s10, 0
    %p56 = por %p54, %p55
    %p57 = scmp.ne.s32.totalorder %s46, %s49
    %p58 = scmp.eq.s32.totalorder %s15, 1
    %p59 = por %p57, %p58
    %p60 = scmp.ne.s32.totalorder %s49, %s50
    %p61 = scmp.eq.s32.totalorder %s15, 0
    %p62 = por %p60, %p61
    %p63 = scmp.ne.s32.totalorder %s49, %s50
    %p64 = scmp.eq.s32.totalorder %s16, 1
    %p65 = por %p63, %p64
    %p67 = scmp.ne.s32.totalorder %s50, %s66
    %p68 = scmp.eq.s32.totalorder %s16, 0
    %p69 = por %p67, %p68
    %s70 = ssub.s32 %s10, %s17
    %p71 = scmp.eq.s32.totalorder %s70, 0
    %s73 = sadd.s32 %s72, 1
    %s74 = scalar_select %p71, %s72, %s73
    %p77 = pneg %p71
    %p78 = scmp.eq.s32.totalorder %s10, 1
    %p79 = por %p77, %p78
    %p80 = scmp.ne.s32.totalorder %s72, %s75
    %p81 = scmp.eq.s32.totalorder %s10, 0
    %p82 = por %p80, %p81
    %p83 = scmp.ne.s32.totalorder %s72, %s75
    %p84 = scmp.eq.s32.totalorder %s15, 1
    %p85 = por %p83, %p84
    %p86 = scmp.ne.s32.totalorder %s75, %s76
    %p87 = scmp.eq.s32.totalorder %s15, 0
    %p88 = por %p86, %p87
    %p89 = scmp.ne.s32.totalorder %s75, %s76
    %p90 = scmp.eq.s32.totalorder %s16, 1
    %p91 = por %p89, %p90
    %p93 = scmp.ne.s32.totalorder %s76, %s92
    %p94 = scmp.eq.s32.totalorder %s16, 0
    %p95 = por %p93, %p94
    %s96 = ssub.s32 %s10, %s17
    %p97 = scmp.eq.s32.totalorder %s96, 0
    %s99 = sadd.s32 %s98, 1
    %s100 = scalar_select %p97, %s98, %s99
    %p103 = pneg %p97
    %p104 = scmp.eq.s32.totalorder %s10, 1
    %p105 = por %p103, %p104
    %p106 = scmp.ne.s32.totalorder %s98, %s101
    %p107 = scmp.eq.s32.totalorder %s10, 0
    %p108 = por %p106, %p107
    %p109 = scmp.ne.s32.totalorder %s98, %s101
    %p110 = scmp.eq.s32.totalorder %s15, 1
    %p111 = por %p109, %p110
    %p112 = scmp.ne.s32.totalorder %s101, %s102
    %p113 = scmp.eq.s32.totalorder %s15, 0
    %p114 = por %p112, %p113
    %p115 = scmp.ne.s32.totalorder %s101, %s102
    %p116 = scmp.eq.s32.totalorder %s16, 1
    %p117 = por %p115, %p116
    %p119 = scmp.ne.s32.totalorder %s102, %s118
    %p120 = scmp.eq.s32.totalorder %s16, 0
    %p121 = por %p119, %p120
    %s122 = ssub.s32 %s10, %s17
    %p123 = scmp.eq.s32.totalorder %s122, 0
    %s125 = sadd.s32 %s124, 1
    %s126 = scalar_select %p123, %s124, %s125
    %p129 = pneg %p123
    %p130 = scmp.eq.s32.totalorder %s10, 1
    %p131 = por %p129, %p130
    %p132 = scmp.ne.s32.totalorder %s124, %s127
    %p133 = scmp.eq.s32.totalorder %s10, 0
    %p134 = por %p132, %p133
    %p135 = scmp.ne.s32.totalorder %s124, %s127
    %p136 = scmp.eq.s32.totalorder %s15, 1
    %p137 = por %p135, %p136
    %p138 = scmp.ne.s32.totalorder %s127, %s128
    %p139 = scmp.eq.s32.totalorder %s15, 0
    %p140 = por %p138, %p139
    %p141 = scmp.ne.s32.totalorder %s127, %s128
    %p142 = scmp.eq.s32.totalorder %s16, 1
    %p143 = por %p141, %p142
    %p145 = scmp.ne.s32.totalorder %s128, %s144
    %p146 = scmp.eq.s32.totalorder %s16, 0
    %p147 = por %p145, %p146
    %p148 = scmp.le.s32.totalorder 1, %s10
    %p149 = scmp.lt.s32.totalorder %s10, 3
    %p150 = pnand %p148, %p149
    %p151 = pneg %p150
    // Predicated region
    $region9: #{forward.10} parent=5 // pred_check
      _
    $region10: #{forward.10} parent=5 // pred_check_branch
      %153 = sbr.rel (%p150) target = $region12
    $region11: #{forward.10} parent=5 // pred_region
      %s154 = ssub.s32 %s10, 1
    $region12: #{forward.10} parent=5 // pred_fallthru
      _
    %p155 = scmp.lt.s32.totalorder %s10, 2
    // Predicated region
    $region13: #{forward.10} parent=5 // pred_check
      %p156 = pneg %p155
    $region14: #{forward.10} parent=5 // pred_check_branch
      %158 = sbr.rel (%p156) target = $region16
    $region15: #{forward.10} parent=5 // pred_region
      // Predicated region
      $region17: #{forward.10} parent=15 // pred_check
        %p159 = pneg %p30
      $region18: #{forward.10} parent=15 // pred_check_branch
        %161 = sbr.rel (%p159) target = $region20
      $region19: #{forward.10} parent=15 // pred_region
        %p162 = scmp.lt.s32.totalorder %s10, 1
        %s163 = scalar_select %p162, %s10, 1
        %s164 = smul.addr %s163, 2
        %s165 = smul.addr %s164, 8
        %s166 = scalar_lea.vmem %s0, %s165
      $region20: #{forward.10} parent=15 // pred_fallthru
        _
      // Predicated region
      $region21: #{forward.10} parent=15 // pred_check
        %p167 = pneg %p56
      $region22: #{forward.10} parent=15 // pred_check_branch
        %169 = sbr.rel (%p167) target = $region24
      $region23: #{forward.10} parent=15 // pred_region
        %p170 = scmp.lt.s32.totalorder %s10, 1
        %s171 = scalar_select %p170, %s10, 1
        %s172 = smul.addr %s171, 12
        %s173 = smul.addr %s172, 8
        %s174 = scalar_lea.vmem %s1, %s173
      $region24: #{forward.10} parent=15 // pred_fallthru
        _
      // Predicated region
      $region25: #{forward.10} parent=15 // pred_check
        %p175 = pneg %p82
      $region26: #{forward.10} parent=15 // pred_check_branch
        %177 = sbr.rel (%p175) target = $region28
      $region27: #{forward.10} parent=15 // pred_region
        %p178 = scmp.lt.s32.totalorder %s10, 1
        %s179 = scalar_select %p178, %s10, 1
        %s180 = smul.addr %s179, 8
        %s181 = smul.addr %s180, 8
        %s182 = scalar_lea.vmem %s2, %s181
      $region28: #{forward.10} parent=15 // pred_fallthru
        _
      // Predicated region
      $region29: #{forward.10} parent=15 // pred_check
        %p183 = pneg %p108
      $region30: #{forward.10} parent=15 // pred_check_branch
        %185 = sbr.rel (%p183) target = $region32
      $region31: #{forward.10} parent=15 // pred_region
        %p186 = scmp.lt.s32.totalorder %s10, 1
        %s187 = scalar_select %p186, %s10, 1
        %s188 = smul.addr %s187, 4
        %s189 = scalar_lea.vmem %s3, %s188
      $region32: #{forward.10} parent=15 // pred_fallthru
        _
    $region16: #{forward.10} parent=5 // pred_fallthru
      _
    %p190 = scmp.le.s32.totalorder 1, %s10
    %p191 = scmp.lt.s32.totalorder %s10, 3
    %p192 = pnand %p190, %p191
    %p193 = pneg %p192
    // Predicated region
    $region33: #{forward.10} parent=5 // pred_check
      _
    $region34: #{forward.10} parent=5 // pred_check_branch
      %195 = sbr.rel (%p192) target = $region36
    $region35: #{forward.10} parent=5 // pred_region
      %s196 = ssub.s32 %s10, 1
      %p197 = scmp.lt.s32.totalorder %s15, 1
      %s198 = scalar_select %p197, %s15, 1
      %s199 = smul.addr %s198, 2
      %s200 = smul.addr %s199, 8
      %s201 = scalar_lea.vmem %s0, %s200
      %p202 = pneg %p36
      %p203 = pneg %p33
      %p204 = scmp.lt.s32.totalorder %s15, 1
      %s205 = scalar_select %p204, %s15, 1
      %s206 = smul.addr %s205, 12
      %s207 = smul.addr %s206, 8
      %s208 = scalar_lea.vmem %s1, %s207
      %p209 = pneg %p62
      %p210 = pneg %p59
      %p211 = scmp.lt.s32.totalorder %s15, 1
      %s212 = scalar_select %p211, %s15, 1
      %s213 = smul.addr %s212, 8
      %s214 = smul.addr %s213, 8
      %s215 = scalar_lea.vmem %s2, %s214
      %p216 = pneg %p88
      %p217 = pneg %p85
      %p218 = scmp.lt.s32.totalorder %s15, 1
      %s219 = scalar_select %p218, %s15, 1
      %s220 = smul.addr %s219, 4
      %s221 = scalar_lea.vmem %s3, %s220
      %p222 = pneg %p114
      %p223 = pneg %p111
      %p224 = pneg %p140
      %p225 = pneg %p137
      %p226 = scmp.lt.s32.totalorder %s15, 1
      %s227 = scalar_select %p226, %s15, 1
      %s228 = smul.addr %s227, 2
      %s229 = smul.addr %s228, 8
      %s230 = scalar_lea.vmem %s4, %s229
      %p231 = scmp.lt.s32.totalorder %s15, 1
      %s232 = scalar_select %p231, %s15, 1
      %s233 = smul.addr %s232, 2
      %s234 = smul.addr %s233, 8
      %s235 = scalar_lea.vmem %s0, %s234
      %p236 = scmp.lt.s32.totalorder %s15, 1
      %s237 = scalar_select %p236, %s15, 1
      %s238 = smul.addr %s237, 12
      %s239 = smul.addr %s238, 8
      %s240 = scalar_lea.vmem %s1, %s239
      %p241 = scmp.lt.s32.totalorder %s15, 1
      %s242 = scalar_select %p241, %s15, 1
      %s243 = smul.addr %s242, 8
      %s244 = smul.addr %s243, 8
      %s245 = scalar_lea.vmem %s2, %s244
      %p246 = scmp.lt.s32.totalorder %s15, 1
      %s247 = scalar_select %p246, %s15, 1
      %s248 = smul.addr %s247, 4
      %s249 = scalar_lea.vmem %s3, %s248
      %p250 = scmp.lt.s32.totalorder %s15, 1
      %s251 = scalar_select %p250, %s15, 1
      %s252 = smul.addr %s251, 2
      %s253 = smul.addr %s252, 8
      %s254 = scalar_lea.vmem %s4, %s253
      %v255 = vld [vmem:[%s235] sm:$0xff]
      %v256 = vld [vmem:[%s235 + $0x8] sm:$0xff]
      %v257 = vld [vmem:[%s240] sm:$0xff]
      %v258 = vld [vmem:[%s240 + $0x8] sm:$0xff]
      %v259 = vld [vmem:[%s240 + $0x10] sm:$0xff]
      %v260 = vld [vmem:[%s249] sm:$0x1]
      %v262 = vlaneseq
      %v263 = vshrl.u32 %v262, 7
      %v264 = vsub.s32 0, %v263
      %v265 = vrot.slane %v260, %v264
      %vm267 = vcmask 195584
      %v269 = vsel %vm267, %v255, 0
      %v272 = vsel %vm267, %v256, 0
      %274 = vmatprep.subr.mxu0 0.0
      %275 = vmatpush1.msra.mxu0 %v257
      %276 = vmatprep.subr.mxu0 0.0
      %277 = vmatpush1.msra.mxu0 %v258
      %278 = vmatprep.subr.mxu0 0.0
      %279 = vmatpush1.msra.mxu0 %v259
      %280 = vmatprep.subr.mxu0 0.0
      %281 = vmatpush1.msra.mxu0 0.0
      %282 = vmatprep.subr.mxu0 0.0
      %283 = vmatpush1.msra.mxu0 0.0
      %284 = vmatprep.subr.mxu0 0.0
      %285 = vmatpush1.msra.mxu0 0.0
      %286 = vmatprep.subr.mxu0 0.0
      %287 = vmatpush1.msra.mxu0 0.0
      %288 = vmatprep.subr.mxu0 0.0
      %289 = vmatpush1.msra.mxu0 0.0
      %290 = vmatprep.subr.mxu0 0.0
      %291 = vmatpush1.msra.mxu0 0.0
      %292 = vmatprep.subr.mxu0 0.0
      %293 = vmatpush1.msra.mxu0 0.0
      %294 = vmatprep.subr.mxu0 0.0
      %295 = vmatpush1.msra.mxu0 0.0
      %296 = vmatprep.subr.mxu0 0.0
      %297 = vmatpush1.msra.mxu0 0.0
      %298 = vmatprep.subr.mxu0 0.0
      %299 = vmatpush1.msra.mxu0 0.0
      %300 = vmatprep.subr.mxu0 0.0
      %301 = vmatpush1.msra.mxu0 0.0
      %302 = vmatprep.subr.mxu0 0.0
      %303 = vmatpush1.msra.mxu0 0.0
      %304 = vmatprep.subr.mxu0 0.0
      %305 = vmatpush1.msra.mxu0 0.0
      %306 = vmatprep.subr.mxu0 0.0
      %307 = vmatpush1.msra.mxu0 0.0
      %308 = vmatprep.subr.mxu0 0.0
      %309 = vmatpush1.msra.mxu0 0.0
      %310 = vmatprep.subr.mxu0 0.0
      %311 = vmatpush1.msra.mxu0 0.0
      %312 = vmatprep.subr.mxu0 0.0
      %313 = vmatpush1.msra.mxu0 0.0
      %314 = vmatprep.subr.mxu0 0.0
      %315 = vmatpush1.msra.mxu0 0.0
      %316 = vmatprep.subr.mxu0 0.0
      %317 = vmatpush1.msra.mxu0 0.0
      %318 = vmatprep.subr.mxu0 0.0
      %319 = vmatpush1.msra.mxu0 0.0
      %320 = vmatprep.subr.mxu0 0.0
      %321 = vmatpush1.msra.mxu0 0.0
      %322 = vmatprep.subr.mxu0 0.0
      %323 = vmatpush1.msra.mxu0 0.0
      %324 = vmatprep.subr.mxu0 0.0
      %325 = vmatpush1.msra.mxu0 0.0
      %326 = vmatprep.subr.mxu0 0.0
      %327 = vmatpush1.msra.mxu0 0.0
      %328 = vmatprep.subr.mxu0 0.0
      %329 = vmatpush1.msra.mxu0 0.0
      %330 = vmatprep.subr.mxu0 0.0
      %331 = vmatpush1.msra.mxu0 0.0
      %332 = vmatprep.subr.mxu0 0.0
      %333 = vmatpush1.msra.mxu0 0.0
      %334 = vmatprep.subr.mxu0 0.0
      %335 = vmatpush1.msra.mxu0 0.0
      %336 = vmatprep.subr.mxu0 0.0
      %337 = vmatpush1.msra.mxu0 0.0
      %338 = vmatprep.mubr.f32.mxu0 0.0
      %339 = vmatmul.mubr.f32.gmra.mrb[0].mxu0 %v269
      %v340 = vpop.f32.mrb[0].mxu0
      %v341 = vadd.f32 %v265, %v340
      %v342 = vpop.f32.mrb[0].mxu0
      %343 = vmatprep.mubr.f32.mxu0 0.0
      %344 = vmatmul.mubr.f32.gmra.mrb[0].mxu0 %v272
      %v345 = vpop.f32.mrb[0].mxu0
      %v346 = vadd.f32 %v265, %v345
      %v347 = vpop.f32.mrb[0].mxu0
      %348 = vdwg.mxu0
      %vm349 = vcmask 97280
      %350 = vst.msk [vmem:[#allocation2] sm:$0xff] %vm349, %v341
      %351 = vst.msk [vmem:[#allocation2 + $0x8] sm:$0xff] %vm349, %v346
      %s352 = scalar_lea.vmem %s240, 24
      %v353 = vld [vmem:[%s352] sm:$0xff]
      %v354 = vld [vmem:[%s352 + $0x8] sm:$0xff]
      %v355 = vld [vmem:[%s352 + $0x10] sm:$0xff]
      %s356 = scalar_lea.vmem %s249, 1
      %v357 = vld [vmem:[%s356] sm:$0x1]
      %v359 = vlaneseq
      %v360 = vshrl.u32 %v359, 7
      %v361 = vsub.s32 0, %v360
      %v362 = vrot.slane %v357, %v361
      %364 = vmatprep.subr.mxu0 0.0
      %365 = vmatpush1.msra.mxu0 %v353
      %366 = vmatprep.subr.mxu0 0.0
      %367 = vmatpush1.msra.mxu0 %v354
      %368 = vmatprep.subr.mxu0 0.0
      %369 = vmatpush1.msra.mxu0 %v355
      %370 = vmatprep.subr.mxu0 0.0
      %371 = vmatpush1.msra.mxu0 0.0
      %372 = vmatprep.subr.mxu0 0.0
      %373 = vmatpush1.msra.mxu0 0.0
      %374 = vmatprep.subr.mxu0 0.0
      %375 = vmatpush1.msra.mxu0 0.0
      %376 = vmatprep.subr.mxu0 0.0
      %377 = vmatpush1.msra.mxu0 0.0
      %378 = vmatprep.subr.mxu0 0.0
      %379 = vmatpush1.msra.mxu0 0.0
      %380 = vmatprep.subr.mxu0 0.0
      %381 = vmatpush1.msra.mxu0 0.0
      %382 = vmatprep.subr.mxu0 0.0
      %383 = vmatpush1.msra.mxu0 0.0
      %384 = vmatprep.subr.mxu0 0.0
      %385 = vmatpush1.msra.mxu0 0.0
      %386 = vmatprep.subr.mxu0 0.0
      %387 = vmatpush1.msra.mxu0 0.0
      %388 = vmatprep.subr.mxu0 0.0
      %389 = vmatpush1.msra.mxu0 0.0
      %390 = vmatprep.subr.mxu0 0.0
      %391 = vmatpush1.msra.mxu0 0.0
      %392 = vmatprep.subr.mxu0 0.0
      %393 = vmatpush1.msra.mxu0 0.0
      %394 = vmatprep.subr.mxu0 0.0
      %395 = vmatpush1.msra.mxu0 0.0
      %396 = vmatprep.subr.mxu0 0.0
      %397 = vmatpush1.msra.mxu0 0.0
      %398 = vmatprep.subr.mxu0 0.0
      %399 = vmatpush1.msra.mxu0 0.0
      %400 = vmatprep.subr.mxu0 0.0
      %401 = vmatpush1.msra.mxu0 0.0
      %402 = vmatprep.subr.mxu0 0.0
      %403 = vmatpush1.msra.mxu0 0.0
      %404 = vmatprep.subr.mxu0 0.0
      %405 = vmatpush1.msra.mxu0 0.0
      %406 = vmatprep.subr.mxu0 0.0
      %407 = vmatpush1.msra.mxu0 0.0
      %408 = vmatprep.subr.mxu0 0.0
      %409 = vmatpush1.msra.mxu0 0.0
      %410 = vmatprep.subr.mxu0 0.0
      %411 = vmatpush1.msra.mxu0 0.0
      %412 = vmatprep.subr.mxu0 0.0
      %413 = vmatpush1.msra.mxu0 0.0
      %414 = vmatprep.subr.mxu0 0.0
      %415 = vmatpush1.msra.mxu0 0.0
      %416 = vmatprep.subr.mxu0 0.0
      %417 = vmatpush1.msra.mxu0 0.0
      %418 = vmatprep.subr.mxu0 0.0
      %419 = vmatpush1.msra.mxu0 0.0
      %420 = vmatprep.subr.mxu0 0.0
      %421 = vmatpush1.msra.mxu0 0.0
      %422 = vmatprep.subr.mxu0 0.0
      %423 = vmatpush1.msra.mxu0 0.0
      %424 = vmatprep.subr.mxu0 0.0
      %425 = vmatpush1.msra.mxu0 0.0
      %426 = vmatprep.subr.mxu0 0.0
      %427 = vmatpush1.msra.mxu0 0.0
      %428 = vmatprep.mubr.f32.mxu0 0.0
      %429 = vmatmul.mubr.f32.gmra.mrb[0].mxu0 %v269
      %v430 = vpop.f32.mrb[0].mxu0
      %v431 = vadd.f32 %v362, %v430
      %v432 = vpop.f32.mrb[0].mxu0
      %433 = vmatprep.mubr.f32.mxu0 0.0
      %434 = vmatmul.mubr.f32.gmra.mrb[0].mxu0 %v272
      %v435 = vpop.f32.mrb[0].mxu0
      %v436 = vadd.f32 %v362, %v435
      %v437 = vpop.f32.mrb[0].mxu0
      %438 = vdwg.mxu0
      %439 = vst.msk [vmem:[#allocation2 + $0x10] sm:$0xff] %vm349, %v431
      %440 = vst.msk [vmem:[#allocation2 + $0x18] sm:$0xff] %vm349, %v436
      %s441 = scalar_lea.vmem %s240, 48
      %v442 = vld [vmem:[%s441] sm:$0xff]
      %v443 = vld [vmem:[%s441 + $0x8] sm:$0xff]
      %v444 = vld [vmem:[%s441 + $0x10] sm:$0xff]
      %s445 = scalar_lea.vmem %s249, 2
      %v446 = vld [vmem:[%s445] sm:$0x1]
      %v448 = vlaneseq
      %v449 = vshrl.u32 %v448, 7
      %v450 = vsub.s32 0, %v449
      %v451 = vrot.slane %v446, %v450
      %453 = vmatprep.subr.mxu0 0.0
      %454 = vmatpush1.msra.mxu0 %v442
      %455 = vmatprep.subr.mxu0 0.0
      %456 = vmatpush1.msra.mxu0 %v443
      %457 = vmatprep.subr.mxu0 0.0
      %458 = vmatpush1.msra.mxu0 %v444
      %459 = vmatprep.subr.mxu0 0.0
      %460 = vmatpush1.msra.mxu0 0.0
      %461 = vmatprep.subr.mxu0 0.0
      %462 = vmatpush1.msra.mxu0 0.0
      %463 = vmatprep.subr.mxu0 0.0
      %464 = vmatpush1.msra.mxu0 0.0
      %465 = vmatprep.subr.mxu0 0.0
      %466 = vmatpush1.msra.mxu0 0.0
      %467 = vmatprep.subr.mxu0 0.0
      %468 = vmatpush1.msra.mxu0 0.0
      %469 = vmatprep.subr.mxu0 0.0
      %470 = vmatpush1.msra.mxu0 0.0
      %471 = vmatprep.subr.mxu0 0.0
      %472 = vmatpush1.msra.mxu0 0.0
      %473 = vmatprep.subr.mxu0 0.0
      %474 = vmatpush1.msra.mxu0 0.0
      %475 = vmatprep.subr.mxu0 0.0
      %476 = vmatpush1.msra.mxu0 0.0
      %477 = vmatprep.subr.mxu0 0.0
      %478 = vmatpush1.msra.mxu0 0.0
      %479 = vmatprep.subr.mxu0 0.0
      %480 = vmatpush1.msra.mxu0 0.0
      %481 = vmatprep.subr.mxu0 0.0
      %482 = vmatpush1.msra.mxu0 0.0
      %483 = vmatprep.subr.mxu0 0.0
      %484 = vmatpush1.msra.mxu0 0.0
      %485 = vmatprep.subr.mxu0 0.0
      %486 = vmatpush1.msra.mxu0 0.0
      %487 = vmatprep.subr.mxu0 0.0
      %488 = vmatpush1.msra.mxu0 0.0
      %489 = vmatprep.subr.mxu0 0.0
      %490 = vmatpush1.msra.mxu0 0.0
      %491 = vmatprep.subr.mxu0 0.0
      %492 = vmatpush1.msra.mxu0 0.0
      %493 = vmatprep.subr.mxu0 0.0
      %494 = vmatpush1.msra.mxu0 0.0
      %495 = vmatprep.subr.mxu0 0.0
      %496 = vmatpush1.msra.mxu0 0.0
      %497 = vmatprep.subr.mxu0 0.0
      %498 = vmatpush1.msra.mxu0 0.0
      %499 = vmatprep.subr.mxu0 0.0
      %500 = vmatpush1.msra.mxu0 0.0
      %501 = vmatprep.subr.mxu0 0.0
      %502 = vmatpush1.msra.mxu0 0.0
      %503 = vmatprep.subr.mxu0 0.0
      %504 = vmatpush1.msra.mxu0 0.0
      %505 = vmatprep.subr.mxu0 0.0
      %506 = vmatpush1.msra.mxu0 0.0
      %507 = vmatprep.subr.mxu0 0.0
      %508 = vmatpush1.msra.mxu0 0.0
      %509 = vmatprep.subr.mxu0 0.0
      %510 = vmatpush1.msra.mxu0 0.0
      %511 = vmatprep.subr.mxu0 0.0
      %512 = vmatpush1.msra.mxu0 0.0
      %513 = vmatprep.subr.mxu0 0.0
      %514 = vmatpush1.msra.mxu0 0.0
      %515 = vmatprep.subr.mxu0 0.0
      %516 = vmatpush1.msra.mxu0 0.0
      %517 = vmatprep.mubr.f32.mxu0 0.0
      %518 = vmatmul.mubr.f32.gmra.mrb[0].mxu0 %v269
      %v519 = vpop.f32.mrb[0].mxu0
      %v520 = vadd.f32 %v451, %v519
      %v521 = vpop.f32.mrb[0].mxu0
      %522 = vmatprep.mubr.f32.mxu0 0.0
      %523 = vmatmul.mubr.f32.gmra.mrb[0].mxu0 %v272
      %v524 = vpop.f32.mrb[0].mxu0
      %v525 = vadd.f32 %v451, %v524
      %v526 = vpop.f32.mrb[0].mxu0
      %527 = vdwg.mxu0
      %528 = vst.msk [vmem:[#allocation2 + $0x20] sm:$0xff] %vm349, %v520
      %529 = vst.msk [vmem:[#allocation2 + $0x28] sm:$0xff] %vm349, %v525
      %s530 = scalar_lea.vmem %s240, 72
      %v531 = vld [vmem:[%s530] sm:$0xff]
      %v532 = vld [vmem:[%s530 + $0x8] sm:$0xff]
      %v533 = vld [vmem:[%s530 + $0x10] sm:$0xff]
      %s534 = scalar_lea.vmem %s249, 3
      %v535 = vld [vmem:[%s534] sm:$0x1]
      %v537 = vlaneseq
      %v538 = vshrl.u32 %v537, 7
      %v539 = vsub.s32 0, %v538
      %v540 = vrot.slane %v535, %v539
      %542 = vmatprep.subr.mxu0 0.0
      %543 = vmatpush1.msra.mxu0 %v531
      %544 = vmatprep.subr.mxu0 0.0
      %545 = vmatpush1.msra.mxu0 %v532
      %546 = vmatprep.subr.mxu0 0.0
      %547 = vmatpush1.msra.mxu0 %v533
      %548 = vmatprep.subr.mxu0 0.0
      %549 = vmatpush1.msra.mxu0 0.0
      %550 = vmatprep.subr.mxu0 0.0
      %551 = vmatpush1.msra.mxu0 0.0
      %552 = vmatprep.subr.mxu0 0.0
      %553 = vmatpush1.msra.mxu0 0.0
      %554 = vmatprep.subr.mxu0 0.0
      %555 = vmatpush1.msra.mxu0 0.0
      %556 = vmatprep.subr.mxu0 0.0
      %557 = vmatpush1.msra.mxu0 0.0
      %558 = vmatprep.subr.mxu0 0.0
      %559 = vmatpush1.msra.mxu0 0.0
      %560 = vmatprep.subr.mxu0 0.0
      %561 = vmatpush1.msra.mxu0 0.0
      %562 = vmatprep.subr.mxu0 0.0
      %563 = vmatpush1.msra.mxu0 0.0
      %564 = vmatprep.subr.mxu0 0.0
      %565 = vmatpush1.msra.mxu0 0.0
      %566 = vmatprep.subr.mxu0 0.0
      %567 = vmatpush1.msra.mxu0 0.0
      %568 = vmatprep.subr.mxu0 0.0
      %569 = vmatpush1.msra.mxu0 0.0
      %570 = vmatprep.subr.mxu0 0.0
      %571 = vmatpush1.msra.mxu0 0.0
      %572 = vmatprep.subr.mxu0 0.0
      %573 = vmatpush1.msra.mxu0 0.0
      %574 = vmatprep.subr.mxu0 0.0
      %575 = vmatpush1.msra.mxu0 0.0
      %576 = vmatprep.subr.mxu0 0.0
      %577 = vmatpush1.msra.mxu0 0.0
      %578 = vmatprep.subr.mxu0 0.0
      %579 = vmatpush1.msra.mxu0 0.0
      %580 = vmatprep.subr.mxu0 0.0
      %581 = vmatpush1.msra.mxu0 0.0
      %582 = vmatprep.subr.mxu0 0.0
      %583 = vmatpush1.msra.mxu0 0.0
      %584 = vmatprep.subr.mxu0 0.0
      %585 = vmatpush1.msra.mxu0 0.0
      %586 = vmatprep.subr.mxu0 0.0
      %587 = vmatpush1.msra.mxu0 0.0
      %588 = vmatprep.subr.mxu0 0.0
      %589 = vmatpush1.msra.mxu0 0.0
      %590 = vmatprep.subr.mxu0 0.0
      %591 = vmatpush1.msra.mxu0 0.0
      %592 = vmatprep.subr.mxu0 0.0
      %593 = vmatpush1.msra.mxu0 0.0
      %594 = vmatprep.subr.mxu0 0.0
      %595 = vmatpush1.msra.mxu0 0.0
      %596 = vmatprep.subr.mxu0 0.0
      %597 = vmatpush1.msra.mxu0 0.0
      %598 = vmatprep.subr.mxu0 0.0
      %599 = vmatpush1.msra.mxu0 0.0
      %600 = vmatprep.subr.mxu0 0.0
      %601 = vmatpush1.msra.mxu0 0.0
      %602 = vmatprep.subr.mxu0 0.0
      %603 = vmatpush1.msra.mxu0 0.0
      %604 = vmatprep.subr.mxu0 0.0
      %605 = vmatpush1.msra.mxu0 0.0
      %606 = vmatprep.mubr.f32.mxu0 0.0
      %607 = vmatmul.mubr.f32.gmra.mrb[0].mxu0 %v269
      %v608 = vpop.f32.mrb[0].mxu0
      %v609 = vadd.f32 %v540, %v608
      %v610 = vpop.f32.mrb[0].mxu0
      %611 = vmatprep.mubr.f32.mxu0 0.0
      %612 = vmatmul.mubr.f32.gmra.mrb[0].mxu0 %v272
      %v613 = vpop.f32.mrb[0].mxu0
      %v614 = vadd.f32 %v540, %v613
      %v615 = vpop.f32.mrb[0].mxu0
      %616 = vdwg.mxu0
      %617 = vst.msk [vmem:[#allocation2 + $0x30] sm:$0xff] %vm349, %v609
      %618 = vst.msk [vmem:[#allocation2 + $0x38] sm:$0xff] %vm349, %v614
      %v619 = vld [vmem:[%s245] sm:$0xff]
      %v620 = vld [vmem:[%s245 + $0x8] sm:$0xf]
      %s621 = scalar_lea.vmem %s245, 16
      %v622 = vld [vmem:[%s621] sm:$0xff]
      %v623 = vld [vmem:[%s621 + $0x8] sm:$0xf]
      %s624 = scalar_lea.vmem %s245, 32
      %v625 = vld [vmem:[%s624] sm:$0xff]
      %v626 = vld [vmem:[%s624 + $0x8] sm:$0xf]
      %s627 = scalar_lea.vmem %s245, 48
      %v628 = vld [vmem:[%s627] sm:$0xff]
      %v629 = vld [vmem:[%s627 + $0x8] sm:$0xf]
      %v630 = vld [vmem:[#allocation2] sm:$0x3]
      %v632 = vsel %vm349, 0.0, 0
      %vm634 = vcmask 1043456
      %v636 = vsel %vm634, %v620, 0
      %638 = vmatprep.subr.mxu0 0.0
      %639 = vmatpush1.msra.mxu0 %v619
      %640 = vmatprep.subr.mxu0 0.0
      %641 = vmatpush1.msra.mxu0 %v636
      %642 = vmatprep.subr.mxu0 0.0
      %643 = vmatpush1.msra.mxu0 0.0
      %644 = vmatprep.subr.mxu0 0.0
      %645 = vmatpush1.msra.mxu0 0.0
      %646 = vmatprep.subr.mxu0 0.0
      %647 = vmatpush1.msra.mxu0 0.0
      %648 = vmatprep.subr.mxu0 0.0
      %649 = vmatpush1.msra.mxu0 0.0
      %650 = vmatprep.subr.mxu0 0.0
      %651 = vmatpush1.msra.mxu0 0.0
      %652 = vmatprep.subr.mxu0 0.0
      %653 = vmatpush1.msra.mxu0 0.0
      %654 = vmatprep.subr.mxu0 0.0
      %655 = vmatpush1.msra.mxu0 0.0
      %656 = vmatprep.subr.mxu0 0.0
      %657 = vmatpush1.msra.mxu0 0.0
      %658 = vmatprep.subr.mxu0 0.0
      %659 = vmatpush1.msra.mxu0 0.0
      %660 = vmatprep.subr.mxu0 0.0
      %661 = vmatpush1.msra.mxu0 0.0
      %662 = vmatprep.subr.mxu0 0.0
      %663 = vmatpush1.msra.mxu0 0.0
      %664 = vmatprep.subr.mxu0 0.0
      %665 = vmatpush1.msra.mxu0 0.0
      %666 = vmatprep.subr.mxu0 0.0
      %667 = vmatpush1.msra.mxu0 0.0
      %668 = vmatprep.subr.mxu0 0.0
      %669 = vmatpush1.msra.mxu0 0.0
      %670 = vmatprep.subr.mxu0 0.0
      %671 = vmatpush1.msra.mxu0 0.0
      %672 = vmatprep.subr.mxu0 0.0
      %673 = vmatpush1.msra.mxu0 0.0
      %674 = vmatprep.subr.mxu0 0.0
      %675 = vmatpush1.msra.mxu0 0.0
      %676 = vmatprep.subr.mxu0 0.0
      %677 = vmatpush1.msra.mxu0 0.0
      %678 = vmatprep.subr.mxu0 0.0
      %679 = vmatpush1.msra.mxu0 0.0
      %680 = vmatprep.subr.mxu0 0.0
      %681 = vmatpush1.msra.mxu0 0.0
      %682 = vmatprep.subr.mxu0 0.0
      %683 = vmatpush1.msra.mxu0 0.0
      %684 = vmatprep.subr.mxu0 0.0
      %685 = vmatpush1.msra.mxu0 0.0
      %686 = vmatprep.subr.mxu0 0.0
      %687 = vmatpush1.msra.mxu0 0.0
      %688 = vmatprep.subr.mxu0 0.0
      %689 = vmatpush1.msra.mxu0 0.0
      %690 = vmatprep.subr.mxu0 0.0
      %691 = vmatpush1.msra.mxu0 0.0
      %692 = vmatprep.subr.mxu0 0.0
      %693 = vmatpush1.msra.mxu0 0.0
      %694 = vmatprep.subr.mxu0 0.0
      %695 = vmatpush1.msra.mxu0 0.0
      %696 = vmatprep.subr.mxu0 0.0
      %697 = vmatpush1.msra.mxu0 0.0
      %698 = vmatprep.subr.mxu0 0.0
      %699 = vmatpush1.msra.mxu0 0.0
      %700 = vmatprep.subr.mxu0 0.0
      %701 = vmatpush1.msra.mxu0 0.0
      %702 = vmatprep.mubr.f32.mxu0 0.0
      %703 = vmatmul.mubr.f32.gmra.mrb[0].mxu0 %v632
      %v704 = vpop.f32.mrb[0].mxu0
      %v705 = vadd.f32 0.0, %v704
      %v706 = vpop.f32.mrb[0].mxu0
      %707 = vdwg.mxu0
      %v708 = vadd.f32 %v630, %v705
      %v709 = vxor.u32 %v708, 2147483648
      %v710 = vmul.f32 %v709, 1.442695
      %v711 = vpow.pop %v710
      %v712 = vadd.f32 %v711, 1.0
      %v713 = vrcp.pop %v712
      %v714 = vmul.f32 1.0, %v713
      %v715 = vld [vmem:[#allocation2 + $0x10] sm:$0x3]
      %v717 = vsel %vm634, %v623, 0
      %719 = vmatprep.subr.mxu0 0.0
      %720 = vmatpush1.msra.mxu0 %v622
      %721 = vmatprep.subr.mxu0 0.0
      %722 = vmatpush1.msra.mxu0 %v717
      %723 = vmatprep.subr.mxu0 0.0
      %724 = vmatpush1.msra.mxu0 0.0
      %725 = vmatprep.subr.mxu0 0.0
      %726 = vmatpush1.msra.mxu0 0.0
      %727 = vmatprep.subr.mxu0 0.0
      %728 = vmatpush1.msra.mxu0 0.0
      %729 = vmatprep.subr.mxu0 0.0
      %730 = vmatpush1.msra.mxu0 0.0
      %731 = vmatprep.subr.mxu0 0.0
      %732 = vmatpush1.msra.mxu0 0.0
      %733 = vmatprep.subr.mxu0 0.0
      %734 = vmatpush1.msra.mxu0 0.0
      %735 = vmatprep.subr.mxu0 0.0
      %736 = vmatpush1.msra.mxu0 0.0
      %737 = vmatprep.subr.mxu0 0.0
      %738 = vmatpush1.msra.mxu0 0.0
      %739 = vmatprep.subr.mxu0 0.0
      %740 = vmatpush1.msra.mxu0 0.0
      %741 = vmatprep.subr.mxu0 0.0
      %742 = vmatpush1.msra.mxu0 0.0
      %743 = vmatprep.subr.mxu0 0.0
      %744 = vmatpush1.msra.mxu0 0.0
      %745 = vmatprep.subr.mxu0 0.0
      %746 = vmatpush1.msra.mxu0 0.0
      %747 = vmatprep.subr.mxu0 0.0
      %748 = vmatpush1.msra.mxu0 0.0
      %749 = vmatprep.subr.mxu0 0.0
      %750 = vmatpush1.msra.mxu0 0.0
      %751 = vmatprep.subr.mxu0 0.0
      %752 = vmatpush1.msra.mxu0 0.0
      %753 = vmatprep.subr.mxu0 0.0
      %754 = vmatpush1.msra.mxu0 0.0
      %755 = vmatprep.subr.mxu0 0.0
      %756 = vmatpush1.msra.mxu0 0.0
      %757 = vmatprep.subr.mxu0 0.0
      %758 = vmatpush1.msra.mxu0 0.0
      %759 = vmatprep.subr.mxu0 0.0
      %760 = vmatpush1.msra.mxu0 0.0
      %761 = vmatprep.subr.mxu0 0.0
      %762 = vmatpush1.msra.mxu0 0.0
      %763 = vmatprep.subr.mxu0 0.0
      %764 = vmatpush1.msra.mxu0 0.0
      %765 = vmatprep.subr.mxu0 0.0
      %766 = vmatpush1.msra.mxu0 0.0
      %767 = vmatprep.subr.mxu0 0.0
      %768 = vmatpush1.msra.mxu0 0.0
      %769 = vmatprep.subr.mxu0 0.0
      %770 = vmatpush1.msra.mxu0 0.0
      %771 = vmatprep.subr.mxu0 0.0
      %772 = vmatpush1.msra.mxu0 0.0
      %773 = vmatprep.subr.mxu0 0.0
      %774 = vmatpush1.msra.mxu0 0.0
      %775 = vmatprep.subr.mxu0 0.0
      %776 = vmatpush1.msra.mxu0 0.0
      %777 = vmatprep.subr.mxu0 0.0
      %778 = vmatpush1.msra.mxu0 0.0
      %779 = vmatprep.subr.mxu0 0.0
      %780 = vmatpush1.msra.mxu0 0.0
      %781 = vmatprep.subr.mxu0 0.0
      %782 = vmatpush1.msra.mxu0 0.0
      %783 = vmatprep.mubr.f32.mxu0 0.0
      %784 = vmatmul.mubr.f32.gmra.mrb[0].mxu0 %v632
      %v785 = vpop.f32.mrb[0].mxu0
      %v786 = vadd.f32 0.0, %v785
      %v787 = vpop.f32.mrb[0].mxu0
      %788 = vdwg.mxu0
      %v789 = vadd.f32 %v715, %v786
      %v790 = vxor.u32 %v789, 2147483648
      %v791 = vmul.f32 %v790, 1.442695
      %v792 = vpow.pop %v791
      %v793 = vadd.f32 %v792, 1.0
      %v794 = vrcp.pop %v793
      %v795 = vmul.f32 1.0, %v794
      %v796 = vld [vmem:[#allocation2 + $0x20] sm:$0x3]
      %v798 = vsel %vm634, %v626, 0
      %800 = vmatprep.subr.mxu0 0.0
      %801 = vmatpush1.msra.mxu0 %v625
      %802 = vmatprep.subr.mxu0 0.0
      %803 = vmatpush1.msra.mxu0 %v798
      %804 = vmatprep.subr.mxu0 0.0
      %805 = vmatpush1.msra.mxu0 0.0
      %806 = vmatprep.subr.mxu0 0.0
      %807 = vmatpush1.msra.mxu0 0.0
      %808 = vmatprep.subr.mxu0 0.0
      %809 = vmatpush1.msra.mxu0 0.0
      %810 = vmatprep.subr.mxu0 0.0
      %811 = vmatpush1.msra.mxu0 0.0
      %812 = vmatprep.subr.mxu0 0.0
      %813 = vmatpush1.msra.mxu0 0.0
      %814 = vmatprep.subr.mxu0 0.0
      %815 = vmatpush1.msra.mxu0 0.0
      %816 = vmatprep.subr.mxu0 0.0
      %817 = vmatpush1.msra.mxu0 0.0
      %818 = vmatprep.subr.mxu0 0.0
      %819 = vmatpush1.msra.mxu0 0.0
      %820 = vmatprep.subr.mxu0 0.0
      %821 = vmatpush1.msra.mxu0 0.0
      %822 = vmatprep.subr.mxu0 0.0
      %823 = vmatpush1.msra.mxu0 0.0
      %824 = vmatprep.subr.mxu0 0.0
      %825 = vmatpush1.msra.mxu0 0.0
      %826 = vmatprep.subr.mxu0 0.0
      %827 = vmatpush1.msra.mxu0 0.0
      %828 = vmatprep.subr.mxu0 0.0
      %829 = vmatpush1.msra.mxu0 0.0
      %830 = vmatprep.subr.mxu0 0.0
      %831 = vmatpush1.msra.mxu0 0.0
      %832 = vmatprep.subr.mxu0 0.0
      %833 = vmatpush1.msra.mxu0 0.0
      %834 = vmatprep.subr.mxu0 0.0
      %835 = vmatpush1.msra.mxu0 0.0
      %836 = vmatprep.subr.mxu0 0.0
      %837 = vmatpush1.msra.mxu0 0.0
      %838 = vmatprep.subr.mxu0 0.0
      %839 = vmatpush1.msra.mxu0 0.0
      %840 = vmatprep.subr.mxu0 0.0
      %841 = vmatpush1.msra.mxu0 0.0
      %842 = vmatprep.subr.mxu0 0.0
      %843 = vmatpush1.msra.mxu0 0.0
      %844 = vmatprep.subr.mxu0 0.0
      %845 = vmatpush1.msra.mxu0 0.0
      %846 = vmatprep.subr.mxu0 0.0
      %847 = vmatpush1.msra.mxu0 0.0
      %848 = vmatprep.subr.mxu0 0.0
      %849 = vmatpush1.msra.mxu0 0.0
      %850 = vmatprep.subr.mxu0 0.0
      %851 = vmatpush1.msra.mxu0 0.0
      %852 = vmatprep.subr.mxu0 0.0
      %853 = vmatpush1.msra.mxu0 0.0
      %854 = vmatprep.subr.mxu0 0.0
      %855 = vmatpush1.msra.mxu0 0.0
      %856 = vmatprep.subr.mxu0 0.0
      %857 = vmatpush1.msra.mxu0 0.0
      %858 = vmatprep.subr.mxu0 0.0
      %859 = vmatpush1.msra.mxu0 0.0
      %860 = vmatprep.subr.mxu0 0.0
      %861 = vmatpush1.msra.mxu0 0.0
      %862 = vmatprep.subr.mxu0 0.0
      %863 = vmatpush1.msra.mxu0 0.0
      %864 = vmatprep.mubr.f32.mxu0 0.0
      %865 = vmatmul.mubr.f32.gmra.mrb[0].mxu0 %v632
      %v866 = vpop.f32.mrb[0].mxu0
      %v867 = vadd.f32 0.0, %v866
      %v868 = vpop.f32.mrb[0].mxu0
      %869 = vdwg.mxu0
      %v870 = vadd.f32 %v796, %v867
      %v871 = vtanh.pop %v870
      %v872 = vld [vmem:[#allocation2 + $0x30] sm:$0x3]
      %v874 = vsel %vm634, %v629, 0
      %876 = vmatprep.subr.mxu0 0.0
      %877 = vmatpush1.msra.mxu0 %v628
      %878 = vmatprep.subr.mxu0 0.0
      %879 = vmatpush1.msra.mxu0 %v874
      %880 = vmatprep.subr.mxu0 0.0
      %881 = vmatpush1.msra.mxu0 0.0
      %882 = vmatprep.subr.mxu0 0.0
      %883 = vmatpush1.msra.mxu0 0.0
      %884 = vmatprep.subr.mxu0 0.0
      %885 = vmatpush1.msra.mxu0 0.0
      %886 = vmatprep.subr.mxu0 0.0
      %887 = vmatpush1.msra.mxu0 0.0
      %888 = vmatprep.subr.mxu0 0.0
      %889 = vmatpush1.msra.mxu0 0.0
      %890 = vmatprep.subr.mxu0 0.0
      %891 = vmatpush1.msra.mxu0 0.0
      %892 = vmatprep.subr.mxu0 0.0
      %893 = vmatpush1.msra.mxu0 0.0
      %894 = vmatprep.subr.mxu0 0.0
      %895 = vmatpush1.msra.mxu0 0.0
      %896 = vmatprep.subr.mxu0 0.0
      %897 = vmatpush1.msra.mxu0 0.0
      %898 = vmatprep.subr.mxu0 0.0
      %899 = vmatpush1.msra.mxu0 0.0
      %900 = vmatprep.subr.mxu0 0.0
      %901 = vmatpush1.msra.mxu0 0.0
      %902 = vmatprep.subr.mxu0 0.0
      %903 = vmatpush1.msra.mxu0 0.0
      %904 = vmatprep.subr.mxu0 0.0
      %905 = vmatpush1.msra.mxu0 0.0
      %906 = vmatprep.subr.mxu0 0.0
      %907 = vmatpush1.msra.mxu0 0.0
      %908 = vmatprep.subr.mxu0 0.0
      %909 = vmatpush1.msra.mxu0 0.0
      %910 = vmatprep.subr.mxu0 0.0
      %911 = vmatpush1.msra.mxu0 0.0
      %912 = vmatprep.subr.mxu0 0.0
      %913 = vmatpush1.msra.mxu0 0.0
      %914 = vmatprep.subr.mxu0 0.0
      %915 = vmatpush1.msra.mxu0 0.0
      %916 = vmatprep.subr.mxu0 0.0
      %917 = vmatpush1.msra.mxu0 0.0
      %918 = vmatprep.subr.mxu0 0.0
      %919 = vmatpush1.msra.mxu0 0.0
      %920 = vmatprep.subr.mxu0 0.0
      %921 = vmatpush1.msra.mxu0 0.0
      %922 = vmatprep.subr.mxu0 0.0
      %923 = vmatpush1.msra.mxu0 0.0
      %924 = vmatprep.subr.mxu0 0.0
      %925 = vmatpush1.msra.mxu0 0.0
      %926 = vmatprep.subr.mxu0 0.0
      %927 = vmatpush1.msra.mxu0 0.0
      %928 = vmatprep.subr.mxu0 0.0
      %929 = vmatpush1.msra.mxu0 0.0
      %930 = vmatprep.subr.mxu0 0.0
      %931 = vmatpush1.msra.mxu0 0.0
      %932 = vmatprep.subr.mxu0 0.0
      %933 = vmatpush1.msra.mxu0 0.0
      %934 = vmatprep.subr.mxu0 0.0
      %935 = vmatpush1.msra.mxu0 0.0
      %936 = vmatprep.subr.mxu0 0.0
      %937 = vmatpush1.msra.mxu0 0.0
      %938 = vmatprep.subr.mxu0 0.0
      %939 = vmatpush1.msra.mxu0 0.0
      %940 = vmatprep.mubr.f32.mxu0 0.0
      %941 = vmatmul.mubr.f32.gmra.mrb[0].mxu0 %v632
      %v942 = vpop.f32.mrb[0].mxu0
      %v943 = vadd.f32 0.0, %v942
      %v944 = vpop.f32.mrb[0].mxu0
      %945 = vdwg.mxu0
      %v946 = vadd.f32 %v872, %v943
      %v947 = vxor.u32 %v946, 2147483648
      %v948 = vmul.f32 %v947, 1.442695
      %v949 = vpow.pop %v948
      %v950 = vadd.f32 %v949, 1.0
      %v951 = vrcp.pop %v950
      %v952 = vmul.f32 1.0, %v951
      %v953 = vmul.f32 %v795, 0.0
      %v954 = vmul.f32 %v714, %v871
      %v955 = vadd.f32 %v953, %v954
      %v956 = vtanh.pop %v955
      %v957 = vmul.f32 %v952, %v956
      %vm958 = vcmask 91136
      %959 = vst.msk [vmem:[%s254] sm:$0x3] %vm958, %v957
      %v960 = vld [vmem:[#allocation2 + $0x2] sm:$0x3]
      %v962 = vsel %vm349, %v957, 0
      %964 = vmatprep.subr.mxu0 0.0
      %965 = vmatpush1.msra.mxu0 %v619
      %966 = vmatprep.subr.mxu0 0.0
      %967 = vmatpush1.msra.mxu0 %v636
      %968 = vmatprep.subr.mxu0 0.0
      %969 = vmatpush1.msra.mxu0 0.0
      %970 = vmatprep.subr.mxu0 0.0
      %971 = vmatpush1.msra.mxu0 0.0
      %972 = vmatprep.subr.mxu0 0.0
      %973 = vmatpush1.msra.mxu0 0.0
      %974 = vmatprep.subr.mxu0 0.0
      %975 = vmatpush1.msra.mxu0 0.0
      %976 = vmatprep.subr.mxu0 0.0
      %977 = vmatpush1.msra.mxu0 0.0
      %978 = vmatprep.subr.mxu0 0.0
      %979 = vmatpush1.msra.mxu0 0.0
      %980 = vmatprep.subr.mxu0 0.0
      %981 = vmatpush1.msra.mxu0 0.0
      %982 = vmatprep.subr.mxu0 0.0
      %983 = vmatpush1.msra.mxu0 0.0
      %984 = vmatprep.subr.mxu0 0.0
      %985 = vmatpush1.msra.mxu0 0.0
      %986 = vmatprep.subr.mxu0 0.0
      %987 = vmatpush1.msra.mxu0 0.0
      %988 = vmatprep.subr.mxu0 0.0
      %989 = vmatpush1.msra.mxu0 0.0
      %990 = vmatprep.subr.mxu0 0.0
      %991 = vmatpush1.msra.mxu0 0.0
      %992 = vmatprep.subr.mxu0 0.0
      %993 = vmatpush1.msra.mxu0 0.0
      %994 = vmatprep.subr.mxu0 0.0
      %995 = vmatpush1.msra.mxu0 0.0
      %996 = vmatprep.subr.mxu0 0.0
      %997 = vmatpush1.msra.mxu0 0.0
      %998 = vmatprep.subr.mxu0 0.0
      %999 = vmatpush1.msra.mxu0 0.0
      %1000 = vmatprep.subr.mxu0 0.0
      %1001 = vmatpush1.msra.mxu0 0.0
      %1002 = vmatprep.subr.mxu0 0.0
      %1003 = vmatpush1.msra.mxu0 0.0
      %1004 = vmatprep.subr.mxu0 0.0
      %1005 = vmatpush1.msra.mxu0 0.0
      %1006 = vmatprep.subr.mxu0 0.0
      %1007 = vmatpush1.msra.mxu0 0.0
      %1008 = vmatprep.subr.mxu0 0.0
      %1009 = vmatpush1.msra.mxu0 0.0
      %1010 = vmatprep.subr.mxu0 0.0
      %1011 = vmatpush1.msra.mxu0 0.0
      %1012 = vmatprep.subr.mxu0 0.0
      %1013 = vmatpush1.msra.mxu0 0.0
      %1014 = vmatprep.subr.mxu0 0.0
      %1015 = vmatpush1.msra.mxu0 0.0
      %1016 = vmatprep.subr.mxu0 0.0
      %1017 = vmatpush1.msra.mxu0 0.0
      %1018 = vmatprep.subr.mxu0 0.0
      %1019 = vmatpush1.msra.mxu0 0.0
      %1020 = vmatprep.subr.mxu0 0.0
      %1021 = vmatpush1.msra.mxu0 0.0
      %1022 = vmatprep.subr.mxu0 0.0
      %1023 = vmatpush1.msra.mxu0 0.0
      %1024 = vmatprep.subr.mxu0 0.0
      %1025 = vmatpush1.msra.mxu0 0.0
      %1026 = vmatprep.subr.mxu0 0.0
      %1027 = vmatpush1.msra.mxu0 0.0
      %1028 = vmatprep.mubr.f32.mxu0 0.0
      %1029 = vmatmul.mubr.f32.gmra.mrb[0].mxu0 %v962
      %v1030 = vpop.f32.mrb[0].mxu0
      %v1031 = vadd.f32 0.0, %v1030
      %v1032 = vpop.f32.mrb[0].mxu0
      %1033 = vdwg.mxu0
      %v1034 = vadd.f32 %v960, %v1031
      %v1035 = vxor.u32 %v1034, 2147483648
      %v1036 = vmul.f32 %v1035, 1.442695
      %v1037 = vpow.pop %v1036
      %v1038 = vadd.f32 %v1037, 1.0
      %v1039 = vrcp.pop %v1038
      %v1040 = vmul.f32 1.0, %v1039
      %v1041 = vld [vmem:[#allocation2 + $0x12] sm:$0x3]
      %1042 = vmatprep.subr.mxu0 0.0
      %1043 = vmatpush1.msra.mxu0 %v622
      %1044 = vmatprep.subr.mxu0 0.0
      %1045 = vmatpush1.msra.mxu0 %v717
      %1046 = vmatprep.subr.mxu0 0.0
      %1047 = vmatpush1.msra.mxu0 0.0
      %1048 = vmatprep.subr.mxu0 0.0
      %1049 = vmatpush1.msra.mxu0 0.0
      %1050 = vmatprep.subr.mxu0 0.0
      %1051 = vmatpush1.msra.mxu0 0.0
      %1052 = vmatprep.subr.mxu0 0.0
      %1053 = vmatpush1.msra.mxu0 0.0
      %1054 = vmatprep.subr.mxu0 0.0
      %1055 = vmatpush1.msra.mxu0 0.0
      %1056 = vmatprep.subr.mxu0 0.0
      %1057 = vmatpush1.msra.mxu0 0.0
      %1058 = vmatprep.subr.mxu0 0.0
      %1059 = vmatpush1.msra.mxu0 0.0
      %1060 = vmatprep.subr.mxu0 0.0
      %1061 = vmatpush1.msra.mxu0 0.0
      %1062 = vmatprep.subr.mxu0 0.0
      %1063 = vmatpush1.msra.mxu0 0.0
      %1064 = vmatprep.subr.mxu0 0.0
      %1065 = vmatpush1.msra.mxu0 0.0
      %1066 = vmatprep.subr.mxu0 0.0
      %1067 = vmatpush1.msra.mxu0 0.0
      %1068 = vmatprep.subr.mxu0 0.0
      %1069 = vmatpush1.msra.mxu0 0.0
      %1070 = vmatprep.subr.mxu0 0.0
      %1071 = vmatpush1.msra.mxu0 0.0
      %1072 = vmatprep.subr.mxu0 0.0
      %1073 = vmatpush1.msra.mxu0 0.0
      %1074 = vmatprep.subr.mxu0 0.0
      %1075 = vmatpush1.msra.mxu0 0.0
      %1076 = vmatprep.subr.mxu0 0.0
      %1077 = vmatpush1.msra.mxu0 0.0
      %1078 = vmatprep.subr.mxu0 0.0
      %1079 = vmatpush1.msra.mxu0 0.0
      %1080 = vmatprep.subr.mxu0 0.0
      %1081 = vmatpush1.msra.mxu0 0.0
      %1082 = vmatprep.subr.mxu0 0.0
      %1083 = vmatpush1.msra.mxu0 0.0
      %1084 = vmatprep.subr.mxu0 0.0
      %1085 = vmatpush1.msra.mxu0 0.0
      %1086 = vmatprep.subr.mxu0 0.0
      %1087 = vmatpush1.msra.mxu0 0.0
      %1088 = vmatprep.subr.mxu0 0.0
      %1089 = vmatpush1.msra.mxu0 0.0
      %1090 = vmatprep.subr.mxu0 0.0
      %1091 = vmatpush1.msra.mxu0 0.0
      %1092 = vmatprep.subr.mxu0 0.0
      %1093 = vmatpush1.msra.mxu0 0.0
      %1094 = vmatprep.subr.mxu0 0.0
      %1095 = vmatpush1.msra.mxu0 0.0
      %1096 = vmatprep.subr.mxu0 0.0
      %1097 = vmatpush1.msra.mxu0 0.0
      %1098 = vmatprep.subr.mxu0 0.0
      %1099 = vmatpush1.msra.mxu0 0.0
      %1100 = vmatprep.subr.mxu0 0.0
      %1101 = vmatpush1.msra.mxu0 0.0
      %1102 = vmatprep.subr.mxu0 0.0
      %1103 = vmatpush1.msra.mxu0 0.0
      %1104 = vmatprep.subr.mxu0 0.0
      %1105 = vmatpush1.msra.mxu0 0.0
      %1106 = vmatprep.mubr.f32.mxu0 0.0
      %1107 = vmatmul.mubr.f32.gmra.mrb[0].mxu0 %v962
      %v1108 = vpop.f32.mrb[0].mxu0
      %v1109 = vadd.f32 0.0, %v1108
      %v1110 = vpop.f32.mrb[0].mxu0
      %1111 = vdwg.mxu0
      %v1112 = vadd.f32 %v1041, %v1109
      %v1113 = vxor.u32 %v1112, 2147483648
      %v1114 = vmul.f32 %v1113, 1.442695
      %v1115 = vpow.pop %v1114
      %v1116 = vadd.f32 %v1115, 1.0
      %v1117 = vrcp.pop %v1116
      %v1118 = vmul.f32 1.0, %v1117
      %v1119 = vld [vmem:[#allocation2 + $0x22] sm:$0x3]
      %1120 = vmatprep.subr.mxu0 0.0
      %1121 = vmatpush1.msra.mxu0 %v625
      %1122 = vmatprep.subr.mxu0 0.0
      %1123 = vmatpush1.msra.mxu0 %v798
      %1124 = vmatprep.subr.mxu0 0.0
      %1125 = vmatpush1.msra.mxu0 0.0
      %1126 = vmatprep.subr.mxu0 0.0
      %1127 = vmatpush1.msra.mxu0 0.0
      %1128 = vmatprep.subr.mxu0 0.0
      %1129 = vmatpush1.msra.mxu0 0.0
      %1130 = vmatprep.subr.mxu0 0.0
      %1131 = vmatpush1.msra.mxu0 0.0
      %1132 = vmatprep.subr.mxu0 0.0
      %1133 = vmatpush1.msra.mxu0 0.0
      %1134 = vmatprep.subr.mxu0 0.0
      %1135 = vmatpush1.msra.mxu0 0.0
      %1136 = vmatprep.subr.mxu0 0.0
      %1137 = vmatpush1.msra.mxu0 0.0
      %1138 = vmatprep.subr.mxu0 0.0
      %1139 = vmatpush1.msra.mxu0 0.0
      %1140 = vmatprep.subr.mxu0 0.0
      %1141 = vmatpush1.msra.mxu0 0.0
      %1142 = vmatprep.subr.mxu0 0.0
      %1143 = vmatpush1.msra.mxu0 0.0
      %1144 = vmatprep.subr.mxu0 0.0
      %1145 = vmatpush1.msra.mxu0 0.0
      %1146 = vmatprep.subr.mxu0 0.0
      %1147 = vmatpush1.msra.mxu0 0.0
      %1148 = vmatprep.subr.mxu0 0.0
      %1149 = vmatpush1.msra.mxu0 0.0
      %1150 = vmatprep.subr.mxu0 0.0
      %1151 = vmatpush1.msra.mxu0 0.0
      %1152 = vmatprep.subr.mxu0 0.0
      %1153 = vmatpush1.msra.mxu0 0.0
      %1154 = vmatprep.subr.mxu0 0.0
      %1155 = vmatpush1.msra.mxu0 0.0
      %1156 = vmatprep.subr.mxu0 0.0
      %1157 = vmatpush1.msra.mxu0 0.0
      %1158 = vmatprep.subr.mxu0 0.0
      %1159 = vmatpush1.msra.mxu0 0.0
      %1160 = vmatprep.subr.mxu0 0.0
      %1161 = vmatpush1.msra.mxu0 0.0
      %1162 = vmatprep.subr.mxu0 0.0
      %1163 = vmatpush1.msra.mxu0 0.0
      %1164 = vmatprep.subr.mxu0 0.0
      %1165 = vmatpush1.msra.mxu0 0.0
      %1166 = vmatprep.subr.mxu0 0.0
      %1167 = vmatpush1.msra.mxu0 0.0
      %1168 = vmatprep.subr.mxu0 0.0
      %1169 = vmatpush1.msra.mxu0 0.0
      %1170 = vmatprep.subr.mxu0 0.0
      %1171 = vmatpush1.msra.mxu0 0.0
      %1172 = vmatprep.subr.mxu0 0.0
      %1173 = vmatpush1.msra.mxu0 0.0
      %1174 = vmatprep.subr.mxu0 0.0
      %1175 = vmatpush1.msra.mxu0 0.0
      %1176 = vmatprep.subr.mxu0 0.0
      %1177 = vmatpush1.msra.mxu0 0.0
      %1178 = vmatprep.subr.mxu0 0.0
      %1179 = vmatpush1.msra.mxu0 0.0
      %1180 = vmatprep.subr.mxu0 0.0
      %1181 = vmatpush1.msra.mxu0 0.0
      %1182 = vmatprep.subr.mxu0 0.0
      %1183 = vmatpush1.msra.mxu0 0.0
      %1184 = vmatprep.mubr.f32.mxu0 0.0
      %1185 = vmatmul.mubr.f32.gmra.mrb[0].mxu0 %v962
      %v1186 = vpop.f32.mrb[0].mxu0
      %v1187 = vadd.f32 0.0, %v1186
      %v1188 = vpop.f32.mrb[0].mxu0
      %1189 = vdwg.mxu0
      %v1190 = vadd.f32 %v1119, %v1187
      %v1191 = vtanh.pop %v1190
      %v1192 = vld [vmem:[#allocation2 + $0x32] sm:$0x3]
      %1193 = vmatprep.subr.mxu0 0.0
      %1194 = vmatpush1.msra.mxu0 %v628
      %1195 = vmatprep.subr.mxu0 0.0
      %1196 = vmatpush1.msra.mxu0 %v874
      %1197 = vmatprep.subr.mxu0 0.0
      %1198 = vmatpush1.msra.mxu0 0.0
      %1199 = vmatprep.subr.mxu0 0.0
      %1200 = vmatpush1.msra.mxu0 0.0
      %1201 = vmatprep.subr.mxu0 0.0
      %1202 = vmatpush1.msra.mxu0 0.0
      %1203 = vmatprep.subr.mxu0 0.0
      %1204 = vmatpush1.msra.mxu0 0.0
      %1205 = vmatprep.subr.mxu0 0.0
      %1206 = vmatpush1.msra.mxu0 0.0
      %1207 = vmatprep.subr.mxu0 0.0
      %1208 = vmatpush1.msra.mxu0 0.0
      %1209 = vmatprep.subr.mxu0 0.0
      %1210 = vmatpush1.msra.mxu0 0.0
      %1211 = vmatprep.subr.mxu0 0.0
      %1212 = vmatpush1.msra.mxu0 0.0
      %1213 = vmatprep.subr.mxu0 0.0
      %1214 = vmatpush1.msra.mxu0 0.0
      %1215 = vmatprep.subr.mxu0 0.0
      %1216 = vmatpush1.msra.mxu0 0.0
      %1217 = vmatprep.subr.mxu0 0.0
      %1218 = vmatpush1.msra.mxu0 0.0
      %1219 = vmatprep.subr.mxu0 0.0
      %1220 = vmatpush1.msra.mxu0 0.0
      %1221 = vmatprep.subr.mxu0 0.0
      %1222 = vmatpush1.msra.mxu0 0.0
      %1223 = vmatprep.subr.mxu0 0.0
      %1224 = vmatpush1.msra.mxu0 0.0
      %1225 = vmatprep.subr.mxu0 0.0
      %1226 = vmatpush1.msra.mxu0 0.0
      %1227 = vmatprep.subr.mxu0 0.0
      %1228 = vmatpush1.msra.mxu0 0.0
      %1229 = vmatprep.subr.mxu0 0.0
      %1230 = vmatpush1.msra.mxu0 0.0
      %1231 = vmatprep.subr.mxu0 0.0
      %1232 = vmatpush1.msra.mxu0 0.0
      %1233 = vmatprep.subr.mxu0 0.0
      %1234 = vmatpush1.msra.mxu0 0.0
      %1235 = vmatprep.subr.mxu0 0.0
      %1236 = vmatpush1.msra.mxu0 0.0
      %1237 = vmatprep.subr.mxu0 0.0
      %1238 = vmatpush1.msra.mxu0 0.0
      %1239 = vmatprep.subr.mxu0 0.0
      %1240 = vmatpush1.msra.mxu0 0.0
      %1241 = vmatprep.subr.mxu0 0.0
      %1242 = vmatpush1.msra.mxu0 0.0
      %1243 = vmatprep.subr.mxu0 0.0
      %1244 = vmatpush1.msra.mxu0 0.0
      %1245 = vmatprep.subr.mxu0 0.0
      %1246 = vmatpush1.msra.mxu0 0.0
      %1247 = vmatprep.subr.mxu0 0.0
      %1248 = vmatpush1.msra.mxu0 0.0
      %1249 = vmatprep.subr.mxu0 0.0
      %1250 = vmatpush1.msra.mxu0 0.0
      %1251 = vmatprep.subr.mxu0 0.0
      %1252 = vmatpush1.msra.mxu0 0.0
      %1253 = vmatprep.subr.mxu0 0.0
      %1254 = vmatpush1.msra.mxu0 0.0
      %1255 = vmatprep.subr.mxu0 0.0
      %1256 = vmatpush1.msra.mxu0 0.0
      %1257 = vmatprep.mubr.f32.mxu0 0.0
      %1258 = vmatmul.mubr.f32.gmra.mrb[0].mxu0 %v962
      %v1259 = vpop.f32.mrb[0].mxu0
      %v1260 = vadd.f32 0.0, %v1259
      %v1261 = vpop.f32.mrb[0].mxu0
      %1262 = vdwg.mxu0
      %v1263 = vadd.f32 %v1192, %v1260
      %v1264 = vxor.u32 %v1263, 2147483648
      %v1265 = vmul.f32 %v1264, 1.442695
      %v1266 = vpow.pop %v1265
      %v1267 = vadd.f32 %v1266, 1.0
      %v1268 = vrcp.pop %v1267
      %v1269 = vmul.f32 1.0, %v1268
      %v1270 = vmul.f32 %v1118, %v955
      %v1271 = vmul.f32 %v1040, %v1191
      %v1272 = vadd.f32 %v1270, %v1271
      %v1273 = vtanh.pop %v1272
      %v1274 = vmul.f32 %v1269, %v1273
      %1275 = vst.msk [vmem:[%s254 + $0x2] sm:$0x3] %vm958, %v1274
      %v1276 = vld [vmem:[#allocation2 + $0x4] sm:$0x3]
      %v1278 = vsel %vm349, %v1274, 0
      %1280 = vmatprep.subr.mxu0 0.0
      %1281 = vmatpush1.msra.mxu0 %v619
      %1282 = vmatprep.subr.mxu0 0.0
      %1283 = vmatpush1.msra.mxu0 %v636
      %1284 = vmatprep.subr.mxu0 0.0
      %1285 = vmatpush1.msra.mxu0 0.0
      %1286 = vmatprep.subr.mxu0 0.0
      %1287 = vmatpush1.msra.mxu0 0.0
      %1288 = vmatprep.subr.mxu0 0.0
      %1289 = vmatpush1.msra.mxu0 0.0
      %1290 = vmatprep.subr.mxu0 0.0
      %1291 = vmatpush1.msra.mxu0 0.0
      %1292 = vmatprep.subr.mxu0 0.0
      %1293 = vmatpush1.msra.mxu0 0.0
      %1294 = vmatprep.subr.mxu0 0.0
      %1295 = vmatpush1.msra.mxu0 0.0
      %1296 = vmatprep.subr.mxu0 0.0
      %1297 = vmatpush1.msra.mxu0 0.0
      %1298 = vmatprep.subr.mxu0 0.0
      %1299 = vmatpush1.msra.mxu0 0.0
      %1300 = vmatprep.subr.mxu0 0.0
      %1301 = vmatpush1.msra.mxu0 0.0
      %1302 = vmatprep.subr.mxu0 0.0
      %1303 = vmatpush1.msra.mxu0 0.0
      %1304 = vmatprep.subr.mxu0 0.0
      %1305 = vmatpush1.msra.mxu0 0.0
      %1306 = vmatprep.subr.mxu0 0.0
      %1307 = vmatpush1.msra.mxu0 0.0
      %1308 = vmatprep.subr.mxu0 0.0
      %1309 = vmatpush1.msra.mxu0 0.0
      %1310 = vmatprep.subr.mxu0 0.0
      %1311 = vmatpush1.msra.mxu0 0.0
      %1312 = vmatprep.subr.mxu0 0.0
      %1313 = vmatpush1.msra.mxu0 0.0
      %1314 = vmatprep.subr.mxu0 0.0
      %1315 = vmatpush1.msra.mxu0 0.0
      %1316 = vmatprep.subr.mxu0 0.0
      %1317 = vmatpush1.msra.mxu0 0.0
      %1318 = vmatprep.subr.mxu0 0.0
      %1319 = vmatpush1.msra.mxu0 0.0
      %1320 = vmatprep.subr.mxu0 0.0
      %1321 = vmatpush1.msra.mxu0 0.0
      %1322 = vmatprep.subr.mxu0 0.0
      %1323 = vmatpush1.msra.mxu0 0.0
      %1324 = vmatprep.subr.mxu0 0.0
      %1325 = vmatpush1.msra.mxu0 0.0
      %1326 = vmatprep.subr.mxu0 0.0
      %1327 = vmatpush1.msra.mxu0 0.0
      %1328 = vmatprep.subr.mxu0 0.0
      %1329 = vmatpush1.msra.mxu0 0.0
      %1330 = vmatprep.subr.mxu0 0.0
      %1331 = vmatpush1.msra.mxu0 0.0
      %1332 = vmatprep.subr.mxu0 0.0
      %1333 = vmatpush1.msra.mxu0 0.0
      %1334 = vmatprep.subr.mxu0 0.0
      %1335 = vmatpush1.msra.mxu0 0.0
      %1336 = vmatprep.subr.mxu0 0.0
      %1337 = vmatpush1.msra.mxu0 0.0
      %1338 = vmatprep.subr.mxu0 0.0
      %1339 = vmatpush1.msra.mxu0 0.0
      %1340 = vmatprep.subr.mxu0 0.0
      %1341 = vmatpush1.msra.mxu0 0.0
      %1342 = vmatprep.subr.mxu0 0.0
      %1343 = vmatpush1.msra.mxu0 0.0
      %1344 = vmatprep.mubr.f32.mxu0 0.0
      %1345 = vmatmul.mubr.f32.gmra.mrb[0].mxu0 %v1278
      %v1346 = vpop.f32.mrb[0].mxu0
      %v1347 = vadd.f32 0.0, %v1346
      %v1348 = vpop.f32.mrb[0].mxu0
      %1349 = vdwg.mxu0
      %v1350 = vadd.f32 %v1276, %v1347
      %v1351 = vxor.u32 %v1350, 2147483648
      %v1352 = vmul.f32 %v1351, 1.442695
      %v1353 = vpow.pop %v1352
      %v1354 = vadd.f32 %v1353, 1.0
      %v1355 = vrcp.pop %v1354
      %v1356 = vmul.f32 1.0, %v1355
      %v1357 = vld [vmem:[#allocation2 + $0x14] sm:$0x3]
      %1358 = vmatprep.subr.mxu0 0.0
      %1359 = vmatpush1.msra.mxu0 %v622
      %1360 = vmatprep.subr.mxu0 0.0
      %1361 = vmatpush1.msra.mxu0 %v717
      %1362 = vmatprep.subr.mxu0 0.0
      %1363 = vmatpush1.msra.mxu0 0.0
      %1364 = vmatprep.subr.mxu0 0.0
      %1365 = vmatpush1.msra.mxu0 0.0
      %1366 = vmatprep.subr.mxu0 0.0
      %1367 = vmatpush1.msra.mxu0 0.0
      %1368 = vmatprep.subr.mxu0 0.0
      %1369 = vmatpush1.msra.mxu0 0.0
      %1370 = vmatprep.subr.mxu0 0.0
      %1371 = vmatpush1.msra.mxu0 0.0
      %1372 = vmatprep.subr.mxu0 0.0
      %1373 = vmatpush1.msra.mxu0 0.0
      %1374 = vmatprep.subr.mxu0 0.0
      %1375 = vmatpush1.msra.mxu0 0.0
      %1376 = vmatprep.subr.mxu0 0.0
      %1377 = vmatpush1.msra.mxu0 0.0
      %1378 = vmatprep.subr.mxu0 0.0
      %1379 = vmatpush1.msra.mxu0 0.0
      %1380 = vmatprep.subr.mxu0 0.0
      %1381 = vmatpush1.msra.mxu0 0.0
      %1382 = vmatprep.subr.mxu0 0.0
      %1383 = vmatpush1.msra.mxu0 0.0
      %1384 = vmatprep.subr.mxu0 0.0
      %1385 = vmatpush1.msra.mxu0 0.0
      %1386 = vmatprep.subr.mxu0 0.0
      %1387 = vmatpush1.msra.mxu0 0.0
      %1388 = vmatprep.subr.mxu0 0.0
      %1389 = vmatpush1.msra.mxu0 0.0
      %1390 = vmatprep.subr.mxu0 0.0
      %1391 = vmatpush1.msra.mxu0 0.0
      %1392 = vmatprep.subr.mxu0 0.0
      %1393 = vmatpush1.msra.mxu0 0.0
      %1394 = vmatprep.subr.mxu0 0.0
      %1395 = vmatpush1.msra.mxu0 0.0
      %1396 = vmatprep.subr.mxu0 0.0
      %1397 = vmatpush1.msra.mxu0 0.0
      %1398 = vmatprep.subr.mxu0 0.0
      %1399 = vmatpush1.msra.mxu0 0.0
      %1400 = vmatprep.subr.mxu0 0.0
      %1401 = vmatpush1.msra.mxu0 0.0
      %1402 = vmatprep.subr.mxu0 0.0
      %1403 = vmatpush1.msra.mxu0 0.0
      %1404 = vmatprep.subr.mxu0 0.0
      %1405 = vmatpush1.msra.mxu0 0.0
      %1406 = vmatprep.subr.mxu0 0.0
      %1407 = vmatpush1.msra.mxu0 0.0
      %1408 = vmatprep.subr.mxu0 0.0
      %1409 = vmatpush1.msra.mxu0 0.0
      %1410 = vmatprep.subr.mxu0 0.0
      %1411 = vmatpush1.msra.mxu0 0.0
      %1412 = vmatprep.subr.mxu0 0.0
      %1413 = vmatpush1.msra.mxu0 0.0
      %1414 = vmatprep.subr.mxu0 0.0
      %1415 = vmatpush1.msra.mxu0 0.0
      %1416 = vmatprep.subr.mxu0 0.0
      %1417 = vmatpush1.msra.mxu0 0.0
      %1418 = vmatprep.subr.mxu0 0.0
      %1419 = vmatpush1.msra.mxu0 0.0
      %1420 = vmatprep.subr.mxu0 0.0
      %1421 = vmatpush1.msra.mxu0 0.0
      %1422 = vmatprep.mubr.f32.mxu0 0.0
      %1423 = vmatmul.mubr.f32.gmra.mrb[0].mxu0 %v1278
      %v1424 = vpop.f32.mrb[0].mxu0
      %v1425 = vadd.f32 0.0, %v1424
      %v1426 = vpop.f32.mrb[0].mxu0
      %1427 = vdwg.mxu0
      %v1428 = vadd.f32 %v1357, %v1425
      %v1429 = vxor.u32 %v1428, 2147483648
      %v1430 = vmul.f32 %v1429, 1.442695
      %v1431 = vpow.pop %v1430
      %v1432 = vadd.f32 %v1431, 1.0
      %v1433 = vrcp.pop %v1432
      %v1434 = vmul.f32 1.0, %v1433
      %v1435 = vld [vmem:[#allocation2 + $0x24] sm:$0x3]
      %1436 = vmatprep.subr.mxu0 0.0
      %1437 = vmatpush1.msra.mxu0 %v625
      %1438 = vmatprep.subr.mxu0 0.0
      %1439 = vmatpush1.msra.mxu0 %v798
      %1440 = vmatprep.subr.mxu0 0.0
      %1441 = vmatpush1.msra.mxu0 0.0
      %1442 = vmatprep.subr.mxu0 0.0
      %1443 = vmatpush1.msra.mxu0 0.0
      %1444 = vmatprep.subr.mxu0 0.0
      %1445 = vmatpush1.msra.mxu0 0.0
      %1446 = vmatprep.subr.mxu0 0.0
      %1447 = vmatpush1.msra.mxu0 0.0
      %1448 = vmatprep.subr.mxu0 0.0
      %1449 = vmatpush1.msra.mxu0 0.0
      %1450 = vmatprep.subr.mxu0 0.0
      %1451 = vmatpush1.msra.mxu0 0.0
      %1452 = vmatprep.subr.mxu0 0.0
      %1453 = vmatpush1.msra.mxu0 0.0
      %1454 = vmatprep.subr.mxu0 0.0
      %1455 = vmatpush1.msra.mxu0 0.0
      %1456 = vmatprep.subr.mxu0 0.0
      %1457 = vmatpush1.msra.mxu0 0.0
      %1458 = vmatprep.subr.mxu0 0.0
      %1459 = vmatpush1.msra.mxu0 0.0
      %1460 = vmatprep.subr.mxu0 0.0
      %1461 = vmatpush1.msra.mxu0 0.0
      %1462 = vmatprep.subr.mxu0 0.0
      %1463 = vmatpush1.msra.mxu0 0.0
      %1464 = vmatprep.subr.mxu0 0.0
      %1465 = vmatpush1.msra.mxu0 0.0
      %1466 = vmatprep.subr.mxu0 0.0
      %1467 = vmatpush1.msra.mxu0 0.0
      %1468 = vmatprep.subr.mxu0 0.0
      %1469 = vmatpush1.msra.mxu0 0.0
      %1470 = vmatprep.subr.mxu0 0.0
      %1471 = vmatpush1.msra.mxu0 0.0
      %1472 = vmatprep.subr.mxu0 0.0
      %1473 = vmatpush1.msra.mxu0 0.0
      %1474 = vmatprep.subr.mxu0 0.0
      %1475 = vmatpush1.msra.mxu0 0.0
      %1476 = vmatprep.subr.mxu0 0.0
      %1477 = vmatpush1.msra.mxu0 0.0
      %1478 = vmatprep.subr.mxu0 0.0
      %1479 = vmatpush1.msra.mxu0 0.0
      %1480 = vmatprep.subr.mxu0 0.0
      %1481 = vmatpush1.msra.mxu0 0.0
      %1482 = vmatprep.subr.mxu0 0.0
      %1483 = vmatpush1.msra.mxu0 0.0
      %1484 = vmatprep.subr.mxu0 0.0
      %1485 = vmatpush1.msra.mxu0 0.0
      %1486 = vmatprep.subr.mxu0 0.0
      %1487 = vmatpush1.msra.mxu0 0.0
      %1488 = vmatprep.subr.mxu0 0.0
      %1489 = vmatpush1.msra.mxu0 0.0
      %1490 = vmatprep.subr.mxu0 0.0
      %1491 = vmatpush1.msra.mxu0 0.0
      %1492 = vmatprep.subr.mxu0 0.0
      %1493 = vmatpush1.msra.mxu0 0.0
      %1494 = vmatprep.subr.mxu0 0.0
      %1495 = vmatpush1.msra.mxu0 0.0
      %1496 = vmatprep.subr.mxu0 0.0
      %1497 = vmatpush1.msra.mxu0 0.0
      %1498 = vmatprep.subr.mxu0 0.0
      %1499 = vmatpush1.msra.mxu0 0.0
      %1500 = vmatprep.mubr.f32.mxu0 0.0
      %1501 = vmatmul.mubr.f32.gmra.mrb[0].mxu0 %v1278
      %v1502 = vpop.f32.mrb[0].mxu0
      %v1503 = vadd.f32 0.0, %v1502
      %v1504 = vpop.f32.mrb[0].mxu0
      %1505 = vdwg.mxu0
      %v1506 = vadd.f32 %v1435, %v1503
      %v1507 = vtanh.pop %v1506
      %v1508 = vld [vmem:[#allocation2 + $0x34] sm:$0x3]
      %1509 = vmatprep.subr.mxu0 0.0
      %1510 = vmatpush1.msra.mxu0 %v628
      %1511 = vmatprep.subr.mxu0 0.0
      %1512 = vmatpush1.msra.mxu0 %v874
      %1513 = vmatprep.subr.mxu0 0.0
      %1514 = vmatpush1.msra.mxu0 0.0
      %1515 = vmatprep.subr.mxu0 0.0
      %1516 = vmatpush1.msra.mxu0 0.0
      %1517 = vmatprep.subr.mxu0 0.0
      %1518 = vmatpush1.msra.mxu0 0.0
      %1519 = vmatprep.subr.mxu0 0.0
      %1520 = vmatpush1.msra.mxu0 0.0
      %1521 = vmatprep.subr.mxu0 0.0
      %1522 = vmatpush1.msra.mxu0 0.0
      %1523 = vmatprep.subr.mxu0 0.0
      %1524 = vmatpush1.msra.mxu0 0.0
      %1525 = vmatprep.subr.mxu0 0.0
      %1526 = vmatpush1.msra.mxu0 0.0
      %1527 = vmatprep.subr.mxu0 0.0
      %1528 = vmatpush1.msra.mxu0 0.0
      %1529 = vmatprep.subr.mxu0 0.0
      %1530 = vmatpush1.msra.mxu0 0.0
      %1531 = vmatprep.subr.mxu0 0.0
      %1532 = vmatpush1.msra.mxu0 0.0
      %1533 = vmatprep.subr.mxu0 0.0
      %1534 = vmatpush1.msra.mxu0 0.0
      %1535 = vmatprep.subr.mxu0 0.0
      %1536 = vmatpush1.msra.mxu0 0.0
      %1537 = vmatprep.subr.mxu0 0.0
      %1538 = vmatpush1.msra.mxu0 0.0
      %1539 = vmatprep.subr.mxu0 0.0
      %1540 = vmatpush1.msra.mxu0 0.0
      %1541 = vmatprep.subr.mxu0 0.0
      %1542 = vmatpush1.msra.mxu0 0.0
      %1543 = vmatprep.subr.mxu0 0.0
      %1544 = vmatpush1.msra.mxu0 0.0
      %1545 = vmatprep.subr.mxu0 0.0
      %1546 = vmatpush1.msra.mxu0 0.0
      %1547 = vmatprep.subr.mxu0 0.0
      %1548 = vmatpush1.msra.mxu0 0.0
      %1549 = vmatprep.subr.mxu0 0.0
      %1550 = vmatpush1.msra.mxu0 0.0
      %1551 = vmatprep.subr.mxu0 0.0
      %1552 = vmatpush1.msra.mxu0 0.0
      %1553 = vmatprep.subr.mxu0 0.0
      %1554 = vmatpush1.msra.mxu0 0.0
      %1555 = vmatprep.subr.mxu0 0.0
      %1556 = vmatpush1.msra.mxu0 0.0
      %1557 = vmatprep.subr.mxu0 0.0
      %1558 = vmatpush1.msra.mxu0 0.0
      %1559 = vmatprep.subr.mxu0 0.0
      %1560 = vmatpush1.msra.mxu0 0.0
      %1561 = vmatprep.subr.mxu0 0.0
      %1562 = vmatpush1.msra.mxu0 0.0
      %1563 = vmatprep.subr.mxu0 0.0
      %1564 = vmatpush1.msra.mxu0 0.0
      %1565 = vmatprep.subr.mxu0 0.0
      %1566 = vmatpush1.msra.mxu0 0.0
      %1567 = vmatprep.subr.mxu0 0.0
      %1568 = vmatpush1.msra.mxu0 0.0
      %1569 = vmatprep.subr.mxu0 0.0
      %1570 = vmatpush1.msra.mxu0 0.0
      %1571 = vmatprep.subr.mxu0 0.0
      %1572 = vmatpush1.msra.mxu0 0.0
      %1573 = vmatprep.mubr.f32.mxu0 0.0
      %1574 = vmatmul.mubr.f32.gmra.mrb[0].mxu0 %v1278
      %v1575 = vpop.f32.mrb[0].mxu0
      %v1576 = vadd.f32 0.0, %v1575
      %v1577 = vpop.f32.mrb[0].mxu0
      %1578 = vdwg.mxu0
      %v1579 = vadd.f32 %v1508, %v1576
      %v1580 = vxor.u32 %v1579, 2147483648
      %v1581 = vmul.f32 %v1580, 1.442695
      %v1582 = vpow.pop %v1581
      %v1583 = vadd.f32 %v1582, 1.0
      %v1584 = vrcp.pop %v1583
      %v1585 = vmul.f32 1.0, %v1584
      %v1586 = vmul.f32 %v1434, %v1272
      %v1587 = vmul.f32 %v1356, %v1507
      %v1588 = vadd.f32 %v1586, %v1587
      %v1589 = vtanh.pop %v1588
      %v1590 = vmul.f32 %v1585, %v1589
      %1591 = vst.msk [vmem:[%s254 + $0x4] sm:$0x3] %vm958, %v1590
      %v1592 = vld [vmem:[#allocation2 + $0x6] sm:$0x3]
      %v1594 = vsel %vm349, %v1590, 0
      %1596 = vmatprep.subr.mxu0 0.0
      %1597 = vmatpush1.msra.mxu0 %v619
      %1598 = vmatprep.subr.mxu0 0.0
      %1599 = vmatpush1.msra.mxu0 %v636
      %1600 = vmatprep.subr.mxu0 0.0
      %1601 = vmatpush1.msra.mxu0 0.0
      %1602 = vmatprep.subr.mxu0 0.0
      %1603 = vmatpush1.msra.mxu0 0.0
      %1604 = vmatprep.subr.mxu0 0.0
      %1605 = vmatpush1.msra.mxu0 0.0
      %1606 = vmatprep.subr.mxu0 0.0
      %1607 = vmatpush1.msra.mxu0 0.0
      %1608 = vmatprep.subr.mxu0 0.0
      %1609 = vmatpush1.msra.mxu0 0.0
      %1610 = vmatprep.subr.mxu0 0.0
      %1611 = vmatpush1.msra.mxu0 0.0
      %1612 = vmatprep.subr.mxu0 0.0
      %1613 = vmatpush1.msra.mxu0 0.0
      %1614 = vmatprep.subr.mxu0 0.0
      %1615 = vmatpush1.msra.mxu0 0.0
      %1616 = vmatprep.subr.mxu0 0.0
      %1617 = vmatpush1.msra.mxu0 0.0
      %1618 = vmatprep.subr.mxu0 0.0
      %1619 = vmatpush1.msra.mxu0 0.0
      %1620 = vmatprep.subr.mxu0 0.0
      %1621 = vmatpush1.msra.mxu0 0.0
      %1622 = vmatprep.subr.mxu0 0.0
      %1623 = vmatpush1.msra.mxu0 0.0
      %1624 = vmatprep.subr.mxu0 0.0
      %1625 = vmatpush1.msra.mxu0 0.0
      %1626 = vmatprep.subr.mxu0 0.0
      %1627 = vmatpush1.msra.mxu0 0.0
      %1628 = vmatprep.subr.mxu0 0.0
      %1629 = vmatpush1.msra.mxu0 0.0
      %1630 = vmatprep.subr.mxu0 0.0
      %1631 = vmatpush1.msra.mxu0 0.0
      %1632 = vmatprep.subr.mxu0 0.0
      %1633 = vmatpush1.msra.mxu0 0.0
      %1634 = vmatprep.subr.mxu0 0.0
      %1635 = vmatpush1.msra.mxu0 0.0
      %1636 = vmatprep.subr.mxu0 0.0
      %1637 = vmatpush1.msra.mxu0 0.0
      %1638 = vmatprep.subr.mxu0 0.0
      %1639 = vmatpush1.msra.mxu0 0.0
      %1640 = vmatprep.subr.mxu0 0.0
      %1641 = vmatpush1.msra.mxu0 0.0
      %1642 = vmatprep.subr.mxu0 0.0
      %1643 = vmatpush1.msra.mxu0 0.0
      %1644 = vmatprep.subr.mxu0 0.0
      %1645 = vmatpush1.msra.mxu0 0.0
      %1646 = vmatprep.subr.mxu0 0.0
      %1647 = vmatpush1.msra.mxu0 0.0
      %1648 = vmatprep.subr.mxu0 0.0
      %1649 = vmatpush1.msra.mxu0 0.0
      %1650 = vmatprep.subr.mxu0 0.0
      %1651 = vmatpush1.msra.mxu0 0.0
      %1652 = vmatprep.subr.mxu0 0.0
      %1653 = vmatpush1.msra.mxu0 0.0
      %1654 = vmatprep.subr.mxu0 0.0
      %1655 = vmatpush1.msra.mxu0 0.0
      %1656 = vmatprep.subr.mxu0 0.0
      %1657 = vmatpush1.msra.mxu0 0.0
      %1658 = vmatprep.subr.mxu0 0.0
      %1659 = vmatpush1.msra.mxu0 0.0
      %1660 = vmatprep.mubr.f32.mxu0 0.0
      %1661 = vmatmul.mubr.f32.gmra.mrb[0].mxu0 %v1594
      %v1662 = vpop.f32.mrb[0].mxu0
      %v1663 = vadd.f32 0.0, %v1662
      %v1664 = vpop.f32.mrb[0].mxu0
      %1665 = vdwg.mxu0
      %v1666 = vadd.f32 %v1592, %v1663
      %v1667 = vxor.u32 %v1666, 2147483648
      %v1668 = vmul.f32 %v1667, 1.442695
      %v1669 = vpow.pop %v1668
      %v1670 = vadd.f32 %v1669, 1.0
      %v1671 = vrcp.pop %v1670
      %v1672 = vmul.f32 1.0, %v1671
      %v1673 = vld [vmem:[#allocation2 + $0x16] sm:$0x3]
      %1674 = vmatprep.subr.mxu0 0.0
      %1675 = vmatpush1.msra.mxu0 %v622
      %1676 = vmatprep.subr.mxu0 0.0
      %1677 = vmatpush1.msra.mxu0 %v717
      %1678 = vmatprep.subr.mxu0 0.0
      %1679 = vmatpush1.msra.mxu0 0.0
      %1680 = vmatprep.subr.mxu0 0.0
      %1681 = vmatpush1.msra.mxu0 0.0
      %1682 = vmatprep.subr.mxu0 0.0
      %1683 = vmatpush1.msra.mxu0 0.0
      %1684 = vmatprep.subr.mxu0 0.0
      %1685 = vmatpush1.msra.mxu0 0.0
      %1686 = vmatprep.subr.mxu0 0.0
      %1687 = vmatpush1.msra.mxu0 0.0
      %1688 = vmatprep.subr.mxu0 0.0
      %1689 = vmatpush1.msra.mxu0 0.0
      %1690 = vmatprep.subr.mxu0 0.0
      %1691 = vmatpush1.msra.mxu0 0.0
      %1692 = vmatprep.subr.mxu0 0.0
      %1693 = vmatpush1.msra.mxu0 0.0
      %1694 = vmatprep.subr.mxu0 0.0
      %1695 = vmatpush1.msra.mxu0 0.0
      %1696 = vmatprep.subr.mxu0 0.0
      %1697 = vmatpush1.msra.mxu0 0.0
      %1698 = vmatprep.subr.mxu0 0.0
      %1699 = vmatpush1.msra.mxu0 0.0
      %1700 = vmatprep.subr.mxu0 0.0
      %1701 = vmatpush1.msra.mxu0 0.0
      %1702 = vmatprep.subr.mxu0 0.0
      %1703 = vmatpush1.msra.mxu0 0.0
      %1704 = vmatprep.subr.mxu0 0.0
      %1705 = vmatpush1.msra.mxu0 0.0
      %1706 = vmatprep.subr.mxu0 0.0
      %1707 = vmatpush1.msra.mxu0 0.0
      %1708 = vmatprep.subr.mxu0 0.0
      %1709 = vmatpush1.msra.mxu0 0.0
      %1710 = vmatprep.subr.mxu0 0.0
      %1711 = vmatpush1.msra.mxu0 0.0
      %1712 = vmatprep.subr.mxu0 0.0
      %1713 = vmatpush1.msra.mxu0 0.0
      %1714 = vmatprep.subr.mxu0 0.0
      %1715 = vmatpush1.msra.mxu0 0.0
      %1716 = vmatprep.subr.mxu0 0.0
      %1717 = vmatpush1.msra.mxu0 0.0
      %1718 = vmatprep.subr.mxu0 0.0
      %1719 = vmatpush1.msra.mxu0 0.0
      %1720 = vmatprep.subr.mxu0 0.0
      %1721 = vmatpush1.msra.mxu0 0.0
      %1722 = vmatprep.subr.mxu0 0.0
      %1723 = vmatpush1.msra.mxu0 0.0
      %1724 = vmatprep.subr.mxu0 0.0
      %1725 = vmatpush1.msra.mxu0 0.0
      %1726 = vmatprep.subr.mxu0 0.0
      %1727 = vmatpush1.msra.mxu0 0.0
      %1728 = vmatprep.subr.mxu0 0.0
      %1729 = vmatpush1.msra.mxu0 0.0
      %1730 = vmatprep.subr.mxu0 0.0
      %1731 = vmatpush1.msra.mxu0 0.0
      %1732 = vmatprep.subr.mxu0 0.0
      %1733 = vmatpush1.msra.mxu0 0.0
      %1734 = vmatprep.subr.mxu0 0.0
      %1735 = vmatpush1.msra.mxu0 0.0
      %1736 = vmatprep.subr.mxu0 0.0
      %1737 = vmatpush1.msra.mxu0 0.0
      %1738 = vmatprep.mubr.f32.mxu0 0.0
      %1739 = vmatmul.mubr.f32.gmra.mrb[0].mxu0 %v1594
      %v1740 = vpop.f32.mrb[0].mxu0
      %v1741 = vadd.f32 0.0, %v1740
      %v1742 = vpop.f32.mrb[0].mxu0
      %1743 = vdwg.mxu0
      %v1744 = vadd.f32 %v1673, %v1741
      %v1745 = vxor.u32 %v1744, 2147483648
      %v1746 = vmul.f32 %v1745, 1.442695
      %v1747 = vpow.pop %v1746
      %v1748 = vadd.f32 %v1747, 1.0
      %v1749 = vrcp.pop %v1748
      %v1750 = vmul.f32 1.0, %v1749
      %v1751 = vld [vmem:[#allocation2 + $0x26] sm:$0x3]
      %1752 = vmatprep.subr.mxu0 0.0
      %1753 = vmatpush1.msra.mxu0 %v625
      %1754 = vmatprep.subr.mxu0 0.0
      %1755 = vmatpush1.msra.mxu0 %v798
      %1756 = vmatprep.subr.mxu0 0.0
      %1757 = vmatpush1.msra.mxu0 0.0
      %1758 = vmatprep.subr.mxu0 0.0
      %1759 = vmatpush1.msra.mxu0 0.0
      %1760 = vmatprep.subr.mxu0 0.0
      %1761 = vmatpush1.msra.mxu0 0.0
      %1762 = vmatprep.subr.mxu0 0.0
      %1763 = vmatpush1.msra.mxu0 0.0
      %1764 = vmatprep.subr.mxu0 0.0
      %1765 = vmatpush1.msra.mxu0 0.0
      %1766 = vmatprep.subr.mxu0 0.0
      %1767 = vmatpush1.msra.mxu0 0.0
      %1768 = vmatprep.subr.mxu0 0.0
      %1769 = vmatpush1.msra.mxu0 0.0
      %1770 = vmatprep.subr.mxu0 0.0
      %1771 = vmatpush1.msra.mxu0 0.0
      %1772 = vmatprep.subr.mxu0 0.0
      %1773 = vmatpush1.msra.mxu0 0.0
      %1774 = vmatprep.subr.mxu0 0.0
      %1775 = vmatpush1.msra.mxu0 0.0
      %1776 = vmatprep.subr.mxu0 0.0
      %1777 = vmatpush1.msra.mxu0 0.0
      %1778 = vmatprep.subr.mxu0 0.0
      %1779 = vmatpush1.msra.mxu0 0.0
      %1780 = vmatprep.subr.mxu0 0.0
      %1781 = vmatpush1.msra.mxu0 0.0
      %1782 = vmatprep.subr.mxu0 0.0
      %1783 = vmatpush1.msra.mxu0 0.0
      %1784 = vmatprep.subr.mxu0 0.0
      %1785 = vmatpush1.msra.mxu0 0.0
      %1786 = vmatprep.subr.mxu0 0.0
      %1787 = vmatpush1.msra.mxu0 0.0
      %1788 = vmatprep.subr.mxu0 0.0
      %1789 = vmatpush1.msra.mxu0 0.0
      %1790 = vmatprep.subr.mxu0 0.0
      %1791 = vmatpush1.msra.mxu0 0.0
      %1792 = vmatprep.subr.mxu0 0.0
      %1793 = vmatpush1.msra.mxu0 0.0
      %1794 = vmatprep.subr.mxu0 0.0
      %1795 = vmatpush1.msra.mxu0 0.0
      %1796 = vmatprep.subr.mxu0 0.0
      %1797 = vmatpush1.msra.mxu0 0.0
      %1798 = vmatprep.subr.mxu0 0.0
      %1799 = vmatpush1.msra.mxu0 0.0
      %1800 = vmatprep.subr.mxu0 0.0
      %1801 = vmatpush1.msra.mxu0 0.0
      %1802 = vmatprep.subr.mxu0 0.0
      %1803 = vmatpush1.msra.mxu0 0.0
      %1804 = vmatprep.subr.mxu0 0.0
      %1805 = vmatpush1.msra.mxu0 0.0
      %1806 = vmatprep.subr.mxu0 0.0
      %1807 = vmatpush1.msra.mxu0 0.0
      %1808 = vmatprep.subr.mxu0 0.0
      %1809 = vmatpush1.msra.mxu0 0.0
      %1810 = vmatprep.subr.mxu0 0.0
      %1811 = vmatpush1.msra.mxu0 0.0
      %1812 = vmatprep.subr.mxu0 0.0
      %1813 = vmatpush1.msra.mxu0 0.0
      %1814 = vmatprep.subr.mxu0 0.0
      %1815 = vmatpush1.msra.mxu0 0.0
      %1816 = vmatprep.mubr.f32.mxu0 0.0
      %1817 = vmatmul.mubr.f32.gmra.mrb[0].mxu0 %v1594
      %v1818 = vpop.f32.mrb[0].mxu0
      %v1819 = vadd.f32 0.0, %v1818
      %v1820 = vpop.f32.mrb[0].mxu0
      %1821 = vdwg.mxu0
      %v1822 = vadd.f32 %v1751, %v1819
      %v1823 = vtanh.pop %v1822
      %v1824 = vld [vmem:[#allocation2 + $0x36] sm:$0x3]
      %1825 = vmatprep.subr.mxu0 0.0
      %1826 = vmatpush1.msra.mxu0 %v628
      %1827 = vmatprep.subr.mxu0 0.0
      %1828 = vmatpush1.msra.mxu0 %v874
      %1829 = vmatprep.subr.mxu0 0.0
      %1830 = vmatpush1.msra.mxu0 0.0
      %1831 = vmatprep.subr.mxu0 0.0
      %1832 = vmatpush1.msra.mxu0 0.0
      %1833 = vmatprep.subr.mxu0 0.0
      %1834 = vmatpush1.msra.mxu0 0.0
      %1835 = vmatprep.subr.mxu0 0.0
      %1836 = vmatpush1.msra.mxu0 0.0
      %1837 = vmatprep.subr.mxu0 0.0
      %1838 = vmatpush1.msra.mxu0 0.0
      %1839 = vmatprep.subr.mxu0 0.0
      %1840 = vmatpush1.msra.mxu0 0.0
      %1841 = vmatprep.subr.mxu0 0.0
      %1842 = vmatpush1.msra.mxu0 0.0
      %1843 = vmatprep.subr.mxu0 0.0
      %1844 = vmatpush1.msra.mxu0 0.0
      %1845 = vmatprep.subr.mxu0 0.0
      %1846 = vmatpush1.msra.mxu0 0.0
      %1847 = vmatprep.subr.mxu0 0.0
      %1848 = vmatpush1.msra.mxu0 0.0
      %1849 = vmatprep.subr.mxu0 0.0
      %1850 = vmatpush1.msra.mxu0 0.0
      %1851 = vmatprep.subr.mxu0 0.0
      %1852 = vmatpush1.msra.mxu0 0.0
      %1853 = vmatprep.subr.mxu0 0.0
      %1854 = vmatpush1.msra.mxu0 0.0
      %1855 = vmatprep.subr.mxu0 0.0
      %1856 = vmatpush1.msra.mxu0 0.0
      %1857 = vmatprep.subr.mxu0 0.0
      %1858 = vmatpush1.msra.mxu0 0.0
      %1859 = vmatprep.subr.mxu0 0.0
      %1860 = vmatpush1.msra.mxu0 0.0
      %1861 = vmatprep.subr.mxu0 0.0
      %1862 = vmatpush1.msra.mxu0 0.0
      %1863 = vmatprep.subr.mxu0 0.0
      %1864 = vmatpush1.msra.mxu0 0.0
      %1865 = vmatprep.subr.mxu0 0.0
      %1866 = vmatpush1.msra.mxu0 0.0
      %1867 = vmatprep.subr.mxu0 0.0
      %1868 = vmatpush1.msra.mxu0 0.0
      %1869 = vmatprep.subr.mxu0 0.0
      %1870 = vmatpush1.msra.mxu0 0.0
      %1871 = vmatprep.subr.mxu0 0.0
      %1872 = vmatpush1.msra.mxu0 0.0
      %1873 = vmatprep.subr.mxu0 0.0
      %1874 = vmatpush1.msra.mxu0 0.0
      %1875 = vmatprep.subr.mxu0 0.0
      %1876 = vmatpush1.msra.mxu0 0.0
      %1877 = vmatprep.subr.mxu0 0.0
      %1878 = vmatpush1.msra.mxu0 0.0
      %1879 = vmatprep.subr.mxu0 0.0
      %1880 = vmatpush1.msra.mxu0 0.0
      %1881 = vmatprep.subr.mxu0 0.0
      %1882 = vmatpush1.msra.mxu0 0.0
      %1883 = vmatprep.subr.mxu0 0.0
      %1884 = vmatpush1.msra.mxu0 0.0
      %1885 = vmatprep.subr.mxu0 0.0
      %1886 = vmatpush1.msra.mxu0 0.0
      %1887 = vmatprep.subr.mxu0 0.0
      %1888 = vmatpush1.msra.mxu0 0.0
      %1889 = vmatprep.mubr.f32.mxu0 0.0
      %1890 = vmatmul.mubr.f32.gmra.mrb[0].mxu0 %v1594
      %v1891 = vpop.f32.mrb[0].mxu0
      %v1892 = vadd.f32 0.0, %v1891
      %v1893 = vpop.f32.mrb[0].mxu0
      %1894 = vdwg.mxu0
      %v1895 = vadd.f32 %v1824, %v1892
      %v1896 = vxor.u32 %v1895, 2147483648
      %v1897 = vmul.f32 %v1896, 1.442695
      %v1898 = vpow.pop %v1897
      %v1899 = vadd.f32 %v1898, 1.0
      %v1900 = vrcp.pop %v1899
      %v1901 = vmul.f32 1.0, %v1900
      %v1902 = vmul.f32 %v1750, %v1588
      %v1903 = vmul.f32 %v1672, %v1823
      %v1904 = vadd.f32 %v1902, %v1903
      %v1905 = vtanh.pop %v1904
      %v1906 = vmul.f32 %v1901, %v1905
      %1907 = vst.msk [vmem:[%s254 + $0x6] sm:$0x3] %vm958, %v1906
      %v1908 = vld [vmem:[#allocation2 + $0x8] sm:$0x3]
      %v1910 = vsel %vm349, %v1906, 0
      %1912 = vmatprep.subr.mxu0 0.0
      %1913 = vmatpush1.msra.mxu0 %v619
      %1914 = vmatprep.subr.mxu0 0.0
      %1915 = vmatpush1.msra.mxu0 %v636
      %1916 = vmatprep.subr.mxu0 0.0
      %1917 = vmatpush1.msra.mxu0 0.0
      %1918 = vmatprep.subr.mxu0 0.0
      %1919 = vmatpush1.msra.mxu0 0.0
      %1920 = vmatprep.subr.mxu0 0.0
      %1921 = vmatpush1.msra.mxu0 0.0
      %1922 = vmatprep.subr.mxu0 0.0
      %1923 = vmatpush1.msra.mxu0 0.0
      %1924 = vmatprep.subr.mxu0 0.0
      %1925 = vmatpush1.msra.mxu0 0.0
      %1926 = vmatprep.subr.mxu0 0.0
      %1927 = vmatpush1.msra.mxu0 0.0
      %1928 = vmatprep.subr.mxu0 0.0
      %1929 = vmatpush1.msra.mxu0 0.0
      %1930 = vmatprep.subr.mxu0 0.0
      %1931 = vmatpush1.msra.mxu0 0.0
      %1932 = vmatprep.subr.mxu0 0.0
      %1933 = vmatpush1.msra.mxu0 0.0
      %1934 = vmatprep.subr.mxu0 0.0
      %1935 = vmatpush1.msra.mxu0 0.0
      %1936 = vmatprep.subr.mxu0 0.0
      %1937 = vmatpush1.msra.mxu0 0.0
      %1938 = vmatprep.subr.mxu0 0.0
      %1939 = vmatpush1.msra.mxu0 0.0
      %1940 = vmatprep.subr.mxu0 0.0
      %1941 = vmatpush1.msra.mxu0 0.0
      %1942 = vmatprep.subr.mxu0 0.0
      %1943 = vmatpush1.msra.mxu0 0.0
      %1944 = vmatprep.subr.mxu0 0.0
      %1945 = vmatpush1.msra.mxu0 0.0
      %1946 = vmatprep.subr.mxu0 0.0
      %1947 = vmatpush1.msra.mxu0 0.0
      %1948 = vmatprep.subr.mxu0 0.0
      %1949 = vmatpush1.msra.mxu0 0.0
      %1950 = vmatprep.subr.mxu0 0.0
      %1951 = vmatpush1.msra.mxu0 0.0
      %1952 = vmatprep.subr.mxu0 0.0
      %1953 = vmatpush1.msra.mxu0 0.0
      %1954 = vmatprep.subr.mxu0 0.0
      %1955 = vmatpush1.msra.mxu0 0.0
      %1956 = vmatprep.subr.mxu0 0.0
      %1957 = vmatpush1.msra.mxu0 0.0
      %1958 = vmatprep.subr.mxu0 0.0
      %1959 = vmatpush1.msra.mxu0 0.0
      %1960 = vmatprep.subr.mxu0 0.0
      %1961 = vmatpush1.msra.mxu0 0.0
      %1962 = vmatprep.subr.mxu0 0.0
      %1963 = vmatpush1.msra.mxu0 0.0
      %1964 = vmatprep.subr.mxu0 0.0
      %1965 = vmatpush1.msra.mxu0 0.0
      %1966 = vmatprep.subr.mxu0 0.0
      %1967 = vmatpush1.msra.mxu0 0.0
      %1968 = vmatprep.subr.mxu0 0.0
      %1969 = vmatpush1.msra.mxu0 0.0
      %1970 = vmatprep.subr.mxu0 0.0
      %1971 = vmatpush1.msra.mxu0 0.0
      %1972 = vmatprep.subr.mxu0 0.0
      %1973 = vmatpush1.msra.mxu0 0.0
      %1974 = vmatprep.subr.mxu0 0.0
      %1975 = vmatpush1.msra.mxu0 0.0
      %1976 = vmatprep.mubr.f32.mxu0 0.0
      %1977 = vmatmul.mubr.f32.gmra.mrb[0].mxu0 %v1910
      %v1978 = vpop.f32.mrb[0].mxu0
      %v1979 = vadd.f32 0.0, %v1978
      %v1980 = vpop.f32.mrb[0].mxu0
      %1981 = vdwg.mxu0
      %v1982 = vadd.f32 %v1908, %v1979
      %v1983 = vxor.u32 %v1982, 2147483648
      %v1984 = vmul.f32 %v1983, 1.442695
      %v1985 = vpow.pop %v1984
      %v1986 = vadd.f32 %v1985, 1.0
      %v1987 = vrcp.pop %v1986
      %v1988 = vmul.f32 1.0, %v1987
      %v1989 = vld [vmem:[#allocation2 + $0x18] sm:$0x3]
      %1990 = vmatprep.subr.mxu0 0.0
      %1991 = vmatpush1.msra.mxu0 %v622
      %1992 = vmatprep.subr.mxu0 0.0
      %1993 = vmatpush1.msra.mxu0 %v717
      %1994 = vmatprep.subr.mxu0 0.0
      %1995 = vmatpush1.msra.mxu0 0.0
      %1996 = vmatprep.subr.mxu0 0.0
      %1997 = vmatpush1.msra.mxu0 0.0
      %1998 = vmatprep.subr.mxu0 0.0
      %1999 = vmatpush1.msra.mxu0 0.0
      %2000 = vmatprep.subr.mxu0 0.0
      %2001 = vmatpush1.msra.mxu0 0.0
      %2002 = vmatprep.subr.mxu0 0.0
      %2003 = vmatpush1.msra.mxu0 0.0
      %2004 = vmatprep.subr.mxu0 0.0
      %2005 = vmatpush1.msra.mxu0 0.0
      %2006 = vmatprep.subr.mxu0 0.0
      %2007 = vmatpush1.msra.mxu0 0.0
      %2008 = vmatprep.subr.mxu0 0.0
      %2009 = vmatpush1.msra.mxu0 0.0
      %2010 = vmatprep.subr.mxu0 0.0
      %2011 = vmatpush1.msra.mxu0 0.0
      %2012 = vmatprep.subr.mxu0 0.0
      %2013 = vmatpush1.msra.mxu0 0.0
      %2014 = vmatprep.subr.mxu0 0.0
      %2015 = vmatpush1.msra.mxu0 0.0
      %2016 = vmatprep.subr.mxu0 0.0
      %2017 = vmatpush1.msra.mxu0 0.0
      %2018 = vmatprep.subr.mxu0 0.0
      %2019 = vmatpush1.msra.mxu0 0.0
      %2020 = vmatprep.subr.mxu0 0.0
      %2021 = vmatpush1.msra.mxu0 0.0
      %2022 = vmatprep.subr.mxu0 0.0
      %2023 = vmatpush1.msra.mxu0 0.0
      %2024 = vmatprep.subr.mxu0 0.0
      %2025 = vmatpush1.msra.mxu0 0.0
      %2026 = vmatprep.subr.mxu0 0.0
      %2027 = vmatpush1.msra.mxu0 0.0
      %2028 = vmatprep.subr.mxu0 0.0
      %2029 = vmatpush1.msra.mxu0 0.0
      %2030 = vmatprep.subr.mxu0 0.0
      %2031 = vmatpush1.msra.mxu0 0.0
      %2032 = vmatprep.subr.mxu0 0.0
      %2033 = vmatpush1.msra.mxu0 0.0
      %2034 = vmatprep.subr.mxu0 0.0
      %2035 = vmatpush1.msra.mxu0 0.0
      %2036 = vmatprep.subr.mxu0 0.0
      %2037 = vmatpush1.msra.mxu0 0.0
      %2038 = vmatprep.subr.mxu0 0.0
      %2039 = vmatpush1.msra.mxu0 0.0
      %2040 = vmatprep.subr.mxu0 0.0
      %2041 = vmatpush1.msra.mxu0 0.0
      %2042 = vmatprep.subr.mxu0 0.0
      %2043 = vmatpush1.msra.mxu0 0.0
      %2044 = vmatprep.subr.mxu0 0.0
      %2045 = vmatpush1.msra.mxu0 0.0
      %2046 = vmatprep.subr.mxu0 0.0
      %2047 = vmatpush1.msra.mxu0 0.0
      %2048 = vmatprep.subr.mxu0 0.0
      %2049 = vmatpush1.msra.mxu0 0.0
      %2050 = vmatprep.subr.mxu0 0.0
      %2051 = vmatpush1.msra.mxu0 0.0
      %2052 = vmatprep.subr.mxu0 0.0
      %2053 = vmatpush1.msra.mxu0 0.0
      %2054 = vmatprep.mubr.f32.mxu0 0.0
      %2055 = vmatmul.mubr.f32.gmra.mrb[0].mxu0 %v1910
      %v2056 = vpop.f32.mrb[0].mxu0
      %v2057 = vadd.f32 0.0, %v2056
      %v2058 = vpop.f32.mrb[0].mxu0
      %2059 = vdwg.mxu0
      %v2060 = vadd.f32 %v1989, %v2057
      %v2061 = vxor.u32 %v2060, 2147483648
      %v2062 = vmul.f32 %v2061, 1.442695
      %v2063 = vpow.pop %v2062
      %v2064 = vadd.f32 %v2063, 1.0
      %v2065 = vrcp.pop %v2064
      %v2066 = vmul.f32 1.0, %v2065
      %v2067 = vld [vmem:[#allocation2 + $0x28] sm:$0x3]
      %2068 = vmatprep.subr.mxu0 0.0
      %2069 = vmatpush1.msra.mxu0 %v625
      %2070 = vmatprep.subr.mxu0 0.0
      %2071 = vmatpush1.msra.mxu0 %v798
      %2072 = vmatprep.subr.mxu0 0.0
      %2073 = vmatpush1.msra.mxu0 0.0
      %2074 = vmatprep.subr.mxu0 0.0
      %2075 = vmatpush1.msra.mxu0 0.0
      %2076 = vmatprep.subr.mxu0 0.0
      %2077 = vmatpush1.msra.mxu0 0.0
      %2078 = vmatprep.subr.mxu0 0.0
      %2079 = vmatpush1.msra.mxu0 0.0
      %2080 = vmatprep.subr.mxu0 0.0
      %2081 = vmatpush1.msra.mxu0 0.0
      %2082 = vmatprep.subr.mxu0 0.0
      %2083 = vmatpush1.msra.mxu0 0.0
      %2084 = vmatprep.subr.mxu0 0.0
      %2085 = vmatpush1.msra.mxu0 0.0
      %2086 = vmatprep.subr.mxu0 0.0
      %2087 = vmatpush1.msra.mxu0 0.0
      %2088 = vmatprep.subr.mxu0 0.0
      %2089 = vmatpush1.msra.mxu0 0.0
      %2090 = vmatprep.subr.mxu0 0.0
      %2091 = vmatpush1.msra.mxu0 0.0
      %2092 = vmatprep.subr.mxu0 0.0
      %2093 = vmatpush1.msra.mxu0 0.0
      %2094 = vmatprep.subr.mxu0 0.0
      %2095 = vmatpush1.msra.mxu0 0.0
      %2096 = vmatprep.subr.mxu0 0.0
      %2097 = vmatpush1.msra.mxu0 0.0
      %2098 = vmatprep.subr.mxu0 0.0
      %2099 = vmatpush1.msra.mxu0 0.0
      %2100 = vmatprep.subr.mxu0 0.0
      %2101 = vmatpush1.msra.mxu0 0.0
      %2102 = vmatprep.subr.mxu0 0.0
      %2103 = vmatpush1.msra.mxu0 0.0
      %2104 = vmatprep.subr.mxu0 0.0
      %2105 = vmatpush1.msra.mxu0 0.0
      %2106 = vmatprep.subr.mxu0 0.0
      %2107 = vmatpush1.msra.mxu0 0.0
      %2108 = vmatprep.subr.mxu0 0.0
      %2109 = vmatpush1.msra.mxu0 0.0
      %2110 = vmatprep.subr.mxu0 0.0
      %2111 = vmatpush1.msra.mxu0 0.0
      %2112 = vmatprep.subr.mxu0 0.0
      %2113 = vmatpush1.msra.mxu0 0.0
      %2114 = vmatprep.subr.mxu0 0.0
      %2115 = vmatpush1.msra.mxu0 0.0
      %2116 = vmatprep.subr.mxu0 0.0
      %2117 = vmatpush1.msra.mxu0 0.0
      %2118 = vmatprep.subr.mxu0 0.0
      %2119 = vmatpush1.msra.mxu0 0.0
      %2120 = vmatprep.subr.mxu0 0.0
      %2121 = vmatpush1.msra.mxu0 0.0
      %2122 = vmatprep.subr.mxu0 0.0
      %2123 = vmatpush1.msra.mxu0 0.0
      %2124 = vmatprep.subr.mxu0 0.0
      %2125 = vmatpush1.msra.mxu0 0.0
      %2126 = vmatprep.subr.mxu0 0.0
      %2127 = vmatpush1.msra.mxu0 0.0
      %2128 = vmatprep.subr.mxu0 0.0
      %2129 = vmatpush1.msra.mxu0 0.0
      %2130 = vmatprep.subr.mxu0 0.0
      %2131 = vmatpush1.msra.mxu0 0.0
      %2132 = vmatprep.mubr.f32.mxu0 0.0
      %2133 = vmatmul.mubr.f32.gmra.mrb[0].mxu0 %v1910
      %v2134 = vpop.f32.mrb[0].mxu0
      %v2135 = vadd.f32 0.0, %v2134
      %v2136 = vpop.f32.mrb[0].mxu0
      %2137 = vdwg.mxu0
      %v2138 = vadd.f32 %v2067, %v2135
      %v2139 = vtanh.pop %v2138
      %v2140 = vld [vmem:[#allocation2 + $0x38] sm:$0x3]
      %2141 = vmatprep.subr.mxu0 0.0
      %2142 = vmatpush1.msra.mxu0 %v628
      %2143 = vmatprep.subr.mxu0 0.0
      %2144 = vmatpush1.msra.mxu0 %v874
      %2145 = vmatprep.subr.mxu0 0.0
      %2146 = vmatpush1.msra.mxu0 0.0
      %2147 = vmatprep.subr.mxu0 0.0
      %2148 = vmatpush1.msra.mxu0 0.0
      %2149 = vmatprep.subr.mxu0 0.0
      %2150 = vmatpush1.msra.mxu0 0.0
      %2151 = vmatprep.subr.mxu0 0.0
      %2152 = vmatpush1.msra.mxu0 0.0
      %2153 = vmatprep.subr.mxu0 0.0
      %2154 = vmatpush1.msra.mxu0 0.0
      %2155 = vmatprep.subr.mxu0 0.0
      %2156 = vmatpush1.msra.mxu0 0.0
      %2157 = vmatprep.subr.mxu0 0.0
      %2158 = vmatpush1.msra.mxu0 0.0
      %2159 = vmatprep.subr.mxu0 0.0
      %2160 = vmatpush1.msra.mxu0 0.0
      %2161 = vmatprep.subr.mxu0 0.0
      %2162 = vmatpush1.msra.mxu0 0.0
      %2163 = vmatprep.subr.mxu0 0.0
      %2164 = vmatpush1.msra.mxu0 0.0
      %2165 = vmatprep.subr.mxu0 0.0
      %2166 = vmatpush1.msra.mxu0 0.0
      %2167 = vmatprep.subr.mxu0 0.0
      %2168 = vmatpush1.msra.mxu0 0.0
      %2169 = vmatprep.subr.mxu0 0.0
      %2170 = vmatpush1.msra.mxu0 0.0
      %2171 = vmatprep.subr.mxu0 0.0
      %2172 = vmatpush1.msra.mxu0 0.0
      %2173 = vmatprep.subr.mxu0 0.0
      %2174 = vmatpush1.msra.mxu0 0.0
      %2175 = vmatprep.subr.mxu0 0.0
      %2176 = vmatpush1.msra.mxu0 0.0
      %2177 = vmatprep.subr.mxu0 0.0
      %2178 = vmatpush1.msra.mxu0 0.0
      %2179 = vmatprep.subr.mxu0 0.0
      %2180 = vmatpush1.msra.mxu0 0.0
      %2181 = vmatprep.subr.mxu0 0.0
      %2182 = vmatpush1.msra.mxu0 0.0
      %2183 = vmatprep.subr.mxu0 0.0
      %2184 = vmatpush1.msra.mxu0 0.0
      %2185 = vmatprep.subr.mxu0 0.0
      %2186 = vmatpush1.msra.mxu0 0.0
      %2187 = vmatprep.subr.mxu0 0.0
      %2188 = vmatpush1.msra.mxu0 0.0
      %2189 = vmatprep.subr.mxu0 0.0
      %2190 = vmatpush1.msra.mxu0 0.0
      %2191 = vmatprep.subr.mxu0 0.0
      %2192 = vmatpush1.msra.mxu0 0.0
      %2193 = vmatprep.subr.mxu0 0.0
      %2194 = vmatpush1.msra.mxu0 0.0
      %2195 = vmatprep.subr.mxu0 0.0
      %2196 = vmatpush1.msra.mxu0 0.0
      %2197 = vmatprep.subr.mxu0 0.0
      %2198 = vmatpush1.msra.mxu0 0.0
      %2199 = vmatprep.subr.mxu0 0.0
      %2200 = vmatpush1.msra.mxu0 0.0
      %2201 = vmatprep.subr.mxu0 0.0
      %2202 = vmatpush1.msra.mxu0 0.0
      %2203 = vmatprep.subr.mxu0 0.0
      %2204 = vmatpush1.msra.mxu0 0.0
      %2205 = vmatprep.mubr.f32.mxu0 0.0
      %2206 = vmatmul.mubr.f32.gmra.mrb[0].mxu0 %v1910
      %v2207 = vpop.f32.mrb[0].mxu0
      %v2208 = vadd.f32 0.0, %v2207
      %v2209 = vpop.f32.mrb[0].mxu0
      %2210 = vdwg.mxu0
      %v2211 = vadd.f32 %v2140, %v2208
      %v2212 = vxor.u32 %v2211, 2147483648
      %v2213 = vmul.f32 %v2212, 1.442695
      %v2214 = vpow.pop %v2213
      %v2215 = vadd.f32 %v2214, 1.0
      %v2216 = vrcp.pop %v2215
      %v2217 = vmul.f32 1.0, %v2216
      %v2218 = vmul.f32 %v2066, %v1904
      %v2219 = vmul.f32 %v1988, %v2139
      %v2220 = vadd.f32 %v2218, %v2219
      %v2221 = vtanh.pop %v2220
      %v2222 = vmul.f32 %v2217, %v2221
      %2223 = vst.msk [vmem:[%s254 + $0x8] sm:$0x3] %vm958, %v2222
      %v2224 = vld [vmem:[#allocation2 + $0xa] sm:$0x3]
      %v2226 = vsel %vm349, %v2222, 0
      %2228 = vmatprep.subr.mxu0 0.0
      %2229 = vmatpush1.msra.mxu0 %v619
      %2230 = vmatprep.subr.mxu0 0.0
      %2231 = vmatpush1.msra.mxu0 %v636
      %2232 = vmatprep.subr.mxu0 0.0
      %2233 = vmatpush1.msra.mxu0 0.0
      %2234 = vmatprep.subr.mxu0 0.0
      %2235 = vmatpush1.msra.mxu0 0.0
      %2236 = vmatprep.subr.mxu0 0.0
      %2237 = vmatpush1.msra.mxu0 0.0
      %2238 = vmatprep.subr.mxu0 0.0
      %2239 = vmatpush1.msra.mxu0 0.0
      %2240 = vmatprep.subr.mxu0 0.0
      %2241 = vmatpush1.msra.mxu0 0.0
      %2242 = vmatprep.subr.mxu0 0.0
      %2243 = vmatpush1.msra.mxu0 0.0
      %2244 = vmatprep.subr.mxu0 0.0
      %2245 = vmatpush1.msra.mxu0 0.0
      %2246 = vmatprep.subr.mxu0 0.0
      %2247 = vmatpush1.msra.mxu0 0.0
      %2248 = vmatprep.subr.mxu0 0.0
      %2249 = vmatpush1.msra.mxu0 0.0
      %2250 = vmatprep.subr.mxu0 0.0
      %2251 = vmatpush1.msra.mxu0 0.0
      %2252 = vmatprep.subr.mxu0 0.0
      %2253 = vmatpush1.msra.mxu0 0.0
      %2254 = vmatprep.subr.mxu0 0.0
      %2255 = vmatpush1.msra.mxu0 0.0
      %2256 = vmatprep.subr.mxu0 0.0
      %2257 = vmatpush1.msra.mxu0 0.0
      %2258 = vmatprep.subr.mxu0 0.0
      %2259 = vmatpush1.msra.mxu0 0.0
      %2260 = vmatprep.subr.mxu0 0.0
      %2261 = vmatpush1.msra.mxu0 0.0
      %2262 = vmatprep.subr.mxu0 0.0
      %2263 = vmatpush1.msra.mxu0 0.0
      %2264 = vmatprep.subr.mxu0 0.0
      %2265 = vmatpush1.msra.mxu0 0.0
      %2266 = vmatprep.subr.mxu0 0.0
      %2267 = vmatpush1.msra.mxu0 0.0
      %2268 = vmatprep.subr.mxu0 0.0
      %2269 = vmatpush1.msra.mxu0 0.0
      %2270 = vmatprep.subr.mxu0 0.0
      %2271 = vmatpush1.msra.mxu0 0.0
      %2272 = vmatprep.subr.mxu0 0.0
      %2273 = vmatpush1.msra.mxu0 0.0
      %2274 = vmatprep.subr.mxu0 0.0
      %2275 = vmatpush1.msra.mxu0 0.0
      %2276 = vmatprep.subr.mxu0 0.0
      %2277 = vmatpush1.msra.mxu0 0.0
      %2278 = vmatprep.subr.mxu0 0.0
      %2279 = vmatpush1.msra.mxu0 0.0
      %2280 = vmatprep.subr.mxu0 0.0
      %2281 = vmatpush1.msra.mxu0 0.0
      %2282 = vmatprep.subr.mxu0 0.0
      %2283 = vmatpush1.msra.mxu0 0.0
      %2284 = vmatprep.subr.mxu0 0.0
      %2285 = vmatpush1.msra.mxu0 0.0
      %2286 = vmatprep.subr.mxu0 0.0
      %2287 = vmatpush1.msra.mxu0 0.0
      %2288 = vmatprep.subr.mxu0 0.0
      %2289 = vmatpush1.msra.mxu0 0.0
      %2290 = vmatprep.subr.mxu0 0.0
      %2291 = vmatpush1.msra.mxu0 0.0
      %2292 = vmatprep.mubr.f32.mxu0 0.0
      %2293 = vmatmul.mubr.f32.gmra.mrb[0].mxu0 %v2226
      %v2294 = vpop.f32.mrb[0].mxu0
      %v2295 = vadd.f32 0.0, %v2294
      %v2296 = vpop.f32.mrb[0].mxu0
      %2297 = vdwg.mxu0
      %v2298 = vadd.f32 %v2224, %v2295
      %v2299 = vxor.u32 %v2298, 2147483648
      %v2300 = vmul.f32 %v2299, 1.442695
      %v2301 = vpow.pop %v2300
      %v2302 = vadd.f32 %v2301, 1.0
      %v2303 = vrcp.pop %v2302
      %v2304 = vmul.f32 1.0, %v2303
      %v2305 = vld [vmem:[#allocation2 + $0x1a] sm:$0x3]
      %2306 = vmatprep.subr.mxu0 0.0
      %2307 = vmatpush1.msra.mxu0 %v622
      %2308 = vmatprep.subr.mxu0 0.0
      %2309 = vmatpush1.msra.mxu0 %v717
      %2310 = vmatprep.subr.mxu0 0.0
      %2311 = vmatpush1.msra.mxu0 0.0
      %2312 = vmatprep.subr.mxu0 0.0
      %2313 = vmatpush1.msra.mxu0 0.0
      %2314 = vmatprep.subr.mxu0 0.0
      %2315 = vmatpush1.msra.mxu0 0.0
      %2316 = vmatprep.subr.mxu0 0.0
      %2317 = vmatpush1.msra.mxu0 0.0
      %2318 = vmatprep.subr.mxu0 0.0
      %2319 = vmatpush1.msra.mxu0 0.0
      %2320 = vmatprep.subr.mxu0 0.0
      %2321 = vmatpush1.msra.mxu0 0.0
      %2322 = vmatprep.subr.mxu0 0.0
      %2323 = vmatpush1.msra.mxu0 0.0
      %2324 = vmatprep.subr.mxu0 0.0
      %2325 = vmatpush1.msra.mxu0 0.0
      %2326 = vmatprep.subr.mxu0 0.0
      %2327 = vmatpush1.msra.mxu0 0.0
      %2328 = vmatprep.subr.mxu0 0.0
      %2329 = vmatpush1.msra.mxu0 0.0
      %2330 = vmatprep.subr.mxu0 0.0
      %2331 = vmatpush1.msra.mxu0 0.0
      %2332 = vmatprep.subr.mxu0 0.0
      %2333 = vmatpush1.msra.mxu0 0.0
      %2334 = vmatprep.subr.mxu0 0.0
      %2335 = vmatpush1.msra.mxu0 0.0
      %2336 = vmatprep.subr.mxu0 0.0
      %2337 = vmatpush1.msra.mxu0 0.0
      %2338 = vmatprep.subr.mxu0 0.0
      %2339 = vmatpush1.msra.mxu0 0.0
      %2340 = vmatprep.subr.mxu0 0.0
      %2341 = vmatpush1.msra.mxu0 0.0
      %2342 = vmatprep.subr.mxu0 0.0
      %2343 = vmatpush1.msra.mxu0 0.0
      %2344 = vmatprep.subr.mxu0 0.0
      %2345 = vmatpush1.msra.mxu0 0.0
      %2346 = vmatprep.subr.mxu0 0.0
      %2347 = vmatpush1.msra.mxu0 0.0
      %2348 = vmatprep.subr.mxu0 0.0
      %2349 = vmatpush1.msra.mxu0 0.0
      %2350 = vmatprep.subr.mxu0 0.0
      %2351 = vmatpush1.msra.mxu0 0.0
      %2352 = vmatprep.subr.mxu0 0.0
      %2353 = vmatpush1.msra.mxu0 0.0
      %2354 = vmatprep.subr.mxu0 0.0
      %2355 = vmatpush1.msra.mxu0 0.0
      %2356 = vmatprep.subr.mxu0 0.0
      %2357 = vmatpush1.msra.mxu0 0.0
      %2358 = vmatprep.subr.mxu0 0.0
      %2359 = vmatpush1.msra.mxu0 0.0
      %2360 = vmatprep.subr.mxu0 0.0
      %2361 = vmatpush1.msra.mxu0 0.0
      %2362 = vmatprep.subr.mxu0 0.0
      %2363 = vmatpush1.msra.mxu0 0.0
      %2364 = vmatprep.subr.mxu0 0.0
      %2365 = vmatpush1.msra.mxu0 0.0
      %2366 = vmatprep.subr.mxu0 0.0
      %2367 = vmatpush1.msra.mxu0 0.0
      %2368 = vmatprep.subr.mxu0 0.0
      %2369 = vmatpush1.msra.mxu0 0.0
      %2370 = vmatprep.mubr.f32.mxu0 0.0
      %2371 = vmatmul.mubr.f32.gmra.mrb[0].mxu0 %v2226
      %v2372 = vpop.f32.mrb[0].mxu0
      %v2373 = vadd.f32 0.0, %v2372
      %v2374 = vpop.f32.mrb[0].mxu0
      %2375 = vdwg.mxu0
      %v2376 = vadd.f32 %v2305, %v2373
      %v2377 = vxor.u32 %v2376, 2147483648
      %v2378 = vmul.f32 %v2377, 1.442695
      %v2379 = vpow.pop %v2378
      %v2380 = vadd.f32 %v2379, 1.0
      %v2381 = vrcp.pop %v2380
      %v2382 = vmul.f32 1.0, %v2381
      %v2383 = vld [vmem:[#allocation2 + $0x2a] sm:$0x3]
      %2384 = vmatprep.subr.mxu0 0.0
      %2385 = vmatpush1.msra.mxu0 %v625
      %2386 = vmatprep.subr.mxu0 0.0
      %2387 = vmatpush1.msra.mxu0 %v798
      %2388 = vmatprep.subr.mxu0 0.0
      %2389 = vmatpush1.msra.mxu0 0.0
      %2390 = vmatprep.subr.mxu0 0.0
      %2391 = vmatpush1.msra.mxu0 0.0
      %2392 = vmatprep.subr.mxu0 0.0
      %2393 = vmatpush1.msra.mxu0 0.0
      %2394 = vmatprep.subr.mxu0 0.0
      %2395 = vmatpush1.msra.mxu0 0.0
      %2396 = vmatprep.subr.mxu0 0.0
      %2397 = vmatpush1.msra.mxu0 0.0
      %2398 = vmatprep.subr.mxu0 0.0
      %2399 = vmatpush1.msra.mxu0 0.0
      %2400 = vmatprep.subr.mxu0 0.0
      %2401 = vmatpush1.msra.mxu0 0.0
      %2402 = vmatprep.subr.mxu0 0.0
      %2403 = vmatpush1.msra.mxu0 0.0
      %2404 = vmatprep.subr.mxu0 0.0
      %2405 = vmatpush1.msra.mxu0 0.0
      %2406 = vmatprep.subr.mxu0 0.0
      %2407 = vmatpush1.msra.mxu0 0.0
      %2408 = vmatprep.subr.mxu0 0.0
      %2409 = vmatpush1.msra.mxu0 0.0
      %2410 = vmatprep.subr.mxu0 0.0
      %2411 = vmatpush1.msra.mxu0 0.0
      %2412 = vmatprep.subr.mxu0 0.0
      %2413 = vmatpush1.msra.mxu0 0.0
      %2414 = vmatprep.subr.mxu0 0.0
      %2415 = vmatpush1.msra.mxu0 0.0
      %2416 = vmatprep.subr.mxu0 0.0
      %2417 = vmatpush1.msra.mxu0 0.0
      %2418 = vmatprep.subr.mxu0 0.0
      %2419 = vmatpush1.msra.mxu0 0.0
      %2420 = vmatprep.subr.mxu0 0.0
      %2421 = vmatpush1.msra.mxu0 0.0
      %2422 = vmatprep.subr.mxu0 0.0
      %2423 = vmatpush1.msra.mxu0 0.0
      %2424 = vmatprep.subr.mxu0 0.0
      %2425 = vmatpush1.msra.mxu0 0.0
      %2426 = vmatprep.subr.mxu0 0.0
      %2427 = vmatpush1.msra.mxu0 0.0
      %2428 = vmatprep.subr.mxu0 0.0
      %2429 = vmatpush1.msra.mxu0 0.0
      %2430 = vmatprep.subr.mxu0 0.0
      %2431 = vmatpush1.msra.mxu0 0.0
      %2432 = vmatprep.subr.mxu0 0.0
      %2433 = vmatpush1.msra.mxu0 0.0
      %2434 = vmatprep.subr.mxu0 0.0
      %2435 = vmatpush1.msra.mxu0 0.0
      %2436 = vmatprep.subr.mxu0 0.0
      %2437 = vmatpush1.msra.mxu0 0.0
      %2438 = vmatprep.subr.mxu0 0.0
      %2439 = vmatpush1.msra.mxu0 0.0
      %2440 = vmatprep.subr.mxu0 0.0
      %2441 = vmatpush1.msra.mxu0 0.0
      %2442 = vmatprep.subr.mxu0 0.0
      %2443 = vmatpush1.msra.mxu0 0.0
      %2444 = vmatprep.subr.mxu0 0.0
      %2445 = vmatpush1.msra.mxu0 0.0
      %2446 = vmatprep.subr.mxu0 0.0
      %2447 = vmatpush1.msra.mxu0 0.0
      %2448 = vmatprep.mubr.f32.mxu0 0.0
      %2449 = vmatmul.mubr.f32.gmra.mrb[0].mxu0 %v2226
      %v2450 = vpop.f32.mrb[0].mxu0
      %v2451 = vadd.f32 0.0, %v2450
      %v2452 = vpop.f32.mrb[0].mxu0
      %2453 = vdwg.mxu0
      %v2454 = vadd.f32 %v2383, %v2451
      %v2455 = vtanh.pop %v2454
      %v2456 = vld [vmem:[#allocation2 + $0x3a] sm:$0x3]
      %2457 = vmatprep.subr.mxu0 0.0
      %2458 = vmatpush1.msra.mxu0 %v628
      %2459 = vmatprep.subr.mxu0 0.0
      %2460 = vmatpush1.msra.mxu0 %v874
      %2461 = vmatprep.subr.mxu0 0.0
      %2462 = vmatpush1.msra.mxu0 0.0
      %2463 = vmatprep.subr.mxu0 0.0
      %2464 = vmatpush1.msra.mxu0 0.0
      %2465 = vmatprep.subr.mxu0 0.0
      %2466 = vmatpush1.msra.mxu0 0.0
      %2467 = vmatprep.subr.mxu0 0.0
      %2468 = vmatpush1.msra.mxu0 0.0
      %2469 = vmatprep.subr.mxu0 0.0
      %2470 = vmatpush1.msra.mxu0 0.0
      %2471 = vmatprep.subr.mxu0 0.0
      %2472 = vmatpush1.msra.mxu0 0.0
      %2473 = vmatprep.subr.mxu0 0.0
      %2474 = vmatpush1.msra.mxu0 0.0
      %2475 = vmatprep.subr.mxu0 0.0
      %2476 = vmatpush1.msra.mxu0 0.0
      %2477 = vmatprep.subr.mxu0 0.0
      %2478 = vmatpush1.msra.mxu0 0.0
      %2479 = vmatprep.subr.mxu0 0.0
      %2480 = vmatpush1.msra.mxu0 0.0
      %2481 = vmatprep.subr.mxu0 0.0
      %2482 = vmatpush1.msra.mxu0 0.0
      %2483 = vmatprep.subr.mxu0 0.0
      %2484 = vmatpush1.msra.mxu0 0.0
      %2485 = vmatprep.subr.mxu0 0.0
      %2486 = vmatpush1.msra.mxu0 0.0
      %2487 = vmatprep.subr.mxu0 0.0
      %2488 = vmatpush1.msra.mxu0 0.0
      %2489 = vmatprep.subr.mxu0 0.0
      %2490 = vmatpush1.msra.mxu0 0.0
      %2491 = vmatprep.subr.mxu0 0.0
      %2492 = vmatpush1.msra.mxu0 0.0
      %2493 = vmatprep.subr.mxu0 0.0
      %2494 = vmatpush1.msra.mxu0 0.0
      %2495 = vmatprep.subr.mxu0 0.0
      %2496 = vmatpush1.msra.mxu0 0.0
      %2497 = vmatprep.subr.mxu0 0.0
      %2498 = vmatpush1.msra.mxu0 0.0
      %2499 = vmatprep.subr.mxu0 0.0
      %2500 = vmatpush1.msra.mxu0 0.0
      %2501 = vmatprep.subr.mxu0 0.0
      %2502 = vmatpush1.msra.mxu0 0.0
      %2503 = vmatprep.subr.mxu0 0.0
      %2504 = vmatpush1.msra.mxu0 0.0
      %2505 = vmatprep.subr.mxu0 0.0
      %2506 = vmatpush1.msra.mxu0 0.0
      %2507 = vmatprep.subr.mxu0 0.0
      %2508 = vmatpush1.msra.mxu0 0.0
      %2509 = vmatprep.subr.mxu0 0.0
      %2510 = vmatpush1.msra.mxu0 0.0
      %2511 = vmatprep.subr.mxu0 0.0
      %2512 = vmatpush1.msra.mxu0 0.0
      %2513 = vmatprep.subr.mxu0 0.0
      %2514 = vmatpush1.msra.mxu0 0.0
      %2515 = vmatprep.subr.mxu0 0.0
      %2516 = vmatpush1.msra.mxu0 0.0
      %2517 = vmatprep.subr.mxu0 0.0
      %2518 = vmatpush1.msra.mxu0 0.0
      %2519 = vmatprep.subr.mxu0 0.0
      %2520 = vmatpush1.msra.mxu0 0.0
      %2521 = vmatprep.mubr.f32.mxu0 0.0
      %2522 = vmatmul.mubr.f32.gmra.mrb[0].mxu0 %v2226
      %v2523 = vpop.f32.mrb[0].mxu0
      %v2524 = vadd.f32 0.0, %v2523
      %v2525 = vpop.f32.mrb[0].mxu0
      %2526 = vdwg.mxu0
      %v2527 = vadd.f32 %v2456, %v2524
      %v2528 = vxor.u32 %v2527, 2147483648
      %v2529 = vmul.f32 %v2528, 1.442695
      %v2530 = vpow.pop %v2529
      %v2531 = vadd.f32 %v2530, 1.0
      %v2532 = vrcp.pop %v2531
      %v2533 = vmul.f32 1.0, %v2532
      %v2534 = vmul.f32 %v2382, %v2220
      %v2535 = vmul.f32 %v2304, %v2455
      %v2536 = vadd.f32 %v2534, %v2535
      %v2537 = vtanh.pop %v2536
      %v2538 = vmul.f32 %v2533, %v2537
      %2539 = vst.msk [vmem:[%s254 + $0xa] sm:$0x3] %vm958, %v2538
      %v2540 = vld [vmem:[#allocation2 + $0xc] sm:$0x3]
      %v2542 = vsel %vm349, %v2538, 0
      %2544 = vmatprep.subr.mxu0 0.0
      %2545 = vmatpush1.msra.mxu0 %v619
      %2546 = vmatprep.subr.mxu0 0.0
      %2547 = vmatpush1.msra.mxu0 %v636
      %2548 = vmatprep.subr.mxu0 0.0
      %2549 = vmatpush1.msra.mxu0 0.0
      %2550 = vmatprep.subr.mxu0 0.0
      %2551 = vmatpush1.msra.mxu0 0.0
      %2552 = vmatprep.subr.mxu0 0.0
      %2553 = vmatpush1.msra.mxu0 0.0
      %2554 = vmatprep.subr.mxu0 0.0
      %2555 = vmatpush1.msra.mxu0 0.0
      %2556 = vmatprep.subr.mxu0 0.0
      %2557 = vmatpush1.msra.mxu0 0.0
      %2558 = vmatprep.subr.mxu0 0.0
      %2559 = vmatpush1.msra.mxu0 0.0
      %2560 = vmatprep.subr.mxu0 0.0
      %2561 = vmatpush1.msra.mxu0 0.0
      %2562 = vmatprep.subr.mxu0 0.0
      %2563 = vmatpush1.msra.mxu0 0.0
      %2564 = vmatprep.subr.mxu0 0.0
      %2565 = vmatpush1.msra.mxu0 0.0
      %2566 = vmatprep.subr.mxu0 0.0
      %2567 = vmatpush1.msra.mxu0 0.0
      %2568 = vmatprep.subr.mxu0 0.0
      %2569 = vmatpush1.msra.mxu0 0.0
      %2570 = vmatprep.subr.mxu0 0.0
      %2571 = vmatpush1.msra.mxu0 0.0
      %2572 = vmatprep.subr.mxu0 0.0
      %2573 = vmatpush1.msra.mxu0 0.0
      %2574 = vmatprep.subr.mxu0 0.0
      %2575 = vmatpush1.msra.mxu0 0.0
      %2576 = vmatprep.subr.mxu0 0.0
      %2577 = vmatpush1.msra.mxu0 0.0
      %2578 = vmatprep.subr.mxu0 0.0
      %2579 = vmatpush1.msra.mxu0 0.0
      %2580 = vmatprep.subr.mxu0 0.0
      %2581 = vmatpush1.msra.mxu0 0.0
      %2582 = vmatprep.subr.mxu0 0.0
      %2583 = vmatpush1.msra.mxu0 0.0
      %2584 = vmatprep.subr.mxu0 0.0
      %2585 = vmatpush1.msra.mxu0 0.0
      %2586 = vmatprep.subr.mxu0 0.0
      %2587 = vmatpush1.msra.mxu0 0.0
      %2588 = vmatprep.subr.mxu0 0.0
      %2589 = vmatpush1.msra.mxu0 0.0
      %2590 = vmatprep.subr.mxu0 0.0
      %2591 = vmatpush1.msra.mxu0 0.0
      %2592 = vmatprep.subr.mxu0 0.0
      %2593 = vmatpush1.msra.mxu0 0.0
      %2594 = vmatprep.subr.mxu0 0.0
      %2595 = vmatpush1.msra.mxu0 0.0
      %2596 = vmatprep.subr.mxu0 0.0
      %2597 = vmatpush1.msra.mxu0 0.0
      %2598 = vmatprep.subr.mxu0 0.0
      %2599 = vmatpush1.msra.mxu0 0.0
      %2600 = vmatprep.subr.mxu0 0.0
      %2601 = vmatpush1.msra.mxu0 0.0
      %2602 = vmatprep.subr.mxu0 0.0
      %2603 = vmatpush1.msra.mxu0 0.0
      %2604 = vmatprep.subr.mxu0 0.0
      %2605 = vmatpush1.msra.mxu0 0.0
      %2606 = vmatprep.subr.mxu0 0.0
      %2607 = vmatpush1.msra.mxu0 0.0
      %2608 = vmatprep.mubr.f32.mxu0 0.0
      %2609 = vmatmul.mubr.f32.gmra.mrb[0].mxu0 %v2542
      %v2610 = vpop.f32.mrb[0].mxu0
      %v2611 = vadd.f32 0.0, %v2610
      %v2612 = vpop.f32.mrb[0].mxu0
      %2613 = vdwg.mxu0
      %v2614 = vadd.f32 %v2540, %v2611
      %v2615 = vxor.u32 %v2614, 2147483648
      %v2616 = vmul.f32 %v2615, 1.442695
      %v2617 = vpow.pop %v2616
      %v2618 = vadd.f32 %v2617, 1.0
      %v2619 = vrcp.pop %v2618
      %v2620 = vmul.f32 1.0, %v2619
      %v2621 = vld [vmem:[#allocation2 + $0x1c] sm:$0x3]
      %2622 = vmatprep.subr.mxu0 0.0
      %2623 = vmatpush1.msra.mxu0 %v622
      %2624 = vmatprep.subr.mxu0 0.0
      %2625 = vmatpush1.msra.mxu0 %v717
      %2626 = vmatprep.subr.mxu0 0.0
      %2627 = vmatpush1.msra.mxu0 0.0
      %2628 = vmatprep.subr.mxu0 0.0
      %2629 = vmatpush1.msra.mxu0 0.0
      %2630 = vmatprep.subr.mxu0 0.0
      %2631 = vmatpush1.msra.mxu0 0.0
      %2632 = vmatprep.subr.mxu0 0.0
      %2633 = vmatpush1.msra.mxu0 0.0
      %2634 = vmatprep.subr.mxu0 0.0
      %2635 = vmatpush1.msra.mxu0 0.0
      %2636 = vmatprep.subr.mxu0 0.0
      %2637 = vmatpush1.msra.mxu0 0.0
      %2638 = vmatprep.subr.mxu0 0.0
      %2639 = vmatpush1.msra.mxu0 0.0
      %2640 = vmatprep.subr.mxu0 0.0
      %2641 = vmatpush1.msra.mxu0 0.0
      %2642 = vmatprep.subr.mxu0 0.0
      %2643 = vmatpush1.msra.mxu0 0.0
      %2644 = vmatprep.subr.mxu0 0.0
      %2645 = vmatpush1.msra.mxu0 0.0
      %2646 = vmatprep.subr.mxu0 0.0
      %2647 = vmatpush1.msra.mxu0 0.0
      %2648 = vmatprep.subr.mxu0 0.0
      %2649 = vmatpush1.msra.mxu0 0.0
      %2650 = vmatprep.subr.mxu0 0.0
      %2651 = vmatpush1.msra.mxu0 0.0
      %2652 = vmatprep.subr.mxu0 0.0
      %2653 = vmatpush1.msra.mxu0 0.0
      %2654 = vmatprep.subr.mxu0 0.0
      %2655 = vmatpush1.msra.mxu0 0.0
      %2656 = vmatprep.subr.mxu0 0.0
      %2657 = vmatpush1.msra.mxu0 0.0
      %2658 = vmatprep.subr.mxu0 0.0
      %2659 = vmatpush1.msra.mxu0 0.0
      %2660 = vmatprep.subr.mxu0 0.0
      %2661 = vmatpush1.msra.mxu0 0.0
      %2662 = vmatprep.subr.mxu0 0.0
      %2663 = vmatpush1.msra.mxu0 0.0
      %2664 = vmatprep.subr.mxu0 0.0
      %2665 = vmatpush1.msra.mxu0 0.0
      %2666 = vmatprep.subr.mxu0 0.0
      %2667 = vmatpush1.msra.mxu0 0.0
      %2668 = vmatprep.subr.mxu0 0.0
      %2669 = vmatpush1.msra.mxu0 0.0
      %2670 = vmatprep.subr.mxu0 0.0
      %2671 = vmatpush1.msra.mxu0 0.0
      %2672 = vmatprep.subr.mxu0 0.0
      %2673 = vmatpush1.msra.mxu0 0.0
      %2674 = vmatprep.subr.mxu0 0.0
      %2675 = vmatpush1.msra.mxu0 0.0
      %2676 = vmatprep.subr.mxu0 0.0
      %2677 = vmatpush1.msra.mxu0 0.0
      %2678 = vmatprep.subr.mxu0 0.0
      %2679 = vmatpush1.msra.mxu0 0.0
      %2680 = vmatprep.subr.mxu0 0.0
      %2681 = vmatpush1.msra.mxu0 0.0
      %2682 = vmatprep.subr.mxu0 0.0
      %2683 = vmatpush1.msra.mxu0 0.0
      %2684 = vmatprep.subr.mxu0 0.0
      %2685 = vmatpush1.msra.mxu0 0.0
      %2686 = vmatprep.mubr.f32.mxu0 0.0
      %2687 = vmatmul.mubr.f32.gmra.mrb[0].mxu0 %v2542
      %v2688 = vpop.f32.mrb[0].mxu0
      %v2689 = vadd.f32 0.0, %v2688
      %v2690 = vpop.f32.mrb[0].mxu0
      %2691 = vdwg.mxu0
      %v2692 = vadd.f32 %v2621, %v2689
      %v2693 = vxor.u32 %v2692, 2147483648
      %v2694 = vmul.f32 %v2693, 1.442695
      %v2695 = vpow.pop %v2694
      %v2696 = vadd.f32 %v2695, 1.0
      %v2697 = vrcp.pop %v2696
      %v2698 = vmul.f32 1.0, %v2697
      %v2699 = vld [vmem:[#allocation2 + $0x2c] sm:$0x3]
      %2700 = vmatprep.subr.mxu0 0.0
      %2701 = vmatpush1.msra.mxu0 %v625
      %2702 = vmatprep.subr.mxu0 0.0
      %2703 = vmatpush1.msra.mxu0 %v798
      %2704 = vmatprep.subr.mxu0 0.0
      %2705 = vmatpush1.msra.mxu0 0.0
      %2706 = vmatprep.subr.mxu0 0.0
      %2707 = vmatpush1.msra.mxu0 0.0
      %2708 = vmatprep.subr.mxu0 0.0
      %2709 = vmatpush1.msra.mxu0 0.0
      %2710 = vmatprep.subr.mxu0 0.0
      %2711 = vmatpush1.msra.mxu0 0.0
      %2712 = vmatprep.subr.mxu0 0.0
      %2713 = vmatpush1.msra.mxu0 0.0
      %2714 = vmatprep.subr.mxu0 0.0
      %2715 = vmatpush1.msra.mxu0 0.0
      %2716 = vmatprep.subr.mxu0 0.0
      %2717 = vmatpush1.msra.mxu0 0.0
      %2718 = vmatprep.subr.mxu0 0.0
      %2719 = vmatpush1.msra.mxu0 0.0
      %2720 = vmatprep.subr.mxu0 0.0
      %2721 = vmatpush1.msra.mxu0 0.0
      %2722 = vmatprep.subr.mxu0 0.0
      %2723 = vmatpush1.msra.mxu0 0.0
      %2724 = vmatprep.subr.mxu0 0.0
      %2725 = vmatpush1.msra.mxu0 0.0
      %2726 = vmatprep.subr.mxu0 0.0
      %2727 = vmatpush1.msra.mxu0 0.0
      %2728 = vmatprep.subr.mxu0 0.0
      %2729 = vmatpush1.msra.mxu0 0.0
      %2730 = vmatprep.subr.mxu0 0.0
      %2731 = vmatpush1.msra.mxu0 0.0
      %2732 = vmatprep.subr.mxu0 0.0
      %2733 = vmatpush1.msra.mxu0 0.0
      %2734 = vmatprep.subr.mxu0 0.0
      %2735 = vmatpush1.msra.mxu0 0.0
      %2736 = vmatprep.subr.mxu0 0.0
      %2737 = vmatpush1.msra.mxu0 0.0
      %2738 = vmatprep.subr.mxu0 0.0
      %2739 = vmatpush1.msra.mxu0 0.0
      %2740 = vmatprep.subr.mxu0 0.0
      %2741 = vmatpush1.msra.mxu0 0.0
      %2742 = vmatprep.subr.mxu0 0.0
      %2743 = vmatpush1.msra.mxu0 0.0
      %2744 = vmatprep.subr.mxu0 0.0
      %2745 = vmatpush1.msra.mxu0 0.0
      %2746 = vmatprep.subr.mxu0 0.0
      %2747 = vmatpush1.msra.mxu0 0.0
      %2748 = vmatprep.subr.mxu0 0.0
      %2749 = vmatpush1.msra.mxu0 0.0
      %2750 = vmatprep.subr.mxu0 0.0
      %2751 = vmatpush1.msra.mxu0 0.0
      %2752 = vmatprep.subr.mxu0 0.0
      %2753 = vmatpush1.msra.mxu0 0.0
      %2754 = vmatprep.subr.mxu0 0.0
      %2755 = vmatpush1.msra.mxu0 0.0
      %2756 = vmatprep.subr.mxu0 0.0
      %2757 = vmatpush1.msra.mxu0 0.0
      %2758 = vmatprep.subr.mxu0 0.0
      %2759 = vmatpush1.msra.mxu0 0.0
      %2760 = vmatprep.subr.mxu0 0.0
      %2761 = vmatpush1.msra.mxu0 0.0
      %2762 = vmatprep.subr.mxu0 0.0
      %2763 = vmatpush1.msra.mxu0 0.0
      %2764 = vmatprep.mubr.f32.mxu0 0.0
      %2765 = vmatmul.mubr.f32.gmra.mrb[0].mxu0 %v2542
      %v2766 = vpop.f32.mrb[0].mxu0
      %v2767 = vadd.f32 0.0, %v2766
      %v2768 = vpop.f32.mrb[0].mxu0
      %2769 = vdwg.mxu0
      %v2770 = vadd.f32 %v2699, %v2767
      %v2771 = vtanh.pop %v2770
      %v2772 = vld [vmem:[#allocation2 + $0x3c] sm:$0x3]
      %2773 = vmatprep.subr.mxu0 0.0
      %2774 = vmatpush1.msra.mxu0 %v628
      %2775 = vmatprep.subr.mxu0 0.0
      %2776 = vmatpush1.msra.mxu0 %v874
      %2777 = vmatprep.subr.mxu0 0.0
      %2778 = vmatpush1.msra.mxu0 0.0
      %2779 = vmatprep.subr.mxu0 0.0
      %2780 = vmatpush1.msra.mxu0 0.0
      %2781 = vmatprep.subr.mxu0 0.0
      %2782 = vmatpush1.msra.mxu0 0.0
      %2783 = vmatprep.subr.mxu0 0.0
      %2784 = vmatpush1.msra.mxu0 0.0
      %2785 = vmatprep.subr.mxu0 0.0
      %2786 = vmatpush1.msra.mxu0 0.0
      %2787 = vmatprep.subr.mxu0 0.0
      %2788 = vmatpush1.msra.mxu0 0.0
      %2789 = vmatprep.subr.mxu0 0.0
      %2790 = vmatpush1.msra.mxu0 0.0
      %2791 = vmatprep.subr.mxu0 0.0
      %2792 = vmatpush1.msra.mxu0 0.0
      %2793 = vmatprep.subr.mxu0 0.0
      %2794 = vmatpush1.msra.mxu0 0.0
      %2795 = vmatprep.subr.mxu0 0.0
      %2796 = vmatpush1.msra.mxu0 0.0
      %2797 = vmatprep.subr.mxu0 0.0
      %2798 = vmatpush1.msra.mxu0 0.0
      %2799 = vmatprep.subr.mxu0 0.0
      %2800 = vmatpush1.msra.mxu0 0.0
      %2801 = vmatprep.subr.mxu0 0.0
      %2802 = vmatpush1.msra.mxu0 0.0
      %2803 = vmatprep.subr.mxu0 0.0
      %2804 = vmatpush1.msra.mxu0 0.0
      %2805 = vmatprep.subr.mxu0 0.0
      %2806 = vmatpush1.msra.mxu0 0.0
      %2807 = vmatprep.subr.mxu0 0.0
      %2808 = vmatpush1.msra.mxu0 0.0
      %2809 = vmatprep.subr.mxu0 0.0
      %2810 = vmatpush1.msra.mxu0 0.0
      %2811 = vmatprep.subr.mxu0 0.0
      %2812 = vmatpush1.msra.mxu0 0.0
      %2813 = vmatprep.subr.mxu0 0.0
      %2814 = vmatpush1.msra.mxu0 0.0
      %2815 = vmatprep.subr.mxu0 0.0
      %2816 = vmatpush1.msra.mxu0 0.0
      %2817 = vmatprep.subr.mxu0 0.0
      %2818 = vmatpush1.msra.mxu0 0.0
      %2819 = vmatprep.subr.mxu0 0.0
      %2820 = vmatpush1.msra.mxu0 0.0
      %2821 = vmatprep.subr.mxu0 0.0
      %2822 = vmatpush1.msra.mxu0 0.0
      %2823 = vmatprep.subr.mxu0 0.0
      %2824 = vmatpush1.msra.mxu0 0.0
      %2825 = vmatprep.subr.mxu0 0.0
      %2826 = vmatpush1.msra.mxu0 0.0
      %2827 = vmatprep.subr.mxu0 0.0
      %2828 = vmatpush1.msra.mxu0 0.0
      %2829 = vmatprep.subr.mxu0 0.0
      %2830 = vmatpush1.msra.mxu0 0.0
      %2831 = vmatprep.subr.mxu0 0.0
      %2832 = vmatpush1.msra.mxu0 0.0
      %2833 = vmatprep.subr.mxu0 0.0
      %2834 = vmatpush1.msra.mxu0 0.0
      %2835 = vmatprep.subr.mxu0 0.0
      %2836 = vmatpush1.msra.mxu0 0.0
      %2837 = vmatprep.mubr.f32.mxu0 0.0
      %2838 = vmatmul.mubr.f32.gmra.mrb[0].mxu0 %v2542
      %v2839 = vpop.f32.mrb[0].mxu0
      %v2840 = vadd.f32 0.0, %v2839
      %v2841 = vpop.f32.mrb[0].mxu0
      %2842 = vdwg.mxu0
      %v2843 = vadd.f32 %v2772, %v2840
      %v2844 = vxor.u32 %v2843, 2147483648
      %v2845 = vmul.f32 %v2844, 1.442695
      %v2846 = vpow.pop %v2845
      %v2847 = vadd.f32 %v2846, 1.0
      %v2848 = vrcp.pop %v2847
      %v2849 = vmul.f32 1.0, %v2848
      %v2850 = vmul.f32 %v2698, %v2536
      %v2851 = vmul.f32 %v2620, %v2771
      %v2852 = vadd.f32 %v2850, %v2851
      %v2853 = vtanh.pop %v2852
      %v2854 = vmul.f32 %v2849, %v2853
      %2855 = vst.msk [vmem:[%s254 + $0xc] sm:$0x3] %vm958, %v2854
      %v2856 = vld [vmem:[#allocation2 + $0xe] sm:$0x3]
      %v2858 = vsel %vm349, %v2854, 0
      %2860 = vmatprep.subr.mxu0 0.0
      %2861 = vmatpush1.msra.mxu0 %v619
      %2862 = vmatprep.subr.mxu0 0.0
      %2863 = vmatpush1.msra.mxu0 %v636
      %2864 = vmatprep.subr.mxu0 0.0
      %2865 = vmatpush1.msra.mxu0 0.0
      %2866 = vmatprep.subr.mxu0 0.0
      %2867 = vmatpush1.msra.mxu0 0.0
      %2868 = vmatprep.subr.mxu0 0.0
      %2869 = vmatpush1.msra.mxu0 0.0
      %2870 = vmatprep.subr.mxu0 0.0
      %2871 = vmatpush1.msra.mxu0 0.0
      %2872 = vmatprep.subr.mxu0 0.0
      %2873 = vmatpush1.msra.mxu0 0.0
      %2874 = vmatprep.subr.mxu0 0.0
      %2875 = vmatpush1.msra.mxu0 0.0
      %2876 = vmatprep.subr.mxu0 0.0
      %2877 = vmatpush1.msra.mxu0 0.0
      %2878 = vmatprep.subr.mxu0 0.0
      %2879 = vmatpush1.msra.mxu0 0.0
      %2880 = vmatprep.subr.mxu0 0.0
      %2881 = vmatpush1.msra.mxu0 0.0
      %2882 = vmatprep.subr.mxu0 0.0
      %2883 = vmatpush1.msra.mxu0 0.0
      %2884 = vmatprep.subr.mxu0 0.0
      %2885 = vmatpush1.msra.mxu0 0.0
      %2886 = vmatprep.subr.mxu0 0.0
      %2887 = vmatpush1.msra.mxu0 0.0
      %2888 = vmatprep.subr.mxu0 0.0
      %2889 = vmatpush1.msra.mxu0 0.0
      %2890 = vmatprep.subr.mxu0 0.0
      %2891 = vmatpush1.msra.mxu0 0.0
      %2892 = vmatprep.subr.mxu0 0.0
      %2893 = vmatpush1.msra.mxu0 0.0
      %2894 = vmatprep.subr.mxu0 0.0
      %2895 = vmatpush1.msra.mxu0 0.0
      %2896 = vmatprep.subr.mxu0 0.0
      %2897 = vmatpush1.msra.mxu0 0.0
      %2898 = vmatprep.subr.mxu0 0.0
      %2899 = vmatpush1.msra.mxu0 0.0
      %2900 = vmatprep.subr.mxu0 0.0
      %2901 = vmatpush1.msra.mxu0 0.0
      %2902 = vmatprep.subr.mxu0 0.0
      %2903 = vmatpush1.msra.mxu0 0.0
      %2904 = vmatprep.subr.mxu0 0.0
      %2905 = vmatpush1.msra.mxu0 0.0
      %2906 = vmatprep.subr.mxu0 0.0
      %2907 = vmatpush1.msra.mxu0 0.0
      %2908 = vmatprep.subr.mxu0 0.0
      %2909 = vmatpush1.msra.mxu0 0.0
      %2910 = vmatprep.subr.mxu0 0.0
      %2911 = vmatpush1.msra.mxu0 0.0
      %2912 = vmatprep.subr.mxu0 0.0
      %2913 = vmatpush1.msra.mxu0 0.0
      %2914 = vmatprep.subr.mxu0 0.0
      %2915 = vmatpush1.msra.mxu0 0.0
      %2916 = vmatprep.subr.mxu0 0.0
      %2917 = vmatpush1.msra.mxu0 0.0
      %2918 = vmatprep.subr.mxu0 0.0
      %2919 = vmatpush1.msra.mxu0 0.0
      %2920 = vmatprep.subr.mxu0 0.0
      %2921 = vmatpush1.msra.mxu0 0.0
      %2922 = vmatprep.subr.mxu0 0.0
      %2923 = vmatpush1.msra.mxu0 0.0
      %2924 = vmatprep.mubr.f32.mxu0 0.0
      %2925 = vmatmul.mubr.f32.gmra.mrb[0].mxu0 %v2858
      %v2926 = vpop.f32.mrb[0].mxu0
      %v2927 = vadd.f32 0.0, %v2926
      %v2928 = vpop.f32.mrb[0].mxu0
      %2929 = vdwg.mxu0
      %v2930 = vadd.f32 %v2856, %v2927
      %v2931 = vxor.u32 %v2930, 2147483648
      %v2932 = vmul.f32 %v2931, 1.442695
      %v2933 = vpow.pop %v2932
      %v2934 = vadd.f32 %v2933, 1.0
      %v2935 = vrcp.pop %v2934
      %v2936 = vmul.f32 1.0, %v2935
      %v2937 = vld [vmem:[#allocation2 + $0x1e] sm:$0x3]
      %2938 = vmatprep.subr.mxu0 0.0
      %2939 = vmatpush1.msra.mxu0 %v622
      %2940 = vmatprep.subr.mxu0 0.0
      %2941 = vmatpush1.msra.mxu0 %v717
      %2942 = vmatprep.subr.mxu0 0.0
      %2943 = vmatpush1.msra.mxu0 0.0
      %2944 = vmatprep.subr.mxu0 0.0
      %2945 = vmatpush1.msra.mxu0 0.0
      %2946 = vmatprep.subr.mxu0 0.0
      %2947 = vmatpush1.msra.mxu0 0.0
      %2948 = vmatprep.subr.mxu0 0.0
      %2949 = vmatpush1.msra.mxu0 0.0
      %2950 = vmatprep.subr.mxu0 0.0
      %2951 = vmatpush1.msra.mxu0 0.0
      %2952 = vmatprep.subr.mxu0 0.0
      %2953 = vmatpush1.msra.mxu0 0.0
      %2954 = vmatprep.subr.mxu0 0.0
      %2955 = vmatpush1.msra.mxu0 0.0
      %2956 = vmatprep.subr.mxu0 0.0
      %2957 = vmatpush1.msra.mxu0 0.0
      %2958 = vmatprep.subr.mxu0 0.0
      %2959 = vmatpush1.msra.mxu0 0.0
      %2960 = vmatprep.subr.mxu0 0.0
      %2961 = vmatpush1.msra.mxu0 0.0
      %2962 = vmatprep.subr.mxu0 0.0
      %2963 = vmatpush1.msra.mxu0 0.0
      %2964 = vmatprep.subr.mxu0 0.0
      %2965 = vmatpush1.msra.mxu0 0.0
      %2966 = vmatprep.subr.mxu0 0.0
      %2967 = vmatpush1.msra.mxu0 0.0
      %2968 = vmatprep.subr.mxu0 0.0
      %2969 = vmatpush1.msra.mxu0 0.0
      %2970 = vmatprep.subr.mxu0 0.0
      %2971 = vmatpush1.msra.mxu0 0.0
      %2972 = vmatprep.subr.mxu0 0.0
      %2973 = vmatpush1.msra.mxu0 0.0
      %2974 = vmatprep.subr.mxu0 0.0
      %2975 = vmatpush1.msra.mxu0 0.0
      %2976 = vmatprep.subr.mxu0 0.0
      %2977 = vmatpush1.msra.mxu0 0.0
      %2978 = vmatprep.subr.mxu0 0.0
      %2979 = vmatpush1.msra.mxu0 0.0
      %2980 = vmatprep.subr.mxu0 0.0
      %2981 = vmatpush1.msra.mxu0 0.0
      %2982 = vmatprep.subr.mxu0 0.0
      %2983 = vmatpush1.msra.mxu0 0.0
      %2984 = vmatprep.subr.mxu0 0.0
      %2985 = vmatpush1.msra.mxu0 0.0
      %2986 = vmatprep.subr.mxu0 0.0
      %2987 = vmatpush1.msra.mxu0 0.0
      %2988 = vmatprep.subr.mxu0 0.0
      %2989 = vmatpush1.msra.mxu0 0.0
      %2990 = vmatprep.subr.mxu0 0.0
      %2991 = vmatpush1.msra.mxu0 0.0
      %2992 = vmatprep.subr.mxu0 0.0
      %2993 = vmatpush1.msra.mxu0 0.0
      %2994 = vmatprep.subr.mxu0 0.0
      %2995 = vmatpush1.msra.mxu0 0.0
      %2996 = vmatprep.subr.mxu0 0.0
      %2997 = vmatpush1.msra.mxu0 0.0
      %2998 = vmatprep.subr.mxu0 0.0
      %2999 = vmatpush1.msra.mxu0 0.0
      %3000 = vmatprep.subr.mxu0 0.0
      %3001 = vmatpush1.msra.mxu0 0.0
      %3002 = vmatprep.mubr.f32.mxu0 0.0
      %3003 = vmatmul.mubr.f32.gmra.mrb[0].mxu0 %v2858
      %v3004 = vpop.f32.mrb[0].mxu0
      %v3005 = vadd.f32 0.0, %v3004
      %v3006 = vpop.f32.mrb[0].mxu0
      %3007 = vdwg.mxu0
      %v3008 = vadd.f32 %v2937, %v3005
      %v3009 = vxor.u32 %v3008, 2147483648
      %v3010 = vmul.f32 %v3009, 1.442695
      %v3011 = vpow.pop %v3010
      %v3012 = vadd.f32 %v3011, 1.0
      %v3013 = vrcp.pop %v3012
      %v3014 = vmul.f32 1.0, %v3013
      %v3015 = vld [vmem:[#allocation2 + $0x2e] sm:$0x3]
      %3016 = vmatprep.subr.mxu0 0.0
      %3017 = vmatpush1.msra.mxu0 %v625
      %3018 = vmatprep.subr.mxu0 0.0
      %3019 = vmatpush1.msra.mxu0 %v798
      %3020 = vmatprep.subr.mxu0 0.0
      %3021 = vmatpush1.msra.mxu0 0.0
      %3022 = vmatprep.subr.mxu0 0.0
      %3023 = vmatpush1.msra.mxu0 0.0
      %3024 = vmatprep.subr.mxu0 0.0
      %3025 = vmatpush1.msra.mxu0 0.0
      %3026 = vmatprep.subr.mxu0 0.0
      %3027 = vmatpush1.msra.mxu0 0.0
      %3028 = vmatprep.subr.mxu0 0.0
      %3029 = vmatpush1.msra.mxu0 0.0
      %3030 = vmatprep.subr.mxu0 0.0
      %3031 = vmatpush1.msra.mxu0 0.0
      %3032 = vmatprep.subr.mxu0 0.0
      %3033 = vmatpush1.msra.mxu0 0.0
      %3034 = vmatprep.subr.mxu0 0.0
      %3035 = vmatpush1.msra.mxu0 0.0
      %3036 = vmatprep.subr.mxu0 0.0
      %3037 = vmatpush1.msra.mxu0 0.0
      %3038 = vmatprep.subr.mxu0 0.0
      %3039 = vmatpush1.msra.mxu0 0.0
      %3040 = vmatprep.subr.mxu0 0.0
      %3041 = vmatpush1.msra.mxu0 0.0
      %3042 = vmatprep.subr.mxu0 0.0
      %3043 = vmatpush1.msra.mxu0 0.0
      %3044 = vmatprep.subr.mxu0 0.0
      %3045 = vmatpush1.msra.mxu0 0.0
      %3046 = vmatprep.subr.mxu0 0.0
      %3047 = vmatpush1.msra.mxu0 0.0
      %3048 = vmatprep.subr.mxu0 0.0
      %3049 = vmatpush1.msra.mxu0 0.0
      %3050 = vmatprep.subr.mxu0 0.0
      %3051 = vmatpush1.msra.mxu0 0.0
      %3052 = vmatprep.subr.mxu0 0.0
      %3053 = vmatpush1.msra.mxu0 0.0
      %3054 = vmatprep.subr.mxu0 0.0
      %3055 = vmatpush1.msra.mxu0 0.0
      %3056 = vmatprep.subr.mxu0 0.0
      %3057 = vmatpush1.msra.mxu0 0.0
      %3058 = vmatprep.subr.mxu0 0.0
      %3059 = vmatpush1.msra.mxu0 0.0
      %3060 = vmatprep.subr.mxu0 0.0
      %3061 = vmatpush1.msra.mxu0 0.0
      %3062 = vmatprep.subr.mxu0 0.0
      %3063 = vmatpush1.msra.mxu0 0.0
      %3064 = vmatprep.subr.mxu0 0.0
      %3065 = vmatpush1.msra.mxu0 0.0
      %3066 = vmatprep.subr.mxu0 0.0
      %3067 = vmatpush1.msra.mxu0 0.0
      %3068 = vmatprep.subr.mxu0 0.0
      %3069 = vmatpush1.msra.mxu0 0.0
      %3070 = vmatprep.subr.mxu0 0.0
      %3071 = vmatpush1.msra.mxu0 0.0
      %3072 = vmatprep.subr.mxu0 0.0
      %3073 = vmatpush1.msra.mxu0 0.0
      %3074 = vmatprep.subr.mxu0 0.0
      %3075 = vmatpush1.msra.mxu0 0.0
      %3076 = vmatprep.subr.mxu0 0.0
      %3077 = vmatpush1.msra.mxu0 0.0
      %3078 = vmatprep.subr.mxu0 0.0
      %3079 = vmatpush1.msra.mxu0 0.0
      %3080 = vmatprep.mubr.f32.mxu0 0.0
      %3081 = vmatmul.mubr.f32.gmra.mrb[0].mxu0 %v2858
      %v3082 = vpop.f32.mrb[0].mxu0
      %v3083 = vadd.f32 0.0, %v3082
      %v3084 = vpop.f32.mrb[0].mxu0
      %3085 = vdwg.mxu0
      %v3086 = vadd.f32 %v3015, %v3083
      %v3087 = vtanh.pop %v3086
      %v3088 = vld [vmem:[#allocation2 + $0x3e] sm:$0x3]
      %3089 = vmatprep.subr.mxu0 0.0
      %3090 = vmatpush1.msra.mxu0 %v628
      %3091 = vmatprep.subr.mxu0 0.0
      %3092 = vmatpush1.msra.mxu0 %v874
      %3093 = vmatprep.subr.mxu0 0.0
      %3094 = vmatpush1.msra.mxu0 0.0
      %3095 = vmatprep.subr.mxu0 0.0
      %3096 = vmatpush1.msra.mxu0 0.0
      %3097 = vmatprep.subr.mxu0 0.0
      %3098 = vmatpush1.msra.mxu0 0.0
      %3099 = vmatprep.subr.mxu0 0.0
      %3100 = vmatpush1.msra.mxu0 0.0
      %3101 = vmatprep.subr.mxu0 0.0
      %3102 = vmatpush1.msra.mxu0 0.0
      %3103 = vmatprep.subr.mxu0 0.0
      %3104 = vmatpush1.msra.mxu0 0.0
      %3105 = vmatprep.subr.mxu0 0.0
      %3106 = vmatpush1.msra.mxu0 0.0
      %3107 = vmatprep.subr.mxu0 0.0
      %3108 = vmatpush1.msra.mxu0 0.0
      %3109 = vmatprep.subr.mxu0 0.0
      %3110 = vmatpush1.msra.mxu0 0.0
      %3111 = vmatprep.subr.mxu0 0.0
      %3112 = vmatpush1.msra.mxu0 0.0
      %3113 = vmatprep.subr.mxu0 0.0
      %3114 = vmatpush1.msra.mxu0 0.0
      %3115 = vmatprep.subr.mxu0 0.0
      %3116 = vmatpush1.msra.mxu0 0.0
      %3117 = vmatprep.subr.mxu0 0.0
      %3118 = vmatpush1.msra.mxu0 0.0
      %3119 = vmatprep.subr.mxu0 0.0
      %3120 = vmatpush1.msra.mxu0 0.0
      %3121 = vmatprep.subr.mxu0 0.0
      %3122 = vmatpush1.msra.mxu0 0.0
      %3123 = vmatprep.subr.mxu0 0.0
      %3124 = vmatpush1.msra.mxu0 0.0
      %3125 = vmatprep.subr.mxu0 0.0
      %3126 = vmatpush1.msra.mxu0 0.0
      %3127 = vmatprep.subr.mxu0 0.0
      %3128 = vmatpush1.msra.mxu0 0.0
      %3129 = vmatprep.subr.mxu0 0.0
      %3130 = vmatpush1.msra.mxu0 0.0
      %3131 = vmatprep.subr.mxu0 0.0
      %3132 = vmatpush1.msra.mxu0 0.0
      %3133 = vmatprep.subr.mxu0 0.0
      %3134 = vmatpush1.msra.mxu0 0.0
      %3135 = vmatprep.subr.mxu0 0.0
      %3136 = vmatpush1.msra.mxu0 0.0
      %3137 = vmatprep.subr.mxu0 0.0
      %3138 = vmatpush1.msra.mxu0 0.0
      %3139 = vmatprep.subr.mxu0 0.0
      %3140 = vmatpush1.msra.mxu0 0.0
      %3141 = vmatprep.subr.mxu0 0.0
      %3142 = vmatpush1.msra.mxu0 0.0
      %3143 = vmatprep.subr.mxu0 0.0
      %3144 = vmatpush1.msra.mxu0 0.0
      %3145 = vmatprep.subr.mxu0 0.0
      %3146 = vmatpush1.msra.mxu0 0.0
      %3147 = vmatprep.subr.mxu0 0.0
      %3148 = vmatpush1.msra.mxu0 0.0
      %3149 = vmatprep.subr.mxu0 0.0
      %3150 = vmatpush1.msra.mxu0 0.0
      %3151 = vmatprep.subr.mxu0 0.0
      %3152 = vmatpush1.msra.mxu0 0.0
      %3153 = vmatprep.mubr.f32.mxu0 0.0
      %3154 = vmatmul.mubr.f32.gmra.mrb[0].mxu0 %v2858
      %v3155 = vpop.f32.mrb[0].mxu0
      %v3156 = vadd.f32 0.0, %v3155
      %v3157 = vpop.f32.mrb[0].mxu0
      %3158 = vdwg.mxu0
      %v3159 = vadd.f32 %v3088, %v3156
      %v3160 = vxor.u32 %v3159, 2147483648
      %v3161 = vmul.f32 %v3160, 1.442695
      %v3162 = vpow.pop %v3161
      %v3163 = vadd.f32 %v3162, 1.0
      %v3164 = vrcp.pop %v3163
      %v3165 = vmul.f32 1.0, %v3164
      %v3166 = vmul.f32 %v3014, %v2852
      %v3167 = vmul.f32 %v2936, %v3087
      %v3168 = vadd.f32 %v3166, %v3167
      %v3169 = vtanh.pop %v3168
      %v3170 = vmul.f32 %v3165, %v3169
      %3171 = vst.msk [vmem:[%s254 + $0xe] sm:$0x3] %vm958, %v3170
      %p3172 = scmp.lt.s32.totalorder %s15, 1
      %s3173 = scalar_select %p3172, %s15, 1
      %s3174 = smul.addr %s3173, 2
      %s3175 = smul.addr %s3174, 8
      %s3176 = scalar_lea.vmem %s4, %s3175
      // Predicated region
      $region37: #{forward.10} parent=35 // pred_check
        %p3177 = pneg %p137
      $region38: #{forward.10} parent=35 // pred_check_branch
        %3179 = sbr.rel (%p3177) target = $region40
      $region39: #{forward.10} parent=35 // pred_region
        _
      $region40: #{forward.10} parent=35 // pred_fallthru
        _
    $region36: #{forward.10} parent=5 // pred_fallthru
      _
    %p3180 = scmp.le.s32.totalorder 2, %s10
    // Predicated region
    $region41: #{forward.10} parent=5 // pred_check
      %p3181 = pneg %p3180
    $region42: #{forward.10} parent=5 // pred_check_branch
      %3183 = sbr.rel (%p3181) target = $region44
    $region43: #{forward.10} parent=5 // pred_region
      %s3184 = ssub.s32 %s10, 2
      // Predicated region
      $region45: #{forward.10} parent=43 // pred_check
        %p3185 = pneg %p143
      $region46: #{forward.10} parent=43 // pred_check_branch
        %3187 = sbr.rel (%p3185) target = $region48
      $region47: #{forward.10} parent=43 // pred_region
        %p3188 = scmp.lt.s32.totalorder %s16, 1
        %s3189 = scalar_select %p3188, %s16, 1
        %s3190 = smul.addr %s3189, 2
        %s3191 = smul.addr %s3190, 8
        %s3192 = scalar_lea.vmem %s4, %s3191
      $region48: #{forward.10} parent=43 // pred_fallthru
        _
    $region44: #{forward.10} parent=5 // pred_fallthru
      _
  $region6: #{forward.10} parent=0 // loop_footer
    %s14 = sadd.s32 1, %s10
  $region7: #{forward.10} parent=0 // loop_footer_branch
    %9 = sbr.rel target = $region3
  $region8: #{forward.10} parent=0 // loop_exit
    _

// kernel: forward.9
$region0: #{forward.9}
  #allocation0 [shape = 'u32[]', space=smem, size = 0x4, offset = 0x4, fixed_abs, tag = 'smem constant byte address 0x4 - core index']
  #allocation1 [shape = 'u32[144,128]{1,0:T(1,128)}', space=vmem, size = 0x12000, scoped, tag = 'internal scratch']
  #allocation2 [shape = 'f32[64,12]{1,0:T(8,128)}', space=vmem, size = 0x8000, scoped, tag = 'scratch operand']
  %s0 = inlined_call_operand.vmem [shape: f32[2,16,32], index: 0, kind: input, shape index: {}]
  %s1 = inlined_call_operand.vmem [shape: f32[2,4,32,12], index: 1, kind: input, shape index: {}]
  %s2 = inlined_call_operand.vmem [shape: f32[2,4,12,12], index: 2, kind: input, shape index: {}]
  %s3 = inlined_call_operand.vmem [shape: f32[2,4,1,12], index: 3, kind: input, shape index: {}]
  %s4 = inlined_call_operand.vmem [shape: f32[2,16,12], index: 4, kind: output, shape index: {}]
  %s5 = sld [smem:[#allocation0]]
  $region49: #{forward.9} parent=0
    _
  %s7 = ssub.s32 1, %s5
  %s8 = scalar_select 0, %s7, %s5
  loop: start=0, step=1, limit=4
  $region2: #{forward.9} parent=0 // loop_pre_header
    _
  $region3: #{forward.9} parent=0 // loop_header
    %s10 = sphi 0, %s14
    %p11 = scmp.ge.s32.totalorder %s10, 4
    %s20 = sphi 0, %s22
    %s23 = sphi 0, %s20
    %s24 = sphi 0, %s23
    %s40 = sphi 0, %s24
    %s46 = sphi 0, %s48
    %s49 = sphi 0, %s46
    %s50 = sphi 0, %s49
    %s66 = sphi 0, %s50
    %s72 = sphi 0, %s74
    %s75 = sphi 0, %s72
    %s76 = sphi 0, %s75
    %s92 = sphi 0, %s76
    %s98 = sphi 0, %s100
    %s101 = sphi 0, %s98
    %s102 = sphi 0, %s101
    %s118 = sphi 0, %s102
    %s124 = sphi 0, %s126
    %s127 = sphi 0, %s124
    %s128 = sphi 0, %s127
    %s144 = sphi 0, %s128
  $region4: #{forward.9} parent=0 // loop_header_branch
    %13 = sbr.rel (%p11) target = $region8
  $region5: #{forward.9} parent=0 // loop_body
    %s15 = ssub.s32 %s10, 1
    %s16 = ssub.s32 %s10, 2
    %s17 = sadd.s32 %s10, 1
    %s18 = ssub.s32 %s10, %s17
    %p19 = scmp.eq.s32.totalorder %s18, 0
    %s21 = sadd.s32 %s20, 1
    %s22 = scalar_select %p19, %s20, %s21
    %p25 = pneg %p19
    %p26 = scmp.eq.s32.totalorder %s10, 1
    %p27 = por %p25, %p26
    %p28 = scmp.ne.s32.totalorder %s20, %s23
    %p29 = scmp.eq.s32.totalorder %s10, 0
    %p30 = por %p28, %p29
    %p31 = scmp.ne.s32.totalorder %s20, %s23
    %p32 = scmp.eq.s32.totalorder %s15, 1
    %p33 = por %p31, %p32
    %p34 = scmp.ne.s32.totalorder %s23, %s24
    %p35 = scmp.eq.s32.totalorder %s15, 0
    %p36 = por %p34, %p35
    %p37 = scmp.ne.s32.totalorder %s23, %s24
    %p38 = scmp.eq.s32.totalorder %s16, 1
    %p39 = por %p37, %p38
    %p41 = scmp.ne.s32.totalorder %s24, %s40
    %p42 = scmp.eq.s32.totalorder %s16, 0
    %p43 = por %p41, %p42
    %s44 = ssub.s32 %s10, %s17
    %p45 = scmp.eq.s32.totalorder %s44, 0
    %s47 = sadd.s32 %s46, 1
    %s48 = scalar_select %p45, %s46, %s47
    %p51 = pneg %p45
    %p52 = scmp.eq.s32.totalorder %s10, 1
    %p53 = por %p51, %p52
    %p54 = scmp.ne.s32.totalorder %s46, %s49
    %p55 = scmp.eq.s32.totalorder %s10, 0
    %p56 = por %p54, %p55
    %p57 = scmp.ne.s32.totalorder %s46, %s49
    %p58 = scmp.eq.s32.totalorder %s15, 1
    %p59 = por %p57, %p58
    %p60 = scmp.ne.s32.totalorder %s49, %s50
    %p61 = scmp.eq.s32.totalorder %s15, 0
    %p62 = por %p60, %p61
    %p63 = scmp.ne.s32.totalorder %s49, %s50
    %p64 = scmp.eq.s32.totalorder %s16, 1
    %p65 = por %p63, %p64
    %p67 = scmp.ne.s32.totalorder %s50, %s66
    %p68 = scmp.eq.s32.totalorder %s16, 0
    %p69 = por %p67, %p68
    %s70 = ssub.s32 %s10, %s17
    %p71 = scmp.eq.s32.totalorder %s70, 0
    %s73 = sadd.s32 %s72, 1
    %s74 = scalar_select %p71, %s72, %s73
    %p77 = pneg %p71
    %p78 = scmp.eq.s32.totalorder %s10, 1
    %p79 = por %p77, %p78
    %p80 = scmp.ne.s32.totalorder %s72, %s75
    %p81 = scmp.eq.s32.totalorder %s10, 0
    %p82 = por %p80, %p81
    %p83 = scmp.ne.s32.totalorder %s72, %s75
    %p84 = scmp.eq.s32.totalorder %s15, 1
    %p85 = por %p83, %p84
    %p86 = scmp.ne.s32.totalorder %s75, %s76
    %p87 = scmp.eq.s32.totalorder %s15, 0
    %p88 = por %p86, %p87
    %p89 = scmp.ne.s32.totalorder %s75, %s76
    %p90 = scmp.eq.s32.totalorder %s16, 1
    %p91 = por %p89, %p90
    %p93 = scmp.ne.s32.totalorder %s76, %s92
    %p94 = scmp.eq.s32.totalorder %s16, 0
    %p95 = por %p93, %p94
    %s96 = ssub.s32 %s10, %s17
    %p97 = scmp.eq.s32.totalorder %s96, 0
    %s99 = sadd.s32 %s98, 1
    %s100 = scalar_select %p97, %s98, %s99
    %p103 = pneg %p97
    %p104 = scmp.eq.s32.totalorder %s10, 1
    %p105 = por %p103, %p104
    %p106 = scmp.ne.s32.totalorder %s98, %s101
    %p107 = scmp.eq.s32.totalorder %s10, 0
    %p108 = por %p106, %p107
    %p109 = scmp.ne.s32.totalorder %s98, %s101
    %p110 = scmp.eq.s32.totalorder %s15, 1
    %p111 = por %p109, %p110
    %p112 = scmp.ne.s32.totalorder %s101, %s102
    %p113 = scmp.eq.s32.totalorder %s15, 0
    %p114 = por %p112, %p113
    %p115 = scmp.ne.s32.totalorder %s101, %s102
    %p116 = scmp.eq.s32.totalorder %s16, 1
    %p117 = por %p115, %p116
    %p119 = scmp.ne.s32.totalorder %s102, %s118
    %p120 = scmp.eq.s32.totalorder %s16, 0
    %p121 = por %p119, %p120
    %s122 = ssub.s32 %s10, %s17
    %p123 = scmp.eq.s32.totalorder %s122, 0
    %s125 = sadd.s32 %s124, 1
    %s126 = scalar_select %p123, %s124, %s125
    %p129 = pneg %p123
    %p130 = scmp.eq.s32.totalorder %s10, 1
    %p131 = por %p129, %p130
    %p132 = scmp.ne.s32.totalorder %s124, %s127
    %p133 = scmp.eq.s32.totalorder %s10, 0
    %p134 = por %p132, %p133
    %p135 = scmp.ne.s32.totalorder %s124, %s127
    %p136 = scmp.eq.s32.totalorder %s15, 1
    %p137 = por %p135, %p136
    %p138 = scmp.ne.s32.totalorder %s127, %s128
    %p139 = scmp.eq.s32.totalorder %s15, 0
    %p140 = por %p138, %p139
    %p141 = scmp.ne.s32.totalorder %s127, %s128
    %p142 = scmp.eq.s32.totalorder %s16, 1
    %p143 = por %p141, %p142
    %p145 = scmp.ne.s32.totalorder %s128, %s144
    %p146 = scmp.eq.s32.totalorder %s16, 0
    %p147 = por %p145, %p146
    %p148 = scmp.le.s32.totalorder 1, %s10
    %p149 = scmp.lt.s32.totalorder %s10, 3
    %p150 = pnand %p148, %p149
    %p151 = pneg %p150
    // Predicated region
    $region9: #{forward.9} parent=5 // pred_check
      _
    $region10: #{forward.9} parent=5 // pred_check_branch
      %153 = sbr.rel (%p150) target = $region12
    $region11: #{forward.9} parent=5 // pred_region
      %s154 = ssub.s32 %s10, 1
    $region12: #{forward.9} parent=5 // pred_fallthru
      _
    %p155 = scmp.lt.s32.totalorder %s10, 2
    // Predicated region
    $region13: #{forward.9} parent=5 // pred_check
      %p156 = pneg %p155
    $region14: #{forward.9} parent=5 // pred_check_branch
      %158 = sbr.rel (%p156) target = $region16
    $region15: #{forward.9} parent=5 // pred_region
      // Predicated region
      $region17: #{forward.9} parent=15 // pred_check
        %p159 = pneg %p30
      $region18: #{forward.9} parent=15 // pred_check_branch
        %161 = sbr.rel (%p159) target = $region20
      $region19: #{forward.9} parent=15 // pred_region
        %p162 = scmp.lt.s32.totalorder %s10, 1
        %s163 = scalar_select %p162, %s10, 1
        %s164 = smul.addr %s163, 2
        %s165 = smul.addr %s164, 8
        %s166 = scalar_lea.vmem %s0, %s165
      $region20: #{forward.9} parent=15 // pred_fallthru
        _
      // Predicated region
      $region21: #{forward.9} parent=15 // pred_check
        %p167 = pneg %p56
      $region22: #{forward.9} parent=15 // pred_check_branch
        %169 = sbr.rel (%p167) target = $region24
      $region23: #{forward.9} parent=15 // pred_region
        %p170 = scmp.lt.s32.totalorder %s10, 1
        %s171 = scalar_select %p170, %s10, 1
        %s172 = smul.addr %s171, 16
        %s173 = smul.addr %s172, 8
        %s174 = scalar_lea.vmem %s1, %s173
      $region24: #{forward.9} parent=15 // pred_fallthru
        _
      // Predicated region
      $region25: #{forward.9} parent=15 // pred_check
        %p175 = pneg %p82
      $region26: #{forward.9} parent=15 // pred_check_branch
        %177 = sbr.rel (%p175) target = $region28
      $region27: #{forward.9} parent=15 // pred_region
        %p178 = scmp.lt.s32.totalorder %s10, 1
        %s179 = scalar_select %p178, %s10, 1
        %s180 = smul.addr %s179, 8
        %s181 = smul.addr %s180, 8
        %s182 = scalar_lea.vmem %s2, %s181
      $region28: #{forward.9} parent=15 // pred_fallthru
        _
      // Predicated region
      $region29: #{forward.9} parent=15 // pred_check
        %p183 = pneg %p108
      $region30: #{forward.9} parent=15 // pred_check_branch
        %185 = sbr.rel (%p183) target = $region32
      $region31: #{forward.9} parent=15 // pred_region
        %p186 = scmp.lt.s32.totalorder %s10, 1
        %s187 = scalar_select %p186, %s10, 1
        %s188 = smul.addr %s187, 4
        %s189 = scalar_lea.vmem %s3, %s188
      $region32: #{forward.9} parent=15 // pred_fallthru
        _
    $region16: #{forward.9} parent=5 // pred_fallthru
      _
    %p190 = scmp.le.s32.totalorder 1, %s10
    %p191 = scmp.lt.s32.totalorder %s10, 3
    %p192 = pnand %p190, %p191
    %p193 = pneg %p192
    // Predicated region
    $region33: #{forward.9} parent=5 // pred_check
      _
    $region34: #{forward.9} parent=5 // pred_check_branch
      %195 = sbr.rel (%p192) target = $region36
    $region35: #{forward.9} parent=5 // pred_region
      %s196 = ssub.s32 %s10, 1
      %p197 = scmp.lt.s32.totalorder %s15, 1
      %s198 = scalar_select %p197, %s15, 1
      %s199 = smul.addr %s198, 2
      %s200 = smul.addr %s199, 8
      %s201 = scalar_lea.vmem %s0, %s200
      %p202 = pneg %p36
      %p203 = pneg %p33
      %p204 = scmp.lt.s32.totalorder %s15, 1
      %s205 = scalar_select %p204, %s15, 1
      %s206 = smul.addr %s205, 16
      %s207 = smul.addr %s206, 8
      %s208 = scalar_lea.vmem %s1, %s207
      %p209 = pneg %p62
      %p210 = pneg %p59
      %p211 = scmp.lt.s32.totalorder %s15, 1
      %s212 = scalar_select %p211, %s15, 1
      %s213 = smul.addr %s212, 8
      %s214 = smul.addr %s213, 8
      %s215 = scalar_lea.vmem %s2, %s214
      %p216 = pneg %p88
      %p217 = pneg %p85
      %p218 = scmp.lt.s32.totalorder %s15, 1
      %s219 = scalar_select %p218, %s15, 1
      %s220 = smul.addr %s219, 4
      %s221 = scalar_lea.vmem %s3, %s220
      %p222 = pneg %p114
      %p223 = pneg %p111
      %p224 = pneg %p140
      %p225 = pneg %p137
      %p226 = scmp.lt.s32.totalorder %s15, 1
      %s227 = scalar_select %p226, %s15, 1
      %s228 = smul.addr %s227, 2
      %s229 = smul.addr %s228, 8
      %s230 = scalar_lea.vmem %s4, %s229
      %p231 = scmp.lt.s32.totalorder %s15, 1
      %s232 = scalar_select %p231, %s15, 1
      %s233 = smul.addr %s232, 2
      %s234 = smul.addr %s233, 8
      %s235 = scalar_lea.vmem %s0, %s234
      %p236 = scmp.lt.s32.totalorder %s15, 1
      %s237 = scalar_select %p236, %s15, 1
      %s238 = smul.addr %s237, 16
      %s239 = smul.addr %s238, 8
      %s240 = scalar_lea.vmem %s1, %s239
      %p241 = scmp.lt.s32.totalorder %s15, 1
      %s242 = scalar_select %p241, %s15, 1
      %s243 = smul.addr %s242, 8
      %s244 = smul.addr %s243, 8
      %s245 = scalar_lea.vmem %s2, %s244
      %p246 = scmp.lt.s32.totalorder %s15, 1
      %s247 = scalar_select %p246, %s15, 1
      %s248 = smul.addr %s247, 4
      %s249 = scalar_lea.vmem %s3, %s248
      %p250 = scmp.lt.s32.totalorder %s15, 1
      %s251 = scalar_select %p250, %s15, 1
      %s252 = smul.addr %s251, 2
      %s253 = smul.addr %s252, 8
      %s254 = scalar_lea.vmem %s4, %s253
      %v255 = vld [vmem:[%s235] sm:$0xff]
      %v256 = vld [vmem:[%s235 + $0x8] sm:$0xff]
      %v257 = vld [vmem:[%s240] sm:$0xff]
      %v258 = vld [vmem:[%s240 + $0x8] sm:$0xff]
      %v259 = vld [vmem:[%s240 + $0x10] sm:$0xff]
      %v260 = vld [vmem:[%s240 + $0x18] sm:$0xff]
      %v261 = vld [vmem:[%s249] sm:$0x1]
      %v263 = vlaneseq
      %v264 = vshrl.u32 %v263, 7
      %v265 = vsub.s32 0, %v264
      %v266 = vrot.slane %v261, %v265
      %vm268 = vcmask 261120
      %v270 = vsel %vm268, %v255, 0
      %v273 = vsel %vm268, %v256, 0
      %275 = vmatprep.subr.mxu0 0.0
      %276 = vmatpush1.msra.mxu0 %v257
      %277 = vmatprep.subr.mxu0 0.0
      %278 = vmatpush1.msra.mxu0 %v258
      %279 = vmatprep.subr.mxu0 0.0
      %280 = vmatpush1.msra.mxu0 %v259
      %281 = vmatprep.subr.mxu0 0.0
      %282 = vmatpush1.msra.mxu0 %v260
      %283 = vmatprep.subr.mxu0 0.0
      %284 = vmatpush1.msra.mxu0 0.0
      %285 = vmatprep.subr.mxu0 0.0
      %286 = vmatpush1.msra.mxu0 0.0
      %287 = vmatprep.subr.mxu0 0.0
      %288 = vmatpush1.msra.mxu0 0.0
      %289 = vmatprep.subr.mxu0 0.0
      %290 = vmatpush1.msra.mxu0 0.0
      %291 = vmatprep.subr.mxu0 0.0
      %292 = vmatpush1.msra.mxu0 0.0
      %293 = vmatprep.subr.mxu0 0.0
      %294 = vmatpush1.msra.mxu0 0.0
      %295 = vmatprep.subr.mxu0 0.0
      %296 = vmatpush1.msra.mxu0 0.0
      %297 = vmatprep.subr.mxu0 0.0
      %298 = vmatpush1.msra.mxu0 0.0
      %299 = vmatprep.subr.mxu0 0.0
      %300 = vmatpush1.msra.mxu0 0.0
      %301 = vmatprep.subr.mxu0 0.0
      %302 = vmatpush1.msra.mxu0 0.0
      %303 = vmatprep.subr.mxu0 0.0
      %304 = vmatpush1.msra.mxu0 0.0
      %305 = vmatprep.subr.mxu0 0.0
      %306 = vmatpush1.msra.mxu0 0.0
      %307 = vmatprep.subr.mxu0 0.0
      %308 = vmatpush1.msra.mxu0 0.0
      %309 = vmatprep.subr.mxu0 0.0
      %310 = vmatpush1.msra.mxu0 0.0
      %311 = vmatprep.subr.mxu0 0.0
      %312 = vmatpush1.msra.mxu0 0.0
      %313 = vmatprep.subr.mxu0 0.0
      %314 = vmatpush1.msra.mxu0 0.0
      %315 = vmatprep.subr.mxu0 0.0
      %316 = vmatpush1.msra.mxu0 0.0
      %317 = vmatprep.subr.mxu0 0.0
      %318 = vmatpush1.msra.mxu0 0.0
      %319 = vmatprep.subr.mxu0 0.0
      %320 = vmatpush1.msra.mxu0 0.0
      %321 = vmatprep.subr.mxu0 0.0
      %322 = vmatpush1.msra.mxu0 0.0
      %323 = vmatprep.subr.mxu0 0.0
      %324 = vmatpush1.msra.mxu0 0.0
      %325 = vmatprep.subr.mxu0 0.0
      %326 = vmatpush1.msra.mxu0 0.0
      %327 = vmatprep.subr.mxu0 0.0
      %328 = vmatpush1.msra.mxu0 0.0
      %329 = vmatprep.subr.mxu0 0.0
      %330 = vmatpush1.msra.mxu0 0.0
      %331 = vmatprep.subr.mxu0 0.0
      %332 = vmatpush1.msra.mxu0 0.0
      %333 = vmatprep.subr.mxu0 0.0
      %334 = vmatpush1.msra.mxu0 0.0
      %335 = vmatprep.subr.mxu0 0.0
      %336 = vmatpush1.msra.mxu0 0.0
      %337 = vmatprep.subr.mxu0 0.0
      %338 = vmatpush1.msra.mxu0 0.0
      %339 = vmatprep.mubr.f32.mxu0 0.0
      %340 = vmatmul.mubr.f32.gmra.mrb[0].mxu0 %v270
      %v341 = vpop.f32.mrb[0].mxu0
      %v342 = vadd.f32 %v266, %v341
      %v343 = vpop.f32.mrb[0].mxu0
      %344 = vmatprep.mubr.f32.mxu0 0.0
      %345 = vmatmul.mubr.f32.gmra.mrb[0].mxu0 %v273
      %v346 = vpop.f32.mrb[0].mxu0
      %v347 = vadd.f32 %v266, %v346
      %v348 = vpop.f32.mrb[0].mxu0
      %349 = vdwg.mxu0
      %vm350 = vcmask 97280
      %351 = vst.msk [vmem:[#allocation2] sm:$0xff] %vm350, %v342
      %352 = vst.msk [vmem:[#allocation2 + $0x8] sm:$0xff] %vm350, %v347
      %s353 = scalar_lea.vmem %s240, 32
      %v354 = vld [vmem:[%s353] sm:$0xff]
      %v355 = vld [vmem:[%s353 + $0x8] sm:$0xff]
      %v356 = vld [vmem:[%s353 + $0x10] sm:$0xff]
      %v357 = vld [vmem:[%s353 + $0x18] sm:$0xff]
      %s358 = scalar_lea.vmem %s249, 1
      %v359 = vld [vmem:[%s358] sm:$0x1]
      %v361 = vlaneseq
      %v362 = vshrl.u32 %v361, 7
      %v363 = vsub.s32 0, %v362
      %v364 = vrot.slane %v359, %v363
      %366 = vmatprep.subr.mxu0 0.0
      %367 = vmatpush1.msra.mxu0 %v354
      %368 = vmatprep.subr.mxu0 0.0
      %369 = vmatpush1.msra.mxu0 %v355
      %370 = vmatprep.subr.mxu0 0.0
      %371 = vmatpush1.msra.mxu0 %v356
      %372 = vmatprep.subr.mxu0 0.0
      %373 = vmatpush1.msra.mxu0 %v357
      %374 = vmatprep.subr.mxu0 0.0
      %375 = vmatpush1.msra.mxu0 0.0
      %376 = vmatprep.subr.mxu0 0.0
      %377 = vmatpush1.msra.mxu0 0.0
      %378 = vmatprep.subr.mxu0 0.0
      %379 = vmatpush1.msra.mxu0 0.0
      %380 = vmatprep.subr.mxu0 0.0
      %381 = vmatpush1.msra.mxu0 0.0
      %382 = vmatprep.subr.mxu0 0.0
      %383 = vmatpush1.msra.mxu0 0.0
      %384 = vmatprep.subr.mxu0 0.0
      %385 = vmatpush1.msra.mxu0 0.0
      %386 = vmatprep.subr.mxu0 0.0
      %387 = vmatpush1.msra.mxu0 0.0
      %388 = vmatprep.subr.mxu0 0.0
      %389 = vmatpush1.msra.mxu0 0.0
      %390 = vmatprep.subr.mxu0 0.0
      %391 = vmatpush1.msra.mxu0 0.0
      %392 = vmatprep.subr.mxu0 0.0
      %393 = vmatpush1.msra.mxu0 0.0
      %394 = vmatprep.subr.mxu0 0.0
      %395 = vmatpush1.msra.mxu0 0.0
      %396 = vmatprep.subr.mxu0 0.0
      %397 = vmatpush1.msra.mxu0 0.0
      %398 = vmatprep.subr.mxu0 0.0
      %399 = vmatpush1.msra.mxu0 0.0
      %400 = vmatprep.subr.mxu0 0.0
      %401 = vmatpush1.msra.mxu0 0.0
      %402 = vmatprep.subr.mxu0 0.0
      %403 = vmatpush1.msra.mxu0 0.0
      %404 = vmatprep.subr.mxu0 0.0
      %405 = vmatpush1.msra.mxu0 0.0
      %406 = vmatprep.subr.mxu0 0.0
      %407 = vmatpush1.msra.mxu0 0.0
      %408 = vmatprep.subr.mxu0 0.0
      %409 = vmatpush1.msra.mxu0 0.0
      %410 = vmatprep.subr.mxu0 0.0
      %411 = vmatpush1.msra.mxu0 0.0
      %412 = vmatprep.subr.mxu0 0.0
      %413 = vmatpush1.msra.mxu0 0.0
      %414 = vmatprep.subr.mxu0 0.0
      %415 = vmatpush1.msra.mxu0 0.0
      %416 = vmatprep.subr.mxu0 0.0
      %417 = vmatpush1.msra.mxu0 0.0
      %418 = vmatprep.subr.mxu0 0.0
      %419 = vmatpush1.msra.mxu0 0.0
      %420 = vmatprep.subr.mxu0 0.0
      %421 = vmatpush1.msra.mxu0 0.0
      %422 = vmatprep.subr.mxu0 0.0
      %423 = vmatpush1.msra.mxu0 0.0
      %424 = vmatprep.subr.mxu0 0.0
      %425 = vmatpush1.msra.mxu0 0.0
      %426 = vmatprep.subr.mxu0 0.0
      %427 = vmatpush1.msra.mxu0 0.0
      %428 = vmatprep.subr.mxu0 0.0
      %429 = vmatpush1.msra.mxu0 0.0
      %430 = vmatprep.mubr.f32.mxu0 0.0
      %431 = vmatmul.mubr.f32.gmra.mrb[0].mxu0 %v270
      %v432 = vpop.f32.mrb[0].mxu0
      %v433 = vadd.f32 %v364, %v432
      %v434 = vpop.f32.mrb[0].mxu0
      %435 = vmatprep.mubr.f32.mxu0 0.0
      %436 = vmatmul.mubr.f32.gmra.mrb[0].mxu0 %v273
      %v437 = vpop.f32.mrb[0].mxu0
      %v438 = vadd.f32 %v364, %v437
      %v439 = vpop.f32.mrb[0].mxu0
      %440 = vdwg.mxu0
      %441 = vst.msk [vmem:[#allocation2 + $0x10] sm:$0xff] %vm350, %v433
      %442 = vst.msk [vmem:[#allocation2 + $0x18] sm:$0xff] %vm350, %v438
      %s443 = scalar_lea.vmem %s240, 64
      %v444 = vld [vmem:[%s443] sm:$0xff]
      %v445 = vld [vmem:[%s443 + $0x8] sm:$0xff]
      %v446 = vld [vmem:[%s443 + $0x10] sm:$0xff]
      %v447 = vld [vmem:[%s443 + $0x18] sm:$0xff]
      %s448 = scalar_lea.vmem %s249, 2
      %v449 = vld [vmem:[%s448] sm:$0x1]
      %v451 = vlaneseq
      %v452 = vshrl.u32 %v451, 7
      %v453 = vsub.s32 0, %v452
      %v454 = vrot.slane %v449, %v453
      %456 = vmatprep.subr.mxu0 0.0
      %457 = vmatpush1.msra.mxu0 %v444
      %458 = vmatprep.subr.mxu0 0.0
      %459 = vmatpush1.msra.mxu0 %v445
      %460 = vmatprep.subr.mxu0 0.0
      %461 = vmatpush1.msra.mxu0 %v446
      %462 = vmatprep.subr.mxu0 0.0
      %463 = vmatpush1.msra.mxu0 %v447
      %464 = vmatprep.subr.mxu0 0.0
      %465 = vmatpush1.msra.mxu0 0.0
      %466 = vmatprep.subr.mxu0 0.0
      %467 = vmatpush1.msra.mxu0 0.0
      %468 = vmatprep.subr.mxu0 0.0
      %469 = vmatpush1.msra.mxu0 0.0
      %470 = vmatprep.subr.mxu0 0.0
      %471 = vmatpush1.msra.mxu0 0.0
      %472 = vmatprep.subr.mxu0 0.0
      %473 = vmatpush1.msra.mxu0 0.0
      %474 = vmatprep.subr.mxu0 0.0
      %475 = vmatpush1.msra.mxu0 0.0
      %476 = vmatprep.subr.mxu0 0.0
      %477 = vmatpush1.msra.mxu0 0.0
      %478 = vmatprep.subr.mxu0 0.0
      %479 = vmatpush1.msra.mxu0 0.0
      %480 = vmatprep.subr.mxu0 0.0
      %481 = vmatpush1.msra.mxu0 0.0
      %482 = vmatprep.subr.mxu0 0.0
      %483 = vmatpush1.msra.mxu0 0.0
      %484 = vmatprep.subr.mxu0 0.0
      %485 = vmatpush1.msra.mxu0 0.0
      %486 = vmatprep.subr.mxu0 0.0
      %487 = vmatpush1.msra.mxu0 0.0
      %488 = vmatprep.subr.mxu0 0.0
      %489 = vmatpush1.msra.mxu0 0.0
      %490 = vmatprep.subr.mxu0 0.0
      %491 = vmatpush1.msra.mxu0 0.0
      %492 = vmatprep.subr.mxu0 0.0
      %493 = vmatpush1.msra.mxu0 0.0
      %494 = vmatprep.subr.mxu0 0.0
      %495 = vmatpush1.msra.mxu0 0.0
      %496 = vmatprep.subr.mxu0 0.0
      %497 = vmatpush1.msra.mxu0 0.0
      %498 = vmatprep.subr.mxu0 0.0
      %499 = vmatpush1.msra.mxu0 0.0
      %500 = vmatprep.subr.mxu0 0.0
      %501 = vmatpush1.msra.mxu0 0.0
      %502 = vmatprep.subr.mxu0 0.0
      %503 = vmatpush1.msra.mxu0 0.0
      %504 = vmatprep.subr.mxu0 0.0
      %505 = vmatpush1.msra.mxu0 0.0
      %506 = vmatprep.subr.mxu0 0.0
      %507 = vmatpush1.msra.mxu0 0.0
      %508 = vmatprep.subr.mxu0 0.0
      %509 = vmatpush1.msra.mxu0 0.0
      %510 = vmatprep.subr.mxu0 0.0
      %511 = vmatpush1.msra.mxu0 0.0
      %512 = vmatprep.subr.mxu0 0.0
      %513 = vmatpush1.msra.mxu0 0.0
      %514 = vmatprep.subr.mxu0 0.0
      %515 = vmatpush1.msra.mxu0 0.0
      %516 = vmatprep.subr.mxu0 0.0
      %517 = vmatpush1.msra.mxu0 0.0
      %518 = vmatprep.subr.mxu0 0.0
      %519 = vmatpush1.msra.mxu0 0.0
      %520 = vmatprep.mubr.f32.mxu0 0.0
      %521 = vmatmul.mubr.f32.gmra.mrb[0].mxu0 %v270
      %v522 = vpop.f32.mrb[0].mxu0
      %v523 = vadd.f32 %v454, %v522
      %v524 = vpop.f32.mrb[0].mxu0
      %525 = vmatprep.mubr.f32.mxu0 0.0
      %526 = vmatmul.mubr.f32.gmra.mrb[0].mxu0 %v273
      %v527 = vpop.f32.mrb[0].mxu0
      %v528 = vadd.f32 %v454, %v527
      %v529 = vpop.f32.mrb[0].mxu0
      %530 = vdwg.mxu0
      %531 = vst.msk [vmem:[#allocation2 + $0x20] sm:$0xff] %vm350, %v523
      %532 = vst.msk [vmem:[#allocation2 + $0x28] sm:$0xff] %vm350, %v528
      %s533 = scalar_lea.vmem %s240, 96
      %v534 = vld [vmem:[%s533] sm:$0xff]
      %v535 = vld [vmem:[%s533 + $0x8] sm:$0xff]
      %v536 = vld [vmem:[%s533 + $0x10] sm:$0xff]
      %v537 = vld [vmem:[%s533 + $0x18] sm:$0xff]
      %s538 = scalar_lea.vmem %s249, 3
      %v539 = vld [vmem:[%s538] sm:$0x1]
      %v541 = vlaneseq
      %v542 = vshrl.u32 %v541, 7
      %v543 = vsub.s32 0, %v542
      %v544 = vrot.slane %v539, %v543
      %546 = vmatprep.subr.mxu0 0.0
      %547 = vmatpush1.msra.mxu0 %v534
      %548 = vmatprep.subr.mxu0 0.0
      %549 = vmatpush1.msra.mxu0 %v535
      %550 = vmatprep.subr.mxu0 0.0
      %551 = vmatpush1.msra.mxu0 %v536
      %552 = vmatprep.subr.mxu0 0.0
      %553 = vmatpush1.msra.mxu0 %v537
      %554 = vmatprep.subr.mxu0 0.0
      %555 = vmatpush1.msra.mxu0 0.0
      %556 = vmatprep.subr.mxu0 0.0
      %557 = vmatpush1.msra.mxu0 0.0
      %558 = vmatprep.subr.mxu0 0.0
      %559 = vmatpush1.msra.mxu0 0.0
      %560 = vmatprep.subr.mxu0 0.0
      %561 = vmatpush1.msra.mxu0 0.0
      %562 = vmatprep.subr.mxu0 0.0
      %563 = vmatpush1.msra.mxu0 0.0
      %564 = vmatprep.subr.mxu0 0.0
      %565 = vmatpush1.msra.mxu0 0.0
      %566 = vmatprep.subr.mxu0 0.0
      %567 = vmatpush1.msra.mxu0 0.0
      %568 = vmatprep.subr.mxu0 0.0
      %569 = vmatpush1.msra.mxu0 0.0
      %570 = vmatprep.subr.mxu0 0.0
      %571 = vmatpush1.msra.mxu0 0.0
      %572 = vmatprep.subr.mxu0 0.0
      %573 = vmatpush1.msra.mxu0 0.0
      %574 = vmatprep.subr.mxu0 0.0
      %575 = vmatpush1.msra.mxu0 0.0
      %576 = vmatprep.subr.mxu0 0.0
      %577 = vmatpush1.msra.mxu0 0.0
      %578 = vmatprep.subr.mxu0 0.0
      %579 = vmatpush1.msra.mxu0 0.0
      %580 = vmatprep.subr.mxu0 0.0
      %581 = vmatpush1.msra.mxu0 0.0
      %582 = vmatprep.subr.mxu0 0.0
      %583 = vmatpush1.msra.mxu0 0.0
      %584 = vmatprep.subr.mxu0 0.0
      %585 = vmatpush1.msra.mxu0 0.0
      %586 = vmatprep.subr.mxu0 0.0
      %587 = vmatpush1.msra.mxu0 0.0
      %588 = vmatprep.subr.mxu0 0.0
      %589 = vmatpush1.msra.mxu0 0.0
      %590 = vmatprep.subr.mxu0 0.0
      %591 = vmatpush1.msra.mxu0 0.0
      %592 = vmatprep.subr.mxu0 0.0
      %593 = vmatpush1.msra.mxu0 0.0
      %594 = vmatprep.subr.mxu0 0.0
      %595 = vmatpush1.msra.mxu0 0.0
      %596 = vmatprep.subr.mxu0 0.0
      %597 = vmatpush1.msra.mxu0 0.0
      %598 = vmatprep.subr.mxu0 0.0
      %599 = vmatpush1.msra.mxu0 0.0
      %600 = vmatprep.subr.mxu0 0.0
      %601 = vmatpush1.msra.mxu0 0.0
      %602 = vmatprep.subr.mxu0 0.0
      %603 = vmatpush1.msra.mxu0 0.0
      %604 = vmatprep.subr.mxu0 0.0
      %605 = vmatpush1.msra.mxu0 0.0
      %606 = vmatprep.subr.mxu0 0.0
      %607 = vmatpush1.msra.mxu0 0.0
      %608 = vmatprep.subr.mxu0 0.0
      %609 = vmatpush1.msra.mxu0 0.0
      %610 = vmatprep.mubr.f32.mxu0 0.0
      %611 = vmatmul.mubr.f32.gmra.mrb[0].mxu0 %v270
      %v612 = vpop.f32.mrb[0].mxu0
      %v613 = vadd.f32 %v544, %v612
      %v614 = vpop.f32.mrb[0].mxu0
      %615 = vmatprep.mubr.f32.mxu0 0.0
      %616 = vmatmul.mubr.f32.gmra.mrb[0].mxu0 %v273
      %v617 = vpop.f32.mrb[0].mxu0
      %v618 = vadd.f32 %v544, %v617
      %v619 = vpop.f32.mrb[0].mxu0
      %620 = vdwg.mxu0
      %621 = vst.msk [vmem:[#allocation2 + $0x30] sm:$0xff] %vm350, %v613
      %622 = vst.msk [vmem:[#allocation2 + $0x38] sm:$0xff] %vm350, %v618
      %v623 = vld [vmem:[%s245] sm:$0xff]
      %v624 = vld [vmem:[%s245 + $0x8] sm:$0xf]
      %s625 = scalar_lea.vmem %s245, 16
      %v626 = vld [vmem:[%s625] sm:$0xff]
      %v627 = vld [vmem:[%s625 + $0x8] sm:$0xf]
      %s628 = scalar_lea.vmem %s245, 32
      %v629 = vld [vmem:[%s628] sm:$0xff]
      %v630 = vld [vmem:[%s628 + $0x8] sm:$0xf]
      %s631 = scalar_lea.vmem %s245, 48
      %v632 = vld [vmem:[%s631] sm:$0xff]
      %v633 = vld [vmem:[%s631 + $0x8] sm:$0xf]
      %v634 = vld [vmem:[#allocation2] sm:$0x3]
      %v636 = vsel %vm350, 0.0, 0
      %vm638 = vcmask 1043456
      %v640 = vsel %vm638, %v624, 0
      %642 = vmatprep.subr.mxu0 0.0
      %643 = vmatpush1.msra.mxu0 %v623
      %644 = vmatprep.subr.mxu0 0.0
      %645 = vmatpush1.msra.mxu0 %v640
      %646 = vmatprep.subr.mxu0 0.0
      %647 = vmatpush1.msra.mxu0 0.0
      %648 = vmatprep.subr.mxu0 0.0
      %649 = vmatpush1.msra.mxu0 0.0
      %650 = vmatprep.subr.mxu0 0.0
      %651 = vmatpush1.msra.mxu0 0.0
      %652 = vmatprep.subr.mxu0 0.0
      %653 = vmatpush1.msra.mxu0 0.0
      %654 = vmatprep.subr.mxu0 0.0
      %655 = vmatpush1.msra.mxu0 0.0
      %656 = vmatprep.subr.mxu0 0.0
      %657 = vmatpush1.msra.mxu0 0.0
      %658 = vmatprep.subr.mxu0 0.0
      %659 = vmatpush1.msra.mxu0 0.0
      %660 = vmatprep.subr.mxu0 0.0
      %661 = vmatpush1.msra.mxu0 0.0
      %662 = vmatprep.subr.mxu0 0.0
      %663 = vmatpush1.msra.mxu0 0.0
      %664 = vmatprep.subr.mxu0 0.0
      %665 = vmatpush1.msra.mxu0 0.0
      %666 = vmatprep.subr.mxu0 0.0
      %667 = vmatpush1.msra.mxu0 0.0
      %668 = vmatprep.subr.mxu0 0.0
      %669 = vmatpush1.msra.mxu0 0.0
      %670 = vmatprep.subr.mxu0 0.0
      %671 = vmatpush1.msra.mxu0 0.0
      %672 = vmatprep.subr.mxu0 0.0
      %673 = vmatpush1.msra.mxu0 0.0
      %674 = vmatprep.subr.mxu0 0.0
      %675 = vmatpush1.msra.mxu0 0.0
      %676 = vmatprep.subr.mxu0 0.0
      %677 = vmatpush1.msra.mxu0 0.0
      %678 = vmatprep.subr.mxu0 0.0
      %679 = vmatpush1.msra.mxu0 0.0
      %680 = vmatprep.subr.mxu0 0.0
      %681 = vmatpush1.msra.mxu0 0.0
      %682 = vmatprep.subr.mxu0 0.0
      %683 = vmatpush1.msra.mxu0 0.0
      %684 = vmatprep.subr.mxu0 0.0
      %685 = vmatpush1.msra.mxu0 0.0
      %686 = vmatprep.subr.mxu0 0.0
      %687 = vmatpush1.msra.mxu0 0.0
      %688 = vmatprep.subr.mxu0 0.0
      %689 = vmatpush1.msra.mxu0 0.0
      %690 = vmatprep.subr.mxu0 0.0
      %691 = vmatpush1.msra.mxu0 0.0
      %692 = vmatprep.subr.mxu0 0.0
      %693 = vmatpush1.msra.mxu0 0.0
      %694 = vmatprep.subr.mxu0 0.0
      %695 = vmatpush1.msra.mxu0 0.0
      %696 = vmatprep.subr.mxu0 0.0
      %697 = vmatpush1.msra.mxu0 0.0
      %698 = vmatprep.subr.mxu0 0.0
      %699 = vmatpush1.msra.mxu0 0.0
      %700 = vmatprep.subr.mxu0 0.0
      %701 = vmatpush1.msra.mxu0 0.0
      %702 = vmatprep.subr.mxu0 0.0
      %703 = vmatpush1.msra.mxu0 0.0
      %704 = vmatprep.subr.mxu0 0.0
      %705 = vmatpush1.msra.mxu0 0.0
      %706 = vmatprep.mubr.f32.mxu0 0.0
      %707 = vmatmul.mubr.f32.gmra.mrb[0].mxu0 %v636
      %v708 = vpop.f32.mrb[0].mxu0
      %v709 = vadd.f32 0.0, %v708
      %v710 = vpop.f32.mrb[0].mxu0
      %711 = vdwg.mxu0
      %v712 = vadd.f32 %v634, %v709
      %v713 = vxor.u32 %v712, 2147483648
      %v714 = vmul.f32 %v713, 1.442695
      %v715 = vpow.pop %v714
      %v716 = vadd.f32 %v715, 1.0
      %v717 = vrcp.pop %v716
      %v718 = vmul.f32 1.0, %v717
      %v719 = vld [vmem:[#allocation2 + $0x10] sm:$0x3]
      %v721 = vsel %vm638, %v627, 0
      %723 = vmatprep.subr.mxu0 0.0
      %724 = vmatpush1.msra.mxu0 %v626
      %725 = vmatprep.subr.mxu0 0.0
      %726 = vmatpush1.msra.mxu0 %v721
      %727 = vmatprep.subr.mxu0 0.0
      %728 = vmatpush1.msra.mxu0 0.0
      %729 = vmatprep.subr.mxu0 0.0
      %730 = vmatpush1.msra.mxu0 0.0
      %731 = vmatprep.subr.mxu0 0.0
      %732 = vmatpush1.msra.mxu0 0.0
      %733 = vmatprep.subr.mxu0 0.0
      %734 = vmatpush1.msra.mxu0 0.0
      %735 = vmatprep.subr.mxu0 0.0
      %736 = vmatpush1.msra.mxu0 0.0
      %737 = vmatprep.subr.mxu0 0.0
      %738 = vmatpush1.msra.mxu0 0.0
      %739 = vmatprep.subr.mxu0 0.0
      %740 = vmatpush1.msra.mxu0 0.0
      %741 = vmatprep.subr.mxu0 0.0
      %742 = vmatpush1.msra.mxu0 0.0
      %743 = vmatprep.subr.mxu0 0.0
      %744 = vmatpush1.msra.mxu0 0.0
      %745 = vmatprep.subr.mxu0 0.0
      %746 = vmatpush1.msra.mxu0 0.0
      %747 = vmatprep.subr.mxu0 0.0
      %748 = vmatpush1.msra.mxu0 0.0
      %749 = vmatprep.subr.mxu0 0.0
      %750 = vmatpush1.msra.mxu0 0.0
      %751 = vmatprep.subr.mxu0 0.0
      %752 = vmatpush1.msra.mxu0 0.0
      %753 = vmatprep.subr.mxu0 0.0
      %754 = vmatpush1.msra.mxu0 0.0
      %755 = vmatprep.subr.mxu0 0.0
      %756 = vmatpush1.msra.mxu0 0.0
      %757 = vmatprep.subr.mxu0 0.0
      %758 = vmatpush1.msra.mxu0 0.0
      %759 = vmatprep.subr.mxu0 0.0
      %760 = vmatpush1.msra.mxu0 0.0
      %761 = vmatprep.subr.mxu0 0.0
      %762 = vmatpush1.msra.mxu0 0.0
      %763 = vmatprep.subr.mxu0 0.0
      %764 = vmatpush1.msra.mxu0 0.0
      %765 = vmatprep.subr.mxu0 0.0
      %766 = vmatpush1.msra.mxu0 0.0
      %767 = vmatprep.subr.mxu0 0.0
      %768 = vmatpush1.msra.mxu0 0.0
      %769 = vmatprep.subr.mxu0 0.0
      %770 = vmatpush1.msra.mxu0 0.0
      %771 = vmatprep.subr.mxu0 0.0
      %772 = vmatpush1.msra.mxu0 0.0
      %773 = vmatprep.subr.mxu0 0.0
      %774 = vmatpush1.msra.mxu0 0.0
      %775 = vmatprep.subr.mxu0 0.0
      %776 = vmatpush1.msra.mxu0 0.0
      %777 = vmatprep.subr.mxu0 0.0
      %778 = vmatpush1.msra.mxu0 0.0
      %779 = vmatprep.subr.mxu0 0.0
      %780 = vmatpush1.msra.mxu0 0.0
      %781 = vmatprep.subr.mxu0 0.0
      %782 = vmatpush1.msra.mxu0 0.0
      %783 = vmatprep.subr.mxu0 0.0
      %784 = vmatpush1.msra.mxu0 0.0
      %785 = vmatprep.subr.mxu0 0.0
      %786 = vmatpush1.msra.mxu0 0.0
      %787 = vmatprep.mubr.f32.mxu0 0.0
      %788 = vmatmul.mubr.f32.gmra.mrb[0].mxu0 %v636
      %v789 = vpop.f32.mrb[0].mxu0
      %v790 = vadd.f32 0.0, %v789
      %v791 = vpop.f32.mrb[0].mxu0
      %792 = vdwg.mxu0
      %v793 = vadd.f32 %v719, %v790
      %v794 = vxor.u32 %v793, 2147483648
      %v795 = vmul.f32 %v794, 1.442695
      %v796 = vpow.pop %v795
      %v797 = vadd.f32 %v796, 1.0
      %v798 = vrcp.pop %v797
      %v799 = vmul.f32 1.0, %v798
      %v800 = vld [vmem:[#allocation2 + $0x20] sm:$0x3]
      %v802 = vsel %vm638, %v630, 0
      %804 = vmatprep.subr.mxu0 0.0
      %805 = vmatpush1.msra.mxu0 %v629
      %806 = vmatprep.subr.mxu0 0.0
      %807 = vmatpush1.msra.mxu0 %v802
      %808 = vmatprep.subr.mxu0 0.0
      %809 = vmatpush1.msra.mxu0 0.0
      %810 = vmatprep.subr.mxu0 0.0
      %811 = vmatpush1.msra.mxu0 0.0
      %812 = vmatprep.subr.mxu0 0.0
      %813 = vmatpush1.msra.mxu0 0.0
      %814 = vmatprep.subr.mxu0 0.0
      %815 = vmatpush1.msra.mxu0 0.0
      %816 = vmatprep.subr.mxu0 0.0
      %817 = vmatpush1.msra.mxu0 0.0
      %818 = vmatprep.subr.mxu0 0.0
      %819 = vmatpush1.msra.mxu0 0.0
      %820 = vmatprep.subr.mxu0 0.0
      %821 = vmatpush1.msra.mxu0 0.0
      %822 = vmatprep.subr.mxu0 0.0
      %823 = vmatpush1.msra.mxu0 0.0
      %824 = vmatprep.subr.mxu0 0.0
      %825 = vmatpush1.msra.mxu0 0.0
      %826 = vmatprep.subr.mxu0 0.0
      %827 = vmatpush1.msra.mxu0 0.0
      %828 = vmatprep.subr.mxu0 0.0
      %829 = vmatpush1.msra.mxu0 0.0
      %830 = vmatprep.subr.mxu0 0.0
      %831 = vmatpush1.msra.mxu0 0.0
      %832 = vmatprep.subr.mxu0 0.0
      %833 = vmatpush1.msra.mxu0 0.0
      %834 = vmatprep.subr.mxu0 0.0
      %835 = vmatpush1.msra.mxu0 0.0
      %836 = vmatprep.subr.mxu0 0.0
      %837 = vmatpush1.msra.mxu0 0.0
      %838 = vmatprep.subr.mxu0 0.0
      %839 = vmatpush1.msra.mxu0 0.0
      %840 = vmatprep.subr.mxu0 0.0
      %841 = vmatpush1.msra.mxu0 0.0
      %842 = vmatprep.subr.mxu0 0.0
      %843 = vmatpush1.msra.mxu0 0.0
      %844 = vmatprep.subr.mxu0 0.0
      %845 = vmatpush1.msra.mxu0 0.0
      %846 = vmatprep.subr.mxu0 0.0
      %847 = vmatpush1.msra.mxu0 0.0
      %848 = vmatprep.subr.mxu0 0.0
      %849 = vmatpush1.msra.mxu0 0.0
      %850 = vmatprep.subr.mxu0 0.0
      %851 = vmatpush1.msra.mxu0 0.0
      %852 = vmatprep.subr.mxu0 0.0
      %853 = vmatpush1.msra.mxu0 0.0
      %854 = vmatprep.subr.mxu0 0.0
      %855 = vmatpush1.msra.mxu0 0.0
      %856 = vmatprep.subr.mxu0 0.0
      %857 = vmatpush1.msra.mxu0 0.0
      %858 = vmatprep.subr.mxu0 0.0
      %859 = vmatpush1.msra.mxu0 0.0
      %860 = vmatprep.subr.mxu0 0.0
      %861 = vmatpush1.msra.mxu0 0.0
      %862 = vmatprep.subr.mxu0 0.0
      %863 = vmatpush1.msra.mxu0 0.0
      %864 = vmatprep.subr.mxu0 0.0
      %865 = vmatpush1.msra.mxu0 0.0
      %866 = vmatprep.subr.mxu0 0.0
      %867 = vmatpush1.msra.mxu0 0.0
      %868 = vmatprep.mubr.f32.mxu0 0.0
      %869 = vmatmul.mubr.f32.gmra.mrb[0].mxu0 %v636
      %v870 = vpop.f32.mrb[0].mxu0
      %v871 = vadd.f32 0.0, %v870
      %v872 = vpop.f32.mrb[0].mxu0
      %873 = vdwg.mxu0
      %v874 = vadd.f32 %v800, %v871
      %v875 = vtanh.pop %v874
      %v876 = vld [vmem:[#allocation2 + $0x30] sm:$0x3]
      %v878 = vsel %vm638, %v633, 0
      %880 = vmatprep.subr.mxu0 0.0
      %881 = vmatpush1.msra.mxu0 %v632
      %882 = vmatprep.subr.mxu0 0.0
      %883 = vmatpush1.msra.mxu0 %v878
      %884 = vmatprep.subr.mxu0 0.0
      %885 = vmatpush1.msra.mxu0 0.0
      %886 = vmatprep.subr.mxu0 0.0
      %887 = vmatpush1.msra.mxu0 0.0
      %888 = vmatprep.subr.mxu0 0.0
      %889 = vmatpush1.msra.mxu0 0.0
      %890 = vmatprep.subr.mxu0 0.0
      %891 = vmatpush1.msra.mxu0 0.0
      %892 = vmatprep.subr.mxu0 0.0
      %893 = vmatpush1.msra.mxu0 0.0
      %894 = vmatprep.subr.mxu0 0.0
      %895 = vmatpush1.msra.mxu0 0.0
      %896 = vmatprep.subr.mxu0 0.0
      %897 = vmatpush1.msra.mxu0 0.0
      %898 = vmatprep.subr.mxu0 0.0
      %899 = vmatpush1.msra.mxu0 0.0
      %900 = vmatprep.subr.mxu0 0.0
      %901 = vmatpush1.msra.mxu0 0.0
      %902 = vmatprep.subr.mxu0 0.0
      %903 = vmatpush1.msra.mxu0 0.0
      %904 = vmatprep.subr.mxu0 0.0
      %905 = vmatpush1.msra.mxu0 0.0
      %906 = vmatprep.subr.mxu0 0.0
      %907 = vmatpush1.msra.mxu0 0.0
      %908 = vmatprep.subr.mxu0 0.0
      %909 = vmatpush1.msra.mxu0 0.0
      %910 = vmatprep.subr.mxu0 0.0
      %911 = vmatpush1.msra.mxu0 0.0
      %912 = vmatprep.subr.mxu0 0.0
      %913 = vmatpush1.msra.mxu0 0.0
      %914 = vmatprep.subr.mxu0 0.0
      %915 = vmatpush1.msra.mxu0 0.0
      %916 = vmatprep.subr.mxu0 0.0
      %917 = vmatpush1.msra.mxu0 0.0
      %918 = vmatprep.subr.mxu0 0.0
      %919 = vmatpush1.msra.mxu0 0.0
      %920 = vmatprep.subr.mxu0 0.0
      %921 = vmatpush1.msra.mxu0 0.0
      %922 = vmatprep.subr.mxu0 0.0
      %923 = vmatpush1.msra.mxu0 0.0
      %924 = vmatprep.subr.mxu0 0.0
      %925 = vmatpush1.msra.mxu0 0.0
      %926 = vmatprep.subr.mxu0 0.0
      %927 = vmatpush1.msra.mxu0 0.0
      %928 = vmatprep.subr.mxu0 0.0
      %929 = vmatpush1.msra.mxu0 0.0
      %930 = vmatprep.subr.mxu0 0.0
      %931 = vmatpush1.msra.mxu0 0.0
      %932 = vmatprep.subr.mxu0 0.0
      %933 = vmatpush1.msra.mxu0 0.0
      %934 = vmatprep.subr.mxu0 0.0
      %935 = vmatpush1.msra.mxu0 0.0
      %936 = vmatprep.subr.mxu0 0.0
      %937 = vmatpush1.msra.mxu0 0.0
      %938 = vmatprep.subr.mxu0 0.0
      %939 = vmatpush1.msra.mxu0 0.0
      %940 = vmatprep.subr.mxu0 0.0
      %941 = vmatpush1.msra.mxu0 0.0
      %942 = vmatprep.subr.mxu0 0.0
      %943 = vmatpush1.msra.mxu0 0.0
      %944 = vmatprep.mubr.f32.mxu0 0.0
      %945 = vmatmul.mubr.f32.gmra.mrb[0].mxu0 %v636
      %v946 = vpop.f32.mrb[0].mxu0
      %v947 = vadd.f32 0.0, %v946
      %v948 = vpop.f32.mrb[0].mxu0
      %949 = vdwg.mxu0
      %v950 = vadd.f32 %v876, %v947
      %v951 = vxor.u32 %v950, 2147483648
      %v952 = vmul.f32 %v951, 1.442695
      %v953 = vpow.pop %v952
      %v954 = vadd.f32 %v953, 1.0
      %v955 = vrcp.pop %v954
      %v956 = vmul.f32 1.0, %v955
      %v957 = vmul.f32 %v799, 0.0
      %v958 = vmul.f32 %v718, %v875
      %v959 = vadd.f32 %v957, %v958
      %v960 = vtanh.pop %v959
      %v961 = vmul.f32 %v956, %v960
      %vm962 = vcmask 91136
      %963 = vst.msk [vmem:[%s254] sm:$0x3] %vm962, %v961
      %v964 = vld [vmem:[#allocation2 + $0x2] sm:$0x3]
      %v966 = vsel %vm350, %v961, 0
      %968 = vmatprep.subr.mxu0 0.0
      %969 = vmatpush1.msra.mxu0 %v623
      %970 = vmatprep.subr.mxu0 0.0
      %971 = vmatpush1.msra.mxu0 %v640
      %972 = vmatprep.subr.mxu0 0.0
      %973 = vmatpush1.msra.mxu0 0.0
      %974 = vmatprep.subr.mxu0 0.0
      %975 = vmatpush1.msra.mxu0 0.0
      %976 = vmatprep.subr.mxu0 0.0
      %977 = vmatpush1.msra.mxu0 0.0
      %978 = vmatprep.subr.mxu0 0.0
      %979 = vmatpush1.msra.mxu0 0.0
      %980 = vmatprep.subr.mxu0 0.0
      %981 = vmatpush1.msra.mxu0 0.0
      %982 = vmatprep.subr.mxu0 0.0
      %983 = vmatpush1.msra.mxu0 0.0
      %984 = vmatprep.subr.mxu0 0.0
      %985 = vmatpush1.msra.mxu0 0.0
      %986 = vmatprep.subr.mxu0 0.0
      %987 = vmatpush1.msra.mxu0 0.0
      %988 = vmatprep.subr.mxu0 0.0
      %989 = vmatpush1.msra.mxu0 0.0
      %990 = vmatprep.subr.mxu0 0.0
      %991 = vmatpush1.msra.mxu0 0.0
      %992 = vmatprep.subr.mxu0 0.0
      %993 = vmatpush1.msra.mxu0 0.0
      %994 = vmatprep.subr.mxu0 0.0
      %995 = vmatpush1.msra.mxu0 0.0
      %996 = vmatprep.subr.mxu0 0.0
      %997 = vmatpush1.msra.mxu0 0.0
      %998 = vmatprep.subr.mxu0 0.0
      %999 = vmatpush1.msra.mxu0 0.0
      %1000 = vmatprep.subr.mxu0 0.0
      %1001 = vmatpush1.msra.mxu0 0.0
      %1002 = vmatprep.subr.mxu0 0.0
      %1003 = vmatpush1.msra.mxu0 0.0
      %1004 = vmatprep.subr.mxu0 0.0
      %1005 = vmatpush1.msra.mxu0 0.0
      %1006 = vmatprep.subr.mxu0 0.0
      %1007 = vmatpush1.msra.mxu0 0.0
      %1008 = vmatprep.subr.mxu0 0.0
      %1009 = vmatpush1.msra.mxu0 0.0
      %1010 = vmatprep.subr.mxu0 0.0
      %1011 = vmatpush1.msra.mxu0 0.0
      %1012 = vmatprep.subr.mxu0 0.0
      %1013 = vmatpush1.msra.mxu0 0.0
      %1014 = vmatprep.subr.mxu0 0.0
      %1015 = vmatpush1.msra.mxu0 0.0
      %1016 = vmatprep.subr.mxu0 0.0
      %1017 = vmatpush1.msra.mxu0 0.0
      %1018 = vmatprep.subr.mxu0 0.0
      %1019 = vmatpush1.msra.mxu0 0.0
      %1020 = vmatprep.subr.mxu0 0.0
      %1021 = vmatpush1.msra.mxu0 0.0
      %1022 = vmatprep.subr.mxu0 0.0
      %1023 = vmatpush1.msra.mxu0 0.0
      %1024 = vmatprep.subr.mxu0 0.0
      %1025 = vmatpush1.msra.mxu0 0.0
      %1026 = vmatprep.subr.mxu0 0.0
      %1027 = vmatpush1.msra.mxu0 0.0
      %1028 = vmatprep.subr.mxu0 0.0
      %1029 = vmatpush1.msra.mxu0 0.0
      %1030 = vmatprep.subr.mxu0 0.0
      %1031 = vmatpush1.msra.mxu0 0.0
      %1032 = vmatprep.mubr.f32.mxu0 0.0
      %1033 = vmatmul.mubr.f32.gmra.mrb[0].mxu0 %v966
      %v1034 = vpop.f32.mrb[0].mxu0
      %v1035 = vadd.f32 0.0, %v1034
      %v1036 = vpop.f32.mrb[0].mxu0
      %1037 = vdwg.mxu0
      %v1038 = vadd.f32 %v964, %v1035
      %v1039 = vxor.u32 %v1038, 2147483648
      %v1040 = vmul.f32 %v1039, 1.442695
      %v1041 = vpow.pop %v1040
      %v1042 = vadd.f32 %v1041, 1.0
      %v1043 = vrcp.pop %v1042
      %v1044 = vmul.f32 1.0, %v1043
      %v1045 = vld [vmem:[#allocation2 + $0x12] sm:$0x3]
      %1046 = vmatprep.subr.mxu0 0.0
      %1047 = vmatpush1.msra.mxu0 %v626
      %1048 = vmatprep.subr.mxu0 0.0
      %1049 = vmatpush1.msra.mxu0 %v721
      %1050 = vmatprep.subr.mxu0 0.0
      %1051 = vmatpush1.msra.mxu0 0.0
      %1052 = vmatprep.subr.mxu0 0.0
      %1053 = vmatpush1.msra.mxu0 0.0
      %1054 = vmatprep.subr.mxu0 0.0
      %1055 = vmatpush1.msra.mxu0 0.0
      %1056 = vmatprep.subr.mxu0 0.0
      %1057 = vmatpush1.msra.mxu0 0.0
      %1058 = vmatprep.subr.mxu0 0.0
      %1059 = vmatpush1.msra.mxu0 0.0
      %1060 = vmatprep.subr.mxu0 0.0
      %1061 = vmatpush1.msra.mxu0 0.0
      %1062 = vmatprep.subr.mxu0 0.0
      %1063 = vmatpush1.msra.mxu0 0.0
      %1064 = vmatprep.subr.mxu0 0.0
      %1065 = vmatpush1.msra.mxu0 0.0
      %1066 = vmatprep.subr.mxu0 0.0
      %1067 = vmatpush1.msra.mxu0 0.0
      %1068 = vmatprep.subr.mxu0 0.0
      %1069 = vmatpush1.msra.mxu0 0.0
      %1070 = vmatprep.subr.mxu0 0.0
      %1071 = vmatpush1.msra.mxu0 0.0
      %1072 = vmatprep.subr.mxu0 0.0
      %1073 = vmatpush1.msra.mxu0 0.0
      %1074 = vmatprep.subr.mxu0 0.0
      %1075 = vmatpush1.msra.mxu0 0.0
      %1076 = vmatprep.subr.mxu0 0.0
      %1077 = vmatpush1.msra.mxu0 0.0
      %1078 = vmatprep.subr.mxu0 0.0
      %1079 = vmatpush1.msra.mxu0 0.0
      %1080 = vmatprep.subr.mxu0 0.0
      %1081 = vmatpush1.msra.mxu0 0.0
      %1082 = vmatprep.subr.mxu0 0.0
      %1083 = vmatpush1.msra.mxu0 0.0
      %1084 = vmatprep.subr.mxu0 0.0
      %1085 = vmatpush1.msra.mxu0 0.0
      %1086 = vmatprep.subr.mxu0 0.0
      %1087 = vmatpush1.msra.mxu0 0.0
      %1088 = vmatprep.subr.mxu0 0.0
      %1089 = vmatpush1.msra.mxu0 0.0
      %1090 = vmatprep.subr.mxu0 0.0
      %1091 = vmatpush1.msra.mxu0 0.0
      %1092 = vmatprep.subr.mxu0 0.0
      %1093 = vmatpush1.msra.mxu0 0.0
      %1094 = vmatprep.subr.mxu0 0.0
      %1095 = vmatpush1.msra.mxu0 0.0
      %1096 = vmatprep.subr.mxu0 0.0
      %1097 = vmatpush1.msra.mxu0 0.0
      %1098 = vmatprep.subr.mxu0 0.0
      %1099 = vmatpush1.msra.mxu0 0.0
      %1100 = vmatprep.subr.mxu0 0.0
      %1101 = vmatpush1.msra.mxu0 0.0
      %1102 = vmatprep.subr.mxu0 0.0
      %1103 = vmatpush1.msra.mxu0 0.0
      %1104 = vmatprep.subr.mxu0 0.0
      %1105 = vmatpush1.msra.mxu0 0.0
      %1106 = vmatprep.subr.mxu0 0.0
      %1107 = vmatpush1.msra.mxu0 0.0
      %1108 = vmatprep.subr.mxu0 0.0
      %1109 = vmatpush1.msra.mxu0 0.0
      %1110 = vmatprep.mubr.f32.mxu0 0.0
      %1111 = vmatmul.mubr.f32.gmra.mrb[0].mxu0 %v966
      %v1112 = vpop.f32.mrb[0].mxu0
      %v1113 = vadd.f32 0.0, %v1112
      %v1114 = vpop.f32.mrb[0].mxu0
      %1115 = vdwg.mxu0
      %v1116 = vadd.f32 %v1045, %v1113
      %v1117 = vxor.u32 %v1116, 2147483648
      %v1118 = vmul.f32 %v1117, 1.442695
      %v1119 = vpow.pop %v1118
      %v1120 = vadd.f32 %v1119, 1.0
      %v1121 = vrcp.pop %v1120
      %v1122 = vmul.f32 1.0, %v1121
      %v1123 = vld [vmem:[#allocation2 + $0x22] sm:$0x3]
      %1124 = vmatprep.subr.mxu0 0.0
      %1125 = vmatpush1.msra.mxu0 %v629
      %1126 = vmatprep.subr.mxu0 0.0
      %1127 = vmatpush1.msra.mxu0 %v802
      %1128 = vmatprep.subr.mxu0 0.0
      %1129 = vmatpush1.msra.mxu0 0.0
      %1130 = vmatprep.subr.mxu0 0.0
      %1131 = vmatpush1.msra.mxu0 0.0
      %1132 = vmatprep.subr.mxu0 0.0
      %1133 = vmatpush1.msra.mxu0 0.0
      %1134 = vmatprep.subr.mxu0 0.0
      %1135 = vmatpush1.msra.mxu0 0.0
      %1136 = vmatprep.subr.mxu0 0.0
      %1137 = vmatpush1.msra.mxu0 0.0
      %1138 = vmatprep.subr.mxu0 0.0
      %1139 = vmatpush1.msra.mxu0 0.0
      %1140 = vmatprep.subr.mxu0 0.0
      %1141 = vmatpush1.msra.mxu0 0.0
      %1142 = vmatprep.subr.mxu0 0.0
      %1143 = vmatpush1.msra.mxu0 0.0
      %1144 = vmatprep.subr.mxu0 0.0
      %1145 = vmatpush1.msra.mxu0 0.0
      %1146 = vmatprep.subr.mxu0 0.0
      %1147 = vmatpush1.msra.mxu0 0.0
      %1148 = vmatprep.subr.mxu0 0.0
      %1149 = vmatpush1.msra.mxu0 0.0
      %1150 = vmatprep.subr.mxu0 0.0
      %1151 = vmatpush1.msra.mxu0 0.0
      %1152 = vmatprep.subr.mxu0 0.0
      %1153 = vmatpush1.msra.mxu0 0.0
      %1154 = vmatprep.subr.mxu0 0.0
      %1155 = vmatpush1.msra.mxu0 0.0
      %1156 = vmatprep.subr.mxu0 0.0
      %1157 = vmatpush1.msra.mxu0 0.0
      %1158 = vmatprep.subr.mxu0 0.0
      %1159 = vmatpush1.msra.mxu0 0.0
      %1160 = vmatprep.subr.mxu0 0.0
      %1161 = vmatpush1.msra.mxu0 0.0
      %1162 = vmatprep.subr.mxu0 0.0
      %1163 = vmatpush1.msra.mxu0 0.0
      %1164 = vmatprep.subr.mxu0 0.0
      %1165 = vmatpush1.msra.mxu0 0.0
      %1166 = vmatprep.subr.mxu0 0.0
      %1167 = vmatpush1.msra.mxu0 0.0
      %1168 = vmatprep.subr.mxu0 0.0
      %1169 = vmatpush1.msra.mxu0 0.0
      %1170 = vmatprep.subr.mxu0 0.0
      %1171 = vmatpush1.msra.mxu0 0.0
      %1172 = vmatprep.subr.mxu0 0.0
      %1173 = vmatpush1.msra.mxu0 0.0
      %1174 = vmatprep.subr.mxu0 0.0
      %1175 = vmatpush1.msra.mxu0 0.0
      %1176 = vmatprep.subr.mxu0 0.0
      %1177 = vmatpush1.msra.mxu0 0.0
      %1178 = vmatprep.subr.mxu0 0.0
      %1179 = vmatpush1.msra.mxu0 0.0
      %1180 = vmatprep.subr.mxu0 0.0
      %1181 = vmatpush1.msra.mxu0 0.0
      %1182 = vmatprep.subr.mxu0 0.0
      %1183 = vmatpush1.msra.mxu0 0.0
      %1184 = vmatprep.subr.mxu0 0.0
      %1185 = vmatpush1.msra.mxu0 0.0
      %1186 = vmatprep.subr.mxu0 0.0
      %1187 = vmatpush1.msra.mxu0 0.0
      %1188 = vmatprep.mubr.f32.mxu0 0.0
      %1189 = vmatmul.mubr.f32.gmra.mrb[0].mxu0 %v966
      %v1190 = vpop.f32.mrb[0].mxu0
      %v1191 = vadd.f32 0.0, %v1190
      %v1192 = vpop.f32.mrb[0].mxu0
      %1193 = vdwg.mxu0
      %v1194 = vadd.f32 %v1123, %v1191
      %v1195 = vtanh.pop %v1194
      %v1196 = vld [vmem:[#allocation2 + $0x32] sm:$0x3]
      %1197 = vmatprep.subr.mxu0 0.0
      %1198 = vmatpush1.msra.mxu0 %v632
      %1199 = vmatprep.subr.mxu0 0.0
      %1200 = vmatpush1.msra.mxu0 %v878
      %1201 = vmatprep.subr.mxu0 0.0
      %1202 = vmatpush1.msra.mxu0 0.0
      %1203 = vmatprep.subr.mxu0 0.0
      %1204 = vmatpush1.msra.mxu0 0.0
      %1205 = vmatprep.subr.mxu0 0.0
      %1206 = vmatpush1.msra.mxu0 0.0
      %1207 = vmatprep.subr.mxu0 0.0
      %1208 = vmatpush1.msra.mxu0 0.0
      %1209 = vmatprep.subr.mxu0 0.0
      %1210 = vmatpush1.msra.mxu0 0.0
      %1211 = vmatprep.subr.mxu0 0.0
      %1212 = vmatpush1.msra.mxu0 0.0
      %1213 = vmatprep.subr.mxu0 0.0
      %1214 = vmatpush1.msra.mxu0 0.0
      %1215 = vmatprep.subr.mxu0 0.0
      %1216 = vmatpush1.msra.mxu0 0.0
      %1217 = vmatprep.subr.mxu0 0.0
      %1218 = vmatpush1.msra.mxu0 0.0
      %1219 = vmatprep.subr.mxu0 0.0
      %1220 = vmatpush1.msra.mxu0 0.0
      %1221 = vmatprep.subr.mxu0 0.0
      %1222 = vmatpush1.msra.mxu0 0.0
      %1223 = vmatprep.subr.mxu0 0.0
      %1224 = vmatpush1.msra.mxu0 0.0
      %1225 = vmatprep.subr.mxu0 0.0
      %1226 = vmatpush1.msra.mxu0 0.0
      %1227 = vmatprep.subr.mxu0 0.0
      %1228 = vmatpush1.msra.mxu0 0.0
      %1229 = vmatprep.subr.mxu0 0.0
      %1230 = vmatpush1.msra.mxu0 0.0
      %1231 = vmatprep.subr.mxu0 0.0
      %1232 = vmatpush1.msra.mxu0 0.0
      %1233 = vmatprep.subr.mxu0 0.0
      %1234 = vmatpush1.msra.mxu0 0.0
      %1235 = vmatprep.subr.mxu0 0.0
      %1236 = vmatpush1.msra.mxu0 0.0
      %1237 = vmatprep.subr.mxu0 0.0
      %1238 = vmatpush1.msra.mxu0 0.0
      %1239 = vmatprep.subr.mxu0 0.0
      %1240 = vmatpush1.msra.mxu0 0.0
      %1241 = vmatprep.subr.mxu0 0.0
      %1242 = vmatpush1.msra.mxu0 0.0
      %1243 = vmatprep.subr.mxu0 0.0
      %1244 = vmatpush1.msra.mxu0 0.0
      %1245 = vmatprep.subr.mxu0 0.0
      %1246 = vmatpush1.msra.mxu0 0.0
      %1247 = vmatprep.subr.mxu0 0.0
      %1248 = vmatpush1.msra.mxu0 0.0
      %1249 = vmatprep.subr.mxu0 0.0
      %1250 = vmatpush1.msra.mxu0 0.0
      %1251 = vmatprep.subr.mxu0 0.0
      %1252 = vmatpush1.msra.mxu0 0.0
      %1253 = vmatprep.subr.mxu0 0.0
      %1254 = vmatpush1.msra.mxu0 0.0
      %1255 = vmatprep.subr.mxu0 0.0
      %1256 = vmatpush1.msra.mxu0 0.0
      %1257 = vmatprep.subr.mxu0 0.0
      %1258 = vmatpush1.msra.mxu0 0.0
      %1259 = vmatprep.subr.mxu0 0.0
      %1260 = vmatpush1.msra.mxu0 0.0
      %1261 = vmatprep.mubr.f32.mxu0 0.0
      %1262 = vmatmul.mubr.f32.gmra.mrb[0].mxu0 %v966
      %v1263 = vpop.f32.mrb[0].mxu0
      %v1264 = vadd.f32 0.0, %v1263
      %v1265 = vpop.f32.mrb[0].mxu0
      %1266 = vdwg.mxu0
      %v1267 = vadd.f32 %v1196, %v1264
      %v1268 = vxor.u32 %v1267, 2147483648
      %v1269 = vmul.f32 %v1268, 1.442695
      %v1270 = vpow.pop %v1269
      %v1271 = vadd.f32 %v1270, 1.0
      %v1272 = vrcp.pop %v1271
      %v1273 = vmul.f32 1.0, %v1272
      %v1274 = vmul.f32 %v1122, %v959
      %v1275 = vmul.f32 %v1044, %v1195
      %v1276 = vadd.f32 %v1274, %v1275
      %v1277 = vtanh.pop %v1276
      %v1278 = vmul.f32 %v1273, %v1277
      %1279 = vst.msk [vmem:[%s254 + $0x2] sm:$0x3] %vm962, %v1278
      %v1280 = vld [vmem:[#allocation2 + $0x4] sm:$0x3]
      %v1282 = vsel %vm350, %v1278, 0
      %1284 = vmatprep.subr.mxu0 0.0
      %1285 = vmatpush1.msra.mxu0 %v623
      %1286 = vmatprep.subr.mxu0 0.0
      %1287 = vmatpush1.msra.mxu0 %v640
      %1288 = vmatprep.subr.mxu0 0.0
      %1289 = vmatpush1.msra.mxu0 0.0
      %1290 = vmatprep.subr.mxu0 0.0
      %1291 = vmatpush1.msra.mxu0 0.0
      %1292 = vmatprep.subr.mxu0 0.0
      %1293 = vmatpush1.msra.mxu0 0.0
      %1294 = vmatprep.subr.mxu0 0.0
      %1295 = vmatpush1.msra.mxu0 0.0
      %1296 = vmatprep.subr.mxu0 0.0
      %1297 = vmatpush1.msra.mxu0 0.0
      %1298 = vmatprep.subr.mxu0 0.0
      %1299 = vmatpush1.msra.mxu0 0.0
      %1300 = vmatprep.subr.mxu0 0.0
      %1301 = vmatpush1.msra.mxu0 0.0
      %1302 = vmatprep.subr.mxu0 0.0
      %1303 = vmatpush1.msra.mxu0 0.0
      %1304 = vmatprep.subr.mxu0 0.0
      %1305 = vmatpush1.msra.mxu0 0.0
      %1306 = vmatprep.subr.mxu0 0.0
      %1307 = vmatpush1.msra.mxu0 0.0
      %1308 = vmatprep.subr.mxu0 0.0
      %1309 = vmatpush1.msra.mxu0 0.0
      %1310 = vmatprep.subr.mxu0 0.0
      %1311 = vmatpush1.msra.mxu0 0.0
      %1312 = vmatprep.subr.mxu0 0.0
      %1313 = vmatpush1.msra.mxu0 0.0
      %1314 = vmatprep.subr.mxu0 0.0
      %1315 = vmatpush1.msra.mxu0 0.0
      %1316 = vmatprep.subr.mxu0 0.0
      %1317 = vmatpush1.msra.mxu0 0.0
      %1318 = vmatprep.subr.mxu0 0.0
      %1319 = vmatpush1.msra.mxu0 0.0
      %1320 = vmatprep.subr.mxu0 0.0
      %1321 = vmatpush1.msra.mxu0 0.0
      %1322 = vmatprep.subr.mxu0 0.0
      %1323 = vmatpush1.msra.mxu0 0.0
      %1324 = vmatprep.subr.mxu0 0.0
      %1325 = vmatpush1.msra.mxu0 0.0
      %1326 = vmatprep.subr.mxu0 0.0
      %1327 = vmatpush1.msra.mxu0 0.0
      %1328 = vmatprep.subr.mxu0 0.0
      %1329 = vmatpush1.msra.mxu0 0.0
      %1330 = vmatprep.subr.mxu0 0.0
      %1331 = vmatpush1.msra.mxu0 0.0
      %1332 = vmatprep.subr.mxu0 0.0
      %1333 = vmatpush1.msra.mxu0 0.0
      %1334 = vmatprep.subr.mxu0 0.0
      %1335 = vmatpush1.msra.mxu0 0.0
      %1336 = vmatprep.subr.mxu0 0.0
      %1337 = vmatpush1.msra.mxu0 0.0
      %1338 = vmatprep.subr.mxu0 0.0
      %1339 = vmatpush1.msra.mxu0 0.0
      %1340 = vmatprep.subr.mxu0 0.0
      %1341 = vmatpush1.msra.mxu0 0.0
      %1342 = vmatprep.subr.mxu0 0.0
      %1343 = vmatpush1.msra.mxu0 0.0
      %1344 = vmatprep.subr.mxu0 0.0
      %1345 = vmatpush1.msra.mxu0 0.0
      %1346 = vmatprep.subr.mxu0 0.0
      %1347 = vmatpush1.msra.mxu0 0.0
      %1348 = vmatprep.mubr.f32.mxu0 0.0
      %1349 = vmatmul.mubr.f32.gmra.mrb[0].mxu0 %v1282
      %v1350 = vpop.f32.mrb[0].mxu0
      %v1351 = vadd.f32 0.0, %v1350
      %v1352 = vpop.f32.mrb[0].mxu0
      %1353 = vdwg.mxu0
      %v1354 = vadd.f32 %v1280, %v1351
      %v1355 = vxor.u32 %v1354, 2147483648
      %v1356 = vmul.f32 %v1355, 1.442695
      %v1357 = vpow.pop %v1356
      %v1358 = vadd.f32 %v1357, 1.0
      %v1359 = vrcp.pop %v1358
      %v1360 = vmul.f32 1.0, %v1359
      %v1361 = vld [vmem:[#allocation2 + $0x14] sm:$0x3]
      %1362 = vmatprep.subr.mxu0 0.0
      %1363 = vmatpush1.msra.mxu0 %v626
      %1364 = vmatprep.subr.mxu0 0.0
      %1365 = vmatpush1.msra.mxu0 %v721
      %1366 = vmatprep.subr.mxu0 0.0
      %1367 = vmatpush1.msra.mxu0 0.0
      %1368 = vmatprep.subr.mxu0 0.0
      %1369 = vmatpush1.msra.mxu0 0.0
      %1370 = vmatprep.subr.mxu0 0.0
      %1371 = vmatpush1.msra.mxu0 0.0
      %1372 = vmatprep.subr.mxu0 0.0
      %1373 = vmatpush1.msra.mxu0 0.0
      %1374 = vmatprep.subr.mxu0 0.0
      %1375 = vmatpush1.msra.mxu0 0.0
      %1376 = vmatprep.subr.mxu0 0.0
      %1377 = vmatpush1.msra.mxu0 0.0
      %1378 = vmatprep.subr.mxu0 0.0
      %1379 = vmatpush1.msra.mxu0 0.0
      %1380 = vmatprep.subr.mxu0 0.0
      %1381 = vmatpush1.msra.mxu0 0.0
      %1382 = vmatprep.subr.mxu0 0.0
      %1383 = vmatpush1.msra.mxu0 0.0
      %1384 = vmatprep.subr.mxu0 0.0
      %1385 = vmatpush1.msra.mxu0 0.0
      %1386 = vmatprep.subr.mxu0 0.0
      %1387 = vmatpush1.msra.mxu0 0.0
      %1388 = vmatprep.subr.mxu0 0.0
      %1389 = vmatpush1.msra.mxu0 0.0
      %1390 = vmatprep.subr.mxu0 0.0
      %1391 = vmatpush1.msra.mxu0 0.0
      %1392 = vmatprep.subr.mxu0 0.0
      %1393 = vmatpush1.msra.mxu0 0.0
      %1394 = vmatprep.subr.mxu0 0.0
      %1395 = vmatpush1.msra.mxu0 0.0
      %1396 = vmatprep.subr.mxu0 0.0
      %1397 = vmatpush1.msra.mxu0 0.0
      %1398 = vmatprep.subr.mxu0 0.0
      %1399 = vmatpush1.msra.mxu0 0.0
      %1400 = vmatprep.subr.mxu0 0.0
      %1401 = vmatpush1.msra.mxu0 0.0
      %1402 = vmatprep.subr.mxu0 0.0
      %1403 = vmatpush1.msra.mxu0 0.0
      %1404 = vmatprep.subr.mxu0 0.0
      %1405 = vmatpush1.msra.mxu0 0.0
      %1406 = vmatprep.subr.mxu0 0.0
      %1407 = vmatpush1.msra.mxu0 0.0
      %1408 = vmatprep.subr.mxu0 0.0
      %1409 = vmatpush1.msra.mxu0 0.0
      %1410 = vmatprep.subr.mxu0 0.0
      %1411 = vmatpush1.msra.mxu0 0.0
      %1412 = vmatprep.subr.mxu0 0.0
      %1413 = vmatpush1.msra.mxu0 0.0
      %1414 = vmatprep.subr.mxu0 0.0
      %1415 = vmatpush1.msra.mxu0 0.0
      %1416 = vmatprep.subr.mxu0 0.0
      %1417 = vmatpush1.msra.mxu0 0.0
      %1418 = vmatprep.subr.mxu0 0.0
      %1419 = vmatpush1.msra.mxu0 0.0
      %1420 = vmatprep.subr.mxu0 0.0
      %1421 = vmatpush1.msra.mxu0 0.0
      %1422 = vmatprep.subr.mxu0 0.0
      %1423 = vmatpush1.msra.mxu0 0.0
      %1424 = vmatprep.subr.mxu0 0.0
      %1425 = vmatpush1.msra.mxu0 0.0
      %1426 = vmatprep.mubr.f32.mxu0 0.0
      %1427 = vmatmul.mubr.f32.gmra.mrb[0].mxu0 %v1282
      %v1428 = vpop.f32.mrb[0].mxu0
      %v1429 = vadd.f32 0.0, %v1428
      %v1430 = vpop.f32.mrb[0].mxu0
      %1431 = vdwg.mxu0
      %v1432 = vadd.f32 %v1361, %v1429
      %v1433 = vxor.u32 %v1432, 2147483648
      %v1434 = vmul.f32 %v1433, 1.442695
      %v1435 = vpow.pop %v1434
      %v1436 = vadd.f32 %v1435, 1.0
      %v1437 = vrcp.pop %v1436
      %v1438 = vmul.f32 1.0, %v1437
      %v1439 = vld [vmem:[#allocation2 + $0x24] sm:$0x3]
      %1440 = vmatprep.subr.mxu0 0.0
      %1441 = vmatpush1.msra.mxu0 %v629
      %1442 = vmatprep.subr.mxu0 0.0
      %1443 = vmatpush1.msra.mxu0 %v802
      %1444 = vmatprep.subr.mxu0 0.0
      %1445 = vmatpush1.msra.mxu0 0.0
      %1446 = vmatprep.subr.mxu0 0.0
      %1447 = vmatpush1.msra.mxu0 0.0
      %1448 = vmatprep.subr.mxu0 0.0
      %1449 = vmatpush1.msra.mxu0 0.0
      %1450 = vmatprep.subr.mxu0 0.0
      %1451 = vmatpush1.msra.mxu0 0.0
      %1452 = vmatprep.subr.mxu0 0.0
      %1453 = vmatpush1.msra.mxu0 0.0
      %1454 = vmatprep.subr.mxu0 0.0
      %1455 = vmatpush1.msra.mxu0 0.0
      %1456 = vmatprep.subr.mxu0 0.0
      %1457 = vmatpush1.msra.mxu0 0.0
      %1458 = vmatprep.subr.mxu0 0.0
      %1459 = vmatpush1.msra.mxu0 0.0
      %1460 = vmatprep.subr.mxu0 0.0
      %1461 = vmatpush1.msra.mxu0 0.0
      %1462 = vmatprep.subr.mxu0 0.0
      %1463 = vmatpush1.msra.mxu0 0.0
      %1464 = vmatprep.subr.mxu0 0.0
      %1465 = vmatpush1.msra.mxu0 0.0
      %1466 = vmatprep.subr.mxu0 0.0
      %1467 = vmatpush1.msra.mxu0 0.0
      %1468 = vmatprep.subr.mxu0 0.0
      %1469 = vmatpush1.msra.mxu0 0.0
      %1470 = vmatprep.subr.mxu0 0.0
      %1471 = vmatpush1.msra.mxu0 0.0
      %1472 = vmatprep.subr.mxu0 0.0
      %1473 = vmatpush1.msra.mxu0 0.0
      %1474 = vmatprep.subr.mxu0 0.0
      %1475 = vmatpush1.msra.mxu0 0.0
      %1476 = vmatprep.subr.mxu0 0.0
      %1477 = vmatpush1.msra.mxu0 0.0
      %1478 = vmatprep.subr.mxu0 0.0
      %1479 = vmatpush1.msra.mxu0 0.0
      %1480 = vmatprep.subr.mxu0 0.0
      %1481 = vmatpush1.msra.mxu0 0.0
      %1482 = vmatprep.subr.mxu0 0.0
      %1483 = vmatpush1.msra.mxu0 0.0
      %1484 = vmatprep.subr.mxu0 0.0
      %1485 = vmatpush1.msra.mxu0 0.0
      %1486 = vmatprep.subr.mxu0 0.0
      %1487 = vmatpush1.msra.mxu0 0.0
      %1488 = vmatprep.subr.mxu0 0.0
      %1489 = vmatpush1.msra.mxu0 0.0
      %1490 = vmatprep.subr.mxu0 0.0
      %1491 = vmatpush1.msra.mxu0 0.0
      %1492 = vmatprep.subr.mxu0 0.0
      %1493 = vmatpush1.msra.mxu0 0.0
      %1494 = vmatprep.subr.mxu0 0.0
      %1495 = vmatpush1.msra.mxu0 0.0
      %1496 = vmatprep.subr.mxu0 0.0
      %1497 = vmatpush1.msra.mxu0 0.0
      %1498 = vmatprep.subr.mxu0 0.0
      %1499 = vmatpush1.msra.mxu0 0.0
      %1500 = vmatprep.subr.mxu0 0.0
      %1501 = vmatpush1.msra.mxu0 0.0
      %1502 = vmatprep.subr.mxu0 0.0
      %1503 = vmatpush1.msra.mxu0 0.0
      %1504 = vmatprep.mubr.f32.mxu0 0.0
      %1505 = vmatmul.mubr.f32.gmra.mrb[0].mxu0 %v1282
      %v1506 = vpop.f32.mrb[0].mxu0
      %v1507 = vadd.f32 0.0, %v1506
      %v1508 = vpop.f32.mrb[0].mxu0
      %1509 = vdwg.mxu0
      %v1510 = vadd.f32 %v1439, %v1507
      %v1511 = vtanh.pop %v1510
      %v1512 = vld [vmem:[#allocation2 + $0x34] sm:$0x3]
      %1513 = vmatprep.subr.mxu0 0.0
      %1514 = vmatpush1.msra.mxu0 %v632
      %1515 = vmatprep.subr.mxu0 0.0
      %1516 = vmatpush1.msra.mxu0 %v878
      %1517 = vmatprep.subr.mxu0 0.0
      %1518 = vmatpush1.msra.mxu0 0.0
      %1519 = vmatprep.subr.mxu0 0.0
      %1520 = vmatpush1.msra.mxu0 0.0
      %1521 = vmatprep.subr.mxu0 0.0
      %1522 = vmatpush1.msra.mxu0 0.0
      %1523 = vmatprep.subr.mxu0 0.0
      %1524 = vmatpush1.msra.mxu0 0.0
      %1525 = vmatprep.subr.mxu0 0.0
      %1526 = vmatpush1.msra.mxu0 0.0
      %1527 = vmatprep.subr.mxu0 0.0
      %1528 = vmatpush1.msra.mxu0 0.0
      %1529 = vmatprep.subr.mxu0 0.0
      %1530 = vmatpush1.msra.mxu0 0.0
      %1531 = vmatprep.subr.mxu0 0.0
      %1532 = vmatpush1.msra.mxu0 0.0
      %1533 = vmatprep.subr.mxu0 0.0
      %1534 = vmatpush1.msra.mxu0 0.0
      %1535 = vmatprep.subr.mxu0 0.0
      %1536 = vmatpush1.msra.mxu0 0.0
      %1537 = vmatprep.subr.mxu0 0.0
      %1538 = vmatpush1.msra.mxu0 0.0
      %1539 = vmatprep.subr.mxu0 0.0
      %1540 = vmatpush1.msra.mxu0 0.0
      %1541 = vmatprep.subr.mxu0 0.0
      %1542 = vmatpush1.msra.mxu0 0.0
      %1543 = vmatprep.subr.mxu0 0.0
      %1544 = vmatpush1.msra.mxu0 0.0
      %1545 = vmatprep.subr.mxu0 0.0
      %1546 = vmatpush1.msra.mxu0 0.0
      %1547 = vmatprep.subr.mxu0 0.0
      %1548 = vmatpush1.msra.mxu0 0.0
      %1549 = vmatprep.subr.mxu0 0.0
      %1550 = vmatpush1.msra.mxu0 0.0
      %1551 = vmatprep.subr.mxu0 0.0
      %1552 = vmatpush1.msra.mxu0 0.0
      %1553 = vmatprep.subr.mxu0 0.0
      %1554 = vmatpush1.msra.mxu0 0.0
      %1555 = vmatprep.subr.mxu0 0.0
      %1556 = vmatpush1.msra.mxu0 0.0
      %1557 = vmatprep.subr.mxu0 0.0
      %1558 = vmatpush1.msra.mxu0 0.0
      %1559 = vmatprep.subr.mxu0 0.0
      %1560 = vmatpush1.msra.mxu0 0.0
      %1561 = vmatprep.subr.mxu0 0.0
      %1562 = vmatpush1.msra.mxu0 0.0
      %1563 = vmatprep.subr.mxu0 0.0
      %1564 = vmatpush1.msra.mxu0 0.0
      %1565 = vmatprep.subr.mxu0 0.0
      %1566 = vmatpush1.msra.mxu0 0.0
      %1567 = vmatprep.subr.mxu0 0.0
      %1568 = vmatpush1.msra.mxu0 0.0
      %1569 = vmatprep.subr.mxu0 0.0
      %1570 = vmatpush1.msra.mxu0 0.0
      %1571 = vmatprep.subr.mxu0 0.0
      %1572 = vmatpush1.msra.mxu0 0.0
      %1573 = vmatprep.subr.mxu0 0.0
      %1574 = vmatpush1.msra.mxu0 0.0
      %1575 = vmatprep.subr.mxu0 0.0
      %1576 = vmatpush1.msra.mxu0 0.0
      %1577 = vmatprep.mubr.f32.mxu0 0.0
      %1578 = vmatmul.mubr.f32.gmra.mrb[0].mxu0 %v1282
      %v1579 = vpop.f32.mrb[0].mxu0
      %v1580 = vadd.f32 0.0, %v1579
      %v1581 = vpop.f32.mrb[0].mxu0
      %1582 = vdwg.mxu0
      %v1583 = vadd.f32 %v1512, %v1580
      %v1584 = vxor.u32 %v1583, 2147483648
      %v1585 = vmul.f32 %v1584, 1.442695
      %v1586 = vpow.pop %v1585
      %v1587 = vadd.f32 %v1586, 1.0
      %v1588 = vrcp.pop %v1587
      %v1589 = vmul.f32 1.0, %v1588
      %v1590 = vmul.f32 %v1438, %v1276
      %v1591 = vmul.f32 %v1360, %v1511
      %v1592 = vadd.f32 %v1590, %v1591
      %v1593 = vtanh.pop %v1592
      %v1594 = vmul.f32 %v1589, %v1593
      %1595 = vst.msk [vmem:[%s254 + $0x4] sm:$0x3] %vm962, %v1594
      %v1596 = vld [vmem:[#allocation2 + $0x6] sm:$0x3]
      %v1598 = vsel %vm350, %v1594, 0
      %1600 = vmatprep.subr.mxu0 0.0
      %1601 = vmatpush1.msra.mxu0 %v623
      %1602 = vmatprep.subr.mxu0 0.0
      %1603 = vmatpush1.msra.mxu0 %v640
      %1604 = vmatprep.subr.mxu0 0.0
      %1605 = vmatpush1.msra.mxu0 0.0
      %1606 = vmatprep.subr.mxu0 0.0
      %1607 = vmatpush1.msra.mxu0 0.0
      %1608 = vmatprep.subr.mxu0 0.0
      %1609 = vmatpush1.msra.mxu0 0.0
      %1610 = vmatprep.subr.mxu0 0.0
      %1611 = vmatpush1.msra.mxu0 0.0
      %1612 = vmatprep.subr.mxu0 0.0
      %1613 = vmatpush1.msra.mxu0 0.0
      %1614 = vmatprep.subr.mxu0 0.0
      %1615 = vmatpush1.msra.mxu0 0.0
      %1616 = vmatprep.subr.mxu0 0.0
      %1617 = vmatpush1.msra.mxu0 0.0
      %1618 = vmatprep.subr.mxu0 0.0
      %1619 = vmatpush1.msra.mxu0 0.0
      %1620 = vmatprep.subr.mxu0 0.0
      %1621 = vmatpush1.msra.mxu0 0.0
      %1622 = vmatprep.subr.mxu0 0.0
      %1623 = vmatpush1.msra.mxu0 0.0
      %1624 = vmatprep.subr.mxu0 0.0
      %1625 = vmatpush1.msra.mxu0 0.0
      %1626 = vmatprep.subr.mxu0 0.0
      %1627 = vmatpush1.msra.mxu0 0.0
      %1628 = vmatprep.subr.mxu0 0.0
      %1629 = vmatpush1.msra.mxu0 0.0
      %1630 = vmatprep.subr.mxu0 0.0
      %1631 = vmatpush1.msra.mxu0 0.0
      %1632 = vmatprep.subr.mxu0 0.0
      %1633 = vmatpush1.msra.mxu0 0.0
      %1634 = vmatprep.subr.mxu0 0.0
      %1635 = vmatpush1.msra.mxu0 0.0
      %1636 = vmatprep.subr.mxu0 0.0
      %1637 = vmatpush1.msra.mxu0 0.0
      %1638 = vmatprep.subr.mxu0 0.0
      %1639 = vmatpush1.msra.mxu0 0.0
      %1640 = vmatprep.subr.mxu0 0.0
      %1641 = vmatpush1.msra.mxu0 0.0
      %1642 = vmatprep.subr.mxu0 0.0
      %1643 = vmatpush1.msra.mxu0 0.0
      %1644 = vmatprep.subr.mxu0 0.0
      %1645 = vmatpush1.msra.mxu0 0.0
      %1646 = vmatprep.subr.mxu0 0.0
      %1647 = vmatpush1.msra.mxu0 0.0
      %1648 = vmatprep.subr.mxu0 0.0
      %1649 = vmatpush1.msra.mxu0 0.0
      %1650 = vmatprep.subr.mxu0 0.0
      %1651 = vmatpush1.msra.mxu0 0.0
      %1652 = vmatprep.subr.mxu0 0.0
      %1653 = vmatpush1.msra.mxu0 0.0
      %1654 = vmatprep.subr.mxu0 0.0
      %1655 = vmatpush1.msra.mxu0 0.0
      %1656 = vmatprep.subr.mxu0 0.0
      %1657 = vmatpush1.msra.mxu0 0.0
      %1658 = vmatprep.subr.mxu0 0.0
      %1659 = vmatpush1.msra.mxu0 0.0
      %1660 = vmatprep.subr.mxu0 0.0
      %1661 = vmatpush1.msra.mxu0 0.0
      %1662 = vmatprep.subr.mxu0 0.0
      %1663 = vmatpush1.msra.mxu0 0.0
      %1664 = vmatprep.mubr.f32.mxu0 0.0
      %1665 = vmatmul.mubr.f32.gmra.mrb[0].mxu0 %v1598
      %v1666 = vpop.f32.mrb[0].mxu0
      %v1667 = vadd.f32 0.0, %v1666
      %v1668 = vpop.f32.mrb[0].mxu0
      %1669 = vdwg.mxu0
      %v1670 = vadd.f32 %v1596, %v1667
      %v1671 = vxor.u32 %v1670, 2147483648
      %v1672 = vmul.f32 %v1671, 1.442695
      %v1673 = vpow.pop %v1672
      %v1674 = vadd.f32 %v1673, 1.0
      %v1675 = vrcp.pop %v1674
      %v1676 = vmul.f32 1.0, %v1675
      %v1677 = vld [vmem:[#allocation2 + $0x16] sm:$0x3]
      %1678 = vmatprep.subr.mxu0 0.0
      %1679 = vmatpush1.msra.mxu0 %v626
      %1680 = vmatprep.subr.mxu0 0.0
      %1681 = vmatpush1.msra.mxu0 %v721
      %1682 = vmatprep.subr.mxu0 0.0
      %1683 = vmatpush1.msra.mxu0 0.0
      %1684 = vmatprep.subr.mxu0 0.0
      %1685 = vmatpush1.msra.mxu0 0.0
      %1686 = vmatprep.subr.mxu0 0.0
      %1687 = vmatpush1.msra.mxu0 0.0
      %1688 = vmatprep.subr.mxu0 0.0
      %1689 = vmatpush1.msra.mxu0 0.0
      %1690 = vmatprep.subr.mxu0 0.0
      %1691 = vmatpush1.msra.mxu0 0.0
      %1692 = vmatprep.subr.mxu0 0.0
      %1693 = vmatpush1.msra.mxu0 0.0
      %1694 = vmatprep.subr.mxu0 0.0
      %1695 = vmatpush1.msra.mxu0 0.0
      %1696 = vmatprep.subr.mxu0 0.0
      %1697 = vmatpush1.msra.mxu0 0.0
      %1698 = vmatprep.subr.mxu0 0.0
      %1699 = vmatpush1.msra.mxu0 0.0
      %1700 = vmatprep.subr.mxu0 0.0
      %1701 = vmatpush1.msra.mxu0 0.0
      %1702 = vmatprep.subr.mxu0 0.0
      %1703 = vmatpush1.msra.mxu0 0.0
      %1704 = vmatprep.subr.mxu0 0.0
      %1705 = vmatpush1.msra.mxu0 0.0
      %1706 = vmatprep.subr.mxu0 0.0
      %1707 = vmatpush1.msra.mxu0 0.0
      %1708 = vmatprep.subr.mxu0 0.0
      %1709 = vmatpush1.msra.mxu0 0.0
      %1710 = vmatprep.subr.mxu0 0.0
      %1711 = vmatpush1.msra.mxu0 0.0
      %1712 = vmatprep.subr.mxu0 0.0
      %1713 = vmatpush1.msra.mxu0 0.0
      %1714 = vmatprep.subr.mxu0 0.0
      %1715 = vmatpush1.msra.mxu0 0.0
      %1716 = vmatprep.subr.mxu0 0.0
      %1717 = vmatpush1.msra.mxu0 0.0
      %1718 = vmatprep.subr.mxu0 0.0
      %1719 = vmatpush1.msra.mxu0 0.0
      %1720 = vmatprep.subr.mxu0 0.0
      %1721 = vmatpush1.msra.mxu0 0.0
      %1722 = vmatprep.subr.mxu0 0.0
      %1723 = vmatpush1.msra.mxu0 0.0
      %1724 = vmatprep.subr.mxu0 0.0
      %1725 = vmatpush1.msra.mxu0 0.0
      %1726 = vmatprep.subr.mxu0 0.0
      %1727 = vmatpush1.msra.mxu0 0.0
      %1728 = vmatprep.subr.mxu0 0.0
      %1729 = vmatpush1.msra.mxu0 0.0
      %1730 = vmatprep.subr.mxu0 0.0
      %1731 = vmatpush1.msra.mxu0 0.0
      %1732 = vmatprep.subr.mxu0 0.0
      %1733 = vmatpush1.msra.mxu0 0.0
      %1734 = vmatprep.subr.mxu0 0.0
      %1735 = vmatpush1.msra.mxu0 0.0
      %1736 = vmatprep.subr.mxu0 0.0
      %1737 = vmatpush1.msra.mxu0 0.0
      %1738 = vmatprep.subr.mxu0 0.0
      %1739 = vmatpush1.msra.mxu0 0.0
      %1740 = vmatprep.subr.mxu0 0.0
      %1741 = vmatpush1.msra.mxu0 0.0
      %1742 = vmatprep.mubr.f32.mxu0 0.0
      %1743 = vmatmul.mubr.f32.gmra.mrb[0].mxu0 %v1598
      %v1744 = vpop.f32.mrb[0].mxu0
      %v1745 = vadd.f32 0.0, %v1744
      %v1746 = vpop.f32.mrb[0].mxu0
      %1747 = vdwg.mxu0
      %v1748 = vadd.f32 %v1677, %v1745
      %v1749 = vxor.u32 %v1748, 2147483648
      %v1750 = vmul.f32 %v1749, 1.442695
      %v1751 = vpow.pop %v1750
      %v1752 = vadd.f32 %v1751, 1.0
      %v1753 = vrcp.pop %v1752
      %v1754 = vmul.f32 1.0, %v1753
      %v1755 = vld [vmem:[#allocation2 + $0x26] sm:$0x3]
      %1756 = vmatprep.subr.mxu0 0.0
      %1757 = vmatpush1.msra.mxu0 %v629
      %1758 = vmatprep.subr.mxu0 0.0
      %1759 = vmatpush1.msra.mxu0 %v802
      %1760 = vmatprep.subr.mxu0 0.0
      %1761 = vmatpush1.msra.mxu0 0.0
      %1762 = vmatprep.subr.mxu0 0.0
      %1763 = vmatpush1.msra.mxu0 0.0
      %1764 = vmatprep.subr.mxu0 0.0
      %1765 = vmatpush1.msra.mxu0 0.0
      %1766 = vmatprep.subr.mxu0 0.0
      %1767 = vmatpush1.msra.mxu0 0.0
      %1768 = vmatprep.subr.mxu0 0.0
      %1769 = vmatpush1.msra.mxu0 0.0
      %1770 = vmatprep.subr.mxu0 0.0
      %1771 = vmatpush1.msra.mxu0 0.0
      %1772 = vmatprep.subr.mxu0 0.0
      %1773 = vmatpush1.msra.mxu0 0.0
      %1774 = vmatprep.subr.mxu0 0.0
      %1775 = vmatpush1.msra.mxu0 0.0
      %1776 = vmatprep.subr.mxu0 0.0
      %1777 = vmatpush1.msra.mxu0 0.0
      %1778 = vmatprep.subr.mxu0 0.0
      %1779 = vmatpush1.msra.mxu0 0.0
      %1780 = vmatprep.subr.mxu0 0.0
      %1781 = vmatpush1.msra.mxu0 0.0
      %1782 = vmatprep.subr.mxu0 0.0
      %1783 = vmatpush1.msra.mxu0 0.0
      %1784 = vmatprep.subr.mxu0 0.0
      %1785 = vmatpush1.msra.mxu0 0.0
      %1786 = vmatprep.subr.mxu0 0.0
      %1787 = vmatpush1.msra.mxu0 0.0
      %1788 = vmatprep.subr.mxu0 0.0
      %1789 = vmatpush1.msra.mxu0 0.0
      %1790 = vmatprep.subr.mxu0 0.0
      %1791 = vmatpush1.msra.mxu0 0.0
      %1792 = vmatprep.subr.mxu0 0.0
      %1793 = vmatpush1.msra.mxu0 0.0
      %1794 = vmatprep.subr.mxu0 0.0
      %1795 = vmatpush1.msra.mxu0 0.0
      %1796 = vmatprep.subr.mxu0 0.0
      %1797 = vmatpush1.msra.mxu0 0.0
      %1798 = vmatprep.subr.mxu0 0.0
      %1799 = vmatpush1.msra.mxu0 0.0
      %1800 = vmatprep.subr.mxu0 0.0
      %1801 = vmatpush1.msra.mxu0 0.0
      %1802 = vmatprep.subr.mxu0 0.0
      %1803 = vmatpush1.msra.mxu0 0.0
      %1804 = vmatprep.subr.mxu0 0.0
      %1805 = vmatpush1.msra.mxu0 0.0
      %1806 = vmatprep.subr.mxu0 0.0
      %1807 = vmatpush1.msra.mxu0 0.0
      %1808 = vmatprep.subr.mxu0 0.0
      %1809 = vmatpush1.msra.mxu0 0.0
      %1810 = vmatprep.subr.mxu0 0.0
      %1811 = vmatpush1.msra.mxu0 0.0
      %1812 = vmatprep.subr.mxu0 0.0
      %1813 = vmatpush1.msra.mxu0 0.0
      %1814 = vmatprep.subr.mxu0 0.0
      %1815 = vmatpush1.msra.mxu0 0.0
      %1816 = vmatprep.subr.mxu0 0.0
      %1817 = vmatpush1.msra.mxu0 0.0
      %1818 = vmatprep.subr.mxu0 0.0
      %1819 = vmatpush1.msra.mxu0 0.0
      %1820 = vmatprep.mubr.f32.mxu0 0.0
      %1821 = vmatmul.mubr.f32.gmra.mrb[0].mxu0 %v1598
      %v1822 = vpop.f32.mrb[0].mxu0
      %v1823 = vadd.f32 0.0, %v1822
      %v1824 = vpop.f32.mrb[0].mxu0
      %1825 = vdwg.mxu0
      %v1826 = vadd.f32 %v1755, %v1823
      %v1827 = vtanh.pop %v1826
      %v1828 = vld [vmem:[#allocation2 + $0x36] sm:$0x3]
      %1829 = vmatprep.subr.mxu0 0.0
      %1830 = vmatpush1.msra.mxu0 %v632
      %1831 = vmatprep.subr.mxu0 0.0
      %1832 = vmatpush1.msra.mxu0 %v878
      %1833 = vmatprep.subr.mxu0 0.0
      %1834 = vmatpush1.msra.mxu0 0.0
      %1835 = vmatprep.subr.mxu0 0.0
      %1836 = vmatpush1.msra.mxu0 0.0
      %1837 = vmatprep.subr.mxu0 0.0
      %1838 = vmatpush1.msra.mxu0 0.0
      %1839 = vmatprep.subr.mxu0 0.0
      %1840 = vmatpush1.msra.mxu0 0.0
      %1841 = vmatprep.subr.mxu0 0.0
      %1842 = vmatpush1.msra.mxu0 0.0
      %1843 = vmatprep.subr.mxu0 0.0
      %1844 = vmatpush1.msra.mxu0 0.0
      %1845 = vmatprep.subr.mxu0 0.0
      %1846 = vmatpush1.msra.mxu0 0.0
      %1847 = vmatprep.subr.mxu0 0.0
      %1848 = vmatpush1.msra.mxu0 0.0
      %1849 = vmatprep.subr.mxu0 0.0
      %1850 = vmatpush1.msra.mxu0 0.0
      %1851 = vmatprep.subr.mxu0 0.0
      %1852 = vmatpush1.msra.mxu0 0.0
      %1853 = vmatprep.subr.mxu0 0.0
      %1854 = vmatpush1.msra.mxu0 0.0
      %1855 = vmatprep.subr.mxu0 0.0
      %1856 = vmatpush1.msra.mxu0 0.0
      %1857 = vmatprep.subr.mxu0 0.0
      %1858 = vmatpush1.msra.mxu0 0.0
      %1859 = vmatprep.subr.mxu0 0.0
      %1860 = vmatpush1.msra.mxu0 0.0
      %1861 = vmatprep.subr.mxu0 0.0
      %1862 = vmatpush1.msra.mxu0 0.0
      %1863 = vmatprep.subr.mxu0 0.0
      %1864 = vmatpush1.msra.mxu0 0.0
      %1865 = vmatprep.subr.mxu0 0.0
      %1866 = vmatpush1.msra.mxu0 0.0
      %1867 = vmatprep.subr.mxu0 0.0
      %1868 = vmatpush1.msra.mxu0 0.0
      %1869 = vmatprep.subr.mxu0 0.0
      %1870 = vmatpush1.msra.mxu0 0.0
      %1871 = vmatprep.subr.mxu0 0.0
      %1872 = vmatpush1.msra.mxu0 0.0
      %1873 = vmatprep.subr.mxu0 0.0
      %1874 = vmatpush1.msra.mxu0 0.0
      %1875 = vmatprep.subr.mxu0 0.0
      %1876 = vmatpush1.msra.mxu0 0.0
      %1877 = vmatprep.subr.mxu0 0.0
      %1878 = vmatpush1.msra.mxu0 0.0
      %1879 = vmatprep.subr.mxu0 0.0
      %1880 = vmatpush1.msra.mxu0 0.0
      %1881 = vmatprep.subr.mxu0 0.0
      %1882 = vmatpush1.msra.mxu0 0.0
      %1883 = vmatprep.subr.mxu0 0.0
      %1884 = vmatpush1.msra.mxu0 0.0
      %1885 = vmatprep.subr.mxu0 0.0
      %1886 = vmatpush1.msra.mxu0 0.0
      %1887 = vmatprep.subr.mxu0 0.0
      %1888 = vmatpush1.msra.mxu0 0.0
      %1889 = vmatprep.subr.mxu0 0.0
      %1890 = vmatpush1.msra.mxu0 0.0
      %1891 = vmatprep.subr.mxu0 0.0
      %1892 = vmatpush1.msra.mxu0 0.0
      %1893 = vmatprep.mubr.f32.mxu0 0.0
      %1894 = vmatmul.mubr.f32.gmra.mrb[0].mxu0 %v1598
      %v1895 = vpop.f32.mrb[0].mxu0
      %v1896 = vadd.f32 0.0, %v1895
      %v1897 = vpop.f32.mrb[0].mxu0
      %1898 = vdwg.mxu0
      %v1899 = vadd.f32 %v1828, %v1896
      %v1900 = vxor.u32 %v1899, 2147483648
      %v1901 = vmul.f32 %v1900, 1.442695
      %v1902 = vpow.pop %v1901
      %v1903 = vadd.f32 %v1902, 1.0
      %v1904 = vrcp.pop %v1903
      %v1905 = vmul.f32 1.0, %v1904
      %v1906 = vmul.f32 %v1754, %v1592
      %v1907 = vmul.f32 %v1676, %v1827
      %v1908 = vadd.f32 %v1906, %v1907
      %v1909 = vtanh.pop %v1908
      %v1910 = vmul.f32 %v1905, %v1909
      %1911 = vst.msk [vmem:[%s254 + $0x6] sm:$0x3] %vm962, %v1910
      %v1912 = vld [vmem:[#allocation2 + $0x8] sm:$0x3]
      %v1914 = vsel %vm350, %v1910, 0
      %1916 = vmatprep.subr.mxu0 0.0
      %1917 = vmatpush1.msra.mxu0 %v623
      %1918 = vmatprep.subr.mxu0 0.0
      %1919 = vmatpush1.msra.mxu0 %v640
      %1920 = vmatprep.subr.mxu0 0.0
      %1921 = vmatpush1.msra.mxu0 0.0
      %1922 = vmatprep.subr.mxu0 0.0
      %1923 = vmatpush1.msra.mxu0 0.0
      %1924 = vmatprep.subr.mxu0 0.0
      %1925 = vmatpush1.msra.mxu0 0.0
      %1926 = vmatprep.subr.mxu0 0.0
      %1927 = vmatpush1.msra.mxu0 0.0
      %1928 = vmatprep.subr.mxu0 0.0
      %1929 = vmatpush1.msra.mxu0 0.0
      %1930 = vmatprep.subr.mxu0 0.0
      %1931 = vmatpush1.msra.mxu0 0.0
      %1932 = vmatprep.subr.mxu0 0.0
      %1933 = vmatpush1.msra.mxu0 0.0
      %1934 = vmatprep.subr.mxu0 0.0
      %1935 = vmatpush1.msra.mxu0 0.0
      %1936 = vmatprep.subr.mxu0 0.0
      %1937 = vmatpush1.msra.mxu0 0.0
      %1938 = vmatprep.subr.mxu0 0.0
      %1939 = vmatpush1.msra.mxu0 0.0
      %1940 = vmatprep.subr.mxu0 0.0
      %1941 = vmatpush1.msra.mxu0 0.0
      %1942 = vmatprep.subr.mxu0 0.0
      %1943 = vmatpush1.msra.mxu0 0.0
      %1944 = vmatprep.subr.mxu0 0.0
      %1945 = vmatpush1.msra.mxu0 0.0
      %1946 = vmatprep.subr.mxu0 0.0
      %1947 = vmatpush1.msra.mxu0 0.0
      %1948 = vmatprep.subr.mxu0 0.0
      %1949 = vmatpush1.msra.mxu0 0.0
      %1950 = vmatprep.subr.mxu0 0.0
      %1951 = vmatpush1.msra.mxu0 0.0
      %1952 = vmatprep.subr.mxu0 0.0
      %1953 = vmatpush1.msra.mxu0 0.0
      %1954 = vmatprep.subr.mxu0 0.0
      %1955 = vmatpush1.msra.mxu0 0.0
      %1956 = vmatprep.subr.mxu0 0.0
      %1957 = vmatpush1.msra.mxu0 0.0
      %1958 = vmatprep.subr.mxu0 0.0
      %1959 = vmatpush1.msra.mxu0 0.0
      %1960 = vmatprep.subr.mxu0 0.0
      %1961 = vmatpush1.msra.mxu0 0.0
      %1962 = vmatprep.subr.mxu0 0.0
      %1963 = vmatpush1.msra.mxu0 0.0
      %1964 = vmatprep.subr.mxu0 0.0
      %1965 = vmatpush1.msra.mxu0 0.0
      %1966 = vmatprep.subr.mxu0 0.0
      %1967 = vmatpush1.msra.mxu0 0.0
      %1968 = vmatprep.subr.mxu0 0.0
      %1969 = vmatpush1.msra.mxu0 0.0
      %1970 = vmatprep.subr.mxu0 0.0
      %1971 = vmatpush1.msra.mxu0 0.0
      %1972 = vmatprep.subr.mxu0 0.0
      %1973 = vmatpush1.msra.mxu0 0.0
      %1974 = vmatprep.subr.mxu0 0.0
      %1975 = vmatpush1.msra.mxu0 0.0
      %1976 = vmatprep.subr.mxu0 0.0
      %1977 = vmatpush1.msra.mxu0 0.0
      %1978 = vmatprep.subr.mxu0 0.0
      %1979 = vmatpush1.msra.mxu0 0.0
      %1980 = vmatprep.mubr.f32.mxu0 0.0
      %1981 = vmatmul.mubr.f32.gmra.mrb[0].mxu0 %v1914
      %v1982 = vpop.f32.mrb[0].mxu0
      %v1983 = vadd.f32 0.0, %v1982
      %v1984 = vpop.f32.mrb[0].mxu0
      %1985 = vdwg.mxu0
      %v1986 = vadd.f32 %v1912, %v1983
      %v1987 = vxor.u32 %v1986, 2147483648
      %v1988 = vmul.f32 %v1987, 1.442695
      %v1989 = vpow.pop %v1988
      %v1990 = vadd.f32 %v1989, 1.0
      %v1991 = vrcp.pop %v1990
      %v1992 = vmul.f32 1.0, %v1991
      %v1993 = vld [vmem:[#allocation2 + $0x18] sm:$0x3]
      %1994 = vmatprep.subr.mxu0 0.0
      %1995 = vmatpush1.msra.mxu0 %v626
      %1996 = vmatprep.subr.mxu0 0.0
      %1997 = vmatpush1.msra.mxu0 %v721
      %1998 = vmatprep.subr.mxu0 0.0
      %1999 = vmatpush1.msra.mxu0 0.0
      %2000 = vmatprep.subr.mxu0 0.0
      %2001 = vmatpush1.msra.mxu0 0.0
      %2002 = vmatprep.subr.mxu0 0.0
      %2003 = vmatpush1.msra.mxu0 0.0
      %2004 = vmatprep.subr.mxu0 0.0
      %2005 = vmatpush1.msra.mxu0 0.0
      %2006 = vmatprep.subr.mxu0 0.0
      %2007 = vmatpush1.msra.mxu0 0.0
      %2008 = vmatprep.subr.mxu0 0.0
      %2009 = vmatpush1.msra.mxu0 0.0
      %2010 = vmatprep.subr.mxu0 0.0
      %2011 = vmatpush1.msra.mxu0 0.0
      %2012 = vmatprep.subr.mxu0 0.0
      %2013 = vmatpush1.msra.mxu0 0.0
      %2014 = vmatprep.subr.mxu0 0.0
      %2015 = vmatpush1.msra.mxu0 0.0
      %2016 = vmatprep.subr.mxu0 0.0
      %2017 = vmatpush1.msra.mxu0 0.0
      %2018 = vmatprep.subr.mxu0 0.0
      %2019 = vmatpush1.msra.mxu0 0.0
      %2020 = vmatprep.subr.mxu0 0.0
      %2021 = vmatpush1.msra.mxu0 0.0
      %2022 = vmatprep.subr.mxu0 0.0
      %2023 = vmatpush1.msra.mxu0 0.0
      %2024 = vmatprep.subr.mxu0 0.0
      %2025 = vmatpush1.msra.mxu0 0.0
      %2026 = vmatprep.subr.mxu0 0.0
      %2027 = vmatpush1.msra.mxu0 0.0
      %2028 = vmatprep.subr.mxu0 0.0
      %2029 = vmatpush1.msra.mxu0 0.0
      %2030 = vmatprep.subr.mxu0 0.0
      %2031 = vmatpush1.msra.mxu0 0.0
      %2032 = vmatprep.subr.mxu0 0.0
      %2033 = vmatpush1.msra.mxu0 0.0
      %2034 = vmatprep.subr.mxu0 0.0
      %2035 = vmatpush1.msra.mxu0 0.0
      %2036 = vmatprep.subr.mxu0 0.0
      %2037 = vmatpush1.msra.mxu0 0.0
      %2038 = vmatprep.subr.mxu0 0.0
      %2039 = vmatpush1.msra.mxu0 0.0
      %2040 = vmatprep.subr.mxu0 0.0
      %2041 = vmatpush1.msra.mxu0 0.0
      %2042 = vmatprep.subr.mxu0 0.0
      %2043 = vmatpush1.msra.mxu0 0.0
      %2044 = vmatprep.subr.mxu0 0.0
      %2045 = vmatpush1.msra.mxu0 0.0
      %2046 = vmatprep.subr.mxu0 0.0
      %2047 = vmatpush1.msra.mxu0 0.0
      %2048 = vmatprep.subr.mxu0 0.0
      %2049 = vmatpush1.msra.mxu0 0.0
      %2050 = vmatprep.subr.mxu0 0.0
      %2051 = vmatpush1.msra.mxu0 0.0
      %2052 = vmatprep.subr.mxu0 0.0
      %2053 = vmatpush1.msra.mxu0 0.0
      %2054 = vmatprep.subr.mxu0 0.0
      %2055 = vmatpush1.msra.mxu0 0.0
      %2056 = vmatprep.subr.mxu0 0.0
      %2057 = vmatpush1.msra.mxu0 0.0
      %2058 = vmatprep.mubr.f32.mxu0 0.0
      %2059 = vmatmul.mubr.f32.gmra.mrb[0].mxu0 %v1914
      %v2060 = vpop.f32.mrb[0].mxu0
      %v2061 = vadd.f32 0.0, %v2060
      %v2062 = vpop.f32.mrb[0].mxu0
      %2063 = vdwg.mxu0
      %v2064 = vadd.f32 %v1993, %v2061
      %v2065 = vxor.u32 %v2064, 2147483648
      %v2066 = vmul.f32 %v2065, 1.442695
      %v2067 = vpow.pop %v2066
      %v2068 = vadd.f32 %v2067, 1.0
      %v2069 = vrcp.pop %v2068
      %v2070 = vmul.f32 1.0, %v2069
      %v2071 = vld [vmem:[#allocation2 + $0x28] sm:$0x3]
      %2072 = vmatprep.subr.mxu0 0.0
      %2073 = vmatpush1.msra.mxu0 %v629
      %2074 = vmatprep.subr.mxu0 0.0
      %2075 = vmatpush1.msra.mxu0 %v802
      %2076 = vmatprep.subr.mxu0 0.0
      %2077 = vmatpush1.msra.mxu0 0.0
      %2078 = vmatprep.subr.mxu0 0.0
      %2079 = vmatpush1.msra.mxu0 0.0
      %2080 = vmatprep.subr.mxu0 0.0
      %2081 = vmatpush1.msra.mxu0 0.0
      %2082 = vmatprep.subr.mxu0 0.0
      %2083 = vmatpush1.msra.mxu0 0.0
      %2084 = vmatprep.subr.mxu0 0.0
      %2085 = vmatpush1.msra.mxu0 0.0
      %2086 = vmatprep.subr.mxu0 0.0
      %2087 = vmatpush1.msra.mxu0 0.0
      %2088 = vmatprep.subr.mxu0 0.0
      %2089 = vmatpush1.msra.mxu0 0.0
      %2090 = vmatprep.subr.mxu0 0.0
      %2091 = vmatpush1.msra.mxu0 0.0
      %2092 = vmatprep.subr.mxu0 0.0
      %2093 = vmatpush1.msra.mxu0 0.0
      %2094 = vmatprep.subr.mxu0 0.0
      %2095 = vmatpush1.msra.mxu0 0.0
      %2096 = vmatprep.subr.mxu0 0.0
      %2097 = vmatpush1.msra.mxu0 0.0
      %2098 = vmatprep.subr.mxu0 0.0
      %2099 = vmatpush1.msra.mxu0 0.0
      %2100 = vmatprep.subr.mxu0 0.0
      %2101 = vmatpush1.msra.mxu0 0.0
      %2102 = vmatprep.subr.mxu0 0.0
      %2103 = vmatpush1.msra.mxu0 0.0
      %2104 = vmatprep.subr.mxu0 0.0
      %2105 = vmatpush1.msra.mxu0 0.0
      %2106 = vmatprep.subr.mxu0 0.0
      %2107 = vmatpush1.msra.mxu0 0.0
      %2108 = vmatprep.subr.mxu0 0.0
      %2109 = vmatpush1.msra.mxu0 0.0
      %2110 = vmatprep.subr.mxu0 0.0
      %2111 = vmatpush1.msra.mxu0 0.0
      %2112 = vmatprep.subr.mxu0 0.0
      %2113 = vmatpush1.msra.mxu0 0.0
      %2114 = vmatprep.subr.mxu0 0.0
      %2115 = vmatpush1.msra.mxu0 0.0
      %2116 = vmatprep.subr.mxu0 0.0
      %2117 = vmatpush1.msra.mxu0 0.0
      %2118 = vmatprep.subr.mxu0 0.0
      %2119 = vmatpush1.msra.mxu0 0.0
      %2120 = vmatprep.subr.mxu0 0.0
      %2121 = vmatpush1.msra.mxu0 0.0
      %2122 = vmatprep.subr.mxu0 0.0
      %2123 = vmatpush1.msra.mxu0 0.0
      %2124 = vmatprep.subr.mxu0 0.0
      %2125 = vmatpush1.msra.mxu0 0.0
      %2126 = vmatprep.subr.mxu0 0.0
      %2127 = vmatpush1.msra.mxu0 0.0
      %2128 = vmatprep.subr.mxu0 0.0
      %2129 = vmatpush1.msra.mxu0 0.0
      %2130 = vmatprep.subr.mxu0 0.0
      %2131 = vmatpush1.msra.mxu0 0.0
      %2132 = vmatprep.subr.mxu0 0.0
      %2133 = vmatpush1.msra.mxu0 0.0
      %2134 = vmatprep.subr.mxu0 0.0
      %2135 = vmatpush1.msra.mxu0 0.0
      %2136 = vmatprep.mubr.f32.mxu0 0.0
      %2137 = vmatmul.mubr.f32.gmra.mrb[0].mxu0 %v1914
      %v2138 = vpop.f32.mrb[0].mxu0
      %v2139 = vadd.f32 0.0, %v2138
      %v2140 = vpop.f32.mrb[0].mxu0
      %2141 = vdwg.mxu0
      %v2142 = vadd.f32 %v2071, %v2139
      %v2143 = vtanh.pop %v2142
      %v2144 = vld [vmem:[#allocation2 + $0x38] sm:$0x3]
      %2145 = vmatprep.subr.mxu0 0.0
      %2146 = vmatpush1.msra.mxu0 %v632
      %2147 = vmatprep.subr.mxu0 0.0
      %2148 = vmatpush1.msra.mxu0 %v878
      %2149 = vmatprep.subr.mxu0 0.0
      %2150 = vmatpush1.msra.mxu0 0.0
      %2151 = vmatprep.subr.mxu0 0.0
      %2152 = vmatpush1.msra.mxu0 0.0
      %2153 = vmatprep.subr.mxu0 0.0
      %2154 = vmatpush1.msra.mxu0 0.0
      %2155 = vmatprep.subr.mxu0 0.0
      %2156 = vmatpush1.msra.mxu0 0.0
      %2157 = vmatprep.subr.mxu0 0.0
      %2158 = vmatpush1.msra.mxu0 0.0
      %2159 = vmatprep.subr.mxu0 0.0
      %2160 = vmatpush1.msra.mxu0 0.0
      %2161 = vmatprep.subr.mxu0 0.0
      %2162 = vmatpush1.msra.mxu0 0.0
      %2163 = vmatprep.subr.mxu0 0.0
      %2164 = vmatpush1.msra.mxu0 0.0
      %2165 = vmatprep.subr.mxu0 0.0
      %2166 = vmatpush1.msra.mxu0 0.0
      %2167 = vmatprep.subr.mxu0 0.0
      %2168 = vmatpush1.msra.mxu0 0.0
      %2169 = vmatprep.subr.mxu0 0.0
      %2170 = vmatpush1.msra.mxu0 0.0
      %2171 = vmatprep.subr.mxu0 0.0
      %2172 = vmatpush1.msra.mxu0 0.0
      %2173 = vmatprep.subr.mxu0 0.0
      %2174 = vmatpush1.msra.mxu0 0.0
      %2175 = vmatprep.subr.mxu0 0.0
      %2176 = vmatpush1.msra.mxu0 0.0
      %2177 = vmatprep.subr.mxu0 0.0
      %2178 = vmatpush1.msra.mxu0 0.0
      %2179 = vmatprep.subr.mxu0 0.0
      %2180 = vmatpush1.msra.mxu0 0.0
      %2181 = vmatprep.subr.mxu0 0.0
      %2182 = vmatpush1.msra.mxu0 0.0
      %2183 = vmatprep.subr.mxu0 0.0
      %2184 = vmatpush1.msra.mxu0 0.0
      %2185 = vmatprep.subr.mxu0 0.0
      %2186 = vmatpush1.msra.mxu0 0.0
      %2187 = vmatprep.subr.mxu0 0.0
      %2188 = vmatpush1.msra.mxu0 0.0
      %2189 = vmatprep.subr.mxu0 0.0
      %2190 = vmatpush1.msra.mxu0 0.0
      %2191 = vmatprep.subr.mxu0 0.0
      %2192 = vmatpush1.msra.mxu0 0.0
      %2193 = vmatprep.subr.mxu0 0.0
      %2194 = vmatpush1.msra.mxu0 0.0
      %2195 = vmatprep.subr.mxu0 0.0
      %2196 = vmatpush1.msra.mxu0 0.0
      %2197 = vmatprep.subr.mxu0 0.0
      %2198 = vmatpush1.msra.mxu0 0.0
      %2199 = vmatprep.subr.mxu0 0.0
      %2200 = vmatpush1.msra.mxu0 0.0
      %2201 = vmatprep.subr.mxu0 0.0
      %2202 = vmatpush1.msra.mxu0 0.0
      %2203 = vmatprep.subr.mxu0 0.0
      %2204 = vmatpush1.msra.mxu0 0.0
      %2205 = vmatprep.subr.mxu0 0.0
      %2206 = vmatpush1.msra.mxu0 0.0
      %2207 = vmatprep.subr.mxu0 0.0
      %2208 = vmatpush1.msra.mxu0 0.0
      %2209 = vmatprep.mubr.f32.mxu0 0.0
      %2210 = vmatmul.mubr.f32.gmra.mrb[0].mxu0 %v1914
      %v2211 = vpop.f32.mrb[0].mxu0
      %v2212 = vadd.f32 0.0, %v2211
      %v2213 = vpop.f32.mrb[0].mxu0
      %2214 = vdwg.mxu0
      %v2215 = vadd.f32 %v2144, %v2212
      %v2216 = vxor.u32 %v2215, 2147483648
      %v2217 = vmul.f32 %v2216, 1.442695
      %v2218 = vpow.pop %v2217
      %v2219 = vadd.f32 %v2218, 1.0
      %v2220 = vrcp.pop %v2219
      %v2221 = vmul.f32 1.0, %v2220
      %v2222 = vmul.f32 %v2070, %v1908
      %v2223 = vmul.f32 %v1992, %v2143
      %v2224 = vadd.f32 %v2222, %v2223
      %v2225 = vtanh.pop %v2224
      %v2226 = vmul.f32 %v2221, %v2225
      %2227 = vst.msk [vmem:[%s254 + $0x8] sm:$0x3] %vm962, %v2226
      %v2228 = vld [vmem:[#allocation2 + $0xa] sm:$0x3]
      %v2230 = vsel %vm350, %v2226, 0
      %2232 = vmatprep.subr.mxu0 0.0
      %2233 = vmatpush1.msra.mxu0 %v623
      %2234 = vmatprep.subr.mxu0 0.0
      %2235 = vmatpush1.msra.mxu0 %v640
      %2236 = vmatprep.subr.mxu0 0.0
      %2237 = vmatpush1.msra.mxu0 0.0
      %2238 = vmatprep.subr.mxu0 0.0
      %2239 = vmatpush1.msra.mxu0 0.0
      %2240 = vmatprep.subr.mxu0 0.0
      %2241 = vmatpush1.msra.mxu0 0.0
      %2242 = vmatprep.subr.mxu0 0.0
      %2243 = vmatpush1.msra.mxu0 0.0
      %2244 = vmatprep.subr.mxu0 0.0
      %2245 = vmatpush1.msra.mxu0 0.0
      %2246 = vmatprep.subr.mxu0 0.0
      %2247 = vmatpush1.msra.mxu0 0.0
      %2248 = vmatprep.subr.mxu0 0.0
      %2249 = vmatpush1.msra.mxu0 0.0
      %2250 = vmatprep.subr.mxu0 0.0
      %2251 = vmatpush1.msra.mxu0 0.0
      %2252 = vmatprep.subr.mxu0 0.0
      %2253 = vmatpush1.msra.mxu0 0.0
      %2254 = vmatprep.subr.mxu0 0.0
      %2255 = vmatpush1.msra.mxu0 0.0
      %2256 = vmatprep.subr.mxu0 0.0
      %2257 = vmatpush1.msra.mxu0 0.0
      %2258 = vmatprep.subr.mxu0 0.0
      %2259 = vmatpush1.msra.mxu0 0.0
      %2260 = vmatprep.subr.mxu0 0.0
      %2261 = vmatpush1.msra.mxu0 0.0
      %2262 = vmatprep.subr.mxu0 0.0
      %2263 = vmatpush1.msra.mxu0 0.0
      %2264 = vmatprep.subr.mxu0 0.0
      %2265 = vmatpush1.msra.mxu0 0.0
      %2266 = vmatprep.subr.mxu0 0.0
      %2267 = vmatpush1.msra.mxu0 0.0
      %2268 = vmatprep.subr.mxu0 0.0
      %2269 = vmatpush1.msra.mxu0 0.0
      %2270 = vmatprep.subr.mxu0 0.0
      %2271 = vmatpush1.msra.mxu0 0.0
      %2272 = vmatprep.subr.mxu0 0.0
      %2273 = vmatpush1.msra.mxu0 0.0
      %2274 = vmatprep.subr.mxu0 0.0
      %2275 = vmatpush1.msra.mxu0 0.0
      %2276 = vmatprep.subr.mxu0 0.0
      %2277 = vmatpush1.msra.mxu0 0.0
      %2278 = vmatprep.subr.mxu0 0.0
      %2279 = vmatpush1.msra.mxu0 0.0
      %2280 = vmatprep.subr.mxu0 0.0
      %2281 = vmatpush1.msra.mxu0 0.0
      %2282 = vmatprep.subr.mxu0 0.0
      %2283 = vmatpush1.msra.mxu0 0.0
      %2284 = vmatprep.subr.mxu0 0.0
      %2285 = vmatpush1.msra.mxu0 0.0
      %2286 = vmatprep.subr.mxu0 0.0
      %2287 = vmatpush1.msra.mxu0 0.0
      %2288 = vmatprep.subr.mxu0 0.0
      %2289 = vmatpush1.msra.mxu0 0.0
      %2290 = vmatprep.subr.mxu0 0.0
      %2291 = vmatpush1.msra.mxu0 0.0
      %2292 = vmatprep.subr.mxu0 0.0
      %2293 = vmatpush1.msra.mxu0 0.0
      %2294 = vmatprep.subr.mxu0 0.0
      %2295 = vmatpush1.msra.mxu0 0.0
      %2296 = vmatprep.mubr.f32.mxu0 0.0
      %2297 = vmatmul.mubr.f32.gmra.mrb[0].mxu0 %v2230
      %v2298 = vpop.f32.mrb[0].mxu0
      %v2299 = vadd.f32 0.0, %v2298
      %v2300 = vpop.f32.mrb[0].mxu0
      %2301 = vdwg.mxu0
      %v2302 = vadd.f32 %v2228, %v2299
      %v2303 = vxor.u32 %v2302, 2147483648
      %v2304 = vmul.f32 %v2303, 1.442695
      %v2305 = vpow.pop %v2304
      %v2306 = vadd.f32 %v2305, 1.0
      %v2307 = vrcp.pop %v2306
      %v2308 = vmul.f32 1.0, %v2307
      %v2309 = vld [vmem:[#allocation2 + $0x1a] sm:$0x3]
      %2310 = vmatprep.subr.mxu0 0.0
      %2311 = vmatpush1.msra.mxu0 %v626
      %2312 = vmatprep.subr.mxu0 0.0
      %2313 = vmatpush1.msra.mxu0 %v721
      %2314 = vmatprep.subr.mxu0 0.0
      %2315 = vmatpush1.msra.mxu0 0.0
      %2316 = vmatprep.subr.mxu0 0.0
      %2317 = vmatpush1.msra.mxu0 0.0
      %2318 = vmatprep.subr.mxu0 0.0
      %2319 = vmatpush1.msra.mxu0 0.0
      %2320 = vmatprep.subr.mxu0 0.0
      %2321 = vmatpush1.msra.mxu0 0.0
      %2322 = vmatprep.subr.mxu0 0.0
      %2323 = vmatpush1.msra.mxu0 0.0
      %2324 = vmatprep.subr.mxu0 0.0
      %2325 = vmatpush1.msra.mxu0 0.0
      %2326 = vmatprep.subr.mxu0 0.0
      %2327 = vmatpush1.msra.mxu0 0.0
      %2328 = vmatprep.subr.mxu0 0.0
      %2329 = vmatpush1.msra.mxu0 0.0
      %2330 = vmatprep.subr.mxu0 0.0
      %2331 = vmatpush1.msra.mxu0 0.0
      %2332 = vmatprep.subr.mxu0 0.0
      %2333 = vmatpush1.msra.mxu0 0.0
      %2334 = vmatprep.subr.mxu0 0.0
      %2335 = vmatpush1.msra.mxu0 0.0
      %2336 = vmatprep.subr.mxu0 0.0
      %2337 = vmatpush1.msra.mxu0 0.0
      %2338 = vmatprep.subr.mxu0 0.0
      %2339 = vmatpush1.msra.mxu0 0.0
      %2340 = vmatprep.subr.mxu0 0.0
      %2341 = vmatpush1.msra.mxu0 0.0
      %2342 = vmatprep.subr.mxu0 0.0
      %2343 = vmatpush1.msra.mxu0 0.0
      %2344 = vmatprep.subr.mxu0 0.0
      %2345 = vmatpush1.msra.mxu0 0.0
      %2346 = vmatprep.subr.mxu0 0.0
      %2347 = vmatpush1.msra.mxu0 0.0
      %2348 = vmatprep.subr.mxu0 0.0
      %2349 = vmatpush1.msra.mxu0 0.0
      %2350 = vmatprep.subr.mxu0 0.0
      %2351 = vmatpush1.msra.mxu0 0.0
      %2352 = vmatprep.subr.mxu0 0.0
      %2353 = vmatpush1.msra.mxu0 0.0
      %2354 = vmatprep.subr.mxu0 0.0
      %2355 = vmatpush1.msra.mxu0 0.0
      %2356 = vmatprep.subr.mxu0 0.0
      %2357 = vmatpush1.msra.mxu0 0.0
      %2358 = vmatprep.subr.mxu0 0.0
      %2359 = vmatpush1.msra.mxu0 0.0
      %2360 = vmatprep.subr.mxu0 0.0
      %2361 = vmatpush1.msra.mxu0 0.0
      %2362 = vmatprep.subr.mxu0 0.0
      %2363 = vmatpush1.msra.mxu0 0.0
      %2364 = vmatprep.subr.mxu0 0.0
      %2365 = vmatpush1.msra.mxu0 0.0
      %2366 = vmatprep.subr.mxu0 0.0
      %2367 = vmatpush1.msra.mxu0 0.0
      %2368 = vmatprep.subr.mxu0 0.0
      %2369 = vmatpush1.msra.mxu0 0.0
      %2370 = vmatprep.subr.mxu0 0.0
      %2371 = vmatpush1.msra.mxu0 0.0
      %2372 = vmatprep.subr.mxu0 0.0
      %2373 = vmatpush1.msra.mxu0 0.0
      %2374 = vmatprep.mubr.f32.mxu0 0.0
      %2375 = vmatmul.mubr.f32.gmra.mrb[0].mxu0 %v2230
      %v2376 = vpop.f32.mrb[0].mxu0
      %v2377 = vadd.f32 0.0, %v2376
      %v2378 = vpop.f32.mrb[0].mxu0
      %2379 = vdwg.mxu0
      %v2380 = vadd.f32 %v2309, %v2377
      %v2381 = vxor.u32 %v2380, 2147483648
      %v2382 = vmul.f32 %v2381, 1.442695
      %v2383 = vpow.pop %v2382
      %v2384 = vadd.f32 %v2383, 1.0
      %v2385 = vrcp.pop %v2384
      %v2386 = vmul.f32 1.0, %v2385
      %v2387 = vld [vmem:[#allocation2 + $0x2a] sm:$0x3]
      %2388 = vmatprep.subr.mxu0 0.0
      %2389 = vmatpush1.msra.mxu0 %v629
      %2390 = vmatprep.subr.mxu0 0.0
      %2391 = vmatpush1.msra.mxu0 %v802
      %2392 = vmatprep.subr.mxu0 0.0
      %2393 = vmatpush1.msra.mxu0 0.0
      %2394 = vmatprep.subr.mxu0 0.0
      %2395 = vmatpush1.msra.mxu0 0.0
      %2396 = vmatprep.subr.mxu0 0.0
      %2397 = vmatpush1.msra.mxu0 0.0
      %2398 = vmatprep.subr.mxu0 0.0
      %2399 = vmatpush1.msra.mxu0 0.0
      %2400 = vmatprep.subr.mxu0 0.0
      %2401 = vmatpush1.msra.mxu0 0.0
      %2402 = vmatprep.subr.mxu0 0.0
      %2403 = vmatpush1.msra.mxu0 0.0
      %2404 = vmatprep.subr.mxu0 0.0
      %2405 = vmatpush1.msra.mxu0 0.0
      %2406 = vmatprep.subr.mxu0 0.0
      %2407 = vmatpush1.msra.mxu0 0.0
      %2408 = vmatprep.subr.mxu0 0.0
      %2409 = vmatpush1.msra.mxu0 0.0
      %2410 = vmatprep.subr.mxu0 0.0
      %2411 = vmatpush1.msra.mxu0 0.0
      %2412 = vmatprep.subr.mxu0 0.0
      %2413 = vmatpush1.msra.mxu0 0.0
      %2414 = vmatprep.subr.mxu0 0.0
      %2415 = vmatpush1.msra.mxu0 0.0
      %2416 = vmatprep.subr.mxu0 0.0
      %2417 = vmatpush1.msra.mxu0 0.0
      %2418 = vmatprep.subr.mxu0 0.0
      %2419 = vmatpush1.msra.mxu0 0.0
      %2420 = vmatprep.subr.mxu0 0.0
      %2421 = vmatpush1.msra.mxu0 0.0
      %2422 = vmatprep.subr.mxu0 0.0
      %2423 = vmatpush1.msra.mxu0 0.0
      %2424 = vmatprep.subr.mxu0 0.0
      %2425 = vmatpush1.msra.mxu0 0.0
      %2426 = vmatprep.subr.mxu0 0.0
      %2427 = vmatpush1.msra.mxu0 0.0
      %2428 = vmatprep.subr.mxu0 0.0
      %2429 = vmatpush1.msra.mxu0 0.0
      %2430 = vmatprep.subr.mxu0 0.0
      %2431 = vmatpush1.msra.mxu0 0.0
      %2432 = vmatprep.subr.mxu0 0.0
      %2433 = vmatpush1.msra.mxu0 0.0
      %2434 = vmatprep.subr.mxu0 0.0
      %2435 = vmatpush1.msra.mxu0 0.0
      %2436 = vmatprep.subr.mxu0 0.0
      %2437 = vmatpush1.msra.mxu0 0.0
      %2438 = vmatprep.subr.mxu0 0.0
      %2439 = vmatpush1.msra.mxu0 0.0
      %2440 = vmatprep.subr.mxu0 0.0
      %2441 = vmatpush1.msra.mxu0 0.0
      %2442 = vmatprep.subr.mxu0 0.0
      %2443 = vmatpush1.msra.mxu0 0.0
      %2444 = vmatprep.subr.mxu0 0.0
      %2445 = vmatpush1.msra.mxu0 0.0
      %2446 = vmatprep.subr.mxu0 0.0
      %2447 = vmatpush1.msra.mxu0 0.0
      %2448 = vmatprep.subr.mxu0 0.0
      %2449 = vmatpush1.msra.mxu0 0.0
      %2450 = vmatprep.subr.mxu0 0.0
      %2451 = vmatpush1.msra.mxu0 0.0
      %2452 = vmatprep.mubr.f32.mxu0 0.0
      %2453 = vmatmul.mubr.f32.gmra.mrb[0].mxu0 %v2230
      %v2454 = vpop.f32.mrb[0].mxu0
      %v2455 = vadd.f32 0.0, %v2454
      %v2456 = vpop.f32.mrb[0].mxu0
      %2457 = vdwg.mxu0
      %v2458 = vadd.f32 %v2387, %v2455
      %v2459 = vtanh.pop %v2458
      %v2460 = vld [vmem:[#allocation2 + $0x3a] sm:$0x3]
      %2461 = vmatprep.subr.mxu0 0.0
      %2462 = vmatpush1.msra.mxu0 %v632
      %2463 = vmatprep.subr.mxu0 0.0
      %2464 = vmatpush1.msra.mxu0 %v878
      %2465 = vmatprep.subr.mxu0 0.0
      %2466 = vmatpush1.msra.mxu0 0.0
      %2467 = vmatprep.subr.mxu0 0.0
      %2468 = vmatpush1.msra.mxu0 0.0
      %2469 = vmatprep.subr.mxu0 0.0
      %2470 = vmatpush1.msra.mxu0 0.0
      %2471 = vmatprep.subr.mxu0 0.0
      %2472 = vmatpush1.msra.mxu0 0.0
      %2473 = vmatprep.subr.mxu0 0.0
      %2474 = vmatpush1.msra.mxu0 0.0
      %2475 = vmatprep.subr.mxu0 0.0
      %2476 = vmatpush1.msra.mxu0 0.0
      %2477 = vmatprep.subr.mxu0 0.0
      %2478 = vmatpush1.msra.mxu0 0.0
      %2479 = vmatprep.subr.mxu0 0.0
      %2480 = vmatpush1.msra.mxu0 0.0
      %2481 = vmatprep.subr.mxu0 0.0
      %2482 = vmatpush1.msra.mxu0 0.0
      %2483 = vmatprep.subr.mxu0 0.0
      %2484 = vmatpush1.msra.mxu0 0.0
      %2485 = vmatprep.subr.mxu0 0.0
      %2486 = vmatpush1.msra.mxu0 0.0
      %2487 = vmatprep.subr.mxu0 0.0
      %2488 = vmatpush1.msra.mxu0 0.0
      %2489 = vmatprep.subr.mxu0 0.0
      %2490 = vmatpush1.msra.mxu0 0.0
      %2491 = vmatprep.subr.mxu0 0.0
      %2492 = vmatpush1.msra.mxu0 0.0
      %2493 = vmatprep.subr.mxu0 0.0
      %2494 = vmatpush1.msra.mxu0 0.0
      %2495 = vmatprep.subr.mxu0 0.0
      %2496 = vmatpush1.msra.mxu0 0.0
      %2497 = vmatprep.subr.mxu0 0.0
      %2498 = vmatpush1.msra.mxu0 0.0
      %2499 = vmatprep.subr.mxu0 0.0
      %2500 = vmatpush1.msra.mxu0 0.0
      %2501 = vmatprep.subr.mxu0 0.0
      %2502 = vmatpush1.msra.mxu0 0.0
      %2503 = vmatprep.subr.mxu0 0.0
      %2504 = vmatpush1.msra.mxu0 0.0
      %2505 = vmatprep.subr.mxu0 0.0
      %2506 = vmatpush1.msra.mxu0 0.0
      %2507 = vmatprep.subr.mxu0 0.0
      %2508 = vmatpush1.msra.mxu0 0.0
      %2509 = vmatprep.subr.mxu0 0.0
      %2510 = vmatpush1.msra.mxu0 0.0
      %2511 = vmatprep.subr.mxu0 0.0
      %2512 = vmatpush1.msra.mxu0 0.0
      %2513 = vmatprep.subr.mxu0 0.0
      %2514 = vmatpush1.msra.mxu0 0.0
      %2515 = vmatprep.subr.mxu0 0.0
      %2516 = vmatpush1.msra.mxu0 0.0
      %2517 = vmatprep.subr.mxu0 0.0
      %2518 = vmatpush1.msra.mxu0 0.0
      %2519 = vmatprep.subr.mxu0 0.0
      %2520 = vmatpush1.msra.mxu0 0.0
      %2521 = vmatprep.subr.mxu0 0.0
      %2522 = vmatpush1.msra.mxu0 0.0
      %2523 = vmatprep.subr.mxu0 0.0
      %2524 = vmatpush1.msra.mxu0 0.0
      %2525 = vmatprep.mubr.f32.mxu0 0.0
      %2526 = vmatmul.mubr.f32.gmra.mrb[0].mxu0 %v2230
      %v2527 = vpop.f32.mrb[0].mxu0
      %v2528 = vadd.f32 0.0, %v2527
      %v2529 = vpop.f32.mrb[0].mxu0
      %2530 = vdwg.mxu0
      %v2531 = vadd.f32 %v2460, %v2528
      %v2532 = vxor.u32 %v2531, 2147483648
      %v2533 = vmul.f32 %v2532, 1.442695
      %v2534 = vpow.pop %v2533
      %v2535 = vadd.f32 %v2534, 1.0
      %v2536 = vrcp.pop %v2535
      %v2537 = vmul.f32 1.0, %v2536
      %v2538 = vmul.f32 %v2386, %v2224
      %v2539 = vmul.f32 %v2308, %v2459
      %v2540 = vadd.f32 %v2538, %v2539
      %v2541 = vtanh.pop %v2540
      %v2542 = vmul.f32 %v2537, %v2541
      %2543 = vst.msk [vmem:[%s254 + $0xa] sm:$0x3] %vm962, %v2542
      %v2544 = vld [vmem:[#allocation2 + $0xc] sm:$0x3]
      %v2546 = vsel %vm350, %v2542, 0
      %2548 = vmatprep.subr.mxu0 0.0
      %2549 = vmatpush1.msra.mxu0 %v623
      %2550 = vmatprep.subr.mxu0 0.0
      %2551 = vmatpush1.msra.mxu0 %v640
      %2552 = vmatprep.subr.mxu0 0.0
      %2553 = vmatpush1.msra.mxu0 0.0
      %2554 = vmatprep.subr.mxu0 0.0
      %2555 = vmatpush1.msra.mxu0 0.0
      %2556 = vmatprep.subr.mxu0 0.0
      %2557 = vmatpush1.msra.mxu0 0.0
      %2558 = vmatprep.subr.mxu0 0.0
      %2559 = vmatpush1.msra.mxu0 0.0
      %2560 = vmatprep.subr.mxu0 0.0
      %2561 = vmatpush1.msra.mxu0 0.0
      %2562 = vmatprep.subr.mxu0 0.0
      %2563 = vmatpush1.msra.mxu0 0.0
      %2564 = vmatprep.subr.mxu0 0.0
      %2565 = vmatpush1.msra.mxu0 0.0
      %2566 = vmatprep.subr.mxu0 0.0
      %2567 = vmatpush1.msra.mxu0 0.0
      %2568 = vmatprep.subr.mxu0 0.0
      %2569 = vmatpush1.msra.mxu0 0.0
      %2570 = vmatprep.subr.mxu0 0.0
      %2571 = vmatpush1.msra.mxu0 0.0
      %2572 = vmatprep.subr.mxu0 0.0
      %2573 = vmatpush1.msra.mxu0 0.0
      %2574 = vmatprep.subr.mxu0 0.0
      %2575 = vmatpush1.msra.mxu0 0.0
      %2576 = vmatprep.subr.mxu0 0.0
      %2577 = vmatpush1.msra.mxu0 0.0
      %2578 = vmatprep.subr.mxu0 0.0
      %2579 = vmatpush1.msra.mxu0 0.0
      %2580 = vmatprep.subr.mxu0 0.0
      %2581 = vmatpush1.msra.mxu0 0.0
      %2582 = vmatprep.subr.mxu0 0.0
      %2583 = vmatpush1.msra.mxu0 0.0
      %2584 = vmatprep.subr.mxu0 0.0
      %2585 = vmatpush1.msra.mxu0 0.0
      %2586 = vmatprep.subr.mxu0 0.0
      %2587 = vmatpush1.msra.mxu0 0.0
      %2588 = vmatprep.subr.mxu0 0.0
      %2589 = vmatpush1.msra.mxu0 0.0
      %2590 = vmatprep.subr.mxu0 0.0
      %2591 = vmatpush1.msra.mxu0 0.0
      %2592 = vmatprep.subr.mxu0 0.0
      %2593 = vmatpush1.msra.mxu0 0.0
      %2594 = vmatprep.subr.mxu0 0.0
      %2595 = vmatpush1.msra.mxu0 0.0
      %2596 = vmatprep.subr.mxu0 0.0
      %2597 = vmatpush1.msra.mxu0 0.0
      %2598 = vmatprep.subr.mxu0 0.0
      %2599 = vmatpush1.msra.mxu0 0.0
      %2600 = vmatprep.subr.mxu0 0.0
      %2601 = vmatpush1.msra.mxu0 0.0
      %2602 = vmatprep.subr.mxu0 0.0
      %2603 = vmatpush1.msra.mxu0 0.0
      %2604 = vmatprep.subr.mxu0 0.0
      %2605 = vmatpush1.msra.mxu0 0.0
      %2606 = vmatprep.subr.mxu0 0.0
      %2607 = vmatpush1.msra.mxu0 0.0
      %2608 = vmatprep.subr.mxu0 0.0
      %2609 = vmatpush1.msra.mxu0 0.0
      %2610 = vmatprep.subr.mxu0 0.0
      %2611 = vmatpush1.msra.mxu0 0.0
      %2612 = vmatprep.mubr.f32.mxu0 0.0
      %2613 = vmatmul.mubr.f32.gmra.mrb[0].mxu0 %v2546
      %v2614 = vpop.f32.mrb[0].mxu0
      %v2615 = vadd.f32 0.0, %v2614
      %v2616 = vpop.f32.mrb[0].mxu0
      %2617 = vdwg.mxu0
      %v2618 = vadd.f32 %v2544, %v2615
      %v2619 = vxor.u32 %v2618, 2147483648
      %v2620 = vmul.f32 %v2619, 1.442695
      %v2621 = vpow.pop %v2620
      %v2622 = vadd.f32 %v2621, 1.0
      %v2623 = vrcp.pop %v2622
      %v2624 = vmul.f32 1.0, %v2623
      %v2625 = vld [vmem:[#allocation2 + $0x1c] sm:$0x3]
      %2626 = vmatprep.subr.mxu0 0.0
      %2627 = vmatpush1.msra.mxu0 %v626
      %2628 = vmatprep.subr.mxu0 0.0
      %2629 = vmatpush1.msra.mxu0 %v721
      %2630 = vmatprep.subr.mxu0 0.0
      %2631 = vmatpush1.msra.mxu0 0.0
      %2632 = vmatprep.subr.mxu0 0.0
      %2633 = vmatpush1.msra.mxu0 0.0
      %2634 = vmatprep.subr.mxu0 0.0
      %2635 = vmatpush1.msra.mxu0 0.0
      %2636 = vmatprep.subr.mxu0 0.0
      %2637 = vmatpush1.msra.mxu0 0.0
      %2638 = vmatprep.subr.mxu0 0.0
      %2639 = vmatpush1.msra.mxu0 0.0
      %2640 = vmatprep.subr.mxu0 0.0
      %2641 = vmatpush1.msra.mxu0 0.0
      %2642 = vmatprep.subr.mxu0 0.0
      %2643 = vmatpush1.msra.mxu0 0.0
      %2644 = vmatprep.subr.mxu0 0.0
      %2645 = vmatpush1.msra.mxu0 0.0
      %2646 = vmatprep.subr.mxu0 0.0
      %2647 = vmatpush1.msra.mxu0 0.0
      %2648 = vmatprep.subr.mxu0 0.0
      %2649 = vmatpush1.msra.mxu0 0.0
      %2650 = vmatprep.subr.mxu0 0.0
      %2651 = vmatpush1.msra.mxu0 0.0
      %2652 = vmatprep.subr.mxu0 0.0
      %2653 = vmatpush1.msra.mxu0 0.0
      %2654 = vmatprep.subr.mxu0 0.0
      %2655 = vmatpush1.msra.mxu0 0.0
      %2656 = vmatprep.subr.mxu0 0.0
      %2657 = vmatpush1.msra.mxu0 0.0
      %2658 = vmatprep.subr.mxu0 0.0
      %2659 = vmatpush1.msra.mxu0 0.0
      %2660 = vmatprep.subr.mxu0 0.0
      %2661 = vmatpush1.msra.mxu0 0.0
      %2662 = vmatprep.subr.mxu0 0.0
      %2663 = vmatpush1.msra.mxu0 0.0
      %2664 = vmatprep.subr.mxu0 0.0
      %2665 = vmatpush1.msra.mxu0 0.0
      %2666 = vmatprep.subr.mxu0 0.0
      %2667 = vmatpush1.msra.mxu0 0.0
      %2668 = vmatprep.subr.mxu0 0.0
      %2669 = vmatpush1.msra.mxu0 0.0
      %2670 = vmatprep.subr.mxu0 0.0
      %2671 = vmatpush1.msra.mxu0 0.0
      %2672 = vmatprep.subr.mxu0 0.0
      %2673 = vmatpush1.msra.mxu0 0.0
      %2674 = vmatprep.subr.mxu0 0.0
      %2675 = vmatpush1.msra.mxu0 0.0
      %2676 = vmatprep.subr.mxu0 0.0
      %2677 = vmatpush1.msra.mxu0 0.0
      %2678 = vmatprep.subr.mxu0 0.0
      %2679 = vmatpush1.msra.mxu0 0.0
      %2680 = vmatprep.subr.mxu0 0.0
      %2681 = vmatpush1.msra.mxu0 0.0
      %2682 = vmatprep.subr.mxu0 0.0
      %2683 = vmatpush1.msra.mxu0 0.0
      %2684 = vmatprep.subr.mxu0 0.0
      %2685 = vmatpush1.msra.mxu0 0.0
      %2686 = vmatprep.subr.mxu0 0.0
      %2687 = vmatpush1.msra.mxu0 0.0
      %2688 = vmatprep.subr.mxu0 0.0
      %2689 = vmatpush1.msra.mxu0 0.0
      %2690 = vmatprep.mubr.f32.mxu0 0.0
      %2691 = vmatmul.mubr.f32.gmra.mrb[0].mxu0 %v2546
      %v2692 = vpop.f32.mrb[0].mxu0
      %v2693 = vadd.f32 0.0, %v2692
      %v2694 = vpop.f32.mrb[0].mxu0
      %2695 = vdwg.mxu0
      %v2696 = vadd.f32 %v2625, %v2693
      %v2697 = vxor.u32 %v2696, 2147483648
      %v2698 = vmul.f32 %v2697, 1.442695
      %v2699 = vpow.pop %v2698
      %v2700 = vadd.f32 %v2699, 1.0
      %v2701 = vrcp.pop %v2700
      %v2702 = vmul.f32 1.0, %v2701
      %v2703 = vld [vmem:[#allocation2 + $0x2c] sm:$0x3]
      %2704 = vmatprep.subr.mxu0 0.0
      %2705 = vmatpush1.msra.mxu0 %v629
      %2706 = vmatprep.subr.mxu0 0.0
      %2707 = vmatpush1.msra.mxu0 %v802
      %2708 = vmatprep.subr.mxu0 0.0
      %2709 = vmatpush1.msra.mxu0 0.0
      %2710 = vmatprep.subr.mxu0 0.0
      %2711 = vmatpush1.msra.mxu0 0.0
      %2712 = vmatprep.subr.mxu0 0.0
      %2713 = vmatpush1.msra.mxu0 0.0
      %2714 = vmatprep.subr.mxu0 0.0
      %2715 = vmatpush1.msra.mxu0 0.0
      %2716 = vmatprep.subr.mxu0 0.0
      %2717 = vmatpush1.msra.mxu0 0.0
      %2718 = vmatprep.subr.mxu0 0.0
      %2719 = vmatpush1.msra.mxu0 0.0
      %2720 = vmatprep.subr.mxu0 0.0
      %2721 = vmatpush1.msra.mxu0 0.0
      %2722 = vmatprep.subr.mxu0 0.0
      %2723 = vmatpush1.msra.mxu0 0.0
      %2724 = vmatprep.subr.mxu0 0.0
      %2725 = vmatpush1.msra.mxu0 0.0
      %2726 = vmatprep.subr.mxu0 0.0
      %2727 = vmatpush1.msra.mxu0 0.0
      %2728 = vmatprep.subr.mxu0 0.0
      %2729 = vmatpush1.msra.mxu0 0.0
      %2730 = vmatprep.subr.mxu0 0.0
      %2731 = vmatpush1.msra.mxu0 0.0
      %2732 = vmatprep.subr.mxu0 0.0
      %2733 = vmatpush1.msra.mxu0 0.0
      %2734 = vmatprep.subr.mxu0 0.0
      %2735 = vmatpush1.msra.mxu0 0.0
      %2736 = vmatprep.subr.mxu0 0.0
      %2737 = vmatpush1.msra.mxu0 0.0
      %2738 = vmatprep.subr.mxu0 0.0
      %2739 = vmatpush1.msra.mxu0 0.0
      %2740 = vmatprep.subr.mxu0 0.0
      %2741 = vmatpush1.msra.mxu0 0.0
      %2742 = vmatprep.subr.mxu0 0.0
      %2743 = vmatpush1.msra.mxu0 0.0
      %2744 = vmatprep.subr.mxu0 0.0
      %2745 = vmatpush1.msra.mxu0 0.0
      %2746 = vmatprep.subr.mxu0 0.0
      %2747 = vmatpush1.msra.mxu0 0.0
      %2748 = vmatprep.subr.mxu0 0.0
      %2749 = vmatpush1.msra.mxu0 0.0
      %2750 = vmatprep.subr.mxu0 0.0
      %2751 = vmatpush1.msra.mxu0 0.0
      %2752 = vmatprep.subr.mxu0 0.0
      %2753 = vmatpush1.msra.mxu0 0.0
      %2754 = vmatprep.subr.mxu0 0.0
      %2755 = vmatpush1.msra.mxu0 0.0
      %2756 = vmatprep.subr.mxu0 0.0
      %2757 = vmatpush1.msra.mxu0 0.0
      %2758 = vmatprep.subr.mxu0 0.0
      %2759 = vmatpush1.msra.mxu0 0.0
      %2760 = vmatprep.subr.mxu0 0.0
      %2761 = vmatpush1.msra.mxu0 0.0
      %2762 = vmatprep.subr.mxu0 0.0
      %2763 = vmatpush1.msra.mxu0 0.0
      %2764 = vmatprep.subr.mxu0 0.0
      %2765 = vmatpush1.msra.mxu0 0.0
      %2766 = vmatprep.subr.mxu0 0.0
      %2767 = vmatpush1.msra.mxu0 0.0
      %2768 = vmatprep.mubr.f32.mxu0 0.0
      %2769 = vmatmul.mubr.f32.gmra.mrb[0].mxu0 %v2546
      %v2770 = vpop.f32.mrb[0].mxu0
      %v2771 = vadd.f32 0.0, %v2770
      %v2772 = vpop.f32.mrb[0].mxu0
      %2773 = vdwg.mxu0
      %v2774 = vadd.f32 %v2703, %v2771
      %v2775 = vtanh.pop %v2774
      %v2776 = vld [vmem:[#allocation2 + $0x3c] sm:$0x3]
      %2777 = vmatprep.subr.mxu0 0.0
      %2778 = vmatpush1.msra.mxu0 %v632
      %2779 = vmatprep.subr.mxu0 0.0
      %2780 = vmatpush1.msra.mxu0 %v878
      %2781 = vmatprep.subr.mxu0 0.0
      %2782 = vmatpush1.msra.mxu0 0.0
      %2783 = vmatprep.subr.mxu0 0.0
      %2784 = vmatpush1.msra.mxu0 0.0
      %2785 = vmatprep.subr.mxu0 0.0
      %2786 = vmatpush1.msra.mxu0 0.0
      %2787 = vmatprep.subr.mxu0 0.0
      %2788 = vmatpush1.msra.mxu0 0.0
      %2789 = vmatprep.subr.mxu0 0.0
      %2790 = vmatpush1.msra.mxu0 0.0
      %2791 = vmatprep.subr.mxu0 0.0
      %2792 = vmatpush1.msra.mxu0 0.0
      %2793 = vmatprep.subr.mxu0 0.0
      %2794 = vmatpush1.msra.mxu0 0.0
      %2795 = vmatprep.subr.mxu0 0.0
      %2796 = vmatpush1.msra.mxu0 0.0
      %2797 = vmatprep.subr.mxu0 0.0
      %2798 = vmatpush1.msra.mxu0 0.0
      %2799 = vmatprep.subr.mxu0 0.0
      %2800 = vmatpush1.msra.mxu0 0.0
      %2801 = vmatprep.subr.mxu0 0.0
      %2802 = vmatpush1.msra.mxu0 0.0
      %2803 = vmatprep.subr.mxu0 0.0
      %2804 = vmatpush1.msra.mxu0 0.0
      %2805 = vmatprep.subr.mxu0 0.0
      %2806 = vmatpush1.msra.mxu0 0.0
      %2807 = vmatprep.subr.mxu0 0.0
      %2808 = vmatpush1.msra.mxu0 0.0
      %2809 = vmatprep.subr.mxu0 0.0
      %2810 = vmatpush1.msra.mxu0 0.0
      %2811 = vmatprep.subr.mxu0 0.0
      %2812 = vmatpush1.msra.mxu0 0.0
      %2813 = vmatprep.subr.mxu0 0.0
      %2814 = vmatpush1.msra.mxu0 0.0
      %2815 = vmatprep.subr.mxu0 0.0
      %2816 = vmatpush1.msra.mxu0 0.0
      %2817 = vmatprep.subr.mxu0 0.0
      %2818 = vmatpush1.msra.mxu0 0.0
      %2819 = vmatprep.subr.mxu0 0.0
      %2820 = vmatpush1.msra.mxu0 0.0
      %2821 = vmatprep.subr.mxu0 0.0
      %2822 = vmatpush1.msra.mxu0 0.0
      %2823 = vmatprep.subr.mxu0 0.0
      %2824 = vmatpush1.msra.mxu0 0.0
      %2825 = vmatprep.subr.mxu0 0.0
      %2826 = vmatpush1.msra.mxu0 0.0
      %2827 = vmatprep.subr.mxu0 0.0
      %2828 = vmatpush1.msra.mxu0 0.0
      %2829 = vmatprep.subr.mxu0 0.0
      %2830 = vmatpush1.msra.mxu0 0.0
      %2831 = vmatprep.subr.mxu0 0.0
      %2832 = vmatpush1.msra.mxu0 0.0
      %2833 = vmatprep.subr.mxu0 0.0
      %2834 = vmatpush1.msra.mxu0 0.0
      %2835 = vmatprep.subr.mxu0 0.0
      %2836 = vmatpush1.msra.mxu0 0.0
      %2837 = vmatprep.subr.mxu0 0.0
      %2838 = vmatpush1.msra.mxu0 0.0
      %2839 = vmatprep.subr.mxu0 0.0
      %2840 = vmatpush1.msra.mxu0 0.0
      %2841 = vmatprep.mubr.f32.mxu0 0.0
      %2842 = vmatmul.mubr.f32.gmra.mrb[0].mxu0 %v2546
      %v2843 = vpop.f32.mrb[0].mxu0
      %v2844 = vadd.f32 0.0, %v2843
      %v2845 = vpop.f32.mrb[0].mxu0
      %2846 = vdwg.mxu0
      %v2847 = vadd.f32 %v2776, %v2844
      %v2848 = vxor.u32 %v2847, 2147483648
      %v2849 = vmul.f32 %v2848, 1.442695
      %v2850 = vpow.pop %v2849
      %v2851 = vadd.f32 %v2850, 1.0
      %v2852 = vrcp.pop %v2851
      %v2853 = vmul.f32 1.0, %v2852
      %v2854 = vmul.f32 %v2702, %v2540
      %v2855 = vmul.f32 %v2624, %v2775
      %v2856 = vadd.f32 %v2854, %v2855
      %v2857 = vtanh.pop %v2856
      %v2858 = vmul.f32 %v2853, %v2857
      %2859 = vst.msk [vmem:[%s254 + $0xc] sm:$0x3] %vm962, %v2858
      %v2860 = vld [vmem:[#allocation2 + $0xe] sm:$0x3]
      %v2862 = vsel %vm350, %v2858, 0
      %2864 = vmatprep.subr.mxu0 0.0
      %2865 = vmatpush1.msra.mxu0 %v623
      %2866 = vmatprep.subr.mxu0 0.0
      %2867 = vmatpush1.msra.mxu0 %v640
      %2868 = vmatprep.subr.mxu0 0.0
      %2869 = vmatpush1.msra.mxu0 0.0
      %2870 = vmatprep.subr.mxu0 0.0
      %2871 = vmatpush1.msra.mxu0 0.0
      %2872 = vmatprep.subr.mxu0 0.0
      %2873 = vmatpush1.msra.mxu0 0.0
      %2874 = vmatprep.subr.mxu0 0.0
      %2875 = vmatpush1.msra.mxu0 0.0
      %2876 = vmatprep.subr.mxu0 0.0
      %2877 = vmatpush1.msra.mxu0 0.0
      %2878 = vmatprep.subr.mxu0 0.0
      %2879 = vmatpush1.msra.mxu0 0.0
      %2880 = vmatprep.subr.mxu0 0.0
      %2881 = vmatpush1.msra.mxu0 0.0
      %2882 = vmatprep.subr.mxu0 0.0
      %2883 = vmatpush1.msra.mxu0 0.0
      %2884 = vmatprep.subr.mxu0 0.0
      %2885 = vmatpush1.msra.mxu0 0.0
      %2886 = vmatprep.subr.mxu0 0.0
      %2887 = vmatpush1.msra.mxu0 0.0
      %2888 = vmatprep.subr.mxu0 0.0
      %2889 = vmatpush1.msra.mxu0 0.0
      %2890 = vmatprep.subr.mxu0 0.0
      %2891 = vmatpush1.msra.mxu0 0.0
      %2892 = vmatprep.subr.mxu0 0.0
      %2893 = vmatpush1.msra.mxu0 0.0
      %2894 = vmatprep.subr.mxu0 0.0
      %2895 = vmatpush1.msra.mxu0 0.0
      %2896 = vmatprep.subr.mxu0 0.0
      %2897 = vmatpush1.msra.mxu0 0.0
      %2898 = vmatprep.subr.mxu0 0.0
      %2899 = vmatpush1.msra.mxu0 0.0
      %2900 = vmatprep.subr.mxu0 0.0
      %2901 = vmatpush1.msra.mxu0 0.0
      %2902 = vmatprep.subr.mxu0 0.0
      %2903 = vmatpush1.msra.mxu0 0.0
      %2904 = vmatprep.subr.mxu0 0.0
      %2905 = vmatpush1.msra.mxu0 0.0
      %2906 = vmatprep.subr.mxu0 0.0
      %2907 = vmatpush1.msra.mxu0 0.0
      %2908 = vmatprep.subr.mxu0 0.0
      %2909 = vmatpush1.msra.mxu0 0.0
      %2910 = vmatprep.subr.mxu0 0.0
      %2911 = vmatpush1.msra.mxu0 0.0
      %2912 = vmatprep.subr.mxu0 0.0
      %2913 = vmatpush1.msra.mxu0 0.0
      %2914 = vmatprep.subr.mxu0 0.0
      %2915 = vmatpush1.msra.mxu0 0.0
      %2916 = vmatprep.subr.mxu0 0.0
      %2917 = vmatpush1.msra.mxu0 0.0
      %2918 = vmatprep.subr.mxu0 0.0
      %2919 = vmatpush1.msra.mxu0 0.0
      %2920 = vmatprep.subr.mxu0 0.0
      %2921 = vmatpush1.msra.mxu0 0.0
      %2922 = vmatprep.subr.mxu0 0.0
      %2923 = vmatpush1.msra.mxu0 0.0
      %2924 = vmatprep.subr.mxu0 0.0
      %2925 = vmatpush1.msra.mxu0 0.0
      %2926 = vmatprep.subr.mxu0 0.0
      %2927 = vmatpush1.msra.mxu0 0.0
      %2928 = vmatprep.mubr.f32.mxu0 0.0
      %2929 = vmatmul.mubr.f32.gmra.mrb[0].mxu0 %v2862
      %v2930 = vpop.f32.mrb[0].mxu0
      %v2931 = vadd.f32 0.0, %v2930
      %v2932 = vpop.f32.mrb[0].mxu0
      %2933 = vdwg.mxu0
      %v2934 = vadd.f32 %v2860, %v2931
      %v2935 = vxor.u32 %v2934, 2147483648
      %v2936 = vmul.f32 %v2935, 1.442695
      %v2937 = vpow.pop %v2936
      %v2938 = vadd.f32 %v2937, 1.0
      %v2939 = vrcp.pop %v2938
      %v2940 = vmul.f32 1.0, %v2939
      %v2941 = vld [vmem:[#allocation2 + $0x1e] sm:$0x3]
      %2942 = vmatprep.subr.mxu0 0.0
      %2943 = vmatpush1.msra.mxu0 %v626
      %2944 = vmatprep.subr.mxu0 0.0
      %2945 = vmatpush1.msra.mxu0 %v721
      %2946 = vmatprep.subr.mxu0 0.0
      %2947 = vmatpush1.msra.mxu0 0.0
      %2948 = vmatprep.subr.mxu0 0.0
      %2949 = vmatpush1.msra.mxu0 0.0
      %2950 = vmatprep.subr.mxu0 0.0
      %2951 = vmatpush1.msra.mxu0 0.0
      %2952 = vmatprep.subr.mxu0 0.0
      %2953 = vmatpush1.msra.mxu0 0.0
      %2954 = vmatprep.subr.mxu0 0.0
      %2955 = vmatpush1.msra.mxu0 0.0
      %2956 = vmatprep.subr.mxu0 0.0
      %2957 = vmatpush1.msra.mxu0 0.0
      %2958 = vmatprep.subr.mxu0 0.0
      %2959 = vmatpush1.msra.mxu0 0.0
      %2960 = vmatprep.subr.mxu0 0.0
      %2961 = vmatpush1.msra.mxu0 0.0
      %2962 = vmatprep.subr.mxu0 0.0
      %2963 = vmatpush1.msra.mxu0 0.0
      %2964 = vmatprep.subr.mxu0 0.0
      %2965 = vmatpush1.msra.mxu0 0.0
      %2966 = vmatprep.subr.mxu0 0.0
      %2967 = vmatpush1.msra.mxu0 0.0
      %2968 = vmatprep.subr.mxu0 0.0
      %2969 = vmatpush1.msra.mxu0 0.0
      %2970 = vmatprep.subr.mxu0 0.0
      %2971 = vmatpush1.msra.mxu0 0.0
      %2972 = vmatprep.subr.mxu0 0.0
      %2973 = vmatpush1.msra.mxu0 0.0
      %2974 = vmatprep.subr.mxu0 0.0
      %2975 = vmatpush1.msra.mxu0 0.0
      %2976 = vmatprep.subr.mxu0 0.0
      %2977 = vmatpush1.msra.mxu0 0.0
      %2978 = vmatprep.subr.mxu0 0.0
      %2979 = vmatpush1.msra.mxu0 0.0
      %2980 = vmatprep.subr.mxu0 0.0
      %2981 = vmatpush1.msra.mxu0 0.0
      %2982 = vmatprep.subr.mxu0 0.0
      %2983 = vmatpush1.msra.mxu0 0.0
      %2984 = vmatprep.subr.mxu0 0.0
      %2985 = vmatpush1.msra.mxu0 0.0
      %2986 = vmatprep.subr.mxu0 0.0
      %2987 = vmatpush1.msra.mxu0 0.0
      %2988 = vmatprep.subr.mxu0 0.0
      %2989 = vmatpush1.msra.mxu0 0.0
      %2990 = vmatprep.subr.mxu0 0.0
      %2991 = vmatpush1.msra.mxu0 0.0
      %2992 = vmatprep.subr.mxu0 0.0
      %2993 = vmatpush1.msra.mxu0 0.0
      %2994 = vmatprep.subr.mxu0 0.0
      %2995 = vmatpush1.msra.mxu0 0.0
      %2996 = vmatprep.subr.mxu0 0.0
      %2997 = vmatpush1.msra.mxu0 0.0
      %2998 = vmatprep.subr.mxu0 0.0
      %2999 = vmatpush1.msra.mxu0 0.0
      %3000 = vmatprep.subr.mxu0 0.0
      %3001 = vmatpush1.msra.mxu0 0.0
      %3002 = vmatprep.subr.mxu0 0.0
      %3003 = vmatpush1.msra.mxu0 0.0
      %3004 = vmatprep.subr.mxu0 0.0
      %3005 = vmatpush1.msra.mxu0 0.0
      %3006 = vmatprep.mubr.f32.mxu0 0.0
      %3007 = vmatmul.mubr.f32.gmra.mrb[0].mxu0 %v2862
      %v3008 = vpop.f32.mrb[0].mxu0
      %v3009 = vadd.f32 0.0, %v3008
      %v3010 = vpop.f32.mrb[0].mxu0
      %3011 = vdwg.mxu0
      %v3012 = vadd.f32 %v2941, %v3009
      %v3013 = vxor.u32 %v3012, 2147483648
      %v3014 = vmul.f32 %v3013, 1.442695
      %v3015 = vpow.pop %v3014
      %v3016 = vadd.f32 %v3015, 1.0
      %v3017 = vrcp.pop %v3016
      %v3018 = vmul.f32 1.0, %v3017
      %v3019 = vld [vmem:[#allocation2 + $0x2e] sm:$0x3]
      %3020 = vmatprep.subr.mxu0 0.0
      %3021 = vmatpush1.msra.mxu0 %v629
      %3022 = vmatprep.subr.mxu0 0.0
      %3023 = vmatpush1.msra.mxu0 %v802
      %3024 = vmatprep.subr.mxu0 0.0
      %3025 = vmatpush1.msra.mxu0 0.0
      %3026 = vmatprep.subr.mxu0 0.0
      %3027 = vmatpush1.msra.mxu0 0.0
      %3028 = vmatprep.subr.mxu0 0.0
      %3029 = vmatpush1.msra.mxu0 0.0
      %3030 = vmatprep.subr.mxu0 0.0
      %3031 = vmatpush1.msra.mxu0 0.0
      %3032 = vmatprep.subr.mxu0 0.0
      %3033 = vmatpush1.msra.mxu0 0.0
      %3034 = vmatprep.subr.mxu0 0.0
      %3035 = vmatpush1.msra.mxu0 0.0
      %3036 = vmatprep.subr.mxu0 0.0
      %3037 = vmatpush1.msra.mxu0 0.0
      %3038 = vmatprep.subr.mxu0 0.0
      %3039 = vmatpush1.msra.mxu0 0.0
      %3040 = vmatprep.subr.mxu0 0.0
      %3041 = vmatpush1.msra.mxu0 0.0
      %3042 = vmatprep.subr.mxu0 0.0
      %3043 = vmatpush1.msra.mxu0 0.0
      %3044 = vmatprep.subr.mxu0 0.0
      %3045 = vmatpush1.msra.mxu0 0.0
      %3046 = vmatprep.subr.mxu0 0.0
      %3047 = vmatpush1.msra.mxu0 0.0
      %3048 = vmatprep.subr.mxu0 0.0
      %3049 = vmatpush1.msra.mxu0 0.0
      %3050 = vmatprep.subr.mxu0 0.0
      %3051 = vmatpush1.msra.mxu0 0.0
      %3052 = vmatprep.subr.mxu0 0.0
      %3053 = vmatpush1.msra.mxu0 0.0
      %3054 = vmatprep.subr.mxu0 0.0
      %3055 = vmatpush1.msra.mxu0 0.0
      %3056 = vmatprep.subr.mxu0 0.0
      %3057 = vmatpush1.msra.mxu0 0.0
      %3058 = vmatprep.subr.mxu0 0.0
      %3059 = vmatpush1.msra.mxu0 0.0
      %3060 = vmatprep.subr.mxu0 0.0
      %3061 = vmatpush1.msra.mxu0 0.0
      %3062 = vmatprep.subr.mxu0 0.0
      %3063 = vmatpush1.msra.mxu0 0.0
      %3064 = vmatprep.subr.mxu0 0.0
      %3065 = vmatpush1.msra.mxu0 0.0
      %3066 = vmatprep.subr.mxu0 0.0
      %3067 = vmatpush1.msra.mxu0 0.0
      %3068 = vmatprep.subr.mxu0 0.0
      %3069 = vmatpush1.msra.mxu0 0.0
      %3070 = vmatprep.subr.mxu0 0.0
      %3071 = vmatpush1.msra.mxu0 0.0
      %3072 = vmatprep.subr.mxu0 0.0
      %3073 = vmatpush1.msra.mxu0 0.0
      %3074 = vmatprep.subr.mxu0 0.0
      %3075 = vmatpush1.msra.mxu0 0.0
      %3076 = vmatprep.subr.mxu0 0.0
      %3077 = vmatpush1.msra.mxu0 0.0
      %3078 = vmatprep.subr.mxu0 0.0
      %3079 = vmatpush1.msra.mxu0 0.0
      %3080 = vmatprep.subr.mxu0 0.0
      %3081 = vmatpush1.msra.mxu0 0.0
      %3082 = vmatprep.subr.mxu0 0.0
      %3083 = vmatpush1.msra.mxu0 0.0
      %3084 = vmatprep.mubr.f32.mxu0 0.0
      %3085 = vmatmul.mubr.f32.gmra.mrb[0].mxu0 %v2862
      %v3086 = vpop.f32.mrb[0].mxu0
      %v3087 = vadd.f32 0.0, %v3086
      %v3088 = vpop.f32.mrb[0].mxu0
      %3089 = vdwg.mxu0
      %v3090 = vadd.f32 %v3019, %v3087
      %v3091 = vtanh.pop %v3090
      %v3092 = vld [vmem:[#allocation2 + $0x3e] sm:$0x3]
      %3093 = vmatprep.subr.mxu0 0.0
      %3094 = vmatpush1.msra.mxu0 %v632
      %3095 = vmatprep.subr.mxu0 0.0
      %3096 = vmatpush1.msra.mxu0 %v878
      %3097 = vmatprep.subr.mxu0 0.0
      %3098 = vmatpush1.msra.mxu0 0.0
      %3099 = vmatprep.subr.mxu0 0.0
      %3100 = vmatpush1.msra.mxu0 0.0
      %3101 = vmatprep.subr.mxu0 0.0
      %3102 = vmatpush1.msra.mxu0 0.0
      %3103 = vmatprep.subr.mxu0 0.0
      %3104 = vmatpush1.msra.mxu0 0.0
      %3105 = vmatprep.subr.mxu0 0.0
      %3106 = vmatpush1.msra.mxu0 0.0
      %3107 = vmatprep.subr.mxu0 0.0
      %3108 = vmatpush1.msra.mxu0 0.0
      %3109 = vmatprep.subr.mxu0 0.0
      %3110 = vmatpush1.msra.mxu0 0.0
      %3111 = vmatprep.subr.mxu0 0.0
      %3112 = vmatpush1.msra.mxu0 0.0
      %3113 = vmatprep.subr.mxu0 0.0
      %3114 = vmatpush1.msra.mxu0 0.0
      %3115 = vmatprep.subr.mxu0 0.0
      %3116 = vmatpush1.msra.mxu0 0.0
      %3117 = vmatprep.subr.mxu0 0.0
      %3118 = vmatpush1.msra.mxu0 0.0
      %3119 = vmatprep.subr.mxu0 0.0
      %3120 = vmatpush1.msra.mxu0 0.0
      %3121 = vmatprep.subr.mxu0 0.0
      %3122 = vmatpush1.msra.mxu0 0.0
      %3123 = vmatprep.subr.mxu0 0.0
      %3124 = vmatpush1.msra.mxu0 0.0
      %3125 = vmatprep.subr.mxu0 0.0
      %3126 = vmatpush1.msra.mxu0 0.0
      %3127 = vmatprep.subr.mxu0 0.0
      %3128 = vmatpush1.msra.mxu0 0.0
      %3129 = vmatprep.subr.mxu0 0.0
      %3130 = vmatpush1.msra.mxu0 0.0
      %3131 = vmatprep.subr.mxu0 0.0
      %3132 = vmatpush1.msra.mxu0 0.0
      %3133 = vmatprep.subr.mxu0 0.0
      %3134 = vmatpush1.msra.mxu0 0.0
      %3135 = vmatprep.subr.mxu0 0.0
      %3136 = vmatpush1.msra.mxu0 0.0
      %3137 = vmatprep.subr.mxu0 0.0
      %3138 = vmatpush1.msra.mxu0 0.0
      %3139 = vmatprep.subr.mxu0 0.0
      %3140 = vmatpush1.msra.mxu0 0.0
      %3141 = vmatprep.subr.mxu0 0.0
      %3142 = vmatpush1.msra.mxu0 0.0
      %3143 = vmatprep.subr.mxu0 0.0
      %3144 = vmatpush1.msra.mxu0 0.0
      %3145 = vmatprep.subr.mxu0 0.0
      %3146 = vmatpush1.msra.mxu0 0.0
      %3147 = vmatprep.subr.mxu0 0.0
      %3148 = vmatpush1.msra.mxu0 0.0
      %3149 = vmatprep.subr.mxu0 0.0
      %3150 = vmatpush1.msra.mxu0 0.0
      %3151 = vmatprep.subr.mxu0 0.0
      %3152 = vmatpush1.msra.mxu0 0.0
      %3153 = vmatprep.subr.mxu0 0.0
      %3154 = vmatpush1.msra.mxu0 0.0
      %3155 = vmatprep.subr.mxu0 0.0
      %3156 = vmatpush1.msra.mxu0 0.0
      %3157 = vmatprep.mubr.f32.mxu0 0.0
      %3158 = vmatmul.mubr.f32.gmra.mrb[0].mxu0 %v2862
      %v3159 = vpop.f32.mrb[0].mxu0
      %v3160 = vadd.f32 0.0, %v3159
      %v3161 = vpop.f32.mrb[0].mxu0
      %3162 = vdwg.mxu0
      %v3163 = vadd.f32 %v3092, %v3160
      %v3164 = vxor.u32 %v3163, 2147483648
      %v3165 = vmul.f32 %v3164, 1.442695
      %v3166 = vpow.pop %v3165
      %v3167 = vadd.f32 %v3166, 1.0
      %v3168 = vrcp.pop %v3167
      %v3169 = vmul.f32 1.0, %v3168
      %v3170 = vmul.f32 %v3018, %v2856
      %v3171 = vmul.f32 %v2940, %v3091
      %v3172 = vadd.f32 %v3170, %v3171
      %v3173 = vtanh.pop %v3172
      %v3174 = vmul.f32 %v3169, %v3173
      %3175 = vst.msk [vmem:[%s254 + $0xe] sm:$0x3] %vm962, %v3174
      %p3176 = scmp.lt.s32.totalorder %s15, 1
      %s3177 = scalar_select %p3176, %s15, 1
      %s3178 = smul.addr %s3177, 2
      %s3179 = smul.addr %s3178, 8
      %s3180 = scalar_lea.vmem %s4, %s3179
      // Predicated region
      $region37: #{forward.9} parent=35 // pred_check
        %p3181 = pneg %p137
      $region38: #{forward.9} parent=35 // pred_check_branch
        %3183 = sbr.rel (%p3181) target = $region40
      $region39: #{forward.9} parent=35 // pred_region
        _
      $region40: #{forward.9} parent=35 // pred_fallthru
        _
    $region36: #{forward.9} parent=5 // pred_fallthru
      _
    %p3184 = scmp.le.s32.totalorder 2, %s10
    // Predicated region
    $region41: #{forward.9} parent=5 // pred_check
      %p3185 = pneg %p3184
    $region42: #{forward.9} parent=5 // pred_check_branch
      %3187 = sbr.rel (%p3185) target = $region44
    $region43: #{forward.9} parent=5 // pred_region
      %s3188 = ssub.s32 %s10, 2
      // Predicated region
      $region45: #{forward.9} parent=43 // pred_check
        %p3189 = pneg %p143
      $region46: #{forward.9} parent=43 // pred_check_branch
        %3191 = sbr.rel (%p3189) target = $region48
      $region47: #{forward.9} parent=43 // pred_region
        %p3192 = scmp.lt.s32.totalorder %s16, 1
        %s3193 = scalar_select %p3192, %s16, 1
        %s3194 = smul.addr %s3193, 2
        %s3195 = smul.addr %s3194, 8
        %s3196 = scalar_lea.vmem %s4, %s3195
      $region48: #{forward.9} parent=43 // pred_fallthru
        _
    $region44: #{forward.9} parent=5 // pred_fallthru
      _
  $region6: #{forward.9} parent=0 // loop_footer
    %s14 = sadd.s32 1, %s10
  $region7: #{forward.9} parent=0 // loop_footer_branch
    %9 = sbr.rel target = $region3
  $region8: #{forward.9} parent=0 // loop_exit
    _

// kernel: forward.11
$region0: #{forward.11}
  #allocation0 [shape = 'u32[]', space=smem, size = 0x4, offset = 0x4, fixed_abs, tag = 'smem constant byte address 0x4 - core index']
  #allocation1 [shape = 'u32[144,128]{1,0:T(1,128)}', space=vmem, size = 0x12000, scoped, tag = 'internal scratch']
  %s0 = inlined_call_operand.vmem [shape: f32[2,8,24], index: 0, kind: input, shape index: {}]
  %s1 = inlined_call_operand.vmem [shape: f32[24,72], index: 1, kind: input, shape index: {}]
  %s2 = inlined_call_operand.vmem [shape: f32[1,72], index: 2, kind: input, shape index: {}]
  %s3 = inlined_call_operand.vmem [shape: f32[24,24], index: 3, kind: input, shape index: {}]
  %s4 = inlined_call_operand.vmem [shape: f32[1,24], index: 4, kind: input, shape index: {}]
  %s5 = inlined_call_operand.vmem [shape: f32[24,19], index: 5, kind: input, shape index: {}]
  %s6 = inlined_call_operand.vmem [shape: f32[1,19], index: 6, kind: input, shape index: {}]
  %s7 = inlined_call_operand.vmem [shape: f32[2,8,19], index: 7, kind: output, shape index: {}]
  %s8 = sld [smem:[#allocation0]]
  $region38: #{forward.11} parent=0
    _
  %s10 = ssub.s32 1, %s8
  %s11 = scalar_select 0, %s10, %s8
  // Predicated region
  $region2: #{forward.11} parent=0 // pred_check
    _
  $region3: #{forward.11} parent=0 // pred_check_branch
    %13 = sbr.rel (0) target = $region5
  $region4: #{forward.11} parent=0 // pred_region
    _
  $region5: #{forward.11} parent=0 // pred_fallthru
    _
  // Predicated region
  $region6: #{forward.11} parent=0 // pred_check
    _
  $region7: #{forward.11} parent=0 // pred_check_branch
    %15 = sbr.rel (0) target = $region9
  $region8: #{forward.11} parent=0 // pred_region
    _
  $region9: #{forward.11} parent=0 // pred_fallthru
    _
  // Predicated region
  $region10: #{forward.11} parent=0 // pred_check
    _
  $region11: #{forward.11} parent=0 // pred_check_branch
    %17 = sbr.rel (0) target = $region13
  $region12: #{forward.11} parent=0 // pred_region
    _
  $region13: #{forward.11} parent=0 // pred_fallthru
    _
  // Predicated region
  $region14: #{forward.11} parent=0 // pred_check
    _
  $region15: #{forward.11} parent=0 // pred_check_branch
    %19 = sbr.rel (0) target = $region17
  $region16: #{forward.11} parent=0 // pred_region
    _
  $region17: #{forward.11} parent=0 // pred_fallthru
    _
  // Predicated region
  $region18: #{forward.11} parent=0 // pred_check
    _
  $region19: #{forward.11} parent=0 // pred_check_branch
    %21 = sbr.rel (0) target = $region21
  $region20: #{forward.11} parent=0 // pred_region
    _
  $region21: #{forward.11} parent=0 // pred_fallthru
    _
  // Predicated region
  $region22: #{forward.11} parent=0 // pred_check
    _
  $region23: #{forward.11} parent=0 // pred_check_branch
    %23 = sbr.rel (0) target = $region25
  $region24: #{forward.11} parent=0 // pred_region
    _
  $region25: #{forward.11} parent=0 // pred_fallthru
    _
  // Predicated region
  $region26: #{forward.11} parent=0 // pred_check
    _
  $region27: #{forward.11} parent=0 // pred_check_branch
    %25 = sbr.rel (0) target = $region29
  $region28: #{forward.11} parent=0 // pred_region
    _
  $region29: #{forward.11} parent=0 // pred_fallthru
    _
  %v26 = vld [vmem:[%s0] sm:$0xff]
  %v27 = vld [vmem:[%s0 + $0x8] sm:$0xff]
  %v28 = vld [vmem:[%s1] sm:$0xff]
  %v29 = vld [vmem:[%s1 + $0x8] sm:$0xff]
  %v30 = vld [vmem:[%s1 + $0x10] sm:$0xff]
  %v31 = vld [vmem:[%s2] sm:$0x1]
  %v33 = vlaneseq
  %v34 = vshrl.u32 %v33, 7
  %v35 = vsub.s32 0, %v34
  %v36 = vrot.slane %v31, %v35
  %vm38 = vcmask 195584
  %v40 = vsel %vm38, %v26, 0
  %v43 = vsel %vm38, %v27, 0
  %45 = vmatprep.subr.mxu0 0.0
  %46 = vmatpush1.msra.mxu0 %v28
  %47 = vmatprep.subr.mxu0 0.0
  %48 = vmatpush1.msra.mxu0 %v29
  %49 = vmatprep.subr.mxu0 0.0
  %50 = vmatpush1.msra.mxu0 %v30
  %51 = vmatprep.subr.mxu0 0.0
  %52 = vmatpush1.msra.mxu0 0.0
  %53 = vmatprep.subr.mxu0 0.0
  %54 = vmatpush1.msra.mxu0 0.0
  %55 = vmatprep.subr.mxu0 0.0
  %56 = vmatpush1.msra.mxu0 0.0
  %57 = vmatprep.subr.mxu0 0.0
  %58 = vmatpush1.msra.mxu0 0.0
  %59 = vmatprep.subr.mxu0 0.0
  %60 = vmatpush1.msra.mxu0 0.0
  %61 = vmatprep.subr.mxu0 0.0
  %62 = vmatpush1.msra.mxu0 0.0
  %63 = vmatprep.subr.mxu0 0.0
  %64 = vmatpush1.msra.mxu0 0.0
  %65 = vmatprep.subr.mxu0 0.0
  %66 = vmatpush1.msra.mxu0 0.0
  %67 = vmatprep.subr.mxu0 0.0
  %68 = vmatpush1.msra.mxu0 0.0
  %69 = vmatprep.subr.mxu0 0.0
  %70 = vmatpush1.msra.mxu0 0.0
  %71 = vmatprep.subr.mxu0 0.0
  %72 = vmatpush1.msra.mxu0 0.0
  %73 = vmatprep.subr.mxu0 0.0
  %74 = vmatpush1.msra.mxu0 0.0
  %75 = vmatprep.subr.mxu0 0.0
  %76 = vmatpush1.msra.mxu0 0.0
  %77 = vmatprep.subr.mxu0 0.0
  %78 = vmatpush1.msra.mxu0 0.0
  %79 = vmatprep.subr.mxu0 0.0
  %80 = vmatpush1.msra.mxu0 0.0
  %81 = vmatprep.subr.mxu0 0.0
  %82 = vmatpush1.msra.mxu0 0.0
  %83 = vmatprep.subr.mxu0 0.0
  %84 = vmatpush1.msra.mxu0 0.0
  %85 = vmatprep.subr.mxu0 0.0
  %86 = vmatpush1.msra.mxu0 0.0
  %87 = vmatprep.subr.mxu0 0.0
  %88 = vmatpush1.msra.mxu0 0.0
  %89 = vmatprep.subr.mxu0 0.0
  %90 = vmatpush1.msra.mxu0 0.0
  %91 = vmatprep.subr.mxu0 0.0
  %92 = vmatpush1.msra.mxu0 0.0
  %93 = vmatprep.subr.mxu0 0.0
  %94 = vmatpush1.msra.mxu0 0.0
  %95 = vmatprep.subr.mxu0 0.0
  %96 = vmatpush1.msra.mxu0 0.0
  %97 = vmatprep.subr.mxu0 0.0
  %98 = vmatpush1.msra.mxu0 0.0
  %99 = vmatprep.subr.mxu0 0.0
  %100 = vmatpush1.msra.mxu0 0.0
  %101 = vmatprep.subr.mxu0 0.0
  %102 = vmatpush1.msra.mxu0 0.0
  %103 = vmatprep.subr.mxu0 0.0
  %104 = vmatpush1.msra.mxu0 0.0
  %105 = vmatprep.subr.mxu0 0.0
  %106 = vmatpush1.msra.mxu0 0.0
  %107 = vmatprep.subr.mxu0 0.0
  %108 = vmatpush1.msra.mxu0 0.0
  %109 = vmatprep.mubr.f32.mxu0 0.0
  %110 = vmatmul.mubr.f32.gmra.mrb[0].mxu0 %v40
  %v111 = vpop.f32.mrb[0].mxu0
  %v112 = vadd.f32 %v36, %v111
  %v113 = vpop.f32.mrb[0].mxu0
  %114 = vmatprep.mubr.f32.mxu0 0.0
  %115 = vmatmul.mubr.f32.gmra.mrb[0].mxu0 %v43
  %v116 = vpop.f32.mrb[0].mxu0
  %v117 = vadd.f32 %v36, %v116
  %v118 = vpop.f32.mrb[0].mxu0
  %119 = vdwg.mxu0
  %v120 = vmul.f32 %v112, 0.35355338
  %v121 = vmul.f32 %v117, 0.35355338
  %123 = vrot.lane.b32.xlu0 %v112, 104
  %v124 = vpop.permute.xlu0 %123
  %vm125 = vcmask 64512
  %v127 = vsel %vm125, %v120, 0
  %v129 = vsel %vm125, %v124, 0
  %131 = vmatprep.subr.mxu0 0.0
  %132 = vmatpush1.xpose.msra.mxu0 %v129
  %133 = vmatprep.subr.mxu0 0.0
  %134 = vmatpush1.xpose.msra.mxu0 0.0
  %135 = vmatprep.subr.mxu0 0.0
  %136 = vmatpush1.xpose.msra.mxu0 0.0
  %137 = vmatprep.subr.mxu0 0.0
  %138 = vmatpush1.xpose.msra.mxu0 0.0
  %139 = vmatprep.subr.mxu0 0.0
  %140 = vmatpush1.xpose.msra.mxu0 0.0
  %141 = vmatprep.subr.mxu0 0.0
  %142 = vmatpush1.xpose.msra.mxu0 0.0
  %143 = vmatprep.subr.mxu0 0.0
  %144 = vmatpush1.xpose.msra.mxu0 0.0
  %145 = vmatprep.subr.mxu0 0.0
  %146 = vmatpush1.xpose.msra.mxu0 0.0
  %147 = vmatprep.subr.mxu0 0.0
  %148 = vmatpush1.xpose.msra.mxu0 0.0
  %149 = vmatprep.subr.mxu0 0.0
  %150 = vmatpush1.xpose.msra.mxu0 0.0
  %151 = vmatprep.subr.mxu0 0.0
  %152 = vmatpush1.xpose.msra.mxu0 0.0
  %153 = vmatprep.subr.mxu0 0.0
  %154 = vmatpush1.xpose.msra.mxu0 0.0
  %155 = vmatprep.subr.mxu0 0.0
  %156 = vmatpush1.xpose.msra.mxu0 0.0
  %157 = vmatprep.subr.mxu0 0.0
  %158 = vmatpush1.xpose.msra.mxu0 0.0
  %159 = vmatprep.subr.mxu0 0.0
  %160 = vmatpush1.xpose.msra.mxu0 0.0
  %161 = vmatprep.subr.mxu0 0.0
  %162 = vmatpush1.xpose.msra.mxu0 0.0
  %163 = vmatprep.subr.mxu0 0.0
  %164 = vmatpush1.xpose.msra.mxu0 0.0
  %165 = vmatprep.subr.mxu0 0.0
  %166 = vmatpush1.xpose.msra.mxu0 0.0
  %167 = vmatprep.subr.mxu0 0.0
  %168 = vmatpush1.xpose.msra.mxu0 0.0
  %169 = vmatprep.subr.mxu0 0.0
  %170 = vmatpush1.xpose.msra.mxu0 0.0
  %171 = vmatprep.subr.mxu0 0.0
  %172 = vmatpush1.xpose.msra.mxu0 0.0
  %173 = vmatprep.subr.mxu0 0.0
  %174 = vmatpush1.xpose.msra.mxu0 0.0
  %175 = vmatprep.subr.mxu0 0.0
  %176 = vmatpush1.xpose.msra.mxu0 0.0
  %177 = vmatprep.subr.mxu0 0.0
  %178 = vmatpush1.xpose.msra.mxu0 0.0
  %179 = vmatprep.subr.mxu0 0.0
  %180 = vmatpush1.xpose.msra.mxu0 0.0
  %181 = vmatprep.subr.mxu0 0.0
  %182 = vmatpush1.xpose.msra.mxu0 0.0
  %183 = vmatprep.subr.mxu0 0.0
  %184 = vmatpush1.xpose.msra.mxu0 0.0
  %185 = vmatprep.subr.mxu0 0.0
  %186 = vmatpush1.xpose.msra.mxu0 0.0
  %187 = vmatprep.subr.mxu0 0.0
  %188 = vmatpush1.xpose.msra.mxu0 0.0
  %189 = vmatprep.subr.mxu0 0.0
  %190 = vmatpush1.xpose.msra.mxu0 0.0
  %191 = vmatprep.subr.mxu0 0.0
  %192 = vmatpush1.xpose.msra.mxu0 0.0
  %193 = vmatprep.subr.mxu0 0.0
  %194 = vmatpush1.xpose.msra.mxu0 0.0
  %195 = vmatprep.mubr.f32.mxu0 0.0
  %196 = vmatmul.mubr.f32.gmra.mrb[0].mxu0 %v127
  %v197 = vpop.f32.mrb[0].mxu0
  %v198 = vadd.f32 0.0, %v197
  %v199 = vpop.f32.mrb[0].mxu0
  %200 = vdwg.mxu0
  %202 = vrot.lane.b32.xlu0 %v117, 104
  %v203 = vpop.permute.xlu0 %202
  %v205 = vsel %vm125, %v121, 0
  %v207 = vsel %vm125, %v203, 0
  %209 = vmatprep.subr.mxu0 0.0
  %210 = vmatpush1.xpose.msra.mxu0 %v207
  %211 = vmatprep.subr.mxu0 0.0
  %212 = vmatpush1.xpose.msra.mxu0 0.0
  %213 = vmatprep.subr.mxu0 0.0
  %214 = vmatpush1.xpose.msra.mxu0 0.0
  %215 = vmatprep.subr.mxu0 0.0
  %216 = vmatpush1.xpose.msra.mxu0 0.0
  %217 = vmatprep.subr.mxu0 0.0
  %218 = vmatpush1.xpose.msra.mxu0 0.0
  %219 = vmatprep.subr.mxu0 0.0
  %220 = vmatpush1.xpose.msra.mxu0 0.0
  %221 = vmatprep.subr.mxu0 0.0
  %222 = vmatpush1.xpose.msra.mxu0 0.0
  %223 = vmatprep.subr.mxu0 0.0
  %224 = vmatpush1.xpose.msra.mxu0 0.0
  %225 = vmatprep.subr.mxu0 0.0
  %226 = vmatpush1.xpose.msra.mxu0 0.0
  %227 = vmatprep.subr.mxu0 0.0
  %228 = vmatpush1.xpose.msra.mxu0 0.0
  %229 = vmatprep.subr.mxu0 0.0
  %230 = vmatpush1.xpose.msra.mxu0 0.0
  %231 = vmatprep.subr.mxu0 0.0
  %232 = vmatpush1.xpose.msra.mxu0 0.0
  %233 = vmatprep.subr.mxu0 0.0
  %234 = vmatpush1.xpose.msra.mxu0 0.0
  %235 = vmatprep.subr.mxu0 0.0
  %236 = vmatpush1.xpose.msra.mxu0 0.0
  %237 = vmatprep.subr.mxu0 0.0
  %238 = vmatpush1.xpose.msra.mxu0 0.0
  %239 = vmatprep.subr.mxu0 0.0
  %240 = vmatpush1.xpose.msra.mxu0 0.0
  %241 = vmatprep.subr.mxu0 0.0
  %242 = vmatpush1.xpose.msra.mxu0 0.0
  %243 = vmatprep.subr.mxu0 0.0
  %244 = vmatpush1.xpose.msra.mxu0 0.0
  %245 = vmatprep.subr.mxu0 0.0
  %246 = vmatpush1.xpose.msra.mxu0 0.0
  %247 = vmatprep.subr.mxu0 0.0
  %248 = vmatpush1.xpose.msra.mxu0 0.0
  %249 = vmatprep.subr.mxu0 0.0
  %250 = vmatpush1.xpose.msra.mxu0 0.0
  %251 = vmatprep.subr.mxu0 0.0
  %252 = vmatpush1.xpose.msra.mxu0 0.0
  %253 = vmatprep.subr.mxu0 0.0
  %254 = vmatpush1.xpose.msra.mxu0 0.0
  %255 = vmatprep.subr.mxu0 0.0
  %256 = vmatpush1.xpose.msra.mxu0 0.0
  %257 = vmatprep.subr.mxu0 0.0
  %258 = vmatpush1.xpose.msra.mxu0 0.0
  %259 = vmatprep.subr.mxu0 0.0
  %260 = vmatpush1.xpose.msra.mxu0 0.0
  %261 = vmatprep.subr.mxu0 0.0
  %262 = vmatpush1.xpose.msra.mxu0 0.0
  %263 = vmatprep.subr.mxu0 0.0
  %264 = vmatpush1.xpose.msra.mxu0 0.0
  %265 = vmatprep.subr.mxu0 0.0
  %266 = vmatpush1.xpose.msra.mxu0 0.0
  %267 = vmatprep.subr.mxu0 0.0
  %268 = vmatpush1.xpose.msra.mxu0 0.0
  %269 = vmatprep.subr.mxu0 0.0
  %270 = vmatpush1.xpose.msra.mxu0 0.0
  %271 = vmatprep.subr.mxu0 0.0
  %272 = vmatpush1.xpose.msra.mxu0 0.0
  %273 = vmatprep.mubr.f32.mxu0 0.0
  %274 = vmatmul.mubr.f32.gmra.mrb[0].mxu0 %v205
  %v275 = vpop.f32.mrb[0].mxu0
  %v276 = vadd.f32 0.0, %v275
  %v277 = vpop.f32.mrb[0].mxu0
  %278 = vdwg.mxu0
  %v279 = vsel %vm125, %v198, -inf
  %280 = vmax.xlane.f32.xlu0 %v279
  %v281 = vpop.xlane.xlu0 %280
  %v282 = vsel %vm125, %v276, -inf
  %283 = vmax.xlane.f32.xlu0 %v282
  %v284 = vpop.xlane.xlu0 %283
  %v285 = vsub.f32 %v198, %v281
  %v286 = vsub.f32 %v276, %v284
  %v287 = vmul.f32 %v285, 1.442695
  %v288 = vpow.pop %v287
  %v289 = vmul.f32 %v286, 1.442695
  %v290 = vpow.pop %v289
  %v291 = vsel %vm125, %v288, 0.0
  %292 = vadd.xlane.f32.xlu0 %v291
  %v293 = vpop.xlane.xlu0 %292
  %v294 = vsel %vm125, %v290, 0.0
  %295 = vadd.xlane.f32.xlu0 %v294
  %v296 = vpop.xlane.xlu0 %295
  %v297 = vrcp.pop %v293
  %v298 = vrcp.pop %v296
  %v299 = vmul.f32 %v288, %v297
  %v300 = vmul.f32 %v290, %v298
  %301 = vrot.lane.b32.xlu0 %v112, 80
  %v302 = vpop.permute.xlu0 %301
  %v305 = vsel %vm125, %v299, 0
  %307 = vmatprep.subr.mxu0 0.0
  %308 = vmatpush1.msra.mxu0 %v302
  %309 = vmatprep.subr.mxu0 0.0
  %310 = vmatpush1.msra.mxu0 0.0
  %311 = vmatprep.subr.mxu0 0.0
  %312 = vmatpush1.msra.mxu0 0.0
  %313 = vmatprep.subr.mxu0 0.0
  %314 = vmatpush1.msra.mxu0 0.0
  %315 = vmatprep.subr.mxu0 0.0
  %316 = vmatpush1.msra.mxu0 0.0
  %317 = vmatprep.subr.mxu0 0.0
  %318 = vmatpush1.msra.mxu0 0.0
  %319 = vmatprep.subr.mxu0 0.0
  %320 = vmatpush1.msra.mxu0 0.0
  %321 = vmatprep.subr.mxu0 0.0
  %322 = vmatpush1.msra.mxu0 0.0
  %323 = vmatprep.subr.mxu0 0.0
  %324 = vmatpush1.msra.mxu0 0.0
  %325 = vmatprep.subr.mxu0 0.0
  %326 = vmatpush1.msra.mxu0 0.0
  %327 = vmatprep.subr.mxu0 0.0
  %328 = vmatpush1.msra.mxu0 0.0
  %329 = vmatprep.subr.mxu0 0.0
  %330 = vmatpush1.msra.mxu0 0.0
  %331 = vmatprep.subr.mxu0 0.0
  %332 = vmatpush1.msra.mxu0 0.0
  %333 = vmatprep.subr.mxu0 0.0
  %334 = vmatpush1.msra.mxu0 0.0
  %335 = vmatprep.subr.mxu0 0.0
  %336 = vmatpush1.msra.mxu0 0.0
  %337 = vmatprep.subr.mxu0 0.0
  %338 = vmatpush1.msra.mxu0 0.0
  %339 = vmatprep.subr.mxu0 0.0
  %340 = vmatpush1.msra.mxu0 0.0
  %341 = vmatprep.subr.mxu0 0.0
  %342 = vmatpush1.msra.mxu0 0.0
  %343 = vmatprep.subr.mxu0 0.0
  %344 = vmatpush1.msra.mxu0 0.0
  %345 = vmatprep.subr.mxu0 0.0
  %346 = vmatpush1.msra.mxu0 0.0
  %347 = vmatprep.subr.mxu0 0.0
  %348 = vmatpush1.msra.mxu0 0.0
  %349 = vmatprep.subr.mxu0 0.0
  %350 = vmatpush1.msra.mxu0 0.0
  %351 = vmatprep.subr.mxu0 0.0
  %352 = vmatpush1.msra.mxu0 0.0
  %353 = vmatprep.subr.mxu0 0.0
  %354 = vmatpush1.msra.mxu0 0.0
  %355 = vmatprep.subr.mxu0 0.0
  %356 = vmatpush1.msra.mxu0 0.0
  %357 = vmatprep.subr.mxu0 0.0
  %358 = vmatpush1.msra.mxu0 0.0
  %359 = vmatprep.subr.mxu0 0.0
  %360 = vmatpush1.msra.mxu0 0.0
  %361 = vmatprep.subr.mxu0 0.0
  %362 = vmatpush1.msra.mxu0 0.0
  %363 = vmatprep.subr.mxu0 0.0
  %364 = vmatpush1.msra.mxu0 0.0
  %365 = vmatprep.subr.mxu0 0.0
  %366 = vmatpush1.msra.mxu0 0.0
  %367 = vmatprep.subr.mxu0 0.0
  %368 = vmatpush1.msra.mxu0 0.0
  %369 = vmatprep.subr.mxu0 0.0
  %370 = vmatpush1.msra.mxu0 0.0
  %371 = vmatprep.mubr.f32.mxu0 0.0
  %372 = vmatmul.mubr.f32.gmra.mrb[0].mxu0 %v305
  %v373 = vpop.f32.mrb[0].mxu0
  %v374 = vadd.f32 0.0, %v373
  %v375 = vpop.f32.mrb[0].mxu0
  %376 = vdwg.mxu0
  %377 = vrot.lane.b32.xlu0 %v117, 80
  %v378 = vpop.permute.xlu0 %377
  %v381 = vsel %vm125, %v300, 0
  %383 = vmatprep.subr.mxu0 0.0
  %384 = vmatpush1.msra.mxu0 %v378
  %385 = vmatprep.subr.mxu0 0.0
  %386 = vmatpush1.msra.mxu0 0.0
  %387 = vmatprep.subr.mxu0 0.0
  %388 = vmatpush1.msra.mxu0 0.0
  %389 = vmatprep.subr.mxu0 0.0
  %390 = vmatpush1.msra.mxu0 0.0
  %391 = vmatprep.subr.mxu0 0.0
  %392 = vmatpush1.msra.mxu0 0.0
  %393 = vmatprep.subr.mxu0 0.0
  %394 = vmatpush1.msra.mxu0 0.0
  %395 = vmatprep.subr.mxu0 0.0
  %396 = vmatpush1.msra.mxu0 0.0
  %397 = vmatprep.subr.mxu0 0.0
  %398 = vmatpush1.msra.mxu0 0.0
  %399 = vmatprep.subr.mxu0 0.0
  %400 = vmatpush1.msra.mxu0 0.0
  %401 = vmatprep.subr.mxu0 0.0
  %402 = vmatpush1.msra.mxu0 0.0
  %403 = vmatprep.subr.mxu0 0.0
  %404 = vmatpush1.msra.mxu0 0.0
  %405 = vmatprep.subr.mxu0 0.0
  %406 = vmatpush1.msra.mxu0 0.0
  %407 = vmatprep.subr.mxu0 0.0
  %408 = vmatpush1.msra.mxu0 0.0
  %409 = vmatprep.subr.mxu0 0.0
  %410 = vmatpush1.msra.mxu0 0.0
  %411 = vmatprep.subr.mxu0 0.0
  %412 = vmatpush1.msra.mxu0 0.0
  %413 = vmatprep.subr.mxu0 0.0
  %414 = vmatpush1.msra.mxu0 0.0
  %415 = vmatprep.subr.mxu0 0.0
  %416 = vmatpush1.msra.mxu0 0.0
  %417 = vmatprep.subr.mxu0 0.0
  %418 = vmatpush1.msra.mxu0 0.0
  %419 = vmatprep.subr.mxu0 0.0
  %420 = vmatpush1.msra.mxu0 0.0
  %421 = vmatprep.subr.mxu0 0.0
  %422 = vmatpush1.msra.mxu0 0.0
  %423 = vmatprep.subr.mxu0 0.0
  %424 = vmatpush1.msra.mxu0 0.0
  %425 = vmatprep.subr.mxu0 0.0
  %426 = vmatpush1.msra.mxu0 0.0
  %427 = vmatprep.subr.mxu0 0.0
  %428 = vmatpush1.msra.mxu0 0.0
  %429 = vmatprep.subr.mxu0 0.0
  %430 = vmatpush1.msra.mxu0 0.0
  %431 = vmatprep.subr.mxu0 0.0
  %432 = vmatpush1.msra.mxu0 0.0
  %433 = vmatprep.subr.mxu0 0.0
  %434 = vmatpush1.msra.mxu0 0.0
  %435 = vmatprep.subr.mxu0 0.0
  %436 = vmatpush1.msra.mxu0 0.0
  %437 = vmatprep.subr.mxu0 0.0
  %438 = vmatpush1.msra.mxu0 0.0
  %439 = vmatprep.subr.mxu0 0.0
  %440 = vmatpush1.msra.mxu0 0.0
  %441 = vmatprep.subr.mxu0 0.0
  %442 = vmatpush1.msra.mxu0 0.0
  %443 = vmatprep.subr.mxu0 0.0
  %444 = vmatpush1.msra.mxu0 0.0
  %445 = vmatprep.subr.mxu0 0.0
  %446 = vmatpush1.msra.mxu0 0.0
  %447 = vmatprep.mubr.f32.mxu0 0.0
  %448 = vmatmul.mubr.f32.gmra.mrb[0].mxu0 %v381
  %v449 = vpop.f32.mrb[0].mxu0
  %v450 = vadd.f32 0.0, %v449
  %v451 = vpop.f32.mrb[0].mxu0
  %452 = vdwg.mxu0
  %v453 = vld [vmem:[%s3] sm:$0xff]
  %454 = vrot.lane.b32.xlu0 %v120, 120
  %v455 = vpop.permute.xlu0 %454
  %456 = vrot.lane.b32.xlu0 %v112, 96
  %v457 = vpop.permute.xlu0 %456
  %v458 = vsel %vm125, %v455, 0
  %v460 = vsel %vm125, %v457, 0
  %462 = vmatprep.subr.mxu0 0.0
  %463 = vmatpush1.xpose.msra.mxu0 %v460
  %464 = vmatprep.subr.mxu0 0.0
  %465 = vmatpush1.xpose.msra.mxu0 0.0
  %466 = vmatprep.subr.mxu0 0.0
  %467 = vmatpush1.xpose.msra.mxu0 0.0
  %468 = vmatprep.subr.mxu0 0.0
  %469 = vmatpush1.xpose.msra.mxu0 0.0
  %470 = vmatprep.subr.mxu0 0.0
  %471 = vmatpush1.xpose.msra.mxu0 0.0
  %472 = vmatprep.subr.mxu0 0.0
  %473 = vmatpush1.xpose.msra.mxu0 0.0
  %474 = vmatprep.subr.mxu0 0.0
  %475 = vmatpush1.xpose.msra.mxu0 0.0
  %476 = vmatprep.subr.mxu0 0.0
  %477 = vmatpush1.xpose.msra.mxu0 0.0
  %478 = vmatprep.subr.mxu0 0.0
  %479 = vmatpush1.xpose.msra.mxu0 0.0
  %480 = vmatprep.subr.mxu0 0.0
  %481 = vmatpush1.xpose.msra.mxu0 0.0
  %482 = vmatprep.subr.mxu0 0.0
  %483 = vmatpush1.xpose.msra.mxu0 0.0
  %484 = vmatprep.subr.mxu0 0.0
  %485 = vmatpush1.xpose.msra.mxu0 0.0
  %486 = vmatprep.subr.mxu0 0.0
  %487 = vmatpush1.xpose.msra.mxu0 0.0
  %488 = vmatprep.subr.mxu0 0.0
  %489 = vmatpush1.xpose.msra.mxu0 0.0
  %490 = vmatprep.subr.mxu0 0.0
  %491 = vmatpush1.xpose.msra.mxu0 0.0
  %492 = vmatprep.subr.mxu0 0.0
  %493 = vmatpush1.xpose.msra.mxu0 0.0
  %494 = vmatprep.subr.mxu0 0.0
  %495 = vmatpush1.xpose.msra.mxu0 0.0
  %496 = vmatprep.subr.mxu0 0.0
  %497 = vmatpush1.xpose.msra.mxu0 0.0
  %498 = vmatprep.subr.mxu0 0.0
  %499 = vmatpush1.xpose.msra.mxu0 0.0
  %500 = vmatprep.subr.mxu0 0.0
  %501 = vmatpush1.xpose.msra.mxu0 0.0
  %502 = vmatprep.subr.mxu0 0.0
  %503 = vmatpush1.xpose.msra.mxu0 0.0
  %504 = vmatprep.subr.mxu0 0.0
  %505 = vmatpush1.xpose.msra.mxu0 0.0
  %506 = vmatprep.subr.mxu0 0.0
  %507 = vmatpush1.xpose.msra.mxu0 0.0
  %508 = vmatprep.subr.mxu0 0.0
  %509 = vmatpush1.xpose.msra.mxu0 0.0
  %510 = vmatprep.subr.mxu0 0.0
  %511 = vmatpush1.xpose.msra.mxu0 0.0
  %512 = vmatprep.subr.mxu0 0.0
  %513 = vmatpush1.xpose.msra.mxu0 0.0
  %514 = vmatprep.subr.mxu0 0.0
  %515 = vmatpush1.xpose.msra.mxu0 0.0
  %516 = vmatprep.subr.mxu0 0.0
  %517 = vmatpush1.xpose.msra.mxu0 0.0
  %518 = vmatprep.subr.mxu0 0.0
  %519 = vmatpush1.xpose.msra.mxu0 0.0
  %520 = vmatprep.subr.mxu0 0.0
  %521 = vmatpush1.xpose.msra.mxu0 0.0
  %522 = vmatprep.subr.mxu0 0.0
  %523 = vmatpush1.xpose.msra.mxu0 0.0
  %524 = vmatprep.subr.mxu0 0.0
  %525 = vmatpush1.xpose.msra.mxu0 0.0
  %526 = vmatprep.mubr.f32.mxu0 0.0
  %527 = vmatmul.mubr.f32.gmra.mrb[0].mxu0 %v458
  %v528 = vpop.f32.mrb[0].mxu0
  %v529 = vadd.f32 0.0, %v528
  %v530 = vpop.f32.mrb[0].mxu0
  %531 = vdwg.mxu0
  %532 = vrot.lane.b32.xlu0 %v121, 120
  %v533 = vpop.permute.xlu0 %532
  %534 = vrot.lane.b32.xlu0 %v117, 96
  %v535 = vpop.permute.xlu0 %534
  %v536 = vsel %vm125, %v533, 0
  %v538 = vsel %vm125, %v535, 0
  %540 = vmatprep.subr.mxu0 0.0
  %541 = vmatpush1.xpose.msra.mxu0 %v538
  %542 = vmatprep.subr.mxu0 0.0
  %543 = vmatpush1.xpose.msra.mxu0 0.0
  %544 = vmatprep.subr.mxu0 0.0
  %545 = vmatpush1.xpose.msra.mxu0 0.0
  %546 = vmatprep.subr.mxu0 0.0
  %547 = vmatpush1.xpose.msra.mxu0 0.0
  %548 = vmatprep.subr.mxu0 0.0
  %549 = vmatpush1.xpose.msra.mxu0 0.0
  %550 = vmatprep.subr.mxu0 0.0
  %551 = vmatpush1.xpose.msra.mxu0 0.0
  %552 = vmatprep.subr.mxu0 0.0
  %553 = vmatpush1.xpose.msra.mxu0 0.0
  %554 = vmatprep.subr.mxu0 0.0
  %555 = vmatpush1.xpose.msra.mxu0 0.0
  %556 = vmatprep.subr.mxu0 0.0
  %557 = vmatpush1.xpose.msra.mxu0 0.0
  %558 = vmatprep.subr.mxu0 0.0
  %559 = vmatpush1.xpose.msra.mxu0 0.0
  %560 = vmatprep.subr.mxu0 0.0
  %561 = vmatpush1.xpose.msra.mxu0 0.0
  %562 = vmatprep.subr.mxu0 0.0
  %563 = vmatpush1.xpose.msra.mxu0 0.0
  %564 = vmatprep.subr.mxu0 0.0
  %565 = vmatpush1.xpose.msra.mxu0 0.0
  %566 = vmatprep.subr.mxu0 0.0
  %567 = vmatpush1.xpose.msra.mxu0 0.0
  %568 = vmatprep.subr.mxu0 0.0
  %569 = vmatpush1.xpose.msra.mxu0 0.0
  %570 = vmatprep.subr.mxu0 0.0
  %571 = vmatpush1.xpose.msra.mxu0 0.0
  %572 = vmatprep.subr.mxu0 0.0
  %573 = vmatpush1.xpose.msra.mxu0 0.0
  %574 = vmatprep.subr.mxu0 0.0
  %575 = vmatpush1.xpose.msra.mxu0 0.0
  %576 = vmatprep.subr.mxu0 0.0
  %577 = vmatpush1.xpose.msra.mxu0 0.0
  %578 = vmatprep.subr.mxu0 0.0
  %579 = vmatpush1.xpose.msra.mxu0 0.0
  %580 = vmatprep.subr.mxu0 0.0
  %581 = vmatpush1.xpose.msra.mxu0 0.0
  %582 = vmatprep.subr.mxu0 0.0
  %583 = vmatpush1.xpose.msra.mxu0 0.0
  %584 = vmatprep.subr.mxu0 0.0
  %585 = vmatpush1.xpose.msra.mxu0 0.0
  %586 = vmatprep.subr.mxu0 0.0
  %587 = vmatpush1.xpose.msra.mxu0 0.0
  %588 = vmatprep.subr.mxu0 0.0
  %589 = vmatpush1.xpose.msra.mxu0 0.0
  %590 = vmatprep.subr.mxu0 0.0
  %591 = vmatpush1.xpose.msra.mxu0 0.0
  %592 = vmatprep.subr.mxu0 0.0
  %593 = vmatpush1.xpose.msra.mxu0 0.0
  %594 = vmatprep.subr.mxu0 0.0
  %595 = vmatpush1.xpose.msra.mxu0 0.0
  %596 = vmatprep.subr.mxu0 0.0
  %597 = vmatpush1.xpose.msra.mxu0 0.0
  %598 = vmatprep.subr.mxu0 0.0
  %599 = vmatpush1.xpose.msra.mxu0 0.0
  %600 = vmatprep.subr.mxu0 0.0
  %601 = vmatpush1.xpose.msra.mxu0 0.0
  %602 = vmatprep.subr.mxu0 0.0
  %603 = vmatpush1.xpose.msra.mxu0 0.0
  %604 = vmatprep.mubr.f32.mxu0 0.0
  %605 = vmatmul.mubr.f32.gmra.mrb[0].mxu0 %v536
  %v606 = vpop.f32.mrb[0].mxu0
  %v607 = vadd.f32 0.0, %v606
  %v608 = vpop.f32.mrb[0].mxu0
  %609 = vdwg.mxu0
  %v610 = vsel %vm125, %v529, -inf
  %611 = vmax.xlane.f32.xlu0 %v610
  %v612 = vpop.xlane.xlu0 %611
  %v613 = vsel %vm125, %v607, -inf
  %614 = vmax.xlane.f32.xlu0 %v613
  %v615 = vpop.xlane.xlu0 %614
  %v616 = vsub.f32 %v529, %v612
  %v617 = vsub.f32 %v607, %v615
  %v618 = vmul.f32 %v616, 1.442695
  %v619 = vpow.pop %v618
  %v620 = vmul.f32 %v617, 1.442695
  %v621 = vpow.pop %v620
  %v622 = vsel %vm125, %v619, 0.0
  %623 = vadd.xlane.f32.xlu0 %v622
  %v624 = vpop.xlane.xlu0 %623
  %v625 = vsel %vm125, %v621, 0.0
  %626 = vadd.xlane.f32.xlu0 %v625
  %v627 = vpop.xlane.xlu0 %626
  %v628 = vrcp.pop %v624
  %v629 = vrcp.pop %v627
  %v630 = vmul.f32 %v619, %v628
  %v631 = vmul.f32 %v621, %v629
  %632 = vrot.lane.b32.xlu0 %v112, 72
  %v633 = vpop.permute.xlu0 %632
  %v636 = vsel %vm125, %v630, 0
  %638 = vmatprep.subr.mxu0 0.0
  %639 = vmatpush1.msra.mxu0 %v633
  %640 = vmatprep.subr.mxu0 0.0
  %641 = vmatpush1.msra.mxu0 0.0
  %642 = vmatprep.subr.mxu0 0.0
  %643 = vmatpush1.msra.mxu0 0.0
  %644 = vmatprep.subr.mxu0 0.0
  %645 = vmatpush1.msra.mxu0 0.0
  %646 = vmatprep.subr.mxu0 0.0
  %647 = vmatpush1.msra.mxu0 0.0
  %648 = vmatprep.subr.mxu0 0.0
  %649 = vmatpush1.msra.mxu0 0.0
  %650 = vmatprep.subr.mxu0 0.0
  %651 = vmatpush1.msra.mxu0 0.0
  %652 = vmatprep.subr.mxu0 0.0
  %653 = vmatpush1.msra.mxu0 0.0
  %654 = vmatprep.subr.mxu0 0.0
  %655 = vmatpush1.msra.mxu0 0.0
  %656 = vmatprep.subr.mxu0 0.0
  %657 = vmatpush1.msra.mxu0 0.0
  %658 = vmatprep.subr.mxu0 0.0
  %659 = vmatpush1.msra.mxu0 0.0
  %660 = vmatprep.subr.mxu0 0.0
  %661 = vmatpush1.msra.mxu0 0.0
  %662 = vmatprep.subr.mxu0 0.0
  %663 = vmatpush1.msra.mxu0 0.0
  %664 = vmatprep.subr.mxu0 0.0
  %665 = vmatpush1.msra.mxu0 0.0
  %666 = vmatprep.subr.mxu0 0.0
  %667 = vmatpush1.msra.mxu0 0.0
  %668 = vmatprep.subr.mxu0 0.0
  %669 = vmatpush1.msra.mxu0 0.0
  %670 = vmatprep.subr.mxu0 0.0
  %671 = vmatpush1.msra.mxu0 0.0
  %672 = vmatprep.subr.mxu0 0.0
  %673 = vmatpush1.msra.mxu0 0.0
  %674 = vmatprep.subr.mxu0 0.0
  %675 = vmatpush1.msra.mxu0 0.0
  %676 = vmatprep.subr.mxu0 0.0
  %677 = vmatpush1.msra.mxu0 0.0
  %678 = vmatprep.subr.mxu0 0.0
  %679 = vmatpush1.msra.mxu0 0.0
  %680 = vmatprep.subr.mxu0 0.0
  %681 = vmatpush1.msra.mxu0 0.0
  %682 = vmatprep.subr.mxu0 0.0
  %683 = vmatpush1.msra.mxu0 0.0
  %684 = vmatprep.subr.mxu0 0.0
  %685 = vmatpush1.msra.mxu0 0.0
  %686 = vmatprep.subr.mxu0 0.0
  %687 = vmatpush1.msra.mxu0 0.0
  %688 = vmatprep.subr.mxu0 0.0
  %689 = vmatpush1.msra.mxu0 0.0
  %690 = vmatprep.subr.mxu0 0.0
  %691 = vmatpush1.msra.mxu0 0.0
  %692 = vmatprep.subr.mxu0 0.0
  %693 = vmatpush1.msra.mxu0 0.0
  %694 = vmatprep.subr.mxu0 0.0
  %695 = vmatpush1.msra.mxu0 0.0
  %696 = vmatprep.subr.mxu0 0.0
  %697 = vmatpush1.msra.mxu0 0.0
  %698 = vmatprep.subr.mxu0 0.0
  %699 = vmatpush1.msra.mxu0 0.0
  %700 = vmatprep.subr.mxu0 0.0
  %701 = vmatpush1.msra.mxu0 0.0
  %702 = vmatprep.mubr.f32.mxu0 0.0
  %703 = vmatmul.mubr.f32.gmra.mrb[0].mxu0 %v636
  %v704 = vpop.f32.mrb[0].mxu0
  %v705 = vadd.f32 0.0, %v704
  %v706 = vpop.f32.mrb[0].mxu0
  %707 = vdwg.mxu0
  %708 = vrot.lane.b32.xlu0 %v117, 72
  %v709 = vpop.permute.xlu0 %708
  %v712 = vsel %vm125, %v631, 0
  %714 = vmatprep.subr.mxu0 0.0
  %715 = vmatpush1.msra.mxu0 %v709
  %716 = vmatprep.subr.mxu0 0.0
  %717 = vmatpush1.msra.mxu0 0.0
  %718 = vmatprep.subr.mxu0 0.0
  %719 = vmatpush1.msra.mxu0 0.0
  %720 = vmatprep.subr.mxu0 0.0
  %721 = vmatpush1.msra.mxu0 0.0
  %722 = vmatprep.subr.mxu0 0.0
  %723 = vmatpush1.msra.mxu0 0.0
  %724 = vmatprep.subr.mxu0 0.0
  %725 = vmatpush1.msra.mxu0 0.0
  %726 = vmatprep.subr.mxu0 0.0
  %727 = vmatpush1.msra.mxu0 0.0
  %728 = vmatprep.subr.mxu0 0.0
  %729 = vmatpush1.msra.mxu0 0.0
  %730 = vmatprep.subr.mxu0 0.0
  %731 = vmatpush1.msra.mxu0 0.0
  %732 = vmatprep.subr.mxu0 0.0
  %733 = vmatpush1.msra.mxu0 0.0
  %734 = vmatprep.subr.mxu0 0.0
  %735 = vmatpush1.msra.mxu0 0.0
  %736 = vmatprep.subr.mxu0 0.0
  %737 = vmatpush1.msra.mxu0 0.0
  %738 = vmatprep.subr.mxu0 0.0
  %739 = vmatpush1.msra.mxu0 0.0
  %740 = vmatprep.subr.mxu0 0.0
  %741 = vmatpush1.msra.mxu0 0.0
  %742 = vmatprep.subr.mxu0 0.0
  %743 = vmatpush1.msra.mxu0 0.0
  %744 = vmatprep.subr.mxu0 0.0
  %745 = vmatpush1.msra.mxu0 0.0
  %746 = vmatprep.subr.mxu0 0.0
  %747 = vmatpush1.msra.mxu0 0.0
  %748 = vmatprep.subr.mxu0 0.0
  %749 = vmatpush1.msra.mxu0 0.0
  %750 = vmatprep.subr.mxu0 0.0
  %751 = vmatpush1.msra.mxu0 0.0
  %752 = vmatprep.subr.mxu0 0.0
  %753 = vmatpush1.msra.mxu0 0.0
  %754 = vmatprep.subr.mxu0 0.0
  %755 = vmatpush1.msra.mxu0 0.0
  %756 = vmatprep.subr.mxu0 0.0
  %757 = vmatpush1.msra.mxu0 0.0
  %758 = vmatprep.subr.mxu0 0.0
  %759 = vmatpush1.msra.mxu0 0.0
  %760 = vmatprep.subr.mxu0 0.0
  %761 = vmatpush1.msra.mxu0 0.0
  %762 = vmatprep.subr.mxu0 0.0
  %763 = vmatpush1.msra.mxu0 0.0
  %764 = vmatprep.subr.mxu0 0.0
  %765 = vmatpush1.msra.mxu0 0.0
  %766 = vmatprep.subr.mxu0 0.0
  %767 = vmatpush1.msra.mxu0 0.0
  %768 = vmatprep.subr.mxu0 0.0
  %769 = vmatpush1.msra.mxu0 0.0
  %770 = vmatprep.subr.mxu0 0.0
  %771 = vmatpush1.msra.mxu0 0.0
  %772 = vmatprep.subr.mxu0 0.0
  %773 = vmatpush1.msra.mxu0 0.0
  %774 = vmatprep.subr.mxu0 0.0
  %775 = vmatpush1.msra.mxu0 0.0
  %776 = vmatprep.subr.mxu0 0.0
  %777 = vmatpush1.msra.mxu0 0.0
  %778 = vmatprep.mubr.f32.mxu0 0.0
  %779 = vmatmul.mubr.f32.gmra.mrb[0].mxu0 %v712
  %v780 = vpop.f32.mrb[0].mxu0
  %v781 = vadd.f32 0.0, %v780
  %v782 = vpop.f32.mrb[0].mxu0
  %783 = vdwg.mxu0
  %v784 = vld [vmem:[%s3 + $0x8] sm:$0xff]
  %v786 = vsel %vm125, %v705, 0
  %v789 = vsel %vm125, %v781, 0
  %791 = vmatprep.subr.mxu0 0.0
  %792 = vmatpush1.msra.mxu0 %v784
  %793 = vmatprep.subr.mxu0 0.0
  %794 = vmatpush1.msra.mxu0 0.0
  %795 = vmatprep.subr.mxu0 0.0
  %796 = vmatpush1.msra.mxu0 0.0
  %797 = vmatprep.subr.mxu0 0.0
  %798 = vmatpush1.msra.mxu0 0.0
  %799 = vmatprep.subr.mxu0 0.0
  %800 = vmatpush1.msra.mxu0 0.0
  %801 = vmatprep.subr.mxu0 0.0
  %802 = vmatpush1.msra.mxu0 0.0
  %803 = vmatprep.subr.mxu0 0.0
  %804 = vmatpush1.msra.mxu0 0.0
  %805 = vmatprep.subr.mxu0 0.0
  %806 = vmatpush1.msra.mxu0 0.0
  %807 = vmatprep.subr.mxu0 0.0
  %808 = vmatpush1.msra.mxu0 0.0
  %809 = vmatprep.subr.mxu0 0.0
  %810 = vmatpush1.msra.mxu0 0.0
  %811 = vmatprep.subr.mxu0 0.0
  %812 = vmatpush1.msra.mxu0 0.0
  %813 = vmatprep.subr.mxu0 0.0
  %814 = vmatpush1.msra.mxu0 0.0
  %815 = vmatprep.subr.mxu0 0.0
  %816 = vmatpush1.msra.mxu0 0.0
  %817 = vmatprep.subr.mxu0 0.0
  %818 = vmatpush1.msra.mxu0 0.0
  %819 = vmatprep.subr.mxu0 0.0
  %820 = vmatpush1.msra.mxu0 0.0
  %821 = vmatprep.subr.mxu0 0.0
  %822 = vmatpush1.msra.mxu0 0.0
  %823 = vmatprep.subr.mxu0 0.0
  %824 = vmatpush1.msra.mxu0 0.0
  %825 = vmatprep.subr.mxu0 0.0
  %826 = vmatpush1.msra.mxu0 0.0
  %827 = vmatprep.subr.mxu0 0.0
  %828 = vmatpush1.msra.mxu0 0.0
  %829 = vmatprep.subr.mxu0 0.0
  %830 = vmatpush1.msra.mxu0 0.0
  %831 = vmatprep.subr.mxu0 0.0
  %832 = vmatpush1.msra.mxu0 0.0
  %833 = vmatprep.subr.mxu0 0.0
  %834 = vmatpush1.msra.mxu0 0.0
  %835 = vmatprep.subr.mxu0 0.0
  %836 = vmatpush1.msra.mxu0 0.0
  %837 = vmatprep.subr.mxu0 0.0
  %838 = vmatpush1.msra.mxu0 0.0
  %839 = vmatprep.subr.mxu0 0.0
  %840 = vmatpush1.msra.mxu0 0.0
  %841 = vmatprep.subr.mxu0 0.0
  %842 = vmatpush1.msra.mxu0 0.0
  %843 = vmatprep.subr.mxu0 0.0
  %844 = vmatpush1.msra.mxu0 0.0
  %845 = vmatprep.subr.mxu0 0.0
  %846 = vmatpush1.msra.mxu0 0.0
  %847 = vmatprep.subr.mxu0 0.0
  %848 = vmatpush1.msra.mxu0 0.0
  %849 = vmatprep.subr.mxu0 0.0
  %850 = vmatpush1.msra.mxu0 0.0
  %851 = vmatprep.subr.mxu0 0.0
  %852 = vmatpush1.msra.mxu0 0.0
  %853 = vmatprep.subr.mxu0 0.0
  %854 = vmatpush1.msra.mxu0 0.0
  %855 = vmatprep.mubr.f32.mxu0 0.0
  %856 = vmatmul.mubr.f32.gmra.mrb[0].mxu0 %v786
  %v857 = vpop.f32.mrb[0].mxu0
  %v858 = vadd.f32 0.0, %v857
  %v859 = vpop.f32.mrb[0].mxu0
  %860 = vmatprep.mubr.f32.mxu0 0.0
  %861 = vmatmul.mubr.f32.gmra.mrb[0].mxu0 %v789
  %v862 = vpop.f32.mrb[0].mxu0
  %v863 = vadd.f32 0.0, %v862
  %v864 = vpop.f32.mrb[0].mxu0
  %865 = vdwg.mxu0
  %v867 = vsel %vm125, %v374, 0
  %v870 = vsel %vm125, %v450, 0
  %872 = vmatprep.subr.mxu0 0.0
  %873 = vmatpush1.msra.mxu0 %v453
  %874 = vmatprep.subr.mxu0 0.0
  %875 = vmatpush1.msra.mxu0 0.0
  %876 = vmatprep.subr.mxu0 0.0
  %877 = vmatpush1.msra.mxu0 0.0
  %878 = vmatprep.subr.mxu0 0.0
  %879 = vmatpush1.msra.mxu0 0.0
  %880 = vmatprep.subr.mxu0 0.0
  %881 = vmatpush1.msra.mxu0 0.0
  %882 = vmatprep.subr.mxu0 0.0
  %883 = vmatpush1.msra.mxu0 0.0
  %884 = vmatprep.subr.mxu0 0.0
  %885 = vmatpush1.msra.mxu0 0.0
  %886 = vmatprep.subr.mxu0 0.0
  %887 = vmatpush1.msra.mxu0 0.0
  %888 = vmatprep.subr.mxu0 0.0
  %889 = vmatpush1.msra.mxu0 0.0
  %890 = vmatprep.subr.mxu0 0.0
  %891 = vmatpush1.msra.mxu0 0.0
  %892 = vmatprep.subr.mxu0 0.0
  %893 = vmatpush1.msra.mxu0 0.0
  %894 = vmatprep.subr.mxu0 0.0
  %895 = vmatpush1.msra.mxu0 0.0
  %896 = vmatprep.subr.mxu0 0.0
  %897 = vmatpush1.msra.mxu0 0.0
  %898 = vmatprep.subr.mxu0 0.0
  %899 = vmatpush1.msra.mxu0 0.0
  %900 = vmatprep.subr.mxu0 0.0
  %901 = vmatpush1.msra.mxu0 0.0
  %902 = vmatprep.subr.mxu0 0.0
  %903 = vmatpush1.msra.mxu0 0.0
  %904 = vmatprep.subr.mxu0 0.0
  %905 = vmatpush1.msra.mxu0 0.0
  %906 = vmatprep.subr.mxu0 0.0
  %907 = vmatpush1.msra.mxu0 0.0
  %908 = vmatprep.subr.mxu0 0.0
  %909 = vmatpush1.msra.mxu0 0.0
  %910 = vmatprep.subr.mxu0 0.0
  %911 = vmatpush1.msra.mxu0 0.0
  %912 = vmatprep.subr.mxu0 0.0
  %913 = vmatpush1.msra.mxu0 0.0
  %914 = vmatprep.subr.mxu0 0.0
  %915 = vmatpush1.msra.mxu0 0.0
  %916 = vmatprep.subr.mxu0 0.0
  %917 = vmatpush1.msra.mxu0 0.0
  %918 = vmatprep.subr.mxu0 0.0
  %919 = vmatpush1.msra.mxu0 0.0
  %920 = vmatprep.subr.mxu0 0.0
  %921 = vmatpush1.msra.mxu0 0.0
  %922 = vmatprep.subr.mxu0 0.0
  %923 = vmatpush1.msra.mxu0 0.0
  %924 = vmatprep.subr.mxu0 0.0
  %925 = vmatpush1.msra.mxu0 0.0
  %926 = vmatprep.subr.mxu0 0.0
  %927 = vmatpush1.msra.mxu0 0.0
  %928 = vmatprep.subr.mxu0 0.0
  %929 = vmatpush1.msra.mxu0 0.0
  %930 = vmatprep.subr.mxu0 0.0
  %931 = vmatpush1.msra.mxu0 0.0
  %932 = vmatprep.subr.mxu0 0.0
  %933 = vmatpush1.msra.mxu0 0.0
  %934 = vmatprep.subr.mxu0 0.0
  %935 = vmatpush1.msra.mxu0 0.0
  %936 = vmatprep.mubr.f32.mxu0 0.0
  %937 = vmatmul.mubr.f32.gmra.mrb[0].mxu0 %v867
  %v938 = vpop.f32.mrb[0].mxu0
  %v939 = vadd.f32 %v858, %v938
  %v940 = vpop.f32.mrb[0].mxu0
  %941 = vmatprep.mubr.f32.mxu0 0.0
  %942 = vmatmul.mubr.f32.gmra.mrb[0].mxu0 %v870
  %v943 = vpop.f32.mrb[0].mxu0
  %v944 = vadd.f32 %v863, %v943
  %v945 = vpop.f32.mrb[0].mxu0
  %946 = vdwg.mxu0
  %947 = vrot.lane.b32.xlu0 %v120, 112
  %v948 = vpop.permute.xlu0 %947
  %949 = vrot.lane.b32.xlu0 %v112, 88
  %v950 = vpop.permute.xlu0 %949
  %v951 = vsel %vm125, %v948, 0
  %v953 = vsel %vm125, %v950, 0
  %955 = vmatprep.subr.mxu0 0.0
  %956 = vmatpush1.xpose.msra.mxu0 %v953
  %957 = vmatprep.subr.mxu0 0.0
  %958 = vmatpush1.xpose.msra.mxu0 0.0
  %959 = vmatprep.subr.mxu0 0.0
  %960 = vmatpush1.xpose.msra.mxu0 0.0
  %961 = vmatprep.subr.mxu0 0.0
  %962 = vmatpush1.xpose.msra.mxu0 0.0
  %963 = vmatprep.subr.mxu0 0.0
  %964 = vmatpush1.xpose.msra.mxu0 0.0
  %965 = vmatprep.subr.mxu0 0.0
  %966 = vmatpush1.xpose.msra.mxu0 0.0
  %967 = vmatprep.subr.mxu0 0.0
  %968 = vmatpush1.xpose.msra.mxu0 0.0
  %969 = vmatprep.subr.mxu0 0.0
  %970 = vmatpush1.xpose.msra.mxu0 0.0
  %971 = vmatprep.subr.mxu0 0.0
  %972 = vmatpush1.xpose.msra.mxu0 0.0
  %973 = vmatprep.subr.mxu0 0.0
  %974 = vmatpush1.xpose.msra.mxu0 0.0
  %975 = vmatprep.subr.mxu0 0.0
  %976 = vmatpush1.xpose.msra.mxu0 0.0
  %977 = vmatprep.subr.mxu0 0.0
  %978 = vmatpush1.xpose.msra.mxu0 0.0
  %979 = vmatprep.subr.mxu0 0.0
  %980 = vmatpush1.xpose.msra.mxu0 0.0
  %981 = vmatprep.subr.mxu0 0.0
  %982 = vmatpush1.xpose.msra.mxu0 0.0
  %983 = vmatprep.subr.mxu0 0.0
  %984 = vmatpush1.xpose.msra.mxu0 0.0
  %985 = vmatprep.subr.mxu0 0.0
  %986 = vmatpush1.xpose.msra.mxu0 0.0
  %987 = vmatprep.subr.mxu0 0.0
  %988 = vmatpush1.xpose.msra.mxu0 0.0
  %989 = vmatprep.subr.mxu0 0.0
  %990 = vmatpush1.xpose.msra.mxu0 0.0
  %991 = vmatprep.subr.mxu0 0.0
  %992 = vmatpush1.xpose.msra.mxu0 0.0
  %993 = vmatprep.subr.mxu0 0.0
  %994 = vmatpush1.xpose.msra.mxu0 0.0
  %995 = vmatprep.subr.mxu0 0.0
  %996 = vmatpush1.xpose.msra.mxu0 0.0
  %997 = vmatprep.subr.mxu0 0.0
  %998 = vmatpush1.xpose.msra.mxu0 0.0
  %999 = vmatprep.subr.mxu0 0.0
  %1000 = vmatpush1.xpose.msra.mxu0 0.0
  %1001 = vmatprep.subr.mxu0 0.0
  %1002 = vmatpush1.xpose.msra.mxu0 0.0
  %1003 = vmatprep.subr.mxu0 0.0
  %1004 = vmatpush1.xpose.msra.mxu0 0.0
  %1005 = vmatprep.subr.mxu0 0.0
  %1006 = vmatpush1.xpose.msra.mxu0 0.0
  %1007 = vmatprep.subr.mxu0 0.0
  %1008 = vmatpush1.xpose.msra.mxu0 0.0
  %1009 = vmatprep.subr.mxu0 0.0
  %1010 = vmatpush1.xpose.msra.mxu0 0.0
  %1011 = vmatprep.subr.mxu0 0.0
  %1012 = vmatpush1.xpose.msra.mxu0 0.0
  %1013 = vmatprep.subr.mxu0 0.0
  %1014 = vmatpush1.xpose.msra.mxu0 0.0
  %1015 = vmatprep.subr.mxu0 0.0
  %1016 = vmatpush1.xpose.msra.mxu0 0.0
  %1017 = vmatprep.subr.mxu0 0.0
  %1018 = vmatpush1.xpose.msra.mxu0 0.0
  %1019 = vmatprep.mubr.f32.mxu0 0.0
  %1020 = vmatmul.mubr.f32.gmra.mrb[0].mxu0 %v951
  %v1021 = vpop.f32.mrb[0].mxu0
  %v1022 = vadd.f32 0.0, %v1021
  %v1023 = vpop.f32.mrb[0].mxu0
  %1024 = vdwg.mxu0
  %1025 = vrot.lane.b32.xlu0 %v121, 112
  %v1026 = vpop.permute.xlu0 %1025
  %1027 = vrot.lane.b32.xlu0 %v117, 88
  %v1028 = vpop.permute.xlu0 %1027
  %v1029 = vsel %vm125, %v1026, 0
  %v1031 = vsel %vm125, %v1028, 0
  %1033 = vmatprep.subr.mxu0 0.0
  %1034 = vmatpush1.xpose.msra.mxu0 %v1031
  %1035 = vmatprep.subr.mxu0 0.0
  %1036 = vmatpush1.xpose.msra.mxu0 0.0
  %1037 = vmatprep.subr.mxu0 0.0
  %1038 = vmatpush1.xpose.msra.mxu0 0.0
  %1039 = vmatprep.subr.mxu0 0.0
  %1040 = vmatpush1.xpose.msra.mxu0 0.0
  %1041 = vmatprep.subr.mxu0 0.0
  %1042 = vmatpush1.xpose.msra.mxu0 0.0
  %1043 = vmatprep.subr.mxu0 0.0
  %1044 = vmatpush1.xpose.msra.mxu0 0.0
  %1045 = vmatprep.subr.mxu0 0.0
  %1046 = vmatpush1.xpose.msra.mxu0 0.0
  %1047 = vmatprep.subr.mxu0 0.0
  %1048 = vmatpush1.xpose.msra.mxu0 0.0
  %1049 = vmatprep.subr.mxu0 0.0
  %1050 = vmatpush1.xpose.msra.mxu0 0.0
  %1051 = vmatprep.subr.mxu0 0.0
  %1052 = vmatpush1.xpose.msra.mxu0 0.0
  %1053 = vmatprep.subr.mxu0 0.0
  %1054 = vmatpush1.xpose.msra.mxu0 0.0
  %1055 = vmatprep.subr.mxu0 0.0
  %1056 = vmatpush1.xpose.msra.mxu0 0.0
  %1057 = vmatprep.subr.mxu0 0.0
  %1058 = vmatpush1.xpose.msra.mxu0 0.0
  %1059 = vmatprep.subr.mxu0 0.0
  %1060 = vmatpush1.xpose.msra.mxu0 0.0
  %1061 = vmatprep.subr.mxu0 0.0
  %1062 = vmatpush1.xpose.msra.mxu0 0.0
  %1063 = vmatprep.subr.mxu0 0.0
  %1064 = vmatpush1.xpose.msra.mxu0 0.0
  %1065 = vmatprep.subr.mxu0 0.0
  %1066 = vmatpush1.xpose.msra.mxu0 0.0
  %1067 = vmatprep.subr.mxu0 0.0
  %1068 = vmatpush1.xpose.msra.mxu0 0.0
  %1069 = vmatprep.subr.mxu0 0.0
  %1070 = vmatpush1.xpose.msra.mxu0 0.0
  %1071 = vmatprep.subr.mxu0 0.0
  %1072 = vmatpush1.xpose.msra.mxu0 0.0
  %1073 = vmatprep.subr.mxu0 0.0
  %1074 = vmatpush1.xpose.msra.mxu0 0.0
  %1075 = vmatprep.subr.mxu0 0.0
  %1076 = vmatpush1.xpose.msra.mxu0 0.0
  %1077 = vmatprep.subr.mxu0 0.0
  %1078 = vmatpush1.xpose.msra.mxu0 0.0
  %1079 = vmatprep.subr.mxu0 0.0
  %1080 = vmatpush1.xpose.msra.mxu0 0.0
  %1081 = vmatprep.subr.mxu0 0.0
  %1082 = vmatpush1.xpose.msra.mxu0 0.0
  %1083 = vmatprep.subr.mxu0 0.0
  %1084 = vmatpush1.xpose.msra.mxu0 0.0
  %1085 = vmatprep.subr.mxu0 0.0
  %1086 = vmatpush1.xpose.msra.mxu0 0.0
  %1087 = vmatprep.subr.mxu0 0.0
  %1088 = vmatpush1.xpose.msra.mxu0 0.0
  %1089 = vmatprep.subr.mxu0 0.0
  %1090 = vmatpush1.xpose.msra.mxu0 0.0
  %1091 = vmatprep.subr.mxu0 0.0
  %1092 = vmatpush1.xpose.msra.mxu0 0.0
  %1093 = vmatprep.subr.mxu0 0.0
  %1094 = vmatpush1.xpose.msra.mxu0 0.0
  %1095 = vmatprep.subr.mxu0 0.0
  %1096 = vmatpush1.xpose.msra.mxu0 0.0
  %1097 = vmatprep.mubr.f32.mxu0 0.0
  %1098 = vmatmul.mubr.f32.gmra.mrb[0].mxu0 %v1029
  %v1099 = vpop.f32.mrb[0].mxu0
  %v1100 = vadd.f32 0.0, %v1099
  %v1101 = vpop.f32.mrb[0].mxu0
  %1102 = vdwg.mxu0
  %v1103 = vsel %vm125, %v1022, -inf
  %1104 = vmax.xlane.f32.xlu0 %v1103
  %v1105 = vpop.xlane.xlu0 %1104
  %v1106 = vsel %vm125, %v1100, -inf
  %1107 = vmax.xlane.f32.xlu0 %v1106
  %v1108 = vpop.xlane.xlu0 %1107
  %v1109 = vsub.f32 %v1022, %v1105
  %v1110 = vsub.f32 %v1100, %v1108
  %v1111 = vmul.f32 %v1109, 1.442695
  %v1112 = vpow.pop %v1111
  %v1113 = vmul.f32 %v1110, 1.442695
  %v1114 = vpow.pop %v1113
  %v1115 = vsel %vm125, %v1112, 0.0
  %1116 = vadd.xlane.f32.xlu0 %v1115
  %v1117 = vpop.xlane.xlu0 %1116
  %v1118 = vsel %vm125, %v1114, 0.0
  %1119 = vadd.xlane.f32.xlu0 %v1118
  %v1120 = vpop.xlane.xlu0 %1119
  %v1121 = vrcp.pop %v1117
  %v1122 = vrcp.pop %v1120
  %v1123 = vmul.f32 %v1112, %v1121
  %v1124 = vmul.f32 %v1114, %v1122
  %1125 = vrot.lane.b32.xlu0 %v112, 64
  %v1126 = vpop.permute.xlu0 %1125
  %v1129 = vsel %vm125, %v1123, 0
  %1131 = vmatprep.subr.mxu0 0.0
  %1132 = vmatpush1.msra.mxu0 %v1126
  %1133 = vmatprep.subr.mxu0 0.0
  %1134 = vmatpush1.msra.mxu0 0.0
  %1135 = vmatprep.subr.mxu0 0.0
  %1136 = vmatpush1.msra.mxu0 0.0
  %1137 = vmatprep.subr.mxu0 0.0
  %1138 = vmatpush1.msra.mxu0 0.0
  %1139 = vmatprep.subr.mxu0 0.0
  %1140 = vmatpush1.msra.mxu0 0.0
  %1141 = vmatprep.subr.mxu0 0.0
  %1142 = vmatpush1.msra.mxu0 0.0
  %1143 = vmatprep.subr.mxu0 0.0
  %1144 = vmatpush1.msra.mxu0 0.0
  %1145 = vmatprep.subr.mxu0 0.0
  %1146 = vmatpush1.msra.mxu0 0.0
  %1147 = vmatprep.subr.mxu0 0.0
  %1148 = vmatpush1.msra.mxu0 0.0
  %1149 = vmatprep.subr.mxu0 0.0
  %1150 = vmatpush1.msra.mxu0 0.0
  %1151 = vmatprep.subr.mxu0 0.0
  %1152 = vmatpush1.msra.mxu0 0.0
  %1153 = vmatprep.subr.mxu0 0.0
  %1154 = vmatpush1.msra.mxu0 0.0
  %1155 = vmatprep.subr.mxu0 0.0
  %1156 = vmatpush1.msra.mxu0 0.0
  %1157 = vmatprep.subr.mxu0 0.0
  %1158 = vmatpush1.msra.mxu0 0.0
  %1159 = vmatprep.subr.mxu0 0.0
  %1160 = vmatpush1.msra.mxu0 0.0
  %1161 = vmatprep.subr.mxu0 0.0
  %1162 = vmatpush1.msra.mxu0 0.0
  %1163 = vmatprep.subr.mxu0 0.0
  %1164 = vmatpush1.msra.mxu0 0.0
  %1165 = vmatprep.subr.mxu0 0.0
  %1166 = vmatpush1.msra.mxu0 0.0
  %1167 = vmatprep.subr.mxu0 0.0
  %1168 = vmatpush1.msra.mxu0 0.0
  %1169 = vmatprep.subr.mxu0 0.0
  %1170 = vmatpush1.msra.mxu0 0.0
  %1171 = vmatprep.subr.mxu0 0.0
  %1172 = vmatpush1.msra.mxu0 0.0
  %1173 = vmatprep.subr.mxu0 0.0
  %1174 = vmatpush1.msra.mxu0 0.0
  %1175 = vmatprep.subr.mxu0 0.0
  %1176 = vmatpush1.msra.mxu0 0.0
  %1177 = vmatprep.subr.mxu0 0.0
  %1178 = vmatpush1.msra.mxu0 0.0
  %1179 = vmatprep.subr.mxu0 0.0
  %1180 = vmatpush1.msra.mxu0 0.0
  %1181 = vmatprep.subr.mxu0 0.0
  %1182 = vmatpush1.msra.mxu0 0.0
  %1183 = vmatprep.subr.mxu0 0.0
  %1184 = vmatpush1.msra.mxu0 0.0
  %1185 = vmatprep.subr.mxu0 0.0
  %1186 = vmatpush1.msra.mxu0 0.0
  %1187 = vmatprep.subr.mxu0 0.0
  %1188 = vmatpush1.msra.mxu0 0.0
  %1189 = vmatprep.subr.mxu0 0.0
  %1190 = vmatpush1.msra.mxu0 0.0
  %1191 = vmatprep.subr.mxu0 0.0
  %1192 = vmatpush1.msra.mxu0 0.0
  %1193 = vmatprep.subr.mxu0 0.0
  %1194 = vmatpush1.msra.mxu0 0.0
  %1195 = vmatprep.mubr.f32.mxu0 0.0
  %1196 = vmatmul.mubr.f32.gmra.mrb[0].mxu0 %v1129
  %v1197 = vpop.f32.mrb[0].mxu0
  %v1198 = vadd.f32 0.0, %v1197
  %v1199 = vpop.f32.mrb[0].mxu0
  %1200 = vdwg.mxu0
  %1201 = vrot.lane.b32.xlu0 %v117, 64
  %v1202 = vpop.permute.xlu0 %1201
  %v1205 = vsel %vm125, %v1124, 0
  %1207 = vmatprep.subr.mxu0 0.0
  %1208 = vmatpush1.msra.mxu0 %v1202
  %1209 = vmatprep.subr.mxu0 0.0
  %1210 = vmatpush1.msra.mxu0 0.0
  %1211 = vmatprep.subr.mxu0 0.0
  %1212 = vmatpush1.msra.mxu0 0.0
  %1213 = vmatprep.subr.mxu0 0.0
  %1214 = vmatpush1.msra.mxu0 0.0
  %1215 = vmatprep.subr.mxu0 0.0
  %1216 = vmatpush1.msra.mxu0 0.0
  %1217 = vmatprep.subr.mxu0 0.0
  %1218 = vmatpush1.msra.mxu0 0.0
  %1219 = vmatprep.subr.mxu0 0.0
  %1220 = vmatpush1.msra.mxu0 0.0
  %1221 = vmatprep.subr.mxu0 0.0
  %1222 = vmatpush1.msra.mxu0 0.0
  %1223 = vmatprep.subr.mxu0 0.0
  %1224 = vmatpush1.msra.mxu0 0.0
  %1225 = vmatprep.subr.mxu0 0.0
  %1226 = vmatpush1.msra.mxu0 0.0
  %1227 = vmatprep.subr.mxu0 0.0
  %1228 = vmatpush1.msra.mxu0 0.0
  %1229 = vmatprep.subr.mxu0 0.0
  %1230 = vmatpush1.msra.mxu0 0.0
  %1231 = vmatprep.subr.mxu0 0.0
  %1232 = vmatpush1.msra.mxu0 0.0
  %1233 = vmatprep.subr.mxu0 0.0
  %1234 = vmatpush1.msra.mxu0 0.0
  %1235 = vmatprep.subr.mxu0 0.0
  %1236 = vmatpush1.msra.mxu0 0.0
  %1237 = vmatprep.subr.mxu0 0.0
  %1238 = vmatpush1.msra.mxu0 0.0
  %1239 = vmatprep.subr.mxu0 0.0
  %1240 = vmatpush1.msra.mxu0 0.0
  %1241 = vmatprep.subr.mxu0 0.0
  %1242 = vmatpush1.msra.mxu0 0.0
  %1243 = vmatprep.subr.mxu0 0.0
  %1244 = vmatpush1.msra.mxu0 0.0
  %1245 = vmatprep.subr.mxu0 0.0
  %1246 = vmatpush1.msra.mxu0 0.0
  %1247 = vmatprep.subr.mxu0 0.0
  %1248 = vmatpush1.msra.mxu0 0.0
  %1249 = vmatprep.subr.mxu0 0.0
  %1250 = vmatpush1.msra.mxu0 0.0
  %1251 = vmatprep.subr.mxu0 0.0
  %1252 = vmatpush1.msra.mxu0 0.0
  %1253 = vmatprep.subr.mxu0 0.0
  %1254 = vmatpush1.msra.mxu0 0.0
  %1255 = vmatprep.subr.mxu0 0.0
  %1256 = vmatpush1.msra.mxu0 0.0
  %1257 = vmatprep.subr.mxu0 0.0
  %1258 = vmatpush1.msra.mxu0 0.0
  %1259 = vmatprep.subr.mxu0 0.0
  %1260 = vmatpush1.msra.mxu0 0.0
  %1261 = vmatprep.subr.mxu0 0.0
  %1262 = vmatpush1.msra.mxu0 0.0
  %1263 = vmatprep.subr.mxu0 0.0
  %1264 = vmatpush1.msra.mxu0 0.0
  %1265 = vmatprep.subr.mxu0 0.0
  %1266 = vmatpush1.msra.mxu0 0.0
  %1267 = vmatprep.subr.mxu0 0.0
  %1268 = vmatpush1.msra.mxu0 0.0
  %1269 = vmatprep.subr.mxu0 0.0
  %1270 = vmatpush1.msra.mxu0 0.0
  %1271 = vmatprep.mubr.f32.mxu0 0.0
  %1272 = vmatmul.mubr.f32.gmra.mrb[0].mxu0 %v1205
  %v1273 = vpop.f32.mrb[0].mxu0
  %v1274 = vadd.f32 0.0, %v1273
  %v1275 = vpop.f32.mrb[0].mxu0
  %1276 = vdwg.mxu0
  %v1277 = vld [vmem:[%s3 + $0x10] sm:$0xff]
  %v1279 = vsel %vm125, %v1198, 0
  %v1282 = vsel %vm125, %v1274, 0
  %1284 = vmatprep.subr.mxu0 0.0
  %1285 = vmatpush1.msra.mxu0 %v1277
  %1286 = vmatprep.subr.mxu0 0.0
  %1287 = vmatpush1.msra.mxu0 0.0
  %1288 = vmatprep.subr.mxu0 0.0
  %1289 = vmatpush1.msra.mxu0 0.0
  %1290 = vmatprep.subr.mxu0 0.0
  %1291 = vmatpush1.msra.mxu0 0.0
  %1292 = vmatprep.subr.mxu0 0.0
  %1293 = vmatpush1.msra.mxu0 0.0
  %1294 = vmatprep.subr.mxu0 0.0
  %1295 = vmatpush1.msra.mxu0 0.0
  %1296 = vmatprep.subr.mxu0 0.0
  %1297 = vmatpush1.msra.mxu0 0.0
  %1298 = vmatprep.subr.mxu0 0.0
  %1299 = vmatpush1.msra.mxu0 0.0
  %1300 = vmatprep.subr.mxu0 0.0
  %1301 = vmatpush1.msra.mxu0 0.0
  %1302 = vmatprep.subr.mxu0 0.0
  %1303 = vmatpush1.msra.mxu0 0.0
  %1304 = vmatprep.subr.mxu0 0.0
  %1305 = vmatpush1.msra.mxu0 0.0
  %1306 = vmatprep.subr.mxu0 0.0
  %1307 = vmatpush1.msra.mxu0 0.0
  %1308 = vmatprep.subr.mxu0 0.0
  %1309 = vmatpush1.msra.mxu0 0.0
  %1310 = vmatprep.subr.mxu0 0.0
  %1311 = vmatpush1.msra.mxu0 0.0
  %1312 = vmatprep.subr.mxu0 0.0
  %1313 = vmatpush1.msra.mxu0 0.0
  %1314 = vmatprep.subr.mxu0 0.0
  %1315 = vmatpush1.msra.mxu0 0.0
  %1316 = vmatprep.subr.mxu0 0.0
  %1317 = vmatpush1.msra.mxu0 0.0
  %1318 = vmatprep.subr.mxu0 0.0
  %1319 = vmatpush1.msra.mxu0 0.0
  %1320 = vmatprep.subr.mxu0 0.0
  %1321 = vmatpush1.msra.mxu0 0.0
  %1322 = vmatprep.subr.mxu0 0.0
  %1323 = vmatpush1.msra.mxu0 0.0
  %1324 = vmatprep.subr.mxu0 0.0
  %1325 = vmatpush1.msra.mxu0 0.0
  %1326 = vmatprep.subr.mxu0 0.0
  %1327 = vmatpush1.msra.mxu0 0.0
  %1328 = vmatprep.subr.mxu0 0.0
  %1329 = vmatpush1.msra.mxu0 0.0
  %1330 = vmatprep.subr.mxu0 0.0
  %1331 = vmatpush1.msra.mxu0 0.0
  %1332 = vmatprep.subr.mxu0 0.0
  %1333 = vmatpush1.msra.mxu0 0.0
  %1334 = vmatprep.subr.mxu0 0.0
  %1335 = vmatpush1.msra.mxu0 0.0
  %1336 = vmatprep.subr.mxu0 0.0
  %1337 = vmatpush1.msra.mxu0 0.0
  %1338 = vmatprep.subr.mxu0 0.0
  %1339 = vmatpush1.msra.mxu0 0.0
  %1340 = vmatprep.subr.mxu0 0.0
  %1341 = vmatpush1.msra.mxu0 0.0
  %1342 = vmatprep.subr.mxu0 0.0
  %1343 = vmatpush1.msra.mxu0 0.0
  %1344 = vmatprep.subr.mxu0 0.0
  %1345 = vmatpush1.msra.mxu0 0.0
  %1346 = vmatprep.subr.mxu0 0.0
  %1347 = vmatpush1.msra.mxu0 0.0
  %1348 = vmatprep.mubr.f32.mxu0 0.0
  %1349 = vmatmul.mubr.f32.gmra.mrb[0].mxu0 %v1279
  %v1350 = vpop.f32.mrb[0].mxu0
  %v1351 = vadd.f32 0.0, %v1350
  %v1352 = vpop.f32.mrb[0].mxu0
  %1353 = vmatprep.mubr.f32.mxu0 0.0
  %1354 = vmatmul.mubr.f32.gmra.mrb[0].mxu0 %v1282
  %v1355 = vpop.f32.mrb[0].mxu0
  %v1356 = vadd.f32 0.0, %v1355
  %v1357 = vpop.f32.mrb[0].mxu0
  %1358 = vdwg.mxu0
  %v1359 = vadd.f32 %v939, %v1351
  %v1360 = vadd.f32 %v944, %v1356
  %v1361 = vld [vmem:[%s4] sm:$0x1]
  %v1363 = vlaneseq
  %v1364 = vshrl.u32 %v1363, 7
  %v1365 = vsub.s32 0, %v1364
  %v1366 = vrot.slane %v1361, %v1365
  %v1368 = vadd.f32 %v1359, %v1366
  %v1369 = vadd.f32 %v1360, %v1366
  %v1370 = vld [vmem:[%s5] sm:$0xff]
  %v1371 = vld [vmem:[%s5 + $0x8] sm:$0xff]
  %v1372 = vld [vmem:[%s5 + $0x10] sm:$0xff]
  %v1373 = vld [vmem:[%s6] sm:$0x1]
  %v1375 = vlaneseq
  %v1376 = vshrl.u32 %v1375, 7
  %v1377 = vsub.s32 0, %v1376
  %v1378 = vrot.slane %v1373, %v1377
  %v1381 = vsel %vm38, %v1368, 0
  %v1384 = vsel %vm38, %v1369, 0
  %1386 = vmatprep.subr.mxu0 0.0
  %1387 = vmatpush1.msra.mxu0 %v1370
  %1388 = vmatprep.subr.mxu0 0.0
  %1389 = vmatpush1.msra.mxu0 %v1371
  %1390 = vmatprep.subr.mxu0 0.0
  %1391 = vmatpush1.msra.mxu0 %v1372
  %1392 = vmatprep.subr.mxu0 0.0
  %1393 = vmatpush1.msra.mxu0 0.0
  %1394 = vmatprep.subr.mxu0 0.0
  %1395 = vmatpush1.msra.mxu0 0.0
  %1396 = vmatprep.subr.mxu0 0.0
  %1397 = vmatpush1.msra.mxu0 0.0
  %1398 = vmatprep.subr.mxu0 0.0
  %1399 = vmatpush1.msra.mxu0 0.0
  %1400 = vmatprep.subr.mxu0 0.0
  %1401 = vmatpush1.msra.mxu0 0.0
  %1402 = vmatprep.subr.mxu0 0.0
  %1403 = vmatpush1.msra.mxu0 0.0
  %1404 = vmatprep.subr.mxu0 0.0
  %1405 = vmatpush1.msra.mxu0 0.0
  %1406 = vmatprep.subr.mxu0 0.0
  %1407 = vmatpush1.msra.mxu0 0.0
  %1408 = vmatprep.subr.mxu0 0.0
  %1409 = vmatpush1.msra.mxu0 0.0
  %1410 = vmatprep.subr.mxu0 0.0
  %1411 = vmatpush1.msra.mxu0 0.0
  %1412 = vmatprep.subr.mxu0 0.0
  %1413 = vmatpush1.msra.mxu0 0.0
  %1414 = vmatprep.subr.mxu0 0.0
  %1415 = vmatpush1.msra.mxu0 0.0
  %1416 = vmatprep.subr.mxu0 0.0
  %1417 = vmatpush1.msra.mxu0 0.0
  %1418 = vmatprep.subr.mxu0 0.0
  %1419 = vmatpush1.msra.mxu0 0.0
  %1420 = vmatprep.subr.mxu0 0.0
  %1421 = vmatpush1.msra.mxu0 0.0
  %1422 = vmatprep.subr.mxu0 0.0
  %1423 = vmatpush1.msra.mxu0 0.0
  %1424 = vmatprep.subr.mxu0 0.0
  %1425 = vmatpush1.msra.mxu0 0.0
  %1426 = vmatprep.subr.mxu0 0.0
  %1427 = vmatpush1.msra.mxu0 0.0
  %1428 = vmatprep.subr.mxu0 0.0
  %1429 = vmatpush1.msra.mxu0 0.0
  %1430 = vmatprep.subr.mxu0 0.0
  %1431 = vmatpush1.msra.mxu0 0.0
  %1432 = vmatprep.subr.mxu0 0.0
  %1433 = vmatpush1.msra.mxu0 0.0
  %1434 = vmatprep.subr.mxu0 0.0
  %1435 = vmatpush1.msra.mxu0 0.0
  %1436 = vmatprep.subr.mxu0 0.0
  %1437 = vmatpush1.msra.mxu0 0.0
  %1438 = vmatprep.subr.mxu0 0.0
  %1439 = vmatpush1.msra.mxu0 0.0
  %1440 = vmatprep.subr.mxu0 0.0
  %1441 = vmatpush1.msra.mxu0 0.0
  %1442 = vmatprep.subr.mxu0 0.0
  %1443 = vmatpush1.msra.mxu0 0.0
  %1444 = vmatprep.subr.mxu0 0.0
  %1445 = vmatpush1.msra.mxu0 0.0
  %1446 = vmatprep.subr.mxu0 0.0
  %1447 = vmatpush1.msra.mxu0 0.0
  %1448 = vmatprep.subr.mxu0 0.0
  %1449 = vmatpush1.msra.mxu0 0.0
  %1450 = vmatprep.mubr.f32.mxu0 0.0
  %1451 = vmatmul.mubr.f32.gmra.mrb[0].mxu0 %v1381
  %v1452 = vpop.f32.mrb[0].mxu0
  %v1453 = vadd.f32 %v1378, %v1452
  %v1454 = vpop.f32.mrb[0].mxu0
  %1455 = vmatprep.mubr.f32.mxu0 0.0
  %1456 = vmatmul.mubr.f32.gmra.mrb[0].mxu0 %v1384
  %v1457 = vpop.f32.mrb[0].mxu0
  %v1458 = vadd.f32 %v1378, %v1457
  %v1459 = vpop.f32.mrb[0].mxu0
  %1460 = vdwg.mxu0
  %vm1461 = vcmask 154624
  %1462 = vst.msk [vmem:[%s7] sm:$0xff] %vm1461, %v1453
  %1463 = vst.msk [vmem:[%s7 + $0x8] sm:$0xff] %vm1461, %v1458
  // Predicated region
  $region30: #{forward.11} parent=0 // pred_check
    _
  $region31: #{forward.11} parent=0 // pred_check_branch
    %1465 = sbr.rel (0) target = $region33
  $region32: #{forward.11} parent=0 // pred_region
    _
  $region33: #{forward.11} parent=0 // pred_fallthru
    _
  // Predicated region
  $region34: #{forward.11} parent=0 // pred_check
    _
  $region35: #{forward.11} parent=0 // pred_check_branch
    %1467 = sbr.rel (0) target = $region37
  $region36: #{forward.11} parent=0 // pred_region
    _
  $region37: #{forward.11} parent=0 // pred_fallthru
    _

// kernel: custom-call.5
$region0: #{custom-call.5}
  %s0 = inlined_call_operand.vmem [shape: s32[7,2], index: 0, kind: output, shape index: {}]

</llo_original>
